<compile_context>
chip_gen: v7x
topology: tpu7x:2x2x1
jax: 0.10.0
libtpu: 0.0.40
codegen_flags: <defaults>
</compile_context>

<pallas_src>
import jax
import jax.numpy as jnp
from jax.experimental import pallas as pl
from jax.experimental.pallas import tpu as pltpu


# -----------------------------------------------------------------------------
# Kernel
# -----------------------------------------------------------------------------
def asmnet_kernel(
    # features from the (external) smnet / amnet encoders (already bf16)
    x3_sm_ref, x3_am_ref, x2_sm_ref, x2_am_ref,
    # mlp_three: 768 -> 1024 -> 512 -> 1 (first layer split into sm / am rows)
    m3_w1s_ref, m3_w1a_ref, m3_b1_ref, m3_w2_ref, m3_b2_ref, m3_w3_ref, m3_b3_ref,
    # mlp_two:   512 -> 1024 -> 512 -> 1 (first layer split into sm / am rows)
    m2_w1s_ref, m2_w1a_ref, m2_b1_ref, m2_w2_ref, m2_b2_ref, m2_w3_ref, m2_b3_ref,
    # outputs (lane-dense per-tile rows)
    pred3_ref, pred2_ref,
):
    f32 = jnp.float32
    bf16 = jnp.bfloat16

    # Attention(x) == x exactly: softmax over a size-1 axis is 1.0, so the
    # attention sub-network is mathematically the identity and is elided.
    x3_sm = x3_sm_ref[...]   # (TB, 384) bf16
    x3_am = x3_am_ref[...]   # (TB, 384) bf16
    x2_sm = x2_sm_ref[...]   # (TB, 256) bf16
    x2_am = x2_am_ref[...]   # (TB, 256) bf16

    def leaky_relu(v):
        return jnp.where(v >= 0, v, 0.01 * v)

    def mlp_tail(h1, w2_ref, b2_ref, w3_ref, b3_ref):
        # h1: f32 pre-activation of the first layer.
        h1 = leaky_relu(h1)
        # Dropout(0.25) -> identity at inference.
        h2 = leaky_relu(
            jnp.dot(h1.astype(bf16), w2_ref[...], preferred_element_type=f32)
            + b2_ref[...])
        # Dropout(0.25) -> identity at inference.
        # 512 -> 1 projection as a lane reduction (w3 stored as (1, 512)),
        # emitted as a lane-dense (1, 1, TB) row (small sublane->lane relayout).
        r = jnp.sum(h2 * w3_ref[...], axis=-1)           # (TB,)
        return r.reshape(1, 1, -1) + b3_ref[...].reshape(1, 1, 1)

    # mlp_three first layer: split matmuls replace concat([pep,poc,pro]) @ W1.
    h3 = (jnp.dot(x3_sm, m3_w1s_ref[...], preferred_element_type=f32)
          + jnp.dot(x3_am, m3_w1a_ref[...], preferred_element_type=f32)
          + m3_b1_ref[...])
    pred3_ref[...] = mlp_tail(h3, m3_w2_ref, m3_b2_ref, m3_w3_ref, m3_b3_ref)

    # mlp_two first layer: split matmuls replace concat([pep,pro]) @ W1.
    h2_pre = (jnp.dot(x2_sm, m2_w1s_ref[...], preferred_element_type=f32)
              + jnp.dot(x2_am, m2_w1a_ref[...], preferred_element_type=f32)
              + m2_b1_ref[...])
    pred2_ref[...] = mlp_tail(h2_pre, m2_w2_ref, m2_b2_ref, m2_w3_ref, m2_b3_ref)


# -----------------------------------------------------------------------------
# Wrapper
# -----------------------------------------------------------------------------
def _round_up(x, m):
    return ((x + m - 1) // m) * m


def asmnet_forward(x3_sm, x3_am, x2_sm, x2_am, kernel_params):
    B = x3_sm.shape[0]
    bf16 = jnp.bfloat16

    # Tile the batch.  bf16 activations -> tiles are multiples of 16 rows.
    # Always emit >= 2 grid steps so the "parallel" batch axis can be sharded
    # across v7x's two TensorCores even for small batches.
    TB_MAX = 512
    if B <= TB_MAX:
        tb = max(16, _round_up((B + 1) // 2, 16))
        num_tiles = 2
    else:
        tb = TB_MAX
        num_tiles = (B + tb - 1) // tb
    pb = num_tiles * tb

    def prep(x):
        x = x.astype(bf16)                    # halve activation HBM/VMEM traffic
        if pb != B:
            x = jnp.pad(x, ((0, pb - B), (0, 0)))
        return x

    acts = tuple(prep(x) for x in (x3_sm, x3_am, x2_sm, x2_am))
    grid = (num_tiles,)

    def act_spec(feat):
        return pl.BlockSpec((tb, feat), lambda i: (i, 0))

    def resident_spec(arr):
        # Full-array block with a constant index_map -> fetched once, reused
        # (revisited) across all batch tiles.
        return pl.BlockSpec(arr.shape, lambda i: (0,) * arr.ndim)

    in_specs = [act_spec(384), act_spec(384), act_spec(256), act_spec(256)]
    in_specs += [resident_spec(p) for p in kernel_params]

    # Lane-dense output slabs: one (1, 1, tb) row per grid step.
    out_spec = pl.BlockSpec((1, 1, tb), lambda i: (i, 0, 0))
    out_shape = jax.ShapeDtypeStruct((num_tiles, 1, tb), jnp.float32)

    pred3, pred2 = pl.pallas_call(
        asmnet_kernel,
        out_shape=(out_shape, out_shape),
        grid=grid,
        in_specs=in_specs,
        out_specs=(out_spec, out_spec),
        compiler_params=pltpu.CompilerParams(
            dimension_semantics=("parallel",),
            vmem_limit_bytes=48 << 20),
    )(*acts, *kernel_params)

    pred3 = pred3.reshape(pb, 1)[:B]
    pred2 = pred2.reshape(pb, 1)[:B]
    return pred3, pred2


# -----------------------------------------------------------------------------
# Parameters
# -----------------------------------------------------------------------------
def init_params(key):
    """Deterministic synthetic parameters matching the PyTorch module shapes.

    Linear weights are stored transposed as (in_dim, out_dim); biases as
    (1, out_dim).  Attention weights mirror the module but are mathematically
    inert (softmax over a size-1 dim is 1.0) and are dropped by
    prepare_params().
    """
    keys = iter(jax.random.split(key, 64))

    def w(shape, fan_in):
        return (jax.random.normal(next(keys), shape, jnp.float32)
                / jnp.sqrt(jnp.float32(fan_in)))

    # 5 Attention blocks (unused by the kernel; attention == identity).
    att_w1 = w((5, 256, 128), 256)
    att_b1 = w((5, 1, 128), 256)
    att_w2 = w((5, 128, 1), 128)
    att_b2 = w((5, 1, 1), 128)

    # mlp_three: [768, 1024, 512, 1]
    m3_w1, m3_b1 = w((768, 1024), 768),  w((1, 1024), 768)
    m3_w2, m3_b2 = w((1024, 512), 1024), w((1, 512), 1024)
    m3_w3, m3_b3 = w((512, 1), 512),     w((1, 1), 512)

    # mlp_two: [512, 1024, 512, 1]
    m2_w1, m2_b1 = w((512, 1024), 512),  w((1, 1024), 512)
    m2_w2, m2_b2 = w((1024, 512), 1024), w((1, 512), 1024)
    m2_w3, m2_b3 = w((512, 1), 512),     w((1, 1), 512)

    return (att_w1, att_b1, att_w2, att_b2,
            m3_w1, m3_b1, m3_w2, m3_b2, m3_w3, m3_b3,
            m2_w1, m2_b1, m2_w2, m2_b2, m2_w3, m2_b3)


def prepare_params(params):
    """Host-side transform: PyTorch-layout params -> kernel-layout params.

    * Drops the (provably identity) attention parameters.
    * Splits the first MLP-layer weights into smnet-row / amnet-row halves so
      the kernel avoids activation concatenation.
    * Casts matmul weights to bf16; keeps biases and the (1, 512) final-layer
      row vectors in f32.
    """
    (att_w1, att_b1, att_w2, att_b2,
     m3_w1, m3_b1, m3_w2, m3_b2, m3_w3, m3_b3,
     m2_w1, m2_b1, m2_w2, m2_b2, m2_w3, m2_b3) = params
    del att_w1, att_b1, att_w2, att_b2  # attention == identity

    bf16 = jnp.bfloat16

    def split_sm_am(w1, n_pairs):
        # combined activation columns are [sm_0, am_0, sm_1, am_1, ...] in
        # 128-wide chunks; gather the matching weight rows per source.
        rows = jnp.split(w1, 2 * n_pairs, axis=0)
        w_sm = jnp.concatenate(rows[0::2], axis=0)
        w_am = jnp.concatenate(rows[1::2], axis=0)
        return w_sm.astype(bf16), w_am.astype(bf16)

    m3_w1s, m3_w1a = split_sm_am(m3_w1, 3)   # (384, 1024) each
    m2_w1s, m2_w1a = split_sm_am(m2_w1, 2)   # (256, 1024) each

    return (m3_w1s, m3_w1a, m3_b1, m3_w2.astype(bf16), m3_b2,
            m3_w3.reshape(1, -1), m3_b3,
            m2_w1s, m2_w1a, m2_b1, m2_w2.astype(bf16), m2_b2,
            m2_w3.reshape(1, -1), m2_b3)


# -----------------------------------------------------------------------------
# Pure-JAX reference (full module math, incl. the identity attention blocks)
# -----------------------------------------------------------------------------
def asmnet_reference(x3_sm, x3_am, x2_sm, x2_am, params):
    (att_w1, att_b1, att_w2, att_b2,
     m3_w1, m3_b1, m3_w2, m3_b2, m3_w3, m3_b3,
     m2_w1, m2_b1, m2_w2, m2_b2, m2_w3, m2_b3) = params

    def attention(i, x):
        h = jnp.maximum(x @ att_w1[i] + att_b1[i], 0.0)
        s = h @ att_w2[i] + att_b2[i]          # (B, 1)
        w = jax.nn.softmax(s, axis=1)          # == 1.0
        return w * x

    def leaky(v):
        return jnp.where(v >= 0, v, 0.01 * v)

    def mm(a, b):  # same mixed precision as the kernel
        return jnp.dot(a.astype(jnp.bfloat16), b.astype(jnp.bfloat16),
                       preferred_element_type=jnp.float32)

    def mlp(x, w1, b1, w2, b2, w3, b3):
        h = leaky(mm(x, w1) + b1)
        h = leaky(mm(h, w2) + b2)
        return jnp.sum(h * w3.reshape(1, -1), axis=-1, keepdims=True) + b3

    pep3 = attention(0, jnp.concatenate([x3_sm[:, 0:128], x3_am[:, 0:128]], 1))
    poc3 = attention(1, jnp.concatenate([x3_sm[:, 128:256], x3_am[:, 128:256]], 1))
    pro3 = attention(2, jnp.concatenate([x3_sm[:, 256:384], x3_am[:, 256:384]], 1))
    pep2 = attention(3, jnp.concatenate([x2_sm[:, 0:128], x2_am[:, 0:128]], 1))
    pro2 = attention(4, jnp.concatenate([x2_sm[:, 128:256], x2_am[:, 128:256]], 1))

    c3 = jnp.concatenate([pep3, poc3, pro3], axis=1)   # (B, 768)
    c2 = jnp.concatenate([pep2, pro2], axis=1)         # (B, 512)
    return (mlp(c3, m3_w1, m3_b1, m3_w2, m3_b2, m3_w3, m3_b3),
            mlp(c2, m2_w1, m2_b1, m2_w2, m2_b2, m2_w3, m2_b3))


# -----------------------------------------------------------------------------
if __name__ == "__main__":
    B = 4
    key = jax.random.PRNGKey(0)
    k_p, k1, k2, k3, k4 = jax.random.split(key, 5)

    params = init_params(k_p)
    kernel_params = prepare_params(params)

    # Synthetic encoder outputs (amnet / smnet are external submodules).
    x_fea_three_smnet = jax.random.normal(k1, (B, 384), jnp.float32)
    x_fea_three_amnet = jax.random.normal(k2, (B, 384), jnp.float32)
    x_fea_two_smnet = jax.random.normal(k3, (B, 256), jnp.float32)
    x_fea_two_amnet = jax.random.normal(k4, (B, 256), jnp.float32)

    pred_three, pred_two = asmnet_forward(
        x_fea_three_smnet, x_fea_three_amnet,
        x_fea_two_smnet, x_fea_two_amnet, kernel_params)
    jax.block_until_ready((pred_three, pred_two))

    ref_three, ref_two = asmnet_reference(
        x_fea_three_smnet, x_fea_three_amnet,
        x_fea_two_smnet, x_fea_two_amnet, params)

    assert pred_three.shape == (B, 1) and pred_two.shape == (B, 1)
    assert jnp.all(jnp.isfinite(pred_three)) and jnp.all(jnp.isfinite(pred_two))
    assert jnp.allclose(pred_three, ref_three, rtol=1e-2, atol=1e-2)
    assert jnp.allclose(pred_two, ref_two, rtol=1e-2, atol=1e-2)
    print("KERNEL_OK")
</pallas_src>

<mosaic_0001>
module attributes {stable_mosaic.version = 11 : i64} {
  func.func @asmnet_kernel(%arg0: i32, %arg1: memref<16x384xbf16, #tpu.memory_space<vmem>>, %arg2: memref<16x384xbf16, #tpu.memory_space<vmem>>, %arg3: memref<16x256xbf16, #tpu.memory_space<vmem>>, %arg4: memref<16x256xbf16, #tpu.memory_space<vmem>>, %arg5: memref<384x1024xbf16, #tpu.memory_space<vmem>>, %arg6: memref<384x1024xbf16, #tpu.memory_space<vmem>>, %arg7: memref<1x1024xf32, #tpu.memory_space<vmem>>, %arg8: memref<1024x512xbf16, #tpu.memory_space<vmem>>, %arg9: memref<1x512xf32, #tpu.memory_space<vmem>>, %arg10: memref<1x512xf32, #tpu.memory_space<vmem>>, %arg11: memref<1x1xf32, #tpu.memory_space<vmem>>, %arg12: memref<256x1024xbf16, #tpu.memory_space<vmem>>, %arg13: memref<256x1024xbf16, #tpu.memory_space<vmem>>, %arg14: memref<1x1024xf32, #tpu.memory_space<vmem>>, %arg15: memref<1024x512xbf16, #tpu.memory_space<vmem>>, %arg16: memref<1x512xf32, #tpu.memory_space<vmem>>, %arg17: memref<1x512xf32, #tpu.memory_space<vmem>>, %arg18: memref<1x1xf32, #tpu.memory_space<vmem>>, %arg19: memref<1x1x16xf32, #tpu.memory_space<vmem>>, %arg20: memref<1x1x16xf32, #tpu.memory_space<vmem>>) attributes {dimension_semantics = [#tpu.dimension_semantics<parallel>], iteration_bounds = array<i64: 2>, scalar_prefetch = 0 : i64, scratch_operands = 0 : i64, tpu.core_type = #tpu.core_type<tc>, window_params = [{transform_indices = @transform_0, window_bounds = array<i64: 16, 384>}, {transform_indices = @transform_1, window_bounds = array<i64: 16, 384>}, {transform_indices = @transform_2, window_bounds = array<i64: 16, 256>}, {transform_indices = @transform_3, window_bounds = array<i64: 16, 256>}, {pipeline_mode = #tpu.pipeline_mode<synchronous>, transform_indices = @transform_4, window_bounds = array<i64: 384, 1024>}, {pipeline_mode = #tpu.pipeline_mode<synchronous>, transform_indices = @transform_5, window_bounds = array<i64: 384, 1024>}, {pipeline_mode = #tpu.pipeline_mode<synchronous>, transform_indices = @transform_6, window_bounds = array<i64: 1, 1024>}, {pipeline_mode = #tpu.pipeline_mode<synchronous>, transform_indices = @transform_7, window_bounds = array<i64: 1024, 512>}, {pipeline_mode = #tpu.pipeline_mode<synchronous>, transform_indices = @transform_8, window_bounds = array<i64: 1, 512>}, {pipeline_mode = #tpu.pipeline_mode<synchronous>, transform_indices = @transform_9, window_bounds = array<i64: 1, 512>}, {pipeline_mode = #tpu.pipeline_mode<synchronous>, transform_indices = @transform_10, window_bounds = array<i64: 1, 1>}, {pipeline_mode = #tpu.pipeline_mode<synchronous>, transform_indices = @transform_11, window_bounds = array<i64: 256, 1024>}, {pipeline_mode = #tpu.pipeline_mode<synchronous>, transform_indices = @transform_12, window_bounds = array<i64: 256, 1024>}, {pipeline_mode = #tpu.pipeline_mode<synchronous>, transform_indices = @transform_13, window_bounds = array<i64: 1, 1024>}, {pipeline_mode = #tpu.pipeline_mode<synchronous>, transform_indices = @transform_14, window_bounds = array<i64: 1024, 512>}, {pipeline_mode = #tpu.pipeline_mode<synchronous>, transform_indices = @transform_15, window_bounds = array<i64: 1, 512>}, {pipeline_mode = #tpu.pipeline_mode<synchronous>, transform_indices = @transform_16, window_bounds = array<i64: 1, 512>}, {pipeline_mode = #tpu.pipeline_mode<synchronous>, transform_indices = @transform_17, window_bounds = array<i64: 1, 1>}, {transform_indices = @transform_18, window_bounds = array<i64: 1, 1, 16>}, {transform_indices = @transform_19, window_bounds = array<i64: 1, 1, 16>}]} {
    %c0 = arith.constant 0 : index
    %c0_0 = arith.constant 0 : index
    %0 = vector.load %arg1[%c0, %c0_0] : memref<16x384xbf16, #tpu.memory_space<vmem>>, vector<16x384xbf16>
    %c0_1 = arith.constant 0 : index
    %c0_2 = arith.constant 0 : index
    %1 = vector.load %arg2[%c0_1, %c0_2] : memref<16x384xbf16, #tpu.memory_space<vmem>>, vector<16x384xbf16>
    %c0_3 = arith.constant 0 : index
    %c0_4 = arith.constant 0 : index
    %2 = vector.load %arg3[%c0_3, %c0_4] : memref<16x256xbf16, #tpu.memory_space<vmem>>, vector<16x256xbf16>
    %c0_5 = arith.constant 0 : index
    %c0_6 = arith.constant 0 : index
    %3 = vector.load %arg4[%c0_5, %c0_6] : memref<16x256xbf16, #tpu.memory_space<vmem>>, vector<16x256xbf16>
    %c0_7 = arith.constant 0 : index
    %c0_8 = arith.constant 0 : index
    %4 = vector.load %arg5[%c0_7, %c0_8] : memref<384x1024xbf16, #tpu.memory_space<vmem>>, vector<384x1024xbf16>
    %cst = arith.constant dense<0.000000e+00> : vector<16x1024xf32>
    %5 = tpu.matmul %0, %4, %cst {dimension_numbers = #tpu.dot_dimension_numbers<[1], [0], [0], [1], [0, 0, 1, 1], [], []>} : vector<16x384xbf16>, vector<384x1024xbf16>, vector<16x1024xf32> -> vector<16x1024xf32>
    %c0_9 = arith.constant 0 : index
    %c0_10 = arith.constant 0 : index
    %6 = vector.load %arg6[%c0_9, %c0_10] : memref<384x1024xbf16, #tpu.memory_space<vmem>>, vector<384x1024xbf16>
    %cst_11 = arith.constant dense<0.000000e+00> : vector<16x1024xf32>
    %7 = tpu.matmul %1, %6, %cst_11 {dimension_numbers = #tpu.dot_dimension_numbers<[1], [0], [0], [1], [0, 0, 1, 1], [], []>} : vector<16x384xbf16>, vector<384x1024xbf16>, vector<16x1024xf32> -> vector<16x1024xf32>
    %8 = arith.addf %5, %7 : vector<16x1024xf32>
    %c0_12 = arith.constant 0 : index
    %c0_13 = arith.constant 0 : index
    %9 = vector.load %arg7[%c0_12, %c0_13] : memref<1x1024xf32, #tpu.memory_space<vmem>>, vector<1x1024xf32>
    %10 = vector.broadcast %9 : vector<1x1024xf32> to vector<16x1024xf32>
    %11 = arith.addf %8, %10 : vector<16x1024xf32>
    %cst_14 = arith.constant 0.000000e+00 : f32
    %12 = vector.broadcast %cst_14 : f32 to vector<16x1024xf32>
    %13 = arith.cmpf oge, %11, %12 : vector<16x1024xf32>
    %cst_15 = arith.constant 0.00999999977 : f32
    %14 = vector.broadcast %cst_15 : f32 to vector<16x1024xf32>
    %15 = arith.mulf %14, %11 : vector<16x1024xf32>
    %16 = arith.select %13, %11, %15 : vector<16x1024xi1>, vector<16x1024xf32>
    %17 = arith.truncf %16 : vector<16x1024xf32> to vector<16x1024xbf16>
    %c0_16 = arith.constant 0 : index
    %c0_17 = arith.constant 0 : index
    %18 = vector.load %arg8[%c0_16, %c0_17] : memref<1024x512xbf16, #tpu.memory_space<vmem>>, vector<1024x512xbf16>
    %cst_18 = arith.constant dense<0.000000e+00> : vector<16x512xf32>
    %19 = tpu.matmul %17, %18, %cst_18 {dimension_numbers = #tpu.dot_dimension_numbers<[1], [0], [0], [1], [0, 0, 1, 1], [], []>} : vector<16x1024xbf16>, vector<1024x512xbf16>, vector<16x512xf32> -> vector<16x512xf32>
    %c0_19 = arith.constant 0 : index
    %c0_20 = arith.constant 0 : index
    %20 = vector.load %arg9[%c0_19, %c0_20] : memref<1x512xf32, #tpu.memory_space<vmem>>, vector<1x512xf32>
    %21 = vector.broadcast %20 : vector<1x512xf32> to vector<16x512xf32>
    %22 = arith.addf %19, %21 : vector<16x512xf32>
    %cst_21 = arith.constant 0.000000e+00 : f32
    %23 = vector.broadcast %cst_21 : f32 to vector<16x512xf32>
    %24 = arith.cmpf oge, %22, %23 : vector<16x512xf32>
    %cst_22 = arith.constant 0.00999999977 : f32
    %25 = vector.broadcast %cst_22 : f32 to vector<16x512xf32>
    %26 = arith.mulf %25, %22 : vector<16x512xf32>
    %27 = arith.select %24, %22, %26 : vector<16x512xi1>, vector<16x512xf32>
    %c0_23 = arith.constant 0 : index
    %c0_24 = arith.constant 0 : index
    %28 = vector.load %arg10[%c0_23, %c0_24] : memref<1x512xf32, #tpu.memory_space<vmem>>, vector<1x512xf32>
    %29 = vector.broadcast %28 : vector<1x512xf32> to vector<16x512xf32>
    %30 = arith.mulf %27, %29 : vector<16x512xf32>
    %cst_25 = arith.constant dense<0.000000e+00> : vector<16xf32>
    %31 = vector.multi_reduction <add>, %30, %cst_25 [1] : vector<16x512xf32> to vector<16xf32>
    %32 = vector.shape_cast %31 : vector<16xf32> to vector<1x1x16xf32>
    %c0_26 = arith.constant 0 : index
    %c0_27 = arith.constant 0 : index
    %33 = vector.load %arg11[%c0_26, %c0_27] : memref<1x1xf32, #tpu.memory_space<vmem>>, vector<1x1xf32>
    %34 = vector.shape_cast %33 : vector<1x1xf32> to vector<1x1x1xf32>
    %35 = vector.broadcast %34 : vector<1x1x1xf32> to vector<1x1x16xf32>
    %36 = arith.addf %32, %35 : vector<1x1x16xf32>
    %c0_28 = arith.constant 0 : index
    %c0_29 = arith.constant 0 : index
    %c0_30 = arith.constant 0 : index
    %37 = vector.load %arg19[%c0_28, %c0_29, %c0_30] : memref<1x1x16xf32, #tpu.memory_space<vmem>>, vector<1x1x16xf32>
    tpu.vector_store %arg19[%c0_28, %c0_29, %c0_30], %36 {strides = array<i32>} : memref<1x1x16xf32, #tpu.memory_space<vmem>>, vector<1x1x16xf32>,
    %c0_31 = arith.constant 0 : index
    %c0_32 = arith.constant 0 : index
    %38 = vector.load %arg12[%c0_31, %c0_32] : memref<256x1024xbf16, #tpu.memory_space<vmem>>, vector<256x1024xbf16>
    %cst_33 = arith.constant dense<0.000000e+00> : vector<16x1024xf32>
    %39 = tpu.matmul %2, %38, %cst_33 {dimension_numbers = #tpu.dot_dimension_numbers<[1], [0], [0], [1], [0, 0, 1, 1], [], []>} : vector<16x256xbf16>, vector<256x1024xbf16>, vector<16x1024xf32> -> vector<16x1024xf32>
    %c0_34 = arith.constant 0 : index
    %c0_35 = arith.constant 0 : index
    %40 = vector.load %arg13[%c0_34, %c0_35] : memref<256x1024xbf16, #tpu.memory_space<vmem>>, vector<256x1024xbf16>
    %cst_36 = arith.constant dense<0.000000e+00> : vector<16x1024xf32>
    %41 = tpu.matmul %3, %40, %cst_36 {dimension_numbers = #tpu.dot_dimension_numbers<[1], [0], [0], [1], [0, 0, 1, 1], [], []>} : vector<16x256xbf16>, vector<256x1024xbf16>, vector<16x1024xf32> -> vector<16x1024xf32>
    %42 = arith.addf %39, %41 : vector<16x1024xf32>
    %c0_37 = arith.constant 0 : index
    %c0_38 = arith.constant 0 : index
    %43 = vector.load %arg14[%c0_37, %c0_38] : memref<1x1024xf32, #tpu.memory_space<vmem>>, vector<1x1024xf32>
    %44 = vector.broadcast %43 : vector<1x1024xf32> to vector<16x1024xf32>
    %45 = arith.addf %42, %44 : vector<16x1024xf32>
    %cst_39 = arith.constant 0.000000e+00 : f32
    %46 = vector.broadcast %cst_39 : f32 to vector<16x1024xf32>
    %47 = arith.cmpf oge, %45, %46 : vector<16x1024xf32>
    %cst_40 = arith.constant 0.00999999977 : f32
    %48 = vector.broadcast %cst_40 : f32 to vector<16x1024xf32>
    %49 = arith.mulf %48, %45 : vector<16x1024xf32>
    %50 = arith.select %47, %45, %49 : vector<16x1024xi1>, vector<16x1024xf32>
    %51 = arith.truncf %50 : vector<16x1024xf32> to vector<16x1024xbf16>
    %c0_41 = arith.constant 0 : index
    %c0_42 = arith.constant 0 : index
    %52 = vector.load %arg15[%c0_41, %c0_42] : memref<1024x512xbf16, #tpu.memory_space<vmem>>, vector<1024x512xbf16>
    %cst_43 = arith.constant dense<0.000000e+00> : vector<16x512xf32>
    %53 = tpu.matmul %51, %52, %cst_43 {dimension_numbers = #tpu.dot_dimension_numbers<[1], [0], [0], [1], [0, 0, 1, 1], [], []>} : vector<16x1024xbf16>, vector<1024x512xbf16>, vector<16x512xf32> -> vector<16x512xf32>
    %c0_44 = arith.constant 0 : index
    %c0_45 = arith.constant 0 : index
    %54 = vector.load %arg16[%c0_44, %c0_45] : memref<1x512xf32, #tpu.memory_space<vmem>>, vector<1x512xf32>
    %55 = vector.broadcast %54 : vector<1x512xf32> to vector<16x512xf32>
    %56 = arith.addf %53, %55 : vector<16x512xf32>
    %cst_46 = arith.constant 0.000000e+00 : f32
    %57 = vector.broadcast %cst_46 : f32 to vector<16x512xf32>
    %58 = arith.cmpf oge, %56, %57 : vector<16x512xf32>
    %cst_47 = arith.constant 0.00999999977 : f32
    %59 = vector.broadcast %cst_47 : f32 to vector<16x512xf32>
    %60 = arith.mulf %59, %56 : vector<16x512xf32>
    %61 = arith.select %58, %56, %60 : vector<16x512xi1>, vector<16x512xf32>
    %c0_48 = arith.constant 0 : index
    %c0_49 = arith.constant 0 : index
    %62 = vector.load %arg17[%c0_48, %c0_49] : memref<1x512xf32, #tpu.memory_space<vmem>>, vector<1x512xf32>
    %63 = vector.broadcast %62 : vector<1x512xf32> to vector<16x512xf32>
    %64 = arith.mulf %61, %63 : vector<16x512xf32>
    %cst_50 = arith.constant dense<0.000000e+00> : vector<16xf32>
    %65 = vector.multi_reduction <add>, %64, %cst_50 [1] : vector<16x512xf32> to vector<16xf32>
    %66 = vector.shape_cast %65 : vector<16xf32> to vector<1x1x16xf32>
    %c0_51 = arith.constant 0 : index
    %c0_52 = arith.constant 0 : index
    %67 = vector.load %arg18[%c0_51, %c0_52] : memref<1x1xf32, #tpu.memory_space<vmem>>, vector<1x1xf32>
    %68 = vector.shape_cast %67 : vector<1x1xf32> to vector<1x1x1xf32>
    %69 = vector.broadcast %68 : vector<1x1x1xf32> to vector<1x1x16xf32>
    %70 = arith.addf %66, %69 : vector<1x1x16xf32>
    %c0_53 = arith.constant 0 : index
    %c0_54 = arith.constant 0 : index
    %c0_55 = arith.constant 0 : index
    %71 = vector.load %arg20[%c0_53, %c0_54, %c0_55] : memref<1x1x16xf32, #tpu.memory_space<vmem>>, vector<1x1x16xf32>
    tpu.vector_store %arg20[%c0_53, %c0_54, %c0_55], %70 {strides = array<i32>} : memref<1x1x16xf32, #tpu.memory_space<vmem>>, vector<1x1x16xf32>,
    return
  }
  func.func @transform_0(%arg0: i32) -> (i32, i32) {
    %c0_i32 = arith.constant 0 : i32
    %c0_i32_0 = arith.constant 0 : i32
    return %arg0, %c0_i32 : i32, i32
  }
  func.func @transform_1(%arg0: i32) -> (i32, i32) {
    %c0_i32 = arith.constant 0 : i32
    %c0_i32_0 = arith.constant 0 : i32
    return %arg0, %c0_i32 : i32, i32
  }
  func.func @transform_2(%arg0: i32) -> (i32, i32) {
    %c0_i32 = arith.constant 0 : i32
    %c0_i32_0 = arith.constant 0 : i32
    return %arg0, %c0_i32 : i32, i32
  }
  func.func @transform_3(%arg0: i32) -> (i32, i32) {
    %c0_i32 = arith.constant 0 : i32
    %c0_i32_0 = arith.constant 0 : i32
    return %arg0, %c0_i32 : i32, i32
  }
  func.func @transform_4(%arg0: i32) -> (i32, i32) {
    %c0_i32 = arith.constant 0 : i32
    %c0_i32_0 = arith.constant 0 : i32
    %c0_i32_1 = arith.constant 0 : i32
    return %c0_i32, %c0_i32_0 : i32, i32
  }
  func.func @transform_5(%arg0: i32) -> (i32, i32) {
    %c0_i32 = arith.constant 0 : i32
    %c0_i32_0 = arith.constant 0 : i32
    %c0_i32_1 = arith.constant 0 : i32
    return %c0_i32, %c0_i32_0 : i32, i32
  }
  func.func @transform_6(%arg0: i32) -> (i32, i32) {
    %c0_i32 = arith.constant 0 : i32
    %c0_i32_0 = arith.constant 0 : i32
    %c0_i32_1 = arith.constant 0 : i32
    return %c0_i32, %c0_i32_0 : i32, i32
  }
  func.func @transform_7(%arg0: i32) -> (i32, i32) {
    %c0_i32 = arith.constant 0 : i32
    %c0_i32_0 = arith.constant 0 : i32
    %c0_i32_1 = arith.constant 0 : i32
    return %c0_i32, %c0_i32_0 : i32, i32
  }
  func.func @transform_8(%arg0: i32) -> (i32, i32) {
    %c0_i32 = arith.constant 0 : i32
    %c0_i32_0 = arith.constant 0 : i32
    %c0_i32_1 = arith.constant 0 : i32
    return %c0_i32, %c0_i32_0 : i32, i32
  }
  func.func @transform_9(%arg0: i32) -> (i32, i32) {
    %c0_i32 = arith.constant 0 : i32
    %c0_i32_0 = arith.constant 0 : i32
    %c0_i32_1 = arith.constant 0 : i32
    return %c0_i32, %c0_i32_0 : i32, i32
  }
  func.func @transform_10(%arg0: i32) -> (i32, i32) {
    %c0_i32 = arith.constant 0 : i32
    %c0_i32_0 = arith.constant 0 : i32
    %c0_i32_1 = arith.constant 0 : i32
    return %c0_i32, %c0_i32_0 : i32, i32
  }
  func.func @transform_11(%arg0: i32) -> (i32, i32) {
    %c0_i32 = arith.constant 0 : i32
    %c0_i32_0 = arith.constant 0 : i32
    %c0_i32_1 = arith.constant 0 : i32
    return %c0_i32, %c0_i32_0 : i32, i32
  }
  func.func @transform_12(%arg0: i32) -> (i32, i32) {
    %c0_i32 = arith.constant 0 : i32
    %c0_i32_0 = arith.constant 0 : i32
    %c0_i32_1 = arith.constant 0 : i32
    return %c0_i32, %c0_i32_0 : i32, i32
  }
  func.func @transform_13(%arg0: i32) -> (i32, i32) {
    %c0_i32 = arith.constant 0 : i32
    %c0_i32_0 = arith.constant 0 : i32
    %c0_i32_1 = arith.constant 0 : i32
    return %c0_i32, %c0_i32_0 : i32, i32
  }
  func.func @transform_14(%arg0: i32) -> (i32, i32) {
    %c0_i32 = arith.constant 0 : i32
    %c0_i32_0 = arith.constant 0 : i32
    %c0_i32_1 = arith.constant 0 : i32
    return %c0_i32, %c0_i32_0 : i32, i32
  }
  func.func @transform_15(%arg0: i32) -> (i32, i32) {
    %c0_i32 = arith.constant 0 : i32
    %c0_i32_0 = arith.constant 0 : i32
    %c0_i32_1 = arith.constant 0 : i32
    return %c0_i32, %c0_i32_0 : i32, i32
  }
  func.func @transform_16(%arg0: i32) -> (i32, i32) {
    %c0_i32 = arith.constant 0 : i32
    %c0_i32_0 = arith.constant 0 : i32
    %c0_i32_1 = arith.constant 0 : i32
    return %c0_i32, %c0_i32_0 : i32, i32
  }
  func.func @transform_17(%arg0: i32) -> (i32, i32) {
    %c0_i32 = arith.constant 0 : i32
    %c0_i32_0 = arith.constant 0 : i32
    %c0_i32_1 = arith.constant 0 : i32
    return %c0_i32, %c0_i32_0 : i32, i32
  }
  func.func @transform_18(%arg0: i32) -> (i32, i32, i32) {
    %c0_i32 = arith.constant 0 : i32
    %c0_i32_0 = arith.constant 0 : i32
    %c0_i32_1 = arith.constant 0 : i32
    return %arg0, %c0_i32, %c0_i32_0 : i32, i32, i32
  }
  func.func @transform_19(%arg0: i32) -> (i32, i32, i32) {
    %c0_i32 = arith.constant 0 : i32
    %c0_i32_0 = arith.constant 0 : i32
    %c0_i32_1 = arith.constant 0 : i32
    return %arg0, %c0_i32, %c0_i32_0 : i32, i32, i32
  }
}

</mosaic_0001>

<llo_original>
// kernel: tpu_custom_call.1
$region0: #{tpu_custom_call.1}
  #allocation0 [shape = 'u32[]', space=smem, size = 0x4, offset = 0x4, fixed_abs, tag = 'smem constant byte address 0x4 - core index']
  #allocation1 [shape = 'u32[144,128]{1,0:T(1,128)}', space=vmem, size = 0x12000, scoped, tag = 'internal scratch']
  #allocation2 [shape = 'f32[1,1]{1,0:T(1,128)S(1)}', space=vmem, size = 0x200, scoped, tag = 'scoped memory for tpu_custom_call.1']
  #allocation3 [shape = 'f32[1,1]{1,0:T(1,128)S(1)}', space=vmem, size = 0x200, scoped, tag = 'scoped memory for tpu_custom_call.1']
  %s0 = inlined_call_operand.hbm [shape: bf16[32,384], index: 0, kind: input, shape index: {}]
  %s1 = inlined_call_operand.hbm [shape: bf16[32,384], index: 1, kind: input, shape index: {}]
  %s2 = inlined_call_operand.hbm [shape: bf16[32,256], index: 2, kind: input, shape index: {}]
  %s3 = inlined_call_operand.hbm [shape: bf16[32,256], index: 3, kind: input, shape index: {}]
  %s4 = inlined_call_operand.hbm [shape: bf16[384,1024], index: 4, kind: input, shape index: {}]
  %s5 = inlined_call_operand.hbm [shape: bf16[384,1024], index: 5, kind: input, shape index: {}]
  %s6 = inlined_call_operand.vmem [shape: f32[1,1024], index: 6, kind: input, shape index: {}]
  %s7 = inlined_call_operand.hbm [shape: bf16[1024,512], index: 7, kind: input, shape index: {}]
  %s8 = inlined_call_operand.vmem [shape: f32[1,512], index: 8, kind: input, shape index: {}]
  %s9 = inlined_call_operand.vmem [shape: f32[1,512], index: 9, kind: input, shape index: {}]
  %s10 = inlined_call_operand.<no memory space> [shape: f32[1,1], index: 10, kind: input, shape index: {}]
  %s11 = inlined_call_operand.hbm [shape: bf16[256,1024], index: 11, kind: input, shape index: {}]
  %s12 = inlined_call_operand.hbm [shape: bf16[256,1024], index: 12, kind: input, shape index: {}]
  %s13 = inlined_call_operand.vmem [shape: f32[1,1024], index: 13, kind: input, shape index: {}]
  %s14 = inlined_call_operand.hbm [shape: bf16[1024,512], index: 14, kind: input, shape index: {}]
  %s15 = inlined_call_operand.vmem [shape: f32[1,512], index: 15, kind: input, shape index: {}]
  %s16 = inlined_call_operand.vmem [shape: f32[1,512], index: 16, kind: input, shape index: {}]
  %s17 = inlined_call_operand.<no memory space> [shape: f32[1,1], index: 17, kind: input, shape index: {}]
  %s18 = inlined_call_operand.hbm [shape: f32[2,1,16], index: 18, kind: output, shape index: {0}]
  %s19 = inlined_call_operand.hbm [shape: f32[2,1,16], index: 19, kind: output, shape index: {1}]
  %20 = xla_tuple %s18, %s19
  %s21 = sld [smem:[#allocation0]]
  $region153: #{tpu_custom_call.1} parent=0
    _
  %s23 = ssub.s32 1, %s21
  %s24 = scalar_select 0, %s23, %s21
  %v25 = vstv %s10
  %26 = vst [vmem:[#allocation2] sm:$0x1] %v25
  %v27 = vstv %s17
  %28 = vst [vmem:[#allocation3] sm:$0x1] %v27
  $region1: #{tpu_custom_call.1} parent=0
    #allocation4 [shape = 'u8[24576]{0}', space=vmem, size = 0x6000, scoped, tag = 'input window, operand 0']
    #allocation5 [shape = 's32[2]{0}', space=sflag, size = 0x8, scoped, tag = 'scoped memory for tpu_custom_call.1']
    #allocation6 [shape = 's32[2]{0}', space=sflag, size = 0x8, scoped, tag = 'scoped memory for tpu_custom_call.1']
    #allocation7 [shape = 'u8[24576]{0}', space=vmem, size = 0x6000, scoped, tag = 'input window, operand 1']
    #allocation8 [shape = 's32[2]{0}', space=sflag, size = 0x8, scoped, tag = 'scoped memory for tpu_custom_call.1']
    #allocation9 [shape = 'u8[16384]{0}', space=vmem, size = 0x4000, scoped, tag = 'input window, operand 2']
    #allocation10 [shape = 'u8[16384]{0}', space=vmem, size = 0x4000, scoped, tag = 'input window, operand 3']
    #allocation11 [shape = 's32[2]{0}', space=sflag, size = 0x8, scoped, tag = 'scoped memory for tpu_custom_call.1']
    #allocation12 [shape = 'u8[786432]{0}', space=vmem, size = 0xc0000, scoped, tag = 'input window, operand 4, single buffered']
    #allocation13 [shape = 'u8[786432]{0}', space=vmem, size = 0xc0000, scoped, tag = 'input window, operand 5, single buffered']
    #allocation14 [shape = 's32[1]{0}', space=sflag, size = 0x4, scoped, tag = 'scoped memory for tpu_custom_call.1']
    #allocation15 [shape = 'u8[1048576]{0}', space=vmem, size = 0x100000, scoped, tag = 'input window, operand 7, single buffered']
    #allocation16 [shape = 'u8[524288]{0}', space=vmem, size = 0x80000, scoped, tag = 'input window, operand 11, single buffered']
    #allocation17 [shape = 's32[1]{0}', space=sflag, size = 0x4, scoped, tag = 'scoped memory for tpu_custom_call.1']
    #allocation18 [shape = 'u8[524288]{0}', space=vmem, size = 0x80000, scoped, tag = 'input window, operand 12, single buffered']
    #allocation19 [shape = 'u8[1048576]{0}', space=vmem, size = 0x100000, scoped, tag = 'input window, operand 14, single buffered']
    #allocation20 [shape = 's32[1]{0}', space=sflag, size = 0x4, scoped, tag = 'scoped memory for tpu_custom_call.1']
    #allocation21 [shape = 'u8[1024]{0}', space=vmem, size = 0x400, scoped, tag = 'output window, operand 0']
    #allocation22 [shape = 'u8[1024]{0}', space=vmem, size = 0x400, scoped, tag = 'output window, operand 1']
    #allocation23 [shape = 's32[2]{0}', space=sflag, size = 0x8, scoped, tag = 'scoped memory for tpu_custom_call.1']
    %29 = vsyncpa [#allocation5], 0
    %s30 = scalar_lea.sflag [#allocation5], 1
    %31 = vsyncpa %s30, 0
    %32 = vsyncpa [#allocation8], 0
    %s33 = scalar_lea.sflag [#allocation8], 1
    %34 = vsyncpa %s33, 0
    %35 = vsyncpa [#allocation11], 0
    %s36 = scalar_lea.sflag [#allocation11], 1
    %37 = vsyncpa %s36, 0
    %38 = vsyncpa [#allocation14], 0
    %39 = vsyncpa [#allocation17], 0
    %40 = vsyncpa [#allocation20], 0
    %41 = vsyncpa [#allocation6], 0
    %s42 = scalar_lea.sflag [#allocation6], 1
    %43 = vsyncpa %s42, 0
    %44 = vsyncpa [#allocation23], 0
    %s45 = scalar_lea.sflag [#allocation23], 1
    %46 = vsyncpa %s45, 0
    loop: start=0, step=1, limit=4
    $region2: #{tpu_custom_call.1} parent=1 // loop_pre_header
      _
    $region3: #{tpu_custom_call.1} parent=1 // loop_header
      %s48 = sphi 0, %s52
      %p49 = scmp.ge.s32.totalorder %s48, 4
      %s58 = sphi 0, %s60
      %s61 = sphi 0, %s58
      %s62 = sphi 0, %s61
      %s78 = sphi 0, %s62
      %s84 = sphi 0, %s86
      %s87 = sphi 0, %s84
      %s88 = sphi 0, %s87
      %s104 = sphi 0, %s88
      %s110 = sphi 0, %s112
      %s113 = sphi 0, %s110
      %s114 = sphi 0, %s113
      %s130 = sphi 0, %s114
      %s136 = sphi 0, %s138
      %s139 = sphi 0, %s136
      %s140 = sphi 0, %s139
      %s156 = sphi 0, %s140
      %s160 = sphi 0, %s160
      %s162 = sphi 0, %s160
      %s163 = sphi 0, %s162
      %s177 = sphi 0, %s163
      %s181 = sphi 0, %s181
      %s183 = sphi 0, %s181
      %s184 = sphi 0, %s183
      %s198 = sphi 0, %s184
      %s202 = sphi 0, %s202
      %s204 = sphi 0, %s202
      %s205 = sphi 0, %s204
      %s219 = sphi 0, %s205
      %s223 = sphi 0, %s223
      %s225 = sphi 0, %s223
      %s226 = sphi 0, %s225
      %s240 = sphi 0, %s226
      %s244 = sphi 0, %s244
      %s246 = sphi 0, %s244
      %s247 = sphi 0, %s246
      %s261 = sphi 0, %s247
      %s265 = sphi 0, %s265
      %s267 = sphi 0, %s265
      %s268 = sphi 0, %s267
      %s282 = sphi 0, %s268
      %s286 = sphi 0, %s286
      %s288 = sphi 0, %s286
      %s289 = sphi 0, %s288
      %s303 = sphi 0, %s289
      %s307 = sphi 0, %s307
      %s309 = sphi 0, %s307
      %s310 = sphi 0, %s309
      %s324 = sphi 0, %s310
      %s328 = sphi 0, %s328
      %s330 = sphi 0, %s328
      %s331 = sphi 0, %s330
      %s345 = sphi 0, %s331
      %s349 = sphi 0, %s349
      %s351 = sphi 0, %s349
      %s352 = sphi 0, %s351
      %s366 = sphi 0, %s352
      %s370 = sphi 0, %s370
      %s372 = sphi 0, %s370
      %s373 = sphi 0, %s372
      %s387 = sphi 0, %s373
      %s391 = sphi 0, %s391
      %s393 = sphi 0, %s391
      %s394 = sphi 0, %s393
      %s408 = sphi 0, %s394
      %s412 = sphi 0, %s412
      %s414 = sphi 0, %s412
      %s415 = sphi 0, %s414
      %s429 = sphi 0, %s415
      %s433 = sphi 0, %s433
      %s435 = sphi 0, %s433
      %s436 = sphi 0, %s435
      %s450 = sphi 0, %s436
      %s456 = sphi 0, %s458
      %s459 = sphi 0, %s456
      %s460 = sphi 0, %s459
      %s476 = sphi 0, %s460
      %s482 = sphi 0, %s484
      %s485 = sphi 0, %s482
      %s486 = sphi 0, %s485
      %s502 = sphi 0, %s486
    $region4: #{tpu_custom_call.1} parent=1 // loop_header_branch
      %51 = sbr.rel (%p49) target = $region8
    $region5: #{tpu_custom_call.1} parent=1 // loop_body
      %s53 = ssub.s32 %s48, 1
      %s54 = ssub.s32 %s48, 2
      %s55 = sadd.s32 %s48, 1
      %s56 = ssub.s32 %s48, %s55
      %p57 = scmp.eq.s32.totalorder %s56, 0
      %s59 = sadd.s32 %s58, 1
      %s60 = scalar_select %p57, %s58, %s59
      %p63 = pneg %p57
      %p64 = scmp.eq.s32.totalorder %s48, 1
      %p65 = por %p63, %p64
      %p66 = scmp.ne.s32.totalorder %s58, %s61
      %p67 = scmp.eq.s32.totalorder %s48, 0
      %p68 = por %p66, %p67
      %p69 = scmp.ne.s32.totalorder %s58, %s61
      %p70 = scmp.eq.s32.totalorder %s53, 1
      %p71 = por %p69, %p70
      %p72 = scmp.ne.s32.totalorder %s61, %s62
      %p73 = scmp.eq.s32.totalorder %s53, 0
      %p74 = por %p72, %p73
      %p75 = scmp.ne.s32.totalorder %s61, %s62
      %p76 = scmp.eq.s32.totalorder %s54, 1
      %p77 = por %p75, %p76
      %p79 = scmp.ne.s32.totalorder %s62, %s78
      %p80 = scmp.eq.s32.totalorder %s54, 0
      %p81 = por %p79, %p80
      %s82 = ssub.s32 %s48, %s55
      %p83 = scmp.eq.s32.totalorder %s82, 0
      %s85 = sadd.s32 %s84, 1
      %s86 = scalar_select %p83, %s84, %s85
      %p89 = pneg %p83
      %p90 = scmp.eq.s32.totalorder %s48, 1
      %p91 = por %p89, %p90
      %p92 = scmp.ne.s32.totalorder %s84, %s87
      %p93 = scmp.eq.s32.totalorder %s48, 0
      %p94 = por %p92, %p93
      %p95 = scmp.ne.s32.totalorder %s84, %s87
      %p96 = scmp.eq.s32.totalorder %s53, 1
      %p97 = por %p95, %p96
      %p98 = scmp.ne.s32.totalorder %s87, %s88
      %p99 = scmp.eq.s32.totalorder %s53, 0
      %p100 = por %p98, %p99
      %p101 = scmp.ne.s32.totalorder %s87, %s88
      %p102 = scmp.eq.s32.totalorder %s54, 1
      %p103 = por %p101, %p102
      %p105 = scmp.ne.s32.totalorder %s88, %s104
      %p106 = scmp.eq.s32.totalorder %s54, 0
      %p107 = por %p105, %p106
      %s108 = ssub.s32 %s48, %s55
      %p109 = scmp.eq.s32.totalorder %s108, 0
      %s111 = sadd.s32 %s110, 1
      %s112 = scalar_select %p109, %s110, %s111
      %p115 = pneg %p109
      %p116 = scmp.eq.s32.totalorder %s48, 1
      %p117 = por %p115, %p116
      %p118 = scmp.ne.s32.totalorder %s110, %s113
      %p119 = scmp.eq.s32.totalorder %s48, 0
      %p120 = por %p118, %p119
      %p121 = scmp.ne.s32.totalorder %s110, %s113
      %p122 = scmp.eq.s32.totalorder %s53, 1
      %p123 = por %p121, %p122
      %p124 = scmp.ne.s32.totalorder %s113, %s114
      %p125 = scmp.eq.s32.totalorder %s53, 0
      %p126 = por %p124, %p125
      %p127 = scmp.ne.s32.totalorder %s113, %s114
      %p128 = scmp.eq.s32.totalorder %s54, 1
      %p129 = por %p127, %p128
      %p131 = scmp.ne.s32.totalorder %s114, %s130
      %p132 = scmp.eq.s32.totalorder %s54, 0
      %p133 = por %p131, %p132
      %s134 = ssub.s32 %s48, %s55
      %p135 = scmp.eq.s32.totalorder %s134, 0
      %s137 = sadd.s32 %s136, 1
      %s138 = scalar_select %p135, %s136, %s137
      %p141 = pneg %p135
      %p142 = scmp.eq.s32.totalorder %s48, 1
      %p143 = por %p141, %p142
      %p144 = scmp.ne.s32.totalorder %s136, %s139
      %p145 = scmp.eq.s32.totalorder %s48, 0
      %p146 = por %p144, %p145
      %p147 = scmp.ne.s32.totalorder %s136, %s139
      %p148 = scmp.eq.s32.totalorder %s53, 1
      %p149 = por %p147, %p148
      %p150 = scmp.ne.s32.totalorder %s139, %s140
      %p151 = scmp.eq.s32.totalorder %s53, 0
      %p152 = por %p150, %p151
      %p153 = scmp.ne.s32.totalorder %s139, %s140
      %p154 = scmp.eq.s32.totalorder %s54, 1
      %p155 = por %p153, %p154
      %p157 = scmp.ne.s32.totalorder %s140, %s156
      %p158 = scmp.eq.s32.totalorder %s54, 0
      %p159 = por %p157, %p158
      %s161 = sadd.s32 %s160, 1
      %p164 = scmp.eq.s32.totalorder %s48, 1
      %p165 = scmp.ne.s32.totalorder %s160, %s162
      %p166 = scmp.eq.s32.totalorder %s48, 0
      %p167 = por %p165, %p166
      %p168 = scmp.ne.s32.totalorder %s160, %s162
      %p169 = scmp.eq.s32.totalorder %s53, 1
      %p170 = por %p168, %p169
      %p171 = scmp.ne.s32.totalorder %s162, %s163
      %p172 = scmp.eq.s32.totalorder %s53, 0
      %p173 = por %p171, %p172
      %p174 = scmp.ne.s32.totalorder %s162, %s163
      %p175 = scmp.eq.s32.totalorder %s54, 1
      %p176 = por %p174, %p175
      %p178 = scmp.ne.s32.totalorder %s163, %s177
      %p179 = scmp.eq.s32.totalorder %s54, 0
      %p180 = por %p178, %p179
      %s182 = sadd.s32 %s181, 1
      %p185 = scmp.eq.s32.totalorder %s48, 1
      %p186 = scmp.ne.s32.totalorder %s181, %s183
      %p187 = scmp.eq.s32.totalorder %s48, 0
      %p188 = por %p186, %p187
      %p189 = scmp.ne.s32.totalorder %s181, %s183
      %p190 = scmp.eq.s32.totalorder %s53, 1
      %p191 = por %p189, %p190
      %p192 = scmp.ne.s32.totalorder %s183, %s184
      %p193 = scmp.eq.s32.totalorder %s53, 0
      %p194 = por %p192, %p193
      %p195 = scmp.ne.s32.totalorder %s183, %s184
      %p196 = scmp.eq.s32.totalorder %s54, 1
      %p197 = por %p195, %p196
      %p199 = scmp.ne.s32.totalorder %s184, %s198
      %p200 = scmp.eq.s32.totalorder %s54, 0
      %p201 = por %p199, %p200
      %s203 = sadd.s32 %s202, 1
      %p206 = scmp.eq.s32.totalorder %s48, 1
      %p207 = scmp.ne.s32.totalorder %s202, %s204
      %p208 = scmp.eq.s32.totalorder %s48, 0
      %p209 = por %p207, %p208
      %p210 = scmp.ne.s32.totalorder %s202, %s204
      %p211 = scmp.eq.s32.totalorder %s53, 1
      %p212 = por %p210, %p211
      %p213 = scmp.ne.s32.totalorder %s204, %s205
      %p214 = scmp.eq.s32.totalorder %s53, 0
      %p215 = por %p213, %p214
      %p216 = scmp.ne.s32.totalorder %s204, %s205
      %p217 = scmp.eq.s32.totalorder %s54, 1
      %p218 = por %p216, %p217
      %p220 = scmp.ne.s32.totalorder %s205, %s219
      %p221 = scmp.eq.s32.totalorder %s54, 0
      %p222 = por %p220, %p221
      %s224 = sadd.s32 %s223, 1
      %p227 = scmp.eq.s32.totalorder %s48, 1
      %p228 = scmp.ne.s32.totalorder %s223, %s225
      %p229 = scmp.eq.s32.totalorder %s48, 0
      %p230 = por %p228, %p229
      %p231 = scmp.ne.s32.totalorder %s223, %s225
      %p232 = scmp.eq.s32.totalorder %s53, 1
      %p233 = por %p231, %p232
      %p234 = scmp.ne.s32.totalorder %s225, %s226
      %p235 = scmp.eq.s32.totalorder %s53, 0
      %p236 = por %p234, %p235
      %p237 = scmp.ne.s32.totalorder %s225, %s226
      %p238 = scmp.eq.s32.totalorder %s54, 1
      %p239 = por %p237, %p238
      %p241 = scmp.ne.s32.totalorder %s226, %s240
      %p242 = scmp.eq.s32.totalorder %s54, 0
      %p243 = por %p241, %p242
      %s245 = sadd.s32 %s244, 1
      %p248 = scmp.eq.s32.totalorder %s48, 1
      %p249 = scmp.ne.s32.totalorder %s244, %s246
      %p250 = scmp.eq.s32.totalorder %s48, 0
      %p251 = por %p249, %p250
      %p252 = scmp.ne.s32.totalorder %s244, %s246
      %p253 = scmp.eq.s32.totalorder %s53, 1
      %p254 = por %p252, %p253
      %p255 = scmp.ne.s32.totalorder %s246, %s247
      %p256 = scmp.eq.s32.totalorder %s53, 0
      %p257 = por %p255, %p256
      %p258 = scmp.ne.s32.totalorder %s246, %s247
      %p259 = scmp.eq.s32.totalorder %s54, 1
      %p260 = por %p258, %p259
      %p262 = scmp.ne.s32.totalorder %s247, %s261
      %p263 = scmp.eq.s32.totalorder %s54, 0
      %p264 = por %p262, %p263
      %s266 = sadd.s32 %s265, 1
      %p269 = scmp.eq.s32.totalorder %s48, 1
      %p270 = scmp.ne.s32.totalorder %s265, %s267
      %p271 = scmp.eq.s32.totalorder %s48, 0
      %p272 = por %p270, %p271
      %p273 = scmp.ne.s32.totalorder %s265, %s267
      %p274 = scmp.eq.s32.totalorder %s53, 1
      %p275 = por %p273, %p274
      %p276 = scmp.ne.s32.totalorder %s267, %s268
      %p277 = scmp.eq.s32.totalorder %s53, 0
      %p278 = por %p276, %p277
      %p279 = scmp.ne.s32.totalorder %s267, %s268
      %p280 = scmp.eq.s32.totalorder %s54, 1
      %p281 = por %p279, %p280
      %p283 = scmp.ne.s32.totalorder %s268, %s282
      %p284 = scmp.eq.s32.totalorder %s54, 0
      %p285 = por %p283, %p284
      %s287 = sadd.s32 %s286, 1
      %p290 = scmp.eq.s32.totalorder %s48, 1
      %p291 = scmp.ne.s32.totalorder %s286, %s288
      %p292 = scmp.eq.s32.totalorder %s48, 0
      %p293 = por %p291, %p292
      %p294 = scmp.ne.s32.totalorder %s286, %s288
      %p295 = scmp.eq.s32.totalorder %s53, 1
      %p296 = por %p294, %p295
      %p297 = scmp.ne.s32.totalorder %s288, %s289
      %p298 = scmp.eq.s32.totalorder %s53, 0
      %p299 = por %p297, %p298
      %p300 = scmp.ne.s32.totalorder %s288, %s289
      %p301 = scmp.eq.s32.totalorder %s54, 1
      %p302 = por %p300, %p301
      %p304 = scmp.ne.s32.totalorder %s289, %s303
      %p305 = scmp.eq.s32.totalorder %s54, 0
      %p306 = por %p304, %p305
      %s308 = sadd.s32 %s307, 1
      %p311 = scmp.eq.s32.totalorder %s48, 1
      %p312 = scmp.ne.s32.totalorder %s307, %s309
      %p313 = scmp.eq.s32.totalorder %s48, 0
      %p314 = por %p312, %p313
      %p315 = scmp.ne.s32.totalorder %s307, %s309
      %p316 = scmp.eq.s32.totalorder %s53, 1
      %p317 = por %p315, %p316
      %p318 = scmp.ne.s32.totalorder %s309, %s310
      %p319 = scmp.eq.s32.totalorder %s53, 0
      %p320 = por %p318, %p319
      %p321 = scmp.ne.s32.totalorder %s309, %s310
      %p322 = scmp.eq.s32.totalorder %s54, 1
      %p323 = por %p321, %p322
      %p325 = scmp.ne.s32.totalorder %s310, %s324
      %p326 = scmp.eq.s32.totalorder %s54, 0
      %p327 = por %p325, %p326
      %s329 = sadd.s32 %s328, 1
      %p332 = scmp.eq.s32.totalorder %s48, 1
      %p333 = scmp.ne.s32.totalorder %s328, %s330
      %p334 = scmp.eq.s32.totalorder %s48, 0
      %p335 = por %p333, %p334
      %p336 = scmp.ne.s32.totalorder %s328, %s330
      %p337 = scmp.eq.s32.totalorder %s53, 1
      %p338 = por %p336, %p337
      %p339 = scmp.ne.s32.totalorder %s330, %s331
      %p340 = scmp.eq.s32.totalorder %s53, 0
      %p341 = por %p339, %p340
      %p342 = scmp.ne.s32.totalorder %s330, %s331
      %p343 = scmp.eq.s32.totalorder %s54, 1
      %p344 = por %p342, %p343
      %p346 = scmp.ne.s32.totalorder %s331, %s345
      %p347 = scmp.eq.s32.totalorder %s54, 0
      %p348 = por %p346, %p347
      %s350 = sadd.s32 %s349, 1
      %p353 = scmp.eq.s32.totalorder %s48, 1
      %p354 = scmp.ne.s32.totalorder %s349, %s351
      %p355 = scmp.eq.s32.totalorder %s48, 0
      %p356 = por %p354, %p355
      %p357 = scmp.ne.s32.totalorder %s349, %s351
      %p358 = scmp.eq.s32.totalorder %s53, 1
      %p359 = por %p357, %p358
      %p360 = scmp.ne.s32.totalorder %s351, %s352
      %p361 = scmp.eq.s32.totalorder %s53, 0
      %p362 = por %p360, %p361
      %p363 = scmp.ne.s32.totalorder %s351, %s352
      %p364 = scmp.eq.s32.totalorder %s54, 1
      %p365 = por %p363, %p364
      %p367 = scmp.ne.s32.totalorder %s352, %s366
      %p368 = scmp.eq.s32.totalorder %s54, 0
      %p369 = por %p367, %p368
      %s371 = sadd.s32 %s370, 1
      %p374 = scmp.eq.s32.totalorder %s48, 1
      %p375 = scmp.ne.s32.totalorder %s370, %s372
      %p376 = scmp.eq.s32.totalorder %s48, 0
      %p377 = por %p375, %p376
      %p378 = scmp.ne.s32.totalorder %s370, %s372
      %p379 = scmp.eq.s32.totalorder %s53, 1
      %p380 = por %p378, %p379
      %p381 = scmp.ne.s32.totalorder %s372, %s373
      %p382 = scmp.eq.s32.totalorder %s53, 0
      %p383 = por %p381, %p382
      %p384 = scmp.ne.s32.totalorder %s372, %s373
      %p385 = scmp.eq.s32.totalorder %s54, 1
      %p386 = por %p384, %p385
      %p388 = scmp.ne.s32.totalorder %s373, %s387
      %p389 = scmp.eq.s32.totalorder %s54, 0
      %p390 = por %p388, %p389
      %s392 = sadd.s32 %s391, 1
      %p395 = scmp.eq.s32.totalorder %s48, 1
      %p396 = scmp.ne.s32.totalorder %s391, %s393
      %p397 = scmp.eq.s32.totalorder %s48, 0
      %p398 = por %p396, %p397
      %p399 = scmp.ne.s32.totalorder %s391, %s393
      %p400 = scmp.eq.s32.totalorder %s53, 1
      %p401 = por %p399, %p400
      %p402 = scmp.ne.s32.totalorder %s393, %s394
      %p403 = scmp.eq.s32.totalorder %s53, 0
      %p404 = por %p402, %p403
      %p405 = scmp.ne.s32.totalorder %s393, %s394
      %p406 = scmp.eq.s32.totalorder %s54, 1
      %p407 = por %p405, %p406
      %p409 = scmp.ne.s32.totalorder %s394, %s408
      %p410 = scmp.eq.s32.totalorder %s54, 0
      %p411 = por %p409, %p410
      %s413 = sadd.s32 %s412, 1
      %p416 = scmp.eq.s32.totalorder %s48, 1
      %p417 = scmp.ne.s32.totalorder %s412, %s414
      %p418 = scmp.eq.s32.totalorder %s48, 0
      %p419 = por %p417, %p418
      %p420 = scmp.ne.s32.totalorder %s412, %s414
      %p421 = scmp.eq.s32.totalorder %s53, 1
      %p422 = por %p420, %p421
      %p423 = scmp.ne.s32.totalorder %s414, %s415
      %p424 = scmp.eq.s32.totalorder %s53, 0
      %p425 = por %p423, %p424
      %p426 = scmp.ne.s32.totalorder %s414, %s415
      %p427 = scmp.eq.s32.totalorder %s54, 1
      %p428 = por %p426, %p427
      %p430 = scmp.ne.s32.totalorder %s415, %s429
      %p431 = scmp.eq.s32.totalorder %s54, 0
      %p432 = por %p430, %p431
      %s434 = sadd.s32 %s433, 1
      %p437 = scmp.eq.s32.totalorder %s48, 1
      %p438 = scmp.ne.s32.totalorder %s433, %s435
      %p439 = scmp.eq.s32.totalorder %s48, 0
      %p440 = por %p438, %p439
      %p441 = scmp.ne.s32.totalorder %s433, %s435
      %p442 = scmp.eq.s32.totalorder %s53, 1
      %p443 = por %p441, %p442
      %p444 = scmp.ne.s32.totalorder %s435, %s436
      %p445 = scmp.eq.s32.totalorder %s53, 0
      %p446 = por %p444, %p445
      %p447 = scmp.ne.s32.totalorder %s435, %s436
      %p448 = scmp.eq.s32.totalorder %s54, 1
      %p449 = por %p447, %p448
      %p451 = scmp.ne.s32.totalorder %s436, %s450
      %p452 = scmp.eq.s32.totalorder %s54, 0
      %p453 = por %p451, %p452
      %s454 = ssub.s32 %s48, %s55
      %p455 = scmp.eq.s32.totalorder %s454, 0
      %s457 = sadd.s32 %s456, 1
      %s458 = scalar_select %p455, %s456, %s457
      %p461 = pneg %p455
      %p462 = scmp.eq.s32.totalorder %s48, 1
      %p463 = por %p461, %p462
      %p464 = scmp.ne.s32.totalorder %s456, %s459
      %p465 = scmp.eq.s32.totalorder %s48, 0
      %p466 = por %p464, %p465
      %p467 = scmp.ne.s32.totalorder %s456, %s459
      %p468 = scmp.eq.s32.totalorder %s53, 1
      %p469 = por %p467, %p468
      %p470 = scmp.ne.s32.totalorder %s459, %s460
      %p471 = scmp.eq.s32.totalorder %s53, 0
      %p472 = por %p470, %p471
      %p473 = scmp.ne.s32.totalorder %s459, %s460
      %p474 = scmp.eq.s32.totalorder %s54, 1
      %p475 = por %p473, %p474
      %p477 = scmp.ne.s32.totalorder %s460, %s476
      %p478 = scmp.eq.s32.totalorder %s54, 0
      %p479 = por %p477, %p478
      %s480 = ssub.s32 %s48, %s55
      %p481 = scmp.eq.s32.totalorder %s480, 0
      %s483 = sadd.s32 %s482, 1
      %s484 = scalar_select %p481, %s482, %s483
      %p487 = pneg %p481
      %p488 = scmp.eq.s32.totalorder %s48, 1
      %p489 = por %p487, %p488
      %p490 = scmp.ne.s32.totalorder %s482, %s485
      %p491 = scmp.eq.s32.totalorder %s48, 0
      %p492 = por %p490, %p491
      %p493 = scmp.ne.s32.totalorder %s482, %s485
      %p494 = scmp.eq.s32.totalorder %s53, 1
      %p495 = por %p493, %p494
      %p496 = scmp.ne.s32.totalorder %s485, %s486
      %p497 = scmp.eq.s32.totalorder %s53, 0
      %p498 = por %p496, %p497
      %p499 = scmp.ne.s32.totalorder %s485, %s486
      %p500 = scmp.eq.s32.totalorder %s54, 1
      %p501 = por %p499, %p500
      %p503 = scmp.ne.s32.totalorder %s486, %s502
      %p504 = scmp.eq.s32.totalorder %s54, 0
      %p505 = por %p503, %p504
      %p506 = scmp.le.s32.totalorder 1, %s48
      %p507 = scmp.lt.s32.totalorder %s48, 3
      %p508 = pnand %p506, %p507
      %p509 = pneg %p508
      // Predicated region
      $region9: #{tpu_custom_call.1} parent=5 // pred_check
        _
      $region10: #{tpu_custom_call.1} parent=5 // pred_check_branch
        %511 = sbr.rel (%p508) target = $region12
      $region11: #{tpu_custom_call.1} parent=5 // pred_region
        %s512 = ssub.s32 %s48, 1
        // Predicated region
        $region13: #{tpu_custom_call.1} parent=11 // pred_check
          %p513 = pneg %p173
        $region14: #{tpu_custom_call.1} parent=11 // pred_check_branch
          %515 = sbr.rel (%p513) target = $region16
        $region15: #{tpu_custom_call.1} parent=11 // pred_region
          %s517 = ssub.s32 24576, 24576
          %518 = vsyncadd [#allocation11], %s517
          %s519 = sshll.u32 [#allocation12], 4
          %s520 = int_to_ptr.vmem [resolvable:$true] %s519
          %525 = dma.hbm_to_vmem [thread:$0]  %s4, 24576, %s520, [#allocation11], 512, 512, 32
        $region16: #{tpu_custom_call.1} parent=11 // pred_fallthru
          _
        // Predicated region
        $region17: #{tpu_custom_call.1} parent=11 // pred_check
          %p526 = pneg %p194
        $region18: #{tpu_custom_call.1} parent=11 // pred_check_branch
          %528 = sbr.rel (%p526) target = $region20
        $region19: #{tpu_custom_call.1} parent=11 // pred_region
          %s530 = ssub.s32 24576, 24576
          %531 = vsyncadd [#allocation14], %s530
          %s532 = sshll.u32 [#allocation13], 4
          %s533 = int_to_ptr.vmem [resolvable:$true] %s532
          %538 = dma.hbm_to_vmem [thread:$0]  %s5, 24576, %s533, [#allocation14], 512, 512, 32
        $region20: #{tpu_custom_call.1} parent=11 // pred_fallthru
          _
        // Predicated region
        $region21: #{tpu_custom_call.1} parent=11 // pred_check
          %p539 = pneg %p215
        $region22: #{tpu_custom_call.1} parent=11 // pred_check_branch
          %541 = sbr.rel (%p539) target = $region24
        $region23: #{tpu_custom_call.1} parent=11 // pred_region
          _
        $region24: #{tpu_custom_call.1} parent=11 // pred_fallthru
          _
        // Predicated region
        $region25: #{tpu_custom_call.1} parent=11 // pred_check
          %p542 = pneg %p236
        $region26: #{tpu_custom_call.1} parent=11 // pred_check_branch
          %544 = sbr.rel (%p542) target = $region28
        $region27: #{tpu_custom_call.1} parent=11 // pred_region
          %s546 = ssub.s32 32768, 32768
          %547 = vsyncadd [#allocation14], %s546
          %s548 = sshll.u32 [#allocation15], 4
          %s549 = int_to_ptr.vmem [resolvable:$true] %s548
          %554 = dma.hbm_to_vmem [thread:$0]  %s7, 32768, %s549, [#allocation14], 256, 256, 16
        $region28: #{tpu_custom_call.1} parent=11 // pred_fallthru
          _
        // Predicated region
        $region29: #{tpu_custom_call.1} parent=11 // pred_check
          %p555 = pneg %p257
        $region30: #{tpu_custom_call.1} parent=11 // pred_check_branch
          %557 = sbr.rel (%p555) target = $region32
        $region31: #{tpu_custom_call.1} parent=11 // pred_region
          _
        $region32: #{tpu_custom_call.1} parent=11 // pred_fallthru
          _
        // Predicated region
        $region33: #{tpu_custom_call.1} parent=11 // pred_check
          %p558 = pneg %p278
        $region34: #{tpu_custom_call.1} parent=11 // pred_check_branch
          %560 = sbr.rel (%p558) target = $region36
        $region35: #{tpu_custom_call.1} parent=11 // pred_region
          _
        $region36: #{tpu_custom_call.1} parent=11 // pred_fallthru
          _
        // Predicated region
        $region37: #{tpu_custom_call.1} parent=11 // pred_check
          %p561 = pneg %p299
        $region38: #{tpu_custom_call.1} parent=11 // pred_check_branch
          %563 = sbr.rel (%p561) target = $region40
        $region39: #{tpu_custom_call.1} parent=11 // pred_region
          _
        $region40: #{tpu_custom_call.1} parent=11 // pred_fallthru
          _
        // Predicated region
        $region41: #{tpu_custom_call.1} parent=11 // pred_check
          %p564 = pneg %p320
        $region42: #{tpu_custom_call.1} parent=11 // pred_check_branch
          %566 = sbr.rel (%p564) target = $region44
        $region43: #{tpu_custom_call.1} parent=11 // pred_region
          %s568 = ssub.s32 16384, 16384
          %569 = vsyncadd [#allocation17], %s568
          %s570 = sshll.u32 [#allocation16], 4
          %s571 = int_to_ptr.vmem [resolvable:$true] %s570
          %576 = dma.hbm_to_vmem [thread:$0]  %s11, 16384, %s571, [#allocation17], 512, 512, 32
        $region44: #{tpu_custom_call.1} parent=11 // pred_fallthru
          _
        // Predicated region
        $region45: #{tpu_custom_call.1} parent=11 // pred_check
          %p577 = pneg %p341
        $region46: #{tpu_custom_call.1} parent=11 // pred_check_branch
          %579 = sbr.rel (%p577) target = $region48
        $region47: #{tpu_custom_call.1} parent=11 // pred_region
          %s581 = ssub.s32 16384, 16384
          %582 = vsyncadd [#allocation17], %s581
          %s583 = sshll.u32 [#allocation18], 4
          %s584 = int_to_ptr.vmem [resolvable:$true] %s583
          %589 = dma.hbm_to_vmem [thread:$0]  %s12, 16384, %s584, [#allocation17], 512, 512, 32
        $region48: #{tpu_custom_call.1} parent=11 // pred_fallthru
          _
        // Predicated region
        $region49: #{tpu_custom_call.1} parent=11 // pred_check
          %p590 = pneg %p362
        $region50: #{tpu_custom_call.1} parent=11 // pred_check_branch
          %592 = sbr.rel (%p590) target = $region52
        $region51: #{tpu_custom_call.1} parent=11 // pred_region
          _
        $region52: #{tpu_custom_call.1} parent=11 // pred_fallthru
          _
        // Predicated region
        $region53: #{tpu_custom_call.1} parent=11 // pred_check
          %p593 = pneg %p383
        $region54: #{tpu_custom_call.1} parent=11 // pred_check_branch
          %595 = sbr.rel (%p593) target = $region56
        $region55: #{tpu_custom_call.1} parent=11 // pred_region
          %s597 = ssub.s32 32768, 32768
          %598 = vsyncadd [#allocation20], %s597
          %s599 = sshll.u32 [#allocation19], 4
          %s600 = int_to_ptr.vmem [resolvable:$true] %s599
          %605 = dma.hbm_to_vmem [thread:$0]  %s14, 32768, %s600, [#allocation20], 256, 256, 16
        $region56: #{tpu_custom_call.1} parent=11 // pred_fallthru
          _
        // Predicated region
        $region57: #{tpu_custom_call.1} parent=11 // pred_check
          %p606 = pneg %p404
        $region58: #{tpu_custom_call.1} parent=11 // pred_check_branch
          %608 = sbr.rel (%p606) target = $region60
        $region59: #{tpu_custom_call.1} parent=11 // pred_region
          _
        $region60: #{tpu_custom_call.1} parent=11 // pred_fallthru
          _
        // Predicated region
        $region61: #{tpu_custom_call.1} parent=11 // pred_check
          %p609 = pneg %p425
        $region62: #{tpu_custom_call.1} parent=11 // pred_check_branch
          %611 = sbr.rel (%p609) target = $region64
        $region63: #{tpu_custom_call.1} parent=11 // pred_region
          _
        $region64: #{tpu_custom_call.1} parent=11 // pred_fallthru
          _
        // Predicated region
        $region65: #{tpu_custom_call.1} parent=11 // pred_check
          %p612 = pneg %p446
        $region66: #{tpu_custom_call.1} parent=11 // pred_check_branch
          %614 = sbr.rel (%p612) target = $region68
        $region67: #{tpu_custom_call.1} parent=11 // pred_region
          _
        $region68: #{tpu_custom_call.1} parent=11 // pred_fallthru
          _
      $region12: #{tpu_custom_call.1} parent=5 // pred_fallthru
        _
      %p615 = scmp.lt.s32.totalorder %s48, 2
      // Predicated region
      $region69: #{tpu_custom_call.1} parent=5 // pred_check
        %p616 = pneg %p615
      $region70: #{tpu_custom_call.1} parent=5 // pred_check_branch
        %618 = sbr.rel (%p616) target = $region72
      $region71: #{tpu_custom_call.1} parent=5 // pred_region
        // Predicated region
        $region73: #{tpu_custom_call.1} parent=71 // pred_check
          %p619 = pneg %p68
        $region74: #{tpu_custom_call.1} parent=71 // pred_check_branch
          %621 = sbr.rel (%p619) target = $region76
        $region75: #{tpu_custom_call.1} parent=71 // pred_region
          %s622 = sand.u32 %s58, 1
          %s623 = scalar_lea.sflag [#allocation5], %s622
          %s624 = sand.u32 %s58, 1
          %s625 = smul.addr %s624, 24
          %s626 = scalar_lea.vmem [#allocation4], %s625
          %s627 = smul.u32 2, %s48
          %s629 = ssub.s32 384, 384
          %630 = vsyncadd %s623, %s629
          %s631 = smul.addr %s627, 3
          %s632 = smul.addr %s631, 64
          %s633 = scalar_lea.hbm %s0, %s632
          %s634 = sshll.u32 %s626, 4
          %s635 = int_to_ptr.vmem [resolvable:$true] %s634
          %640 = dma.hbm_to_vmem [thread:$0]  %s633, 384, %s635, %s623, 192, 192, 12
        $region76: #{tpu_custom_call.1} parent=71 // pred_fallthru
          _
        // Predicated region
        $region77: #{tpu_custom_call.1} parent=71 // pred_check
          %p641 = pneg %p94
        $region78: #{tpu_custom_call.1} parent=71 // pred_check_branch
          %643 = sbr.rel (%p641) target = $region80
        $region79: #{tpu_custom_call.1} parent=71 // pred_region
          %s644 = sand.u32 %s48, 1
          %s645 = scalar_lea.sflag [#allocation8], %s644
          %s646 = sand.u32 %s84, 1
          %s647 = smul.addr %s646, 24
          %s648 = scalar_lea.vmem [#allocation7], %s647
          %s649 = smul.u32 2, %s48
          %s651 = ssub.s32 384, 384
          %652 = vsyncadd %s645, %s651
          %s653 = smul.addr %s649, 3
          %s654 = smul.addr %s653, 64
          %s655 = scalar_lea.hbm %s1, %s654
          %s656 = sshll.u32 %s648, 4
          %s657 = int_to_ptr.vmem [resolvable:$true] %s656
          %662 = dma.hbm_to_vmem [thread:$0]  %s655, 384, %s657, %s645, 192, 192, 12
        $region80: #{tpu_custom_call.1} parent=71 // pred_fallthru
          _
        // Predicated region
        $region81: #{tpu_custom_call.1} parent=71 // pred_check
          %p663 = pneg %p120
        $region82: #{tpu_custom_call.1} parent=71 // pred_check_branch
          %665 = sbr.rel (%p663) target = $region84
        $region83: #{tpu_custom_call.1} parent=71 // pred_region
          %s666 = sand.u32 %s48, 1
          %s667 = scalar_lea.sflag [#allocation8], %s666
          %s668 = sand.u32 %s110, 1
          %s669 = smul.addr %s668, 16
          %s670 = scalar_lea.vmem [#allocation9], %s669
          %s671 = smul.u32 2, %s48
          %s673 = ssub.s32 256, 256
          %674 = vsyncadd %s667, %s673
          %s675 = smul.addr %s671, 2
          %s676 = smul.addr %s675, 64
          %s677 = scalar_lea.hbm %s2, %s676
          %s678 = sshll.u32 %s670, 4
          %s679 = int_to_ptr.vmem [resolvable:$true] %s678
          %684 = dma.hbm_to_vmem [thread:$0]  %s677, 256, %s679, %s667, 128, 128, 8
        $region84: #{tpu_custom_call.1} parent=71 // pred_fallthru
          _
        // Predicated region
        $region85: #{tpu_custom_call.1} parent=71 // pred_check
          %p685 = pneg %p146
        $region86: #{tpu_custom_call.1} parent=71 // pred_check_branch
          %687 = sbr.rel (%p685) target = $region88
        $region87: #{tpu_custom_call.1} parent=71 // pred_region
          %s688 = sand.u32 %s48, 1
          %s689 = scalar_lea.sflag [#allocation11], %s688
          %s690 = sand.u32 %s136, 1
          %s691 = smul.addr %s690, 16
          %s692 = scalar_lea.vmem [#allocation10], %s691
          %s693 = smul.u32 2, %s48
          %s695 = ssub.s32 256, 256
          %696 = vsyncadd %s689, %s695
          %s697 = smul.addr %s693, 2
          %s698 = smul.addr %s697, 64
          %s699 = scalar_lea.hbm %s3, %s698
          %s700 = sshll.u32 %s692, 4
          %s701 = int_to_ptr.vmem [resolvable:$true] %s700
          %706 = dma.hbm_to_vmem [thread:$0]  %s699, 256, %s701, %s689, 128, 128, 8
        $region88: #{tpu_custom_call.1} parent=71 // pred_fallthru
          _
      $region72: #{tpu_custom_call.1} parent=5 // pred_fallthru
        _
      %p707 = scmp.le.s32.totalorder 1, %s48
      %p708 = scmp.lt.s32.totalorder %s48, 3
      %p709 = pnand %p707, %p708
      %p710 = pneg %p709
      // Predicated region
      $region89: #{tpu_custom_call.1} parent=5 // pred_check
        _
      $region90: #{tpu_custom_call.1} parent=5 // pred_check_branch
        %712 = sbr.rel (%p709) target = $region92
      $region91: #{tpu_custom_call.1} parent=5 // pred_region
        %s713 = ssub.s32 %s48, 1
        %s714 = sand.u32 %s61, 1
        %s715 = scalar_lea.sflag [#allocation5], %s714
        %s716 = sand.u32 %s61, 1
        %s717 = smul.addr %s716, 24
        %s718 = scalar_lea.vmem [#allocation4], %s717
        // Predicated region
        $region93: #{tpu_custom_call.1} parent=91 // pred_check
          %p719 = pneg %p74
        $region94: #{tpu_custom_call.1} parent=91 // pred_check_branch
          %721 = sbr.rel (%p719) target = $region96
        $region95: #{tpu_custom_call.1} parent=91 // pred_region
          %722 = dma.done %s715, 384
        $region96: #{tpu_custom_call.1} parent=91 // pred_fallthru
          _
        %s723 = sand.u32 %s53, 1
        %s724 = scalar_lea.sflag [#allocation8], %s723
        %s725 = sand.u32 %s87, 1
        %s726 = smul.addr %s725, 24
        %s727 = scalar_lea.vmem [#allocation7], %s726
        // Predicated region
        $region97: #{tpu_custom_call.1} parent=91 // pred_check
          %p728 = pneg %p100
        $region98: #{tpu_custom_call.1} parent=91 // pred_check_branch
          %730 = sbr.rel (%p728) target = $region100
        $region99: #{tpu_custom_call.1} parent=91 // pred_region
          %731 = dma.done %s724, 384
        $region100: #{tpu_custom_call.1} parent=91 // pred_fallthru
          _
        %s732 = sand.u32 %s53, 1
        %s733 = scalar_lea.sflag [#allocation8], %s732
        %s734 = sand.u32 %s113, 1
        %s735 = smul.addr %s734, 16
        %s736 = scalar_lea.vmem [#allocation9], %s735
        // Predicated region
        $region101: #{tpu_custom_call.1} parent=91 // pred_check
          %p737 = pneg %p126
        $region102: #{tpu_custom_call.1} parent=91 // pred_check_branch
          %739 = sbr.rel (%p737) target = $region104
        $region103: #{tpu_custom_call.1} parent=91 // pred_region
          %740 = dma.done %s733, 256
        $region104: #{tpu_custom_call.1} parent=91 // pred_fallthru
          _
        %s741 = sand.u32 %s53, 1
        %s742 = scalar_lea.sflag [#allocation11], %s741
        %s743 = sand.u32 %s139, 1
        %s744 = smul.addr %s743, 16
        %s745 = scalar_lea.vmem [#allocation10], %s744
        // Predicated region
        $region105: #{tpu_custom_call.1} parent=91 // pred_check
          %p746 = pneg %p152
        $region106: #{tpu_custom_call.1} parent=91 // pred_check_branch
          %748 = sbr.rel (%p746) target = $region108
        $region107: #{tpu_custom_call.1} parent=91 // pred_region
          %749 = dma.done %s742, 256
        $region108: #{tpu_custom_call.1} parent=91 // pred_fallthru
          _
        // Predicated region
        $region109: #{tpu_custom_call.1} parent=91 // pred_check
          %p750 = pneg %p173
        $region110: #{tpu_custom_call.1} parent=91 // pred_check_branch
          %752 = sbr.rel (%p750) target = $region112
        $region111: #{tpu_custom_call.1} parent=91 // pred_region
          %753 = dma.done [#allocation11], 24576
        $region112: #{tpu_custom_call.1} parent=91 // pred_fallthru
          _
        // Predicated region
        $region113: #{tpu_custom_call.1} parent=91 // pred_check
          %p754 = pneg %p194
        $region114: #{tpu_custom_call.1} parent=91 // pred_check_branch
          %756 = sbr.rel (%p754) target = $region116
        $region115: #{tpu_custom_call.1} parent=91 // pred_region
          %757 = dma.done [#allocation14], 24576
        $region116: #{tpu_custom_call.1} parent=91 // pred_fallthru
          _
        // Predicated region
        $region117: #{tpu_custom_call.1} parent=91 // pred_check
          %p758 = pneg %p236
        $region118: #{tpu_custom_call.1} parent=91 // pred_check_branch
          %760 = sbr.rel (%p758) target = $region120
        $region119: #{tpu_custom_call.1} parent=91 // pred_region
          %761 = dma.done [#allocation14], 32768
        $region120: #{tpu_custom_call.1} parent=91 // pred_fallthru
          _
        // Predicated region
        $region121: #{tpu_custom_call.1} parent=91 // pred_check
          %p762 = pneg %p320
        $region122: #{tpu_custom_call.1} parent=91 // pred_check_branch
          %764 = sbr.rel (%p762) target = $region124
        $region123: #{tpu_custom_call.1} parent=91 // pred_region
          %765 = dma.done [#allocation17], 16384
        $region124: #{tpu_custom_call.1} parent=91 // pred_fallthru
          _
        // Predicated region
        $region125: #{tpu_custom_call.1} parent=91 // pred_check
          %p766 = pneg %p341
        $region126: #{tpu_custom_call.1} parent=91 // pred_check_branch
          %768 = sbr.rel (%p766) target = $region128
        $region127: #{tpu_custom_call.1} parent=91 // pred_region
          %769 = dma.done [#allocation17], 16384
        $region128: #{tpu_custom_call.1} parent=91 // pred_fallthru
          _
        // Predicated region
        $region129: #{tpu_custom_call.1} parent=91 // pred_check
          %p770 = pneg %p383
        $region130: #{tpu_custom_call.1} parent=91 // pred_check_branch
          %772 = sbr.rel (%p770) target = $region132
        $region131: #{tpu_custom_call.1} parent=91 // pred_region
          %773 = dma.done [#allocation20], 32768
        $region132: #{tpu_custom_call.1} parent=91 // pred_fallthru
          _
        %s774 = sand.u32 %s61, 1
        %s775 = scalar_lea.sflag [#allocation5], %s774
        %s776 = sand.u32 %s61, 1
        %s777 = smul.addr %s776, 24
        %s778 = scalar_lea.vmem [#allocation4], %s777
        %p779 = pneg %p74
        %p780 = pneg %p71
        %s781 = sand.u32 %s53, 1
        %s782 = scalar_lea.sflag [#allocation8], %s781
        %s783 = sand.u32 %s87, 1
        %s784 = smul.addr %s783, 24
        %s785 = scalar_lea.vmem [#allocation7], %s784
        %p786 = pneg %p100
        %p787 = pneg %p97
        %s788 = sand.u32 %s53, 1
        %s789 = scalar_lea.sflag [#allocation8], %s788
        %s790 = sand.u32 %s113, 1
        %s791 = smul.addr %s790, 16
        %s792 = scalar_lea.vmem [#allocation9], %s791
        %p793 = pneg %p126
        %p794 = pneg %p123
        %s795 = sand.u32 %s53, 1
        %s796 = scalar_lea.sflag [#allocation11], %s795
        %s797 = sand.u32 %s139, 1
        %s798 = smul.addr %s797, 16
        %s799 = scalar_lea.vmem [#allocation10], %s798
        %p800 = pneg %p152
        %p801 = pneg %p149
        %p802 = pneg %p173
        %p803 = pneg %p170
        %p804 = pneg %p194
        %p805 = pneg %p191
        %p806 = pneg %p215
        %p807 = pneg %p212
        %p808 = pneg %p236
        %p809 = pneg %p233
        %p810 = pneg %p257
        %p811 = pneg %p254
        %p812 = pneg %p278
        %p813 = pneg %p275
        %p814 = pneg %p299
        %p815 = pneg %p296
        %p816 = pneg %p320
        %p817 = pneg %p317
        %p818 = pneg %p341
        %p819 = pneg %p338
        %p820 = pneg %p362
        %p821 = pneg %p359
        %p822 = pneg %p383
        %p823 = pneg %p380
        %p824 = pneg %p404
        %p825 = pneg %p401
        %p826 = pneg %p425
        %p827 = pneg %p422
        %p828 = pneg %p446
        %p829 = pneg %p443
        %p830 = pneg %p472
        %p831 = pneg %p469
        %s832 = sand.u32 %s459, 1
        %s833 = scalar_lea.sflag [#allocation6], %s832
        %s834 = sand.u32 %s459, 1
        %s835 = scalar_lea.vmem [#allocation21], %s834
        %p836 = pneg %p498
        %p837 = pneg %p495
        %s838 = sand.u32 %s485, 1
        %s839 = scalar_lea.sflag [#allocation23], %s838
        %s840 = sand.u32 %s485, 1
        %s841 = scalar_lea.vmem [#allocation22], %s840
        %s842 = smul.u32 2, %s53
        %s843 = smul.u32 2, %s53
        %s844 = smul.u32 2, %s53
        %s845 = smul.u32 2, %s53
        %v847 = vld [vmem:[%s718] sm:$0xff]
        %v848 = vld [vmem:[%s718 + $0x8] sm:$0xf]
        %v849 = vld [vmem:[%s718 + $0xc] sm:$0xff]
        %v850 = vld [vmem:[%s718 + $0x14] sm:$0xf]
        %v851 = vld [vmem:[%s727] sm:$0xff]
        %v852 = vld [vmem:[%s727 + $0x8] sm:$0xf]
        %v853 = vld [vmem:[%s727 + $0xc] sm:$0xff]
        %v854 = vld [vmem:[%s727 + $0x14] sm:$0xf]
        %v855 = vld [vmem:[%s736] sm:$0xff]
        %v856 = vld [vmem:[%s736 + $0x8] sm:$0xff]
        %v857 = vld [vmem:[%s745] sm:$0xff]
        %v858 = vld [vmem:[%s745 + $0x8] sm:$0xff]
        %v859 = vld [vmem:[#allocation12] sm:$0xff]
        %v860 = vld [vmem:[#allocation12 + $0x8] sm:$0xff]
        %v861 = vld [vmem:[#allocation12 + $0x10] sm:$0xff]
        %v862 = vld [vmem:[#allocation12 + $0x18] sm:$0xff]
        %v863 = vld [vmem:[#allocation12 + $0x20] sm:$0xff]
        %v864 = vld [vmem:[#allocation12 + $0x28] sm:$0xff]
        %v865 = vld [vmem:[#allocation12 + $0x30] sm:$0xff]
        %v866 = vld [vmem:[#allocation12 + $0x38] sm:$0xff]
        %v867 = vld [vmem:[#allocation12 + $0x40] sm:$0xff]
        %v868 = vld [vmem:[#allocation12 + $0x48] sm:$0xff]
        %v869 = vld [vmem:[#allocation12 + $0x50] sm:$0xff]
        %v870 = vld [vmem:[#allocation12 + $0x58] sm:$0xff]
        %v871 = vld [vmem:[#allocation12 + $0x60] sm:$0xff]
        %v872 = vld [vmem:[#allocation12 + $0x68] sm:$0xff]
        %v873 = vld [vmem:[#allocation12 + $0x70] sm:$0xff]
        %v874 = vld [vmem:[#allocation12 + $0x78] sm:$0xff]
        %v875 = vld [vmem:[#allocation12 + $0x80] sm:$0xff]
        %v876 = vld [vmem:[#allocation12 + $0x88] sm:$0xff]
        %v877 = vld [vmem:[#allocation12 + $0x90] sm:$0xff]
        %v878 = vld [vmem:[#allocation12 + $0x98] sm:$0xff]
        %v879 = vld [vmem:[#allocation12 + $0xa0] sm:$0xff]
        %v880 = vld [vmem:[#allocation12 + $0xa8] sm:$0xff]
        %v881 = vld [vmem:[#allocation12 + $0xb0] sm:$0xff]
        %v882 = vld [vmem:[#allocation12 + $0xb8] sm:$0xff]
        %v883 = vld [vmem:[#allocation12 + $0xc0] sm:$0xff]
        %v884 = vld [vmem:[#allocation12 + $0xc8] sm:$0xff]
        %v885 = vld [vmem:[#allocation12 + $0xd0] sm:$0xff]
        %v886 = vld [vmem:[#allocation12 + $0xd8] sm:$0xff]
        %v887 = vld [vmem:[#allocation12 + $0xe0] sm:$0xff]
        %v888 = vld [vmem:[#allocation12 + $0xe8] sm:$0xff]
        %v889 = vld [vmem:[#allocation12 + $0xf0] sm:$0xff]
        %v890 = vld [vmem:[#allocation12 + $0xf8] sm:$0xff]
        %v891 = vld [vmem:[#allocation12 + $0x100] sm:$0xff]
        %v892 = vld [vmem:[#allocation12 + $0x108] sm:$0xff]
        %v893 = vld [vmem:[#allocation12 + $0x110] sm:$0xff]
        %v894 = vld [vmem:[#allocation12 + $0x118] sm:$0xff]
        %v895 = vld [vmem:[#allocation12 + $0x120] sm:$0xff]
        %v896 = vld [vmem:[#allocation12 + $0x128] sm:$0xff]
        %v897 = vld [vmem:[#allocation12 + $0x130] sm:$0xff]
        %v898 = vld [vmem:[#allocation12 + $0x138] sm:$0xff]
        %v899 = vld [vmem:[#allocation12 + $0x140] sm:$0xff]
        %v900 = vld [vmem:[#allocation12 + $0x148] sm:$0xff]
        %v901 = vld [vmem:[#allocation12 + $0x150] sm:$0xff]
        %v902 = vld [vmem:[#allocation12 + $0x158] sm:$0xff]
        %v903 = vld [vmem:[#allocation12 + $0x160] sm:$0xff]
        %v904 = vld [vmem:[#allocation12 + $0x168] sm:$0xff]
        %v905 = vld [vmem:[#allocation12 + $0x170] sm:$0xff]
        %v906 = vld [vmem:[#allocation12 + $0x178] sm:$0xff]
        %v907 = vld [vmem:[#allocation12 + $0x180] sm:$0xff]
        %v908 = vld [vmem:[#allocation12 + $0x188] sm:$0xff]
        %v909 = vld [vmem:[#allocation12 + $0x190] sm:$0xff]
        %v910 = vld [vmem:[#allocation12 + $0x198] sm:$0xff]
        %v911 = vld [vmem:[#allocation12 + $0x1a0] sm:$0xff]
        %v912 = vld [vmem:[#allocation12 + $0x1a8] sm:$0xff]
        %v913 = vld [vmem:[#allocation12 + $0x1b0] sm:$0xff]
        %v914 = vld [vmem:[#allocation12 + $0x1b8] sm:$0xff]
        %v915 = vld [vmem:[#allocation12 + $0x1c0] sm:$0xff]
        %v916 = vld [vmem:[#allocation12 + $0x1c8] sm:$0xff]
        %v917 = vld [vmem:[#allocation12 + $0x1d0] sm:$0xff]
        %v918 = vld [vmem:[#allocation12 + $0x1d8] sm:$0xff]
        %v919 = vld [vmem:[#allocation12 + $0x1e0] sm:$0xff]
        %v920 = vld [vmem:[#allocation12 + $0x1e8] sm:$0xff]
        %v921 = vld [vmem:[#allocation12 + $0x1f0] sm:$0xff]
        %v922 = vld [vmem:[#allocation12 + $0x1f8] sm:$0xff]
        %v923 = vld [vmem:[#allocation12 + $0x200] sm:$0xff]
        %v924 = vld [vmem:[#allocation12 + $0x208] sm:$0xff]
        %v925 = vld [vmem:[#allocation12 + $0x210] sm:$0xff]
        %v926 = vld [vmem:[#allocation12 + $0x218] sm:$0xff]
        %v927 = vld [vmem:[#allocation12 + $0x220] sm:$0xff]
        %v928 = vld [vmem:[#allocation12 + $0x228] sm:$0xff]
        %v929 = vld [vmem:[#allocation12 + $0x230] sm:$0xff]
        %v930 = vld [vmem:[#allocation12 + $0x238] sm:$0xff]
        %v931 = vld [vmem:[#allocation12 + $0x240] sm:$0xff]
        %v932 = vld [vmem:[#allocation12 + $0x248] sm:$0xff]
        %v933 = vld [vmem:[#allocation12 + $0x250] sm:$0xff]
        %v934 = vld [vmem:[#allocation12 + $0x258] sm:$0xff]
        %v935 = vld [vmem:[#allocation12 + $0x260] sm:$0xff]
        %v936 = vld [vmem:[#allocation12 + $0x268] sm:$0xff]
        %v937 = vld [vmem:[#allocation12 + $0x270] sm:$0xff]
        %v938 = vld [vmem:[#allocation12 + $0x278] sm:$0xff]
        %v939 = vld [vmem:[#allocation12 + $0x280] sm:$0xff]
        %v940 = vld [vmem:[#allocation12 + $0x288] sm:$0xff]
        %v941 = vld [vmem:[#allocation12 + $0x290] sm:$0xff]
        %v942 = vld [vmem:[#allocation12 + $0x298] sm:$0xff]
        %v943 = vld [vmem:[#allocation12 + $0x2a0] sm:$0xff]
        %v944 = vld [vmem:[#allocation12 + $0x2a8] sm:$0xff]
        %v945 = vld [vmem:[#allocation12 + $0x2b0] sm:$0xff]
        %v946 = vld [vmem:[#allocation12 + $0x2b8] sm:$0xff]
        %v947 = vld [vmem:[#allocation12 + $0x2c0] sm:$0xff]
        %v948 = vld [vmem:[#allocation12 + $0x2c8] sm:$0xff]
        %v949 = vld [vmem:[#allocation12 + $0x2d0] sm:$0xff]
        %v950 = vld [vmem:[#allocation12 + $0x2d8] sm:$0xff]
        %v951 = vld [vmem:[#allocation12 + $0x2e0] sm:$0xff]
        %v952 = vld [vmem:[#allocation12 + $0x2e8] sm:$0xff]
        %v953 = vld [vmem:[#allocation12 + $0x2f0] sm:$0xff]
        %v954 = vld [vmem:[#allocation12 + $0x2f8] sm:$0xff]
        %v955 = vld [vmem:[#allocation12 + $0x300] sm:$0xff]
        %v956 = vld [vmem:[#allocation12 + $0x308] sm:$0xff]
        %v957 = vld [vmem:[#allocation12 + $0x310] sm:$0xff]
        %v958 = vld [vmem:[#allocation12 + $0x318] sm:$0xff]
        %v959 = vld [vmem:[#allocation12 + $0x320] sm:$0xff]
        %v960 = vld [vmem:[#allocation12 + $0x328] sm:$0xff]
        %v961 = vld [vmem:[#allocation12 + $0x330] sm:$0xff]
        %v962 = vld [vmem:[#allocation12 + $0x338] sm:$0xff]
        %v963 = vld [vmem:[#allocation12 + $0x340] sm:$0xff]
        %v964 = vld [vmem:[#allocation12 + $0x348] sm:$0xff]
        %v965 = vld [vmem:[#allocation12 + $0x350] sm:$0xff]
        %v966 = vld [vmem:[#allocation12 + $0x358] sm:$0xff]
        %v967 = vld [vmem:[#allocation12 + $0x360] sm:$0xff]
        %v968 = vld [vmem:[#allocation12 + $0x368] sm:$0xff]
        %v969 = vld [vmem:[#allocation12 + $0x370] sm:$0xff]
        %v970 = vld [vmem:[#allocation12 + $0x378] sm:$0xff]
        %v971 = vld [vmem:[#allocation12 + $0x380] sm:$0xff]
        %v972 = vld [vmem:[#allocation12 + $0x388] sm:$0xff]
        %v973 = vld [vmem:[#allocation12 + $0x390] sm:$0xff]
        %v974 = vld [vmem:[#allocation12 + $0x398] sm:$0xff]
        %v975 = vld [vmem:[#allocation12 + $0x3a0] sm:$0xff]
        %v976 = vld [vmem:[#allocation12 + $0x3a8] sm:$0xff]
        %v977 = vld [vmem:[#allocation12 + $0x3b0] sm:$0xff]
        %v978 = vld [vmem:[#allocation12 + $0x3b8] sm:$0xff]
        %v979 = vld [vmem:[#allocation12 + $0x3c0] sm:$0xff]
        %v980 = vld [vmem:[#allocation12 + $0x3c8] sm:$0xff]
        %v981 = vld [vmem:[#allocation12 + $0x3d0] sm:$0xff]
        %v982 = vld [vmem:[#allocation12 + $0x3d8] sm:$0xff]
        %v983 = vld [vmem:[#allocation12 + $0x3e0] sm:$0xff]
        %v984 = vld [vmem:[#allocation12 + $0x3e8] sm:$0xff]
        %v985 = vld [vmem:[#allocation12 + $0x3f0] sm:$0xff]
        %v986 = vld [vmem:[#allocation12 + $0x3f8] sm:$0xff]
        %v987 = vld [vmem:[#allocation12 + $0x400] sm:$0xff]
        %v988 = vld [vmem:[#allocation12 + $0x408] sm:$0xff]
        %v989 = vld [vmem:[#allocation12 + $0x410] sm:$0xff]
        %v990 = vld [vmem:[#allocation12 + $0x418] sm:$0xff]
        %v991 = vld [vmem:[#allocation12 + $0x420] sm:$0xff]
        %v992 = vld [vmem:[#allocation12 + $0x428] sm:$0xff]
        %v993 = vld [vmem:[#allocation12 + $0x430] sm:$0xff]
        %v994 = vld [vmem:[#allocation12 + $0x438] sm:$0xff]
        %v995 = vld [vmem:[#allocation12 + $0x440] sm:$0xff]
        %v996 = vld [vmem:[#allocation12 + $0x448] sm:$0xff]
        %v997 = vld [vmem:[#allocation12 + $0x450] sm:$0xff]
        %v998 = vld [vmem:[#allocation12 + $0x458] sm:$0xff]
        %v999 = vld [vmem:[#allocation12 + $0x460] sm:$0xff]
        %v1000 = vld [vmem:[#allocation12 + $0x468] sm:$0xff]
        %v1001 = vld [vmem:[#allocation12 + $0x470] sm:$0xff]
        %v1002 = vld [vmem:[#allocation12 + $0x478] sm:$0xff]
        %v1003 = vld [vmem:[#allocation12 + $0x480] sm:$0xff]
        %v1004 = vld [vmem:[#allocation12 + $0x488] sm:$0xff]
        %v1005 = vld [vmem:[#allocation12 + $0x490] sm:$0xff]
        %v1006 = vld [vmem:[#allocation12 + $0x498] sm:$0xff]
        %v1007 = vld [vmem:[#allocation12 + $0x4a0] sm:$0xff]
        %v1008 = vld [vmem:[#allocation12 + $0x4a8] sm:$0xff]
        %v1009 = vld [vmem:[#allocation12 + $0x4b0] sm:$0xff]
        %v1010 = vld [vmem:[#allocation12 + $0x4b8] sm:$0xff]
        %v1011 = vld [vmem:[#allocation12 + $0x4c0] sm:$0xff]
        %v1012 = vld [vmem:[#allocation12 + $0x4c8] sm:$0xff]
        %v1013 = vld [vmem:[#allocation12 + $0x4d0] sm:$0xff]
        %v1014 = vld [vmem:[#allocation12 + $0x4d8] sm:$0xff]
        %v1015 = vld [vmem:[#allocation12 + $0x4e0] sm:$0xff]
        %v1016 = vld [vmem:[#allocation12 + $0x4e8] sm:$0xff]
        %v1017 = vld [vmem:[#allocation12 + $0x4f0] sm:$0xff]
        %v1018 = vld [vmem:[#allocation12 + $0x4f8] sm:$0xff]
        %v1019 = vld [vmem:[#allocation12 + $0x500] sm:$0xff]
        %v1020 = vld [vmem:[#allocation12 + $0x508] sm:$0xff]
        %v1021 = vld [vmem:[#allocation12 + $0x510] sm:$0xff]
        %v1022 = vld [vmem:[#allocation12 + $0x518] sm:$0xff]
        %v1023 = vld [vmem:[#allocation12 + $0x520] sm:$0xff]
        %v1024 = vld [vmem:[#allocation12 + $0x528] sm:$0xff]
        %v1025 = vld [vmem:[#allocation12 + $0x530] sm:$0xff]
        %v1026 = vld [vmem:[#allocation12 + $0x538] sm:$0xff]
        %v1027 = vld [vmem:[#allocation12 + $0x540] sm:$0xff]
        %v1028 = vld [vmem:[#allocation12 + $0x548] sm:$0xff]
        %v1029 = vld [vmem:[#allocation12 + $0x550] sm:$0xff]
        %v1030 = vld [vmem:[#allocation12 + $0x558] sm:$0xff]
        %v1031 = vld [vmem:[#allocation12 + $0x560] sm:$0xff]
        %v1032 = vld [vmem:[#allocation12 + $0x568] sm:$0xff]
        %v1033 = vld [vmem:[#allocation12 + $0x570] sm:$0xff]
        %v1034 = vld [vmem:[#allocation12 + $0x578] sm:$0xff]
        %v1035 = vld [vmem:[#allocation12 + $0x580] sm:$0xff]
        %v1036 = vld [vmem:[#allocation12 + $0x588] sm:$0xff]
        %v1037 = vld [vmem:[#allocation12 + $0x590] sm:$0xff]
        %v1038 = vld [vmem:[#allocation12 + $0x598] sm:$0xff]
        %v1039 = vld [vmem:[#allocation12 + $0x5a0] sm:$0xff]
        %v1040 = vld [vmem:[#allocation12 + $0x5a8] sm:$0xff]
        %v1041 = vld [vmem:[#allocation12 + $0x5b0] sm:$0xff]
        %v1042 = vld [vmem:[#allocation12 + $0x5b8] sm:$0xff]
        %v1043 = vld [vmem:[#allocation12 + $0x5c0] sm:$0xff]
        %v1044 = vld [vmem:[#allocation12 + $0x5c8] sm:$0xff]
        %v1045 = vld [vmem:[#allocation12 + $0x5d0] sm:$0xff]
        %v1046 = vld [vmem:[#allocation12 + $0x5d8] sm:$0xff]
        %v1047 = vld [vmem:[#allocation12 + $0x5e0] sm:$0xff]
        %v1048 = vld [vmem:[#allocation12 + $0x5e8] sm:$0xff]
        %v1049 = vld [vmem:[#allocation12 + $0x5f0] sm:$0xff]
        %v1050 = vld [vmem:[#allocation12 + $0x5f8] sm:$0xff]
        %v1051 = vld [vmem:[#allocation13] sm:$0xff]
        %v1052 = vld [vmem:[#allocation13 + $0x8] sm:$0xff]
        %v1053 = vld [vmem:[#allocation13 + $0x10] sm:$0xff]
        %v1054 = vld [vmem:[#allocation13 + $0x18] sm:$0xff]
        %v1055 = vld [vmem:[#allocation13 + $0x20] sm:$0xff]
        %v1056 = vld [vmem:[#allocation13 + $0x28] sm:$0xff]
        %v1057 = vld [vmem:[#allocation13 + $0x30] sm:$0xff]
        %v1058 = vld [vmem:[#allocation13 + $0x38] sm:$0xff]
        %v1059 = vld [vmem:[#allocation13 + $0x40] sm:$0xff]
        %v1060 = vld [vmem:[#allocation13 + $0x48] sm:$0xff]
        %v1061 = vld [vmem:[#allocation13 + $0x50] sm:$0xff]
        %v1062 = vld [vmem:[#allocation13 + $0x58] sm:$0xff]
        %v1063 = vld [vmem:[#allocation13 + $0x60] sm:$0xff]
        %v1064 = vld [vmem:[#allocation13 + $0x68] sm:$0xff]
        %v1065 = vld [vmem:[#allocation13 + $0x70] sm:$0xff]
        %v1066 = vld [vmem:[#allocation13 + $0x78] sm:$0xff]
        %v1067 = vld [vmem:[#allocation13 + $0x80] sm:$0xff]
        %v1068 = vld [vmem:[#allocation13 + $0x88] sm:$0xff]
        %v1069 = vld [vmem:[#allocation13 + $0x90] sm:$0xff]
        %v1070 = vld [vmem:[#allocation13 + $0x98] sm:$0xff]
        %v1071 = vld [vmem:[#allocation13 + $0xa0] sm:$0xff]
        %v1072 = vld [vmem:[#allocation13 + $0xa8] sm:$0xff]
        %v1073 = vld [vmem:[#allocation13 + $0xb0] sm:$0xff]
        %v1074 = vld [vmem:[#allocation13 + $0xb8] sm:$0xff]
        %v1075 = vld [vmem:[#allocation13 + $0xc0] sm:$0xff]
        %v1076 = vld [vmem:[#allocation13 + $0xc8] sm:$0xff]
        %v1077 = vld [vmem:[#allocation13 + $0xd0] sm:$0xff]
        %v1078 = vld [vmem:[#allocation13 + $0xd8] sm:$0xff]
        %v1079 = vld [vmem:[#allocation13 + $0xe0] sm:$0xff]
        %v1080 = vld [vmem:[#allocation13 + $0xe8] sm:$0xff]
        %v1081 = vld [vmem:[#allocation13 + $0xf0] sm:$0xff]
        %v1082 = vld [vmem:[#allocation13 + $0xf8] sm:$0xff]
        %v1083 = vld [vmem:[#allocation13 + $0x100] sm:$0xff]
        %v1084 = vld [vmem:[#allocation13 + $0x108] sm:$0xff]
        %v1085 = vld [vmem:[#allocation13 + $0x110] sm:$0xff]
        %v1086 = vld [vmem:[#allocation13 + $0x118] sm:$0xff]
        %v1087 = vld [vmem:[#allocation13 + $0x120] sm:$0xff]
        %v1088 = vld [vmem:[#allocation13 + $0x128] sm:$0xff]
        %v1089 = vld [vmem:[#allocation13 + $0x130] sm:$0xff]
        %v1090 = vld [vmem:[#allocation13 + $0x138] sm:$0xff]
        %v1091 = vld [vmem:[#allocation13 + $0x140] sm:$0xff]
        %v1092 = vld [vmem:[#allocation13 + $0x148] sm:$0xff]
        %v1093 = vld [vmem:[#allocation13 + $0x150] sm:$0xff]
        %v1094 = vld [vmem:[#allocation13 + $0x158] sm:$0xff]
        %v1095 = vld [vmem:[#allocation13 + $0x160] sm:$0xff]
        %v1096 = vld [vmem:[#allocation13 + $0x168] sm:$0xff]
        %v1097 = vld [vmem:[#allocation13 + $0x170] sm:$0xff]
        %v1098 = vld [vmem:[#allocation13 + $0x178] sm:$0xff]
        %v1099 = vld [vmem:[#allocation13 + $0x180] sm:$0xff]
        %v1100 = vld [vmem:[#allocation13 + $0x188] sm:$0xff]
        %v1101 = vld [vmem:[#allocation13 + $0x190] sm:$0xff]
        %v1102 = vld [vmem:[#allocation13 + $0x198] sm:$0xff]
        %v1103 = vld [vmem:[#allocation13 + $0x1a0] sm:$0xff]
        %v1104 = vld [vmem:[#allocation13 + $0x1a8] sm:$0xff]
        %v1105 = vld [vmem:[#allocation13 + $0x1b0] sm:$0xff]
        %v1106 = vld [vmem:[#allocation13 + $0x1b8] sm:$0xff]
        %v1107 = vld [vmem:[#allocation13 + $0x1c0] sm:$0xff]
        %v1108 = vld [vmem:[#allocation13 + $0x1c8] sm:$0xff]
        %v1109 = vld [vmem:[#allocation13 + $0x1d0] sm:$0xff]
        %v1110 = vld [vmem:[#allocation13 + $0x1d8] sm:$0xff]
        %v1111 = vld [vmem:[#allocation13 + $0x1e0] sm:$0xff]
        %v1112 = vld [vmem:[#allocation13 + $0x1e8] sm:$0xff]
        %v1113 = vld [vmem:[#allocation13 + $0x1f0] sm:$0xff]
        %v1114 = vld [vmem:[#allocation13 + $0x1f8] sm:$0xff]
        %v1115 = vld [vmem:[#allocation13 + $0x200] sm:$0xff]
        %v1116 = vld [vmem:[#allocation13 + $0x208] sm:$0xff]
        %v1117 = vld [vmem:[#allocation13 + $0x210] sm:$0xff]
        %v1118 = vld [vmem:[#allocation13 + $0x218] sm:$0xff]
        %v1119 = vld [vmem:[#allocation13 + $0x220] sm:$0xff]
        %v1120 = vld [vmem:[#allocation13 + $0x228] sm:$0xff]
        %v1121 = vld [vmem:[#allocation13 + $0x230] sm:$0xff]
        %v1122 = vld [vmem:[#allocation13 + $0x238] sm:$0xff]
        %v1123 = vld [vmem:[#allocation13 + $0x240] sm:$0xff]
        %v1124 = vld [vmem:[#allocation13 + $0x248] sm:$0xff]
        %v1125 = vld [vmem:[#allocation13 + $0x250] sm:$0xff]
        %v1126 = vld [vmem:[#allocation13 + $0x258] sm:$0xff]
        %v1127 = vld [vmem:[#allocation13 + $0x260] sm:$0xff]
        %v1128 = vld [vmem:[#allocation13 + $0x268] sm:$0xff]
        %v1129 = vld [vmem:[#allocation13 + $0x270] sm:$0xff]
        %v1130 = vld [vmem:[#allocation13 + $0x278] sm:$0xff]
        %v1131 = vld [vmem:[#allocation13 + $0x280] sm:$0xff]
        %v1132 = vld [vmem:[#allocation13 + $0x288] sm:$0xff]
        %v1133 = vld [vmem:[#allocation13 + $0x290] sm:$0xff]
        %v1134 = vld [vmem:[#allocation13 + $0x298] sm:$0xff]
        %v1135 = vld [vmem:[#allocation13 + $0x2a0] sm:$0xff]
        %v1136 = vld [vmem:[#allocation13 + $0x2a8] sm:$0xff]
        %v1137 = vld [vmem:[#allocation13 + $0x2b0] sm:$0xff]
        %v1138 = vld [vmem:[#allocation13 + $0x2b8] sm:$0xff]
        %v1139 = vld [vmem:[#allocation13 + $0x2c0] sm:$0xff]
        %v1140 = vld [vmem:[#allocation13 + $0x2c8] sm:$0xff]
        %v1141 = vld [vmem:[#allocation13 + $0x2d0] sm:$0xff]
        %v1142 = vld [vmem:[#allocation13 + $0x2d8] sm:$0xff]
        %v1143 = vld [vmem:[#allocation13 + $0x2e0] sm:$0xff]
        %v1144 = vld [vmem:[#allocation13 + $0x2e8] sm:$0xff]
        %v1145 = vld [vmem:[#allocation13 + $0x2f0] sm:$0xff]
        %v1146 = vld [vmem:[#allocation13 + $0x2f8] sm:$0xff]
        %v1147 = vld [vmem:[#allocation13 + $0x300] sm:$0xff]
        %v1148 = vld [vmem:[#allocation13 + $0x308] sm:$0xff]
        %v1149 = vld [vmem:[#allocation13 + $0x310] sm:$0xff]
        %v1150 = vld [vmem:[#allocation13 + $0x318] sm:$0xff]
        %v1151 = vld [vmem:[#allocation13 + $0x320] sm:$0xff]
        %v1152 = vld [vmem:[#allocation13 + $0x328] sm:$0xff]
        %v1153 = vld [vmem:[#allocation13 + $0x330] sm:$0xff]
        %v1154 = vld [vmem:[#allocation13 + $0x338] sm:$0xff]
        %v1155 = vld [vmem:[#allocation13 + $0x340] sm:$0xff]
        %v1156 = vld [vmem:[#allocation13 + $0x348] sm:$0xff]
        %v1157 = vld [vmem:[#allocation13 + $0x350] sm:$0xff]
        %v1158 = vld [vmem:[#allocation13 + $0x358] sm:$0xff]
        %v1159 = vld [vmem:[#allocation13 + $0x360] sm:$0xff]
        %v1160 = vld [vmem:[#allocation13 + $0x368] sm:$0xff]
        %v1161 = vld [vmem:[#allocation13 + $0x370] sm:$0xff]
        %v1162 = vld [vmem:[#allocation13 + $0x378] sm:$0xff]
        %v1163 = vld [vmem:[#allocation13 + $0x380] sm:$0xff]
        %v1164 = vld [vmem:[#allocation13 + $0x388] sm:$0xff]
        %v1165 = vld [vmem:[#allocation13 + $0x390] sm:$0xff]
        %v1166 = vld [vmem:[#allocation13 + $0x398] sm:$0xff]
        %v1167 = vld [vmem:[#allocation13 + $0x3a0] sm:$0xff]
        %v1168 = vld [vmem:[#allocation13 + $0x3a8] sm:$0xff]
        %v1169 = vld [vmem:[#allocation13 + $0x3b0] sm:$0xff]
        %v1170 = vld [vmem:[#allocation13 + $0x3b8] sm:$0xff]
        %v1171 = vld [vmem:[#allocation13 + $0x3c0] sm:$0xff]
        %v1172 = vld [vmem:[#allocation13 + $0x3c8] sm:$0xff]
        %v1173 = vld [vmem:[#allocation13 + $0x3d0] sm:$0xff]
        %v1174 = vld [vmem:[#allocation13 + $0x3d8] sm:$0xff]
        %v1175 = vld [vmem:[#allocation13 + $0x3e0] sm:$0xff]
        %v1176 = vld [vmem:[#allocation13 + $0x3e8] sm:$0xff]
        %v1177 = vld [vmem:[#allocation13 + $0x3f0] sm:$0xff]
        %v1178 = vld [vmem:[#allocation13 + $0x3f8] sm:$0xff]
        %v1179 = vld [vmem:[#allocation13 + $0x400] sm:$0xff]
        %v1180 = vld [vmem:[#allocation13 + $0x408] sm:$0xff]
        %v1181 = vld [vmem:[#allocation13 + $0x410] sm:$0xff]
        %v1182 = vld [vmem:[#allocation13 + $0x418] sm:$0xff]
        %v1183 = vld [vmem:[#allocation13 + $0x420] sm:$0xff]
        %v1184 = vld [vmem:[#allocation13 + $0x428] sm:$0xff]
        %v1185 = vld [vmem:[#allocation13 + $0x430] sm:$0xff]
        %v1186 = vld [vmem:[#allocation13 + $0x438] sm:$0xff]
        %v1187 = vld [vmem:[#allocation13 + $0x440] sm:$0xff]
        %v1188 = vld [vmem:[#allocation13 + $0x448] sm:$0xff]
        %v1189 = vld [vmem:[#allocation13 + $0x450] sm:$0xff]
        %v1190 = vld [vmem:[#allocation13 + $0x458] sm:$0xff]
        %v1191 = vld [vmem:[#allocation13 + $0x460] sm:$0xff]
        %v1192 = vld [vmem:[#allocation13 + $0x468] sm:$0xff]
        %v1193 = vld [vmem:[#allocation13 + $0x470] sm:$0xff]
        %v1194 = vld [vmem:[#allocation13 + $0x478] sm:$0xff]
        %v1195 = vld [vmem:[#allocation13 + $0x480] sm:$0xff]
        %v1196 = vld [vmem:[#allocation13 + $0x488] sm:$0xff]
        %v1197 = vld [vmem:[#allocation13 + $0x490] sm:$0xff]
        %v1198 = vld [vmem:[#allocation13 + $0x498] sm:$0xff]
        %v1199 = vld [vmem:[#allocation13 + $0x4a0] sm:$0xff]
        %v1200 = vld [vmem:[#allocation13 + $0x4a8] sm:$0xff]
        %v1201 = vld [vmem:[#allocation13 + $0x4b0] sm:$0xff]
        %v1202 = vld [vmem:[#allocation13 + $0x4b8] sm:$0xff]
        %v1203 = vld [vmem:[#allocation13 + $0x4c0] sm:$0xff]
        %v1204 = vld [vmem:[#allocation13 + $0x4c8] sm:$0xff]
        %v1205 = vld [vmem:[#allocation13 + $0x4d0] sm:$0xff]
        %v1206 = vld [vmem:[#allocation13 + $0x4d8] sm:$0xff]
        %v1207 = vld [vmem:[#allocation13 + $0x4e0] sm:$0xff]
        %v1208 = vld [vmem:[#allocation13 + $0x4e8] sm:$0xff]
        %v1209 = vld [vmem:[#allocation13 + $0x4f0] sm:$0xff]
        %v1210 = vld [vmem:[#allocation13 + $0x4f8] sm:$0xff]
        %v1211 = vld [vmem:[#allocation13 + $0x500] sm:$0xff]
        %v1212 = vld [vmem:[#allocation13 + $0x508] sm:$0xff]
        %v1213 = vld [vmem:[#allocation13 + $0x510] sm:$0xff]
        %v1214 = vld [vmem:[#allocation13 + $0x518] sm:$0xff]
        %v1215 = vld [vmem:[#allocation13 + $0x520] sm:$0xff]
        %v1216 = vld [vmem:[#allocation13 + $0x528] sm:$0xff]
        %v1217 = vld [vmem:[#allocation13 + $0x530] sm:$0xff]
        %v1218 = vld [vmem:[#allocation13 + $0x538] sm:$0xff]
        %v1219 = vld [vmem:[#allocation13 + $0x540] sm:$0xff]
        %v1220 = vld [vmem:[#allocation13 + $0x548] sm:$0xff]
        %v1221 = vld [vmem:[#allocation13 + $0x550] sm:$0xff]
        %v1222 = vld [vmem:[#allocation13 + $0x558] sm:$0xff]
        %v1223 = vld [vmem:[#allocation13 + $0x560] sm:$0xff]
        %v1224 = vld [vmem:[#allocation13 + $0x568] sm:$0xff]
        %v1225 = vld [vmem:[#allocation13 + $0x570] sm:$0xff]
        %v1226 = vld [vmem:[#allocation13 + $0x578] sm:$0xff]
        %v1227 = vld [vmem:[#allocation13 + $0x580] sm:$0xff]
        %v1228 = vld [vmem:[#allocation13 + $0x588] sm:$0xff]
        %v1229 = vld [vmem:[#allocation13 + $0x590] sm:$0xff]
        %v1230 = vld [vmem:[#allocation13 + $0x598] sm:$0xff]
        %v1231 = vld [vmem:[#allocation13 + $0x5a0] sm:$0xff]
        %v1232 = vld [vmem:[#allocation13 + $0x5a8] sm:$0xff]
        %v1233 = vld [vmem:[#allocation13 + $0x5b0] sm:$0xff]
        %v1234 = vld [vmem:[#allocation13 + $0x5b8] sm:$0xff]
        %v1235 = vld [vmem:[#allocation13 + $0x5c0] sm:$0xff]
        %v1236 = vld [vmem:[#allocation13 + $0x5c8] sm:$0xff]
        %v1237 = vld [vmem:[#allocation13 + $0x5d0] sm:$0xff]
        %v1238 = vld [vmem:[#allocation13 + $0x5d8] sm:$0xff]
        %v1239 = vld [vmem:[#allocation13 + $0x5e0] sm:$0xff]
        %v1240 = vld [vmem:[#allocation13 + $0x5e8] sm:$0xff]
        %v1241 = vld [vmem:[#allocation13 + $0x5f0] sm:$0xff]
        %v1242 = vld [vmem:[#allocation13 + $0x5f8] sm:$0xff]
        %v1247 = vunpack.c.l.b16 %v851
        %v1248 = vunpack.c.h.b16 %v851
        %v1249 = vunpack.c.l.b16 %v852
        %v1250 = vunpack.c.l.b16 %v853
        %v1251 = vunpack.c.h.b16 %v853
        %v1252 = vunpack.c.l.b16 %v854
        %v1253 = vpack.c.b16 %v1250, %v1247
        %v1254 = vpack.c.b16 %v1251, %v1248
        %v1255 = vpack.c.b16 %v1252, %v1249
        %v1451 = vunpack.c.l.b16 %v1051
        %v1452 = vunpack.c.h.b16 %v1051
        %v1453 = vunpack.c.l.b16 %v1052
        %v1454 = vunpack.c.h.b16 %v1052
        %v1455 = vunpack.c.l.b16 %v1053
        %v1456 = vunpack.c.h.b16 %v1053
        %v1457 = vunpack.c.l.b16 %v1054
        %v1458 = vunpack.c.h.b16 %v1054
        %v1459 = vunpack.c.l.b16 %v1055
        %v1460 = vunpack.c.h.b16 %v1055
        %v1461 = vunpack.c.l.b16 %v1056
        %v1462 = vunpack.c.h.b16 %v1056
        %v1463 = vunpack.c.l.b16 %v1057
        %v1464 = vunpack.c.h.b16 %v1057
        %v1465 = vunpack.c.l.b16 %v1058
        %v1466 = vunpack.c.h.b16 %v1058
        %v1467 = vunpack.c.l.b16 %v1059
        %v1468 = vunpack.c.h.b16 %v1059
        %v1469 = vunpack.c.l.b16 %v1060
        %v1470 = vunpack.c.h.b16 %v1060
        %v1471 = vunpack.c.l.b16 %v1061
        %v1472 = vunpack.c.h.b16 %v1061
        %v1473 = vunpack.c.l.b16 %v1062
        %v1474 = vunpack.c.h.b16 %v1062
        %v1475 = vunpack.c.l.b16 %v1063
        %v1476 = vunpack.c.h.b16 %v1063
        %v1477 = vunpack.c.l.b16 %v1064
        %v1478 = vunpack.c.h.b16 %v1064
        %v1479 = vunpack.c.l.b16 %v1065
        %v1480 = vunpack.c.h.b16 %v1065
        %v1481 = vunpack.c.l.b16 %v1066
        %v1482 = vunpack.c.h.b16 %v1066
        %v1483 = vunpack.c.l.b16 %v1067
        %v1484 = vunpack.c.h.b16 %v1067
        %v1485 = vunpack.c.l.b16 %v1068
        %v1486 = vunpack.c.h.b16 %v1068
        %v1487 = vunpack.c.l.b16 %v1069
        %v1488 = vunpack.c.h.b16 %v1069
        %v1489 = vunpack.c.l.b16 %v1070
        %v1490 = vunpack.c.h.b16 %v1070
        %v1491 = vunpack.c.l.b16 %v1071
        %v1492 = vunpack.c.h.b16 %v1071
        %v1493 = vunpack.c.l.b16 %v1072
        %v1494 = vunpack.c.h.b16 %v1072
        %v1495 = vunpack.c.l.b16 %v1073
        %v1496 = vunpack.c.h.b16 %v1073
        %v1497 = vunpack.c.l.b16 %v1074
        %v1498 = vunpack.c.h.b16 %v1074
        %v1499 = vunpack.c.l.b16 %v1075
        %v1500 = vunpack.c.h.b16 %v1075
        %v1501 = vunpack.c.l.b16 %v1076
        %v1502 = vunpack.c.h.b16 %v1076
        %v1503 = vunpack.c.l.b16 %v1077
        %v1504 = vunpack.c.h.b16 %v1077
        %v1505 = vunpack.c.l.b16 %v1078
        %v1506 = vunpack.c.h.b16 %v1078
        %v1507 = vunpack.c.l.b16 %v1079
        %v1508 = vunpack.c.h.b16 %v1079
        %v1509 = vunpack.c.l.b16 %v1080
        %v1510 = vunpack.c.h.b16 %v1080
        %v1511 = vunpack.c.l.b16 %v1081
        %v1512 = vunpack.c.h.b16 %v1081
        %v1513 = vunpack.c.l.b16 %v1082
        %v1514 = vunpack.c.h.b16 %v1082
        %v1515 = vunpack.c.l.b16 %v1083
        %v1516 = vunpack.c.h.b16 %v1083
        %v1517 = vunpack.c.l.b16 %v1084
        %v1518 = vunpack.c.h.b16 %v1084
        %v1519 = vunpack.c.l.b16 %v1085
        %v1520 = vunpack.c.h.b16 %v1085
        %v1521 = vunpack.c.l.b16 %v1086
        %v1522 = vunpack.c.h.b16 %v1086
        %v1523 = vunpack.c.l.b16 %v1087
        %v1524 = vunpack.c.h.b16 %v1087
        %v1525 = vunpack.c.l.b16 %v1088
        %v1526 = vunpack.c.h.b16 %v1088
        %v1527 = vunpack.c.l.b16 %v1089
        %v1528 = vunpack.c.h.b16 %v1089
        %v1529 = vunpack.c.l.b16 %v1090
        %v1530 = vunpack.c.h.b16 %v1090
        %v1531 = vunpack.c.l.b16 %v1091
        %v1532 = vunpack.c.h.b16 %v1091
        %v1533 = vunpack.c.l.b16 %v1092
        %v1534 = vunpack.c.h.b16 %v1092
        %v1535 = vunpack.c.l.b16 %v1093
        %v1536 = vunpack.c.h.b16 %v1093
        %v1537 = vunpack.c.l.b16 %v1094
        %v1538 = vunpack.c.h.b16 %v1094
        %v1539 = vunpack.c.l.b16 %v1095
        %v1540 = vunpack.c.h.b16 %v1095
        %v1541 = vunpack.c.l.b16 %v1096
        %v1542 = vunpack.c.h.b16 %v1096
        %v1543 = vunpack.c.l.b16 %v1097
        %v1544 = vunpack.c.h.b16 %v1097
        %v1545 = vunpack.c.l.b16 %v1098
        %v1546 = vunpack.c.h.b16 %v1098
        %v1547 = vunpack.c.l.b16 %v1099
        %v1548 = vunpack.c.h.b16 %v1099
        %v1549 = vunpack.c.l.b16 %v1100
        %v1550 = vunpack.c.h.b16 %v1100
        %v1551 = vunpack.c.l.b16 %v1101
        %v1552 = vunpack.c.h.b16 %v1101
        %v1553 = vunpack.c.l.b16 %v1102
        %v1554 = vunpack.c.h.b16 %v1102
        %v1555 = vunpack.c.l.b16 %v1103
        %v1556 = vunpack.c.h.b16 %v1103
        %v1557 = vunpack.c.l.b16 %v1104
        %v1558 = vunpack.c.h.b16 %v1104
        %v1559 = vunpack.c.l.b16 %v1105
        %v1560 = vunpack.c.h.b16 %v1105
        %v1561 = vunpack.c.l.b16 %v1106
        %v1562 = vunpack.c.h.b16 %v1106
        %v1563 = vunpack.c.l.b16 %v1107
        %v1564 = vunpack.c.h.b16 %v1107
        %v1565 = vunpack.c.l.b16 %v1108
        %v1566 = vunpack.c.h.b16 %v1108
        %v1567 = vunpack.c.l.b16 %v1109
        %v1568 = vunpack.c.h.b16 %v1109
        %v1569 = vunpack.c.l.b16 %v1110
        %v1570 = vunpack.c.h.b16 %v1110
        %v1571 = vunpack.c.l.b16 %v1111
        %v1572 = vunpack.c.h.b16 %v1111
        %v1573 = vunpack.c.l.b16 %v1112
        %v1574 = vunpack.c.h.b16 %v1112
        %v1575 = vunpack.c.l.b16 %v1113
        %v1576 = vunpack.c.h.b16 %v1113
        %v1577 = vunpack.c.l.b16 %v1114
        %v1578 = vunpack.c.h.b16 %v1114
        %v1579 = vunpack.c.l.b16 %v1115
        %v1580 = vunpack.c.h.b16 %v1115
        %v1581 = vunpack.c.l.b16 %v1116
        %v1582 = vunpack.c.h.b16 %v1116
        %v1583 = vunpack.c.l.b16 %v1117
        %v1584 = vunpack.c.h.b16 %v1117
        %v1585 = vunpack.c.l.b16 %v1118
        %v1586 = vunpack.c.h.b16 %v1118
        %v1587 = vunpack.c.l.b16 %v1119
        %v1588 = vunpack.c.h.b16 %v1119
        %v1589 = vunpack.c.l.b16 %v1120
        %v1590 = vunpack.c.h.b16 %v1120
        %v1591 = vunpack.c.l.b16 %v1121
        %v1592 = vunpack.c.h.b16 %v1121
        %v1593 = vunpack.c.l.b16 %v1122
        %v1594 = vunpack.c.h.b16 %v1122
        %v1595 = vunpack.c.l.b16 %v1123
        %v1596 = vunpack.c.h.b16 %v1123
        %v1597 = vunpack.c.l.b16 %v1124
        %v1598 = vunpack.c.h.b16 %v1124
        %v1599 = vunpack.c.l.b16 %v1125
        %v1600 = vunpack.c.h.b16 %v1125
        %v1601 = vunpack.c.l.b16 %v1126
        %v1602 = vunpack.c.h.b16 %v1126
        %v1603 = vunpack.c.l.b16 %v1127
        %v1604 = vunpack.c.h.b16 %v1127
        %v1605 = vunpack.c.l.b16 %v1128
        %v1606 = vunpack.c.h.b16 %v1128
        %v1607 = vunpack.c.l.b16 %v1129
        %v1608 = vunpack.c.h.b16 %v1129
        %v1609 = vunpack.c.l.b16 %v1130
        %v1610 = vunpack.c.h.b16 %v1130
        %v1611 = vunpack.c.l.b16 %v1131
        %v1612 = vunpack.c.h.b16 %v1131
        %v1613 = vunpack.c.l.b16 %v1132
        %v1614 = vunpack.c.h.b16 %v1132
        %v1615 = vunpack.c.l.b16 %v1133
        %v1616 = vunpack.c.h.b16 %v1133
        %v1617 = vunpack.c.l.b16 %v1134
        %v1618 = vunpack.c.h.b16 %v1134
        %v1619 = vunpack.c.l.b16 %v1135
        %v1620 = vunpack.c.h.b16 %v1135
        %v1621 = vunpack.c.l.b16 %v1136
        %v1622 = vunpack.c.h.b16 %v1136
        %v1623 = vunpack.c.l.b16 %v1137
        %v1624 = vunpack.c.h.b16 %v1137
        %v1625 = vunpack.c.l.b16 %v1138
        %v1626 = vunpack.c.h.b16 %v1138
        %v1627 = vunpack.c.l.b16 %v1139
        %v1628 = vunpack.c.h.b16 %v1139
        %v1629 = vunpack.c.l.b16 %v1140
        %v1630 = vunpack.c.h.b16 %v1140
        %v1631 = vunpack.c.l.b16 %v1141
        %v1632 = vunpack.c.h.b16 %v1141
        %v1633 = vunpack.c.l.b16 %v1142
        %v1634 = vunpack.c.h.b16 %v1142
        %v1635 = vunpack.c.l.b16 %v1143
        %v1636 = vunpack.c.h.b16 %v1143
        %v1637 = vunpack.c.l.b16 %v1144
        %v1638 = vunpack.c.h.b16 %v1144
        %v1639 = vunpack.c.l.b16 %v1145
        %v1640 = vunpack.c.h.b16 %v1145
        %v1641 = vunpack.c.l.b16 %v1146
        %v1642 = vunpack.c.h.b16 %v1146
        %v1643 = vunpack.c.l.b16 %v1147
        %v1644 = vunpack.c.h.b16 %v1147
        %v1645 = vunpack.c.l.b16 %v1148
        %v1646 = vunpack.c.h.b16 %v1148
        %v1647 = vunpack.c.l.b16 %v1149
        %v1648 = vunpack.c.h.b16 %v1149
        %v1649 = vunpack.c.l.b16 %v1150
        %v1650 = vunpack.c.h.b16 %v1150
        %v1651 = vunpack.c.l.b16 %v1151
        %v1652 = vunpack.c.h.b16 %v1151
        %v1653 = vunpack.c.l.b16 %v1152
        %v1654 = vunpack.c.h.b16 %v1152
        %v1655 = vunpack.c.l.b16 %v1153
        %v1656 = vunpack.c.h.b16 %v1153
        %v1657 = vunpack.c.l.b16 %v1154
        %v1658 = vunpack.c.h.b16 %v1154
        %v1659 = vunpack.c.l.b16 %v1155
        %v1660 = vunpack.c.h.b16 %v1155
        %v1661 = vunpack.c.l.b16 %v1156
        %v1662 = vunpack.c.h.b16 %v1156
        %v1663 = vunpack.c.l.b16 %v1157
        %v1664 = vunpack.c.h.b16 %v1157
        %v1665 = vunpack.c.l.b16 %v1158
        %v1666 = vunpack.c.h.b16 %v1158
        %v1667 = vunpack.c.l.b16 %v1159
        %v1668 = vunpack.c.h.b16 %v1159
        %v1669 = vunpack.c.l.b16 %v1160
        %v1670 = vunpack.c.h.b16 %v1160
        %v1671 = vunpack.c.l.b16 %v1161
        %v1672 = vunpack.c.h.b16 %v1161
        %v1673 = vunpack.c.l.b16 %v1162
        %v1674 = vunpack.c.h.b16 %v1162
        %v1675 = vunpack.c.l.b16 %v1163
        %v1676 = vunpack.c.h.b16 %v1163
        %v1677 = vunpack.c.l.b16 %v1164
        %v1678 = vunpack.c.h.b16 %v1164
        %v1679 = vunpack.c.l.b16 %v1165
        %v1680 = vunpack.c.h.b16 %v1165
        %v1681 = vunpack.c.l.b16 %v1166
        %v1682 = vunpack.c.h.b16 %v1166
        %v1683 = vunpack.c.l.b16 %v1167
        %v1684 = vunpack.c.h.b16 %v1167
        %v1685 = vunpack.c.l.b16 %v1168
        %v1686 = vunpack.c.h.b16 %v1168
        %v1687 = vunpack.c.l.b16 %v1169
        %v1688 = vunpack.c.h.b16 %v1169
        %v1689 = vunpack.c.l.b16 %v1170
        %v1690 = vunpack.c.h.b16 %v1170
        %v1691 = vunpack.c.l.b16 %v1171
        %v1692 = vunpack.c.h.b16 %v1171
        %v1693 = vunpack.c.l.b16 %v1172
        %v1694 = vunpack.c.h.b16 %v1172
        %v1695 = vunpack.c.l.b16 %v1173
        %v1696 = vunpack.c.h.b16 %v1173
        %v1697 = vunpack.c.l.b16 %v1174
        %v1698 = vunpack.c.h.b16 %v1174
        %v1699 = vunpack.c.l.b16 %v1175
        %v1700 = vunpack.c.h.b16 %v1175
        %v1701 = vunpack.c.l.b16 %v1176
        %v1702 = vunpack.c.h.b16 %v1176
        %v1703 = vunpack.c.l.b16 %v1177
        %v1704 = vunpack.c.h.b16 %v1177
        %v1705 = vunpack.c.l.b16 %v1178
        %v1706 = vunpack.c.h.b16 %v1178
        %v1707 = vunpack.c.l.b16 %v1179
        %v1708 = vunpack.c.h.b16 %v1179
        %v1709 = vunpack.c.l.b16 %v1180
        %v1710 = vunpack.c.h.b16 %v1180
        %v1711 = vunpack.c.l.b16 %v1181
        %v1712 = vunpack.c.h.b16 %v1181
        %v1713 = vunpack.c.l.b16 %v1182
        %v1714 = vunpack.c.h.b16 %v1182
        %v1715 = vunpack.c.l.b16 %v1183
        %v1716 = vunpack.c.h.b16 %v1183
        %v1717 = vunpack.c.l.b16 %v1184
        %v1718 = vunpack.c.h.b16 %v1184
        %v1719 = vunpack.c.l.b16 %v1185
        %v1720 = vunpack.c.h.b16 %v1185
        %v1721 = vunpack.c.l.b16 %v1186
        %v1722 = vunpack.c.h.b16 %v1186
        %v1723 = vunpack.c.l.b16 %v1187
        %v1724 = vunpack.c.h.b16 %v1187
        %v1725 = vunpack.c.l.b16 %v1188
        %v1726 = vunpack.c.h.b16 %v1188
        %v1727 = vunpack.c.l.b16 %v1189
        %v1728 = vunpack.c.h.b16 %v1189
        %v1729 = vunpack.c.l.b16 %v1190
        %v1730 = vunpack.c.h.b16 %v1190
        %v1731 = vunpack.c.l.b16 %v1191
        %v1732 = vunpack.c.h.b16 %v1191
        %v1733 = vunpack.c.l.b16 %v1192
        %v1734 = vunpack.c.h.b16 %v1192
        %v1735 = vunpack.c.l.b16 %v1193
        %v1736 = vunpack.c.h.b16 %v1193
        %v1737 = vunpack.c.l.b16 %v1194
        %v1738 = vunpack.c.h.b16 %v1194
        %v1739 = vunpack.c.l.b16 %v1195
        %v1740 = vunpack.c.h.b16 %v1195
        %v1741 = vunpack.c.l.b16 %v1196
        %v1742 = vunpack.c.h.b16 %v1196
        %v1743 = vunpack.c.l.b16 %v1197
        %v1744 = vunpack.c.h.b16 %v1197
        %v1745 = vunpack.c.l.b16 %v1198
        %v1746 = vunpack.c.h.b16 %v1198
        %v1747 = vunpack.c.l.b16 %v1199
        %v1748 = vunpack.c.h.b16 %v1199
        %v1749 = vunpack.c.l.b16 %v1200
        %v1750 = vunpack.c.h.b16 %v1200
        %v1751 = vunpack.c.l.b16 %v1201
        %v1752 = vunpack.c.h.b16 %v1201
        %v1753 = vunpack.c.l.b16 %v1202
        %v1754 = vunpack.c.h.b16 %v1202
        %v1755 = vunpack.c.l.b16 %v1203
        %v1756 = vunpack.c.h.b16 %v1203
        %v1757 = vunpack.c.l.b16 %v1204
        %v1758 = vunpack.c.h.b16 %v1204
        %v1759 = vunpack.c.l.b16 %v1205
        %v1760 = vunpack.c.h.b16 %v1205
        %v1761 = vunpack.c.l.b16 %v1206
        %v1762 = vunpack.c.h.b16 %v1206
        %v1763 = vunpack.c.l.b16 %v1207
        %v1764 = vunpack.c.h.b16 %v1207
        %v1765 = vunpack.c.l.b16 %v1208
        %v1766 = vunpack.c.h.b16 %v1208
        %v1767 = vunpack.c.l.b16 %v1209
        %v1768 = vunpack.c.h.b16 %v1209
        %v1769 = vunpack.c.l.b16 %v1210
        %v1770 = vunpack.c.h.b16 %v1210
        %v1771 = vunpack.c.l.b16 %v1211
        %v1772 = vunpack.c.h.b16 %v1211
        %v1773 = vunpack.c.l.b16 %v1212
        %v1774 = vunpack.c.h.b16 %v1212
        %v1775 = vunpack.c.l.b16 %v1213
        %v1776 = vunpack.c.h.b16 %v1213
        %v1777 = vunpack.c.l.b16 %v1214
        %v1778 = vunpack.c.h.b16 %v1214
        %v1779 = vunpack.c.l.b16 %v1215
        %v1780 = vunpack.c.h.b16 %v1215
        %v1781 = vunpack.c.l.b16 %v1216
        %v1782 = vunpack.c.h.b16 %v1216
        %v1783 = vunpack.c.l.b16 %v1217
        %v1784 = vunpack.c.h.b16 %v1217
        %v1785 = vunpack.c.l.b16 %v1218
        %v1786 = vunpack.c.h.b16 %v1218
        %v1787 = vunpack.c.l.b16 %v1219
        %v1788 = vunpack.c.h.b16 %v1219
        %v1789 = vunpack.c.l.b16 %v1220
        %v1790 = vunpack.c.h.b16 %v1220
        %v1791 = vunpack.c.l.b16 %v1221
        %v1792 = vunpack.c.h.b16 %v1221
        %v1793 = vunpack.c.l.b16 %v1222
        %v1794 = vunpack.c.h.b16 %v1222
        %v1795 = vunpack.c.l.b16 %v1223
        %v1796 = vunpack.c.h.b16 %v1223
        %v1797 = vunpack.c.l.b16 %v1224
        %v1798 = vunpack.c.h.b16 %v1224
        %v1799 = vunpack.c.l.b16 %v1225
        %v1800 = vunpack.c.h.b16 %v1225
        %v1801 = vunpack.c.l.b16 %v1226
        %v1802 = vunpack.c.h.b16 %v1226
        %v1803 = vunpack.c.l.b16 %v1227
        %v1804 = vunpack.c.h.b16 %v1227
        %v1805 = vunpack.c.l.b16 %v1228
        %v1806 = vunpack.c.h.b16 %v1228
        %v1807 = vunpack.c.l.b16 %v1229
        %v1808 = vunpack.c.h.b16 %v1229
        %v1809 = vunpack.c.l.b16 %v1230
        %v1810 = vunpack.c.h.b16 %v1230
        %v1811 = vunpack.c.l.b16 %v1231
        %v1812 = vunpack.c.h.b16 %v1231
        %v1813 = vunpack.c.l.b16 %v1232
        %v1814 = vunpack.c.h.b16 %v1232
        %v1815 = vunpack.c.l.b16 %v1233
        %v1816 = vunpack.c.h.b16 %v1233
        %v1817 = vunpack.c.l.b16 %v1234
        %v1818 = vunpack.c.h.b16 %v1234
        %v1819 = vunpack.c.l.b16 %v1235
        %v1820 = vunpack.c.h.b16 %v1235
        %v1821 = vunpack.c.l.b16 %v1236
        %v1822 = vunpack.c.h.b16 %v1236
        %v1823 = vunpack.c.l.b16 %v1237
        %v1824 = vunpack.c.h.b16 %v1237
        %v1825 = vunpack.c.l.b16 %v1238
        %v1826 = vunpack.c.h.b16 %v1238
        %v1827 = vunpack.c.l.b16 %v1239
        %v1828 = vunpack.c.h.b16 %v1239
        %v1829 = vunpack.c.l.b16 %v1240
        %v1830 = vunpack.c.h.b16 %v1240
        %v1831 = vunpack.c.l.b16 %v1241
        %v1832 = vunpack.c.h.b16 %v1241
        %v1833 = vunpack.c.l.b16 %v1242
        %v1834 = vunpack.c.h.b16 %v1242
        %v1835 = vpack.c.b16 %v1459, %v1451
        %v1836 = vpack.c.b16 %v1460, %v1452
        %v1837 = vpack.c.b16 %v1461, %v1453
        %v1838 = vpack.c.b16 %v1462, %v1454
        %v1839 = vpack.c.b16 %v1463, %v1455
        %v1840 = vpack.c.b16 %v1464, %v1456
        %v1841 = vpack.c.b16 %v1465, %v1457
        %v1842 = vpack.c.b16 %v1466, %v1458
        %v1843 = vpack.c.b16 %v1475, %v1467
        %v1844 = vpack.c.b16 %v1476, %v1468
        %v1845 = vpack.c.b16 %v1477, %v1469
        %v1846 = vpack.c.b16 %v1478, %v1470
        %v1847 = vpack.c.b16 %v1479, %v1471
        %v1848 = vpack.c.b16 %v1480, %v1472
        %v1849 = vpack.c.b16 %v1481, %v1473
        %v1850 = vpack.c.b16 %v1482, %v1474
        %v1851 = vpack.c.b16 %v1491, %v1483
        %v1852 = vpack.c.b16 %v1492, %v1484
        %v1853 = vpack.c.b16 %v1493, %v1485
        %v1854 = vpack.c.b16 %v1494, %v1486
        %v1855 = vpack.c.b16 %v1495, %v1487
        %v1856 = vpack.c.b16 %v1496, %v1488
        %v1857 = vpack.c.b16 %v1497, %v1489
        %v1858 = vpack.c.b16 %v1498, %v1490
        %v1859 = vpack.c.b16 %v1507, %v1499
        %v1860 = vpack.c.b16 %v1508, %v1500
        %v1861 = vpack.c.b16 %v1509, %v1501
        %v1862 = vpack.c.b16 %v1510, %v1502
        %v1863 = vpack.c.b16 %v1511, %v1503
        %v1864 = vpack.c.b16 %v1512, %v1504
        %v1865 = vpack.c.b16 %v1513, %v1505
        %v1866 = vpack.c.b16 %v1514, %v1506
        %v1867 = vpack.c.b16 %v1523, %v1515
        %v1868 = vpack.c.b16 %v1524, %v1516
        %v1869 = vpack.c.b16 %v1525, %v1517
        %v1870 = vpack.c.b16 %v1526, %v1518
        %v1871 = vpack.c.b16 %v1527, %v1519
        %v1872 = vpack.c.b16 %v1528, %v1520
        %v1873 = vpack.c.b16 %v1529, %v1521
        %v1874 = vpack.c.b16 %v1530, %v1522
        %v1875 = vpack.c.b16 %v1539, %v1531
        %v1876 = vpack.c.b16 %v1540, %v1532
        %v1877 = vpack.c.b16 %v1541, %v1533
        %v1878 = vpack.c.b16 %v1542, %v1534
        %v1879 = vpack.c.b16 %v1543, %v1535
        %v1880 = vpack.c.b16 %v1544, %v1536
        %v1881 = vpack.c.b16 %v1545, %v1537
        %v1882 = vpack.c.b16 %v1546, %v1538
        %v1883 = vpack.c.b16 %v1555, %v1547
        %v1884 = vpack.c.b16 %v1556, %v1548
        %v1885 = vpack.c.b16 %v1557, %v1549
        %v1886 = vpack.c.b16 %v1558, %v1550
        %v1887 = vpack.c.b16 %v1559, %v1551
        %v1888 = vpack.c.b16 %v1560, %v1552
        %v1889 = vpack.c.b16 %v1561, %v1553
        %v1890 = vpack.c.b16 %v1562, %v1554
        %v1891 = vpack.c.b16 %v1571, %v1563
        %v1892 = vpack.c.b16 %v1572, %v1564
        %v1893 = vpack.c.b16 %v1573, %v1565
        %v1894 = vpack.c.b16 %v1574, %v1566
        %v1895 = vpack.c.b16 %v1575, %v1567
        %v1896 = vpack.c.b16 %v1576, %v1568
        %v1897 = vpack.c.b16 %v1577, %v1569
        %v1898 = vpack.c.b16 %v1578, %v1570
        %v1899 = vpack.c.b16 %v1587, %v1579
        %v1900 = vpack.c.b16 %v1588, %v1580
        %v1901 = vpack.c.b16 %v1589, %v1581
        %v1902 = vpack.c.b16 %v1590, %v1582
        %v1903 = vpack.c.b16 %v1591, %v1583
        %v1904 = vpack.c.b16 %v1592, %v1584
        %v1905 = vpack.c.b16 %v1593, %v1585
        %v1906 = vpack.c.b16 %v1594, %v1586
        %v1907 = vpack.c.b16 %v1603, %v1595
        %v1908 = vpack.c.b16 %v1604, %v1596
        %v1909 = vpack.c.b16 %v1605, %v1597
        %v1910 = vpack.c.b16 %v1606, %v1598
        %v1911 = vpack.c.b16 %v1607, %v1599
        %v1912 = vpack.c.b16 %v1608, %v1600
        %v1913 = vpack.c.b16 %v1609, %v1601
        %v1914 = vpack.c.b16 %v1610, %v1602
        %v1915 = vpack.c.b16 %v1619, %v1611
        %v1916 = vpack.c.b16 %v1620, %v1612
        %v1917 = vpack.c.b16 %v1621, %v1613
        %v1918 = vpack.c.b16 %v1622, %v1614
        %v1919 = vpack.c.b16 %v1623, %v1615
        %v1920 = vpack.c.b16 %v1624, %v1616
        %v1921 = vpack.c.b16 %v1625, %v1617
        %v1922 = vpack.c.b16 %v1626, %v1618
        %v1923 = vpack.c.b16 %v1635, %v1627
        %v1924 = vpack.c.b16 %v1636, %v1628
        %v1925 = vpack.c.b16 %v1637, %v1629
        %v1926 = vpack.c.b16 %v1638, %v1630
        %v1927 = vpack.c.b16 %v1639, %v1631
        %v1928 = vpack.c.b16 %v1640, %v1632
        %v1929 = vpack.c.b16 %v1641, %v1633
        %v1930 = vpack.c.b16 %v1642, %v1634
        %v1931 = vpack.c.b16 %v1651, %v1643
        %v1932 = vpack.c.b16 %v1652, %v1644
        %v1933 = vpack.c.b16 %v1653, %v1645
        %v1934 = vpack.c.b16 %v1654, %v1646
        %v1935 = vpack.c.b16 %v1655, %v1647
        %v1936 = vpack.c.b16 %v1656, %v1648
        %v1937 = vpack.c.b16 %v1657, %v1649
        %v1938 = vpack.c.b16 %v1658, %v1650
        %v1939 = vpack.c.b16 %v1667, %v1659
        %v1940 = vpack.c.b16 %v1668, %v1660
        %v1941 = vpack.c.b16 %v1669, %v1661
        %v1942 = vpack.c.b16 %v1670, %v1662
        %v1943 = vpack.c.b16 %v1671, %v1663
        %v1944 = vpack.c.b16 %v1672, %v1664
        %v1945 = vpack.c.b16 %v1673, %v1665
        %v1946 = vpack.c.b16 %v1674, %v1666
        %v1947 = vpack.c.b16 %v1683, %v1675
        %v1948 = vpack.c.b16 %v1684, %v1676
        %v1949 = vpack.c.b16 %v1685, %v1677
        %v1950 = vpack.c.b16 %v1686, %v1678
        %v1951 = vpack.c.b16 %v1687, %v1679
        %v1952 = vpack.c.b16 %v1688, %v1680
        %v1953 = vpack.c.b16 %v1689, %v1681
        %v1954 = vpack.c.b16 %v1690, %v1682
        %v1955 = vpack.c.b16 %v1699, %v1691
        %v1956 = vpack.c.b16 %v1700, %v1692
        %v1957 = vpack.c.b16 %v1701, %v1693
        %v1958 = vpack.c.b16 %v1702, %v1694
        %v1959 = vpack.c.b16 %v1703, %v1695
        %v1960 = vpack.c.b16 %v1704, %v1696
        %v1961 = vpack.c.b16 %v1705, %v1697
        %v1962 = vpack.c.b16 %v1706, %v1698
        %v1963 = vpack.c.b16 %v1715, %v1707
        %v1964 = vpack.c.b16 %v1716, %v1708
        %v1965 = vpack.c.b16 %v1717, %v1709
        %v1966 = vpack.c.b16 %v1718, %v1710
        %v1967 = vpack.c.b16 %v1719, %v1711
        %v1968 = vpack.c.b16 %v1720, %v1712
        %v1969 = vpack.c.b16 %v1721, %v1713
        %v1970 = vpack.c.b16 %v1722, %v1714
        %v1971 = vpack.c.b16 %v1731, %v1723
        %v1972 = vpack.c.b16 %v1732, %v1724
        %v1973 = vpack.c.b16 %v1733, %v1725
        %v1974 = vpack.c.b16 %v1734, %v1726
        %v1975 = vpack.c.b16 %v1735, %v1727
        %v1976 = vpack.c.b16 %v1736, %v1728
        %v1977 = vpack.c.b16 %v1737, %v1729
        %v1978 = vpack.c.b16 %v1738, %v1730
        %v1979 = vpack.c.b16 %v1747, %v1739
        %v1980 = vpack.c.b16 %v1748, %v1740
        %v1981 = vpack.c.b16 %v1749, %v1741
        %v1982 = vpack.c.b16 %v1750, %v1742
        %v1983 = vpack.c.b16 %v1751, %v1743
        %v1984 = vpack.c.b16 %v1752, %v1744
        %v1985 = vpack.c.b16 %v1753, %v1745
        %v1986 = vpack.c.b16 %v1754, %v1746
        %v1987 = vpack.c.b16 %v1763, %v1755
        %v1988 = vpack.c.b16 %v1764, %v1756
        %v1989 = vpack.c.b16 %v1765, %v1757
        %v1990 = vpack.c.b16 %v1766, %v1758
        %v1991 = vpack.c.b16 %v1767, %v1759
        %v1992 = vpack.c.b16 %v1768, %v1760
        %v1993 = vpack.c.b16 %v1769, %v1761
        %v1994 = vpack.c.b16 %v1770, %v1762
        %v1995 = vpack.c.b16 %v1779, %v1771
        %v1996 = vpack.c.b16 %v1780, %v1772
        %v1997 = vpack.c.b16 %v1781, %v1773
        %v1998 = vpack.c.b16 %v1782, %v1774
        %v1999 = vpack.c.b16 %v1783, %v1775
        %v2000 = vpack.c.b16 %v1784, %v1776
        %v2001 = vpack.c.b16 %v1785, %v1777
        %v2002 = vpack.c.b16 %v1786, %v1778
        %v2003 = vpack.c.b16 %v1795, %v1787
        %v2004 = vpack.c.b16 %v1796, %v1788
        %v2005 = vpack.c.b16 %v1797, %v1789
        %v2006 = vpack.c.b16 %v1798, %v1790
        %v2007 = vpack.c.b16 %v1799, %v1791
        %v2008 = vpack.c.b16 %v1800, %v1792
        %v2009 = vpack.c.b16 %v1801, %v1793
        %v2010 = vpack.c.b16 %v1802, %v1794
        %v2011 = vpack.c.b16 %v1811, %v1803
        %v2012 = vpack.c.b16 %v1812, %v1804
        %v2013 = vpack.c.b16 %v1813, %v1805
        %v2014 = vpack.c.b16 %v1814, %v1806
        %v2015 = vpack.c.b16 %v1815, %v1807
        %v2016 = vpack.c.b16 %v1816, %v1808
        %v2017 = vpack.c.b16 %v1817, %v1809
        %v2018 = vpack.c.b16 %v1818, %v1810
        %v2019 = vpack.c.b16 %v1827, %v1819
        %v2020 = vpack.c.b16 %v1828, %v1820
        %v2021 = vpack.c.b16 %v1829, %v1821
        %v2022 = vpack.c.b16 %v1830, %v1822
        %v2023 = vpack.c.b16 %v1831, %v1823
        %v2024 = vpack.c.b16 %v1832, %v1824
        %v2025 = vpack.c.b16 %v1833, %v1825
        %v2026 = vpack.c.b16 %v1834, %v1826
        %2219 = vmatprep.subr.bf16.mxu0 %v1836
        %2220 = vmatpush1.bf16.msra.mxu0 %v1835
        %2221 = vmatprep.subr.bf16.mxu0 %v1844
        %2222 = vmatpush1.bf16.msra.mxu0 %v1843
        %2223 = vmatprep.subr.bf16.mxu0 %v1852
        %2224 = vmatpush1.bf16.msra.mxu0 %v1851
        %2225 = vmatprep.subr.bf16.mxu0 %v1860
        %2226 = vmatpush1.bf16.msra.mxu0 %v1859
        %2227 = vmatprep.subr.bf16.mxu0 %v1868
        %2228 = vmatpush1.bf16.msra.mxu0 %v1867
        %2229 = vmatprep.subr.bf16.mxu0 %v1876
        %2230 = vmatpush1.bf16.msra.mxu0 %v1875
        %2231 = vmatprep.subr.bf16.mxu0 %v1884
        %2232 = vmatpush1.bf16.msra.mxu0 %v1883
        %2233 = vmatprep.subr.bf16.mxu0 %v1892
        %2234 = vmatpush1.bf16.msra.mxu0 %v1891
        %2235 = vmatprep.subr.bf16.mxu0 %v1900
        %2236 = vmatpush1.bf16.msra.mxu0 %v1899
        %2237 = vmatprep.subr.bf16.mxu0 %v1908
        %2238 = vmatpush1.bf16.msra.mxu0 %v1907
        %2239 = vmatprep.subr.bf16.mxu0 %v1916
        %2240 = vmatpush1.bf16.msra.mxu0 %v1915
        %2241 = vmatprep.subr.bf16.mxu0 %v1924
        %2242 = vmatpush1.bf16.msra.mxu0 %v1923
        %2243 = vmatprep.subr.bf16.mxu0 %v1932
        %2244 = vmatpush1.bf16.msra.mxu0 %v1931
        %2245 = vmatprep.subr.bf16.mxu0 %v1940
        %2246 = vmatpush1.bf16.msra.mxu0 %v1939
        %2247 = vmatprep.subr.bf16.mxu0 %v1948
        %2248 = vmatpush1.bf16.msra.mxu0 %v1947
        %2249 = vmatprep.subr.bf16.mxu0 %v1956
        %2250 = vmatpush1.bf16.msra.mxu0 %v1955
        %2251 = vmatprep.mubr.bf16.mxu0 %v1254
        %2252 = vmatmul.mubr.bf16.gmra.mrb[0].mxu0 %v1253
        %v2253 = vpop.f32.mrb[0].mxu0
        %v2254 = vadd.f32 0.0, %v2253
        %v2255 = vpop.f32.mrb[0].mxu0
        %v2256 = vadd.f32 0.0, %v2255
        %v2257 = vpop.f32.mrb[0].mxu0
        %v2258 = vadd.f32 0.0, %v2257
        %v2259 = vpop.f32.mrb[0].mxu0
        %v2260 = vadd.f32 0.0, %v2259
        %2261 = vdwg.mxu0
        %2262 = vmatprep.subr.bf16.mxu0 %v1964
        %2263 = vmatpush1.bf16.msra.mxu0 %v1963
        %2264 = vmatprep.subr.bf16.mxu0 %v1972
        %2265 = vmatpush1.bf16.msra.mxu0 %v1971
        %2266 = vmatprep.subr.bf16.mxu0 %v1980
        %2267 = vmatpush1.bf16.msra.mxu0 %v1979
        %2268 = vmatprep.subr.bf16.mxu0 %v1988
        %2269 = vmatpush1.bf16.msra.mxu0 %v1987
        %2270 = vmatprep.subr.bf16.mxu0 %v1996
        %2271 = vmatpush1.bf16.msra.mxu0 %v1995
        %2272 = vmatprep.subr.bf16.mxu0 %v2004
        %2273 = vmatpush1.bf16.msra.mxu0 %v2003
        %2274 = vmatprep.subr.bf16.mxu0 %v2012
        %2275 = vmatpush1.bf16.msra.mxu0 %v2011
        %2276 = vmatprep.subr.bf16.mxu0 %v2020
        %2277 = vmatpush1.bf16.msra.mxu0 %v2019
        %2278 = vmatprep.subr.bf16.mxu0 0
        %2279 = vmatpush1.bf16.msra.mxu0 0
        %2280 = vmatprep.subr.bf16.mxu0 0
        %2281 = vmatpush1.bf16.msra.mxu0 0
        %2282 = vmatprep.subr.bf16.mxu0 0
        %2283 = vmatpush1.bf16.msra.mxu0 0
        %2284 = vmatprep.subr.bf16.mxu0 0
        %2285 = vmatpush1.bf16.msra.mxu0 0
        %2286 = vmatprep.subr.bf16.mxu0 0
        %2287 = vmatpush1.bf16.msra.mxu0 0
        %2288 = vmatprep.subr.bf16.mxu0 0
        %2289 = vmatpush1.bf16.msra.mxu0 0
        %2290 = vmatprep.subr.bf16.mxu0 0
        %2291 = vmatpush1.bf16.msra.mxu0 0
        %2292 = vmatprep.subr.bf16.mxu0 0
        %2293 = vmatpush1.bf16.msra.mxu0 0
        %2294 = vmatprep.mubr.bf16.mxu0 0
        %2295 = vmatmul.mubr.bf16.gmra.mrb[0].mxu0 %v1255
        %v2296 = vpop.f32.mrb[0].mxu0
        %v2297 = vadd.f32 %v2254, %v2296
        %v2298 = vpop.f32.mrb[0].mxu0
        %v2299 = vadd.f32 %v2256, %v2298
        %v2300 = vpop.f32.mrb[0].mxu0
        %v2301 = vadd.f32 %v2258, %v2300
        %v2302 = vpop.f32.mrb[0].mxu0
        %v2303 = vadd.f32 %v2260, %v2302
        %2304 = vdwg.mxu0
        %2305 = vmatprep.subr.bf16.mxu0 %v1838
        %2306 = vmatpush1.bf16.msra.mxu0 %v1837
        %2307 = vmatprep.subr.bf16.mxu0 %v1846
        %2308 = vmatpush1.bf16.msra.mxu0 %v1845
        %2309 = vmatprep.subr.bf16.mxu0 %v1854
        %2310 = vmatpush1.bf16.msra.mxu0 %v1853
        %2311 = vmatprep.subr.bf16.mxu0 %v1862
        %2312 = vmatpush1.bf16.msra.mxu0 %v1861
        %2313 = vmatprep.subr.bf16.mxu0 %v1870
        %2314 = vmatpush1.bf16.msra.mxu0 %v1869
        %2315 = vmatprep.subr.bf16.mxu0 %v1878
        %2316 = vmatpush1.bf16.msra.mxu0 %v1877
        %2317 = vmatprep.subr.bf16.mxu0 %v1886
        %2318 = vmatpush1.bf16.msra.mxu0 %v1885
        %2319 = vmatprep.subr.bf16.mxu0 %v1894
        %2320 = vmatpush1.bf16.msra.mxu0 %v1893
        %2321 = vmatprep.subr.bf16.mxu0 %v1902
        %2322 = vmatpush1.bf16.msra.mxu0 %v1901
        %2323 = vmatprep.subr.bf16.mxu0 %v1910
        %2324 = vmatpush1.bf16.msra.mxu0 %v1909
        %2325 = vmatprep.subr.bf16.mxu0 %v1918
        %2326 = vmatpush1.bf16.msra.mxu0 %v1917
        %2327 = vmatprep.subr.bf16.mxu0 %v1926
        %2328 = vmatpush1.bf16.msra.mxu0 %v1925
        %2329 = vmatprep.subr.bf16.mxu0 %v1934
        %2330 = vmatpush1.bf16.msra.mxu0 %v1933
        %2331 = vmatprep.subr.bf16.mxu0 %v1942
        %2332 = vmatpush1.bf16.msra.mxu0 %v1941
        %2333 = vmatprep.subr.bf16.mxu0 %v1950
        %2334 = vmatpush1.bf16.msra.mxu0 %v1949
        %2335 = vmatprep.subr.bf16.mxu0 %v1958
        %2336 = vmatpush1.bf16.msra.mxu0 %v1957
        %2337 = vmatprep.mubr.bf16.mxu0 %v1254
        %2338 = vmatmul.mubr.bf16.gmra.mrb[0].mxu0 %v1253
        %v2339 = vpop.f32.mrb[0].mxu0
        %v2340 = vadd.f32 0.0, %v2339
        %v2341 = vpop.f32.mrb[0].mxu0
        %v2342 = vadd.f32 0.0, %v2341
        %v2343 = vpop.f32.mrb[0].mxu0
        %v2344 = vadd.f32 0.0, %v2343
        %v2345 = vpop.f32.mrb[0].mxu0
        %v2346 = vadd.f32 0.0, %v2345
        %2347 = vdwg.mxu0
        %2348 = vmatprep.subr.bf16.mxu0 %v1966
        %2349 = vmatpush1.bf16.msra.mxu0 %v1965
        %2350 = vmatprep.subr.bf16.mxu0 %v1974
        %2351 = vmatpush1.bf16.msra.mxu0 %v1973
        %2352 = vmatprep.subr.bf16.mxu0 %v1982
        %2353 = vmatpush1.bf16.msra.mxu0 %v1981
        %2354 = vmatprep.subr.bf16.mxu0 %v1990
        %2355 = vmatpush1.bf16.msra.mxu0 %v1989
        %2356 = vmatprep.subr.bf16.mxu0 %v1998
        %2357 = vmatpush1.bf16.msra.mxu0 %v1997
        %2358 = vmatprep.subr.bf16.mxu0 %v2006
        %2359 = vmatpush1.bf16.msra.mxu0 %v2005
        %2360 = vmatprep.subr.bf16.mxu0 %v2014
        %2361 = vmatpush1.bf16.msra.mxu0 %v2013
        %2362 = vmatprep.subr.bf16.mxu0 %v2022
        %2363 = vmatpush1.bf16.msra.mxu0 %v2021
        %2364 = vmatprep.subr.bf16.mxu0 0
        %2365 = vmatpush1.bf16.msra.mxu0 0
        %2366 = vmatprep.subr.bf16.mxu0 0
        %2367 = vmatpush1.bf16.msra.mxu0 0
        %2368 = vmatprep.subr.bf16.mxu0 0
        %2369 = vmatpush1.bf16.msra.mxu0 0
        %2370 = vmatprep.subr.bf16.mxu0 0
        %2371 = vmatpush1.bf16.msra.mxu0 0
        %2372 = vmatprep.subr.bf16.mxu0 0
        %2373 = vmatpush1.bf16.msra.mxu0 0
        %2374 = vmatprep.subr.bf16.mxu0 0
        %2375 = vmatpush1.bf16.msra.mxu0 0
        %2376 = vmatprep.subr.bf16.mxu0 0
        %2377 = vmatpush1.bf16.msra.mxu0 0
        %2378 = vmatprep.subr.bf16.mxu0 0
        %2379 = vmatpush1.bf16.msra.mxu0 0
        %2380 = vmatprep.mubr.bf16.mxu0 0
        %2381 = vmatmul.mubr.bf16.gmra.mrb[0].mxu0 %v1255
        %v2382 = vpop.f32.mrb[0].mxu0
        %v2383 = vadd.f32 %v2340, %v2382
        %v2384 = vpop.f32.mrb[0].mxu0
        %v2385 = vadd.f32 %v2342, %v2384
        %v2386 = vpop.f32.mrb[0].mxu0
        %v2387 = vadd.f32 %v2344, %v2386
        %v2388 = vpop.f32.mrb[0].mxu0
        %v2389 = vadd.f32 %v2346, %v2388
        %2390 = vdwg.mxu0
        %2391 = vmatprep.subr.bf16.mxu0 %v1840
        %2392 = vmatpush1.bf16.msra.mxu0 %v1839
        %2393 = vmatprep.subr.bf16.mxu0 %v1848
        %2394 = vmatpush1.bf16.msra.mxu0 %v1847
        %2395 = vmatprep.subr.bf16.mxu0 %v1856
        %2396 = vmatpush1.bf16.msra.mxu0 %v1855
        %2397 = vmatprep.subr.bf16.mxu0 %v1864
        %2398 = vmatpush1.bf16.msra.mxu0 %v1863
        %2399 = vmatprep.subr.bf16.mxu0 %v1872
        %2400 = vmatpush1.bf16.msra.mxu0 %v1871
        %2401 = vmatprep.subr.bf16.mxu0 %v1880
        %2402 = vmatpush1.bf16.msra.mxu0 %v1879
        %2403 = vmatprep.subr.bf16.mxu0 %v1888
        %2404 = vmatpush1.bf16.msra.mxu0 %v1887
        %2405 = vmatprep.subr.bf16.mxu0 %v1896
        %2406 = vmatpush1.bf16.msra.mxu0 %v1895
        %2407 = vmatprep.subr.bf16.mxu0 %v1904
        %2408 = vmatpush1.bf16.msra.mxu0 %v1903
        %2409 = vmatprep.subr.bf16.mxu0 %v1912
        %2410 = vmatpush1.bf16.msra.mxu0 %v1911
        %2411 = vmatprep.subr.bf16.mxu0 %v1920
        %2412 = vmatpush1.bf16.msra.mxu0 %v1919
        %2413 = vmatprep.subr.bf16.mxu0 %v1928
        %2414 = vmatpush1.bf16.msra.mxu0 %v1927
        %2415 = vmatprep.subr.bf16.mxu0 %v1936
        %2416 = vmatpush1.bf16.msra.mxu0 %v1935
        %2417 = vmatprep.subr.bf16.mxu0 %v1944
        %2418 = vmatpush1.bf16.msra.mxu0 %v1943
        %2419 = vmatprep.subr.bf16.mxu0 %v1952
        %2420 = vmatpush1.bf16.msra.mxu0 %v1951
        %2421 = vmatprep.subr.bf16.mxu0 %v1960
        %2422 = vmatpush1.bf16.msra.mxu0 %v1959
        %2423 = vmatprep.mubr.bf16.mxu0 %v1254
        %2424 = vmatmul.mubr.bf16.gmra.mrb[0].mxu0 %v1253
        %v2425 = vpop.f32.mrb[0].mxu0
        %v2426 = vadd.f32 0.0, %v2425
        %v2427 = vpop.f32.mrb[0].mxu0
        %v2428 = vadd.f32 0.0, %v2427
        %v2429 = vpop.f32.mrb[0].mxu0
        %v2430 = vadd.f32 0.0, %v2429
        %v2431 = vpop.f32.mrb[0].mxu0
        %v2432 = vadd.f32 0.0, %v2431
        %2433 = vdwg.mxu0
        %2434 = vmatprep.subr.bf16.mxu0 %v1968
        %2435 = vmatpush1.bf16.msra.mxu0 %v1967
        %2436 = vmatprep.subr.bf16.mxu0 %v1976
        %2437 = vmatpush1.bf16.msra.mxu0 %v1975
        %2438 = vmatprep.subr.bf16.mxu0 %v1984
        %2439 = vmatpush1.bf16.msra.mxu0 %v1983
        %2440 = vmatprep.subr.bf16.mxu0 %v1992
        %2441 = vmatpush1.bf16.msra.mxu0 %v1991
        %2442 = vmatprep.subr.bf16.mxu0 %v2000
        %2443 = vmatpush1.bf16.msra.mxu0 %v1999
        %2444 = vmatprep.subr.bf16.mxu0 %v2008
        %2445 = vmatpush1.bf16.msra.mxu0 %v2007
        %2446 = vmatprep.subr.bf16.mxu0 %v2016
        %2447 = vmatpush1.bf16.msra.mxu0 %v2015
        %2448 = vmatprep.subr.bf16.mxu0 %v2024
        %2449 = vmatpush1.bf16.msra.mxu0 %v2023
        %2450 = vmatprep.subr.bf16.mxu0 0
        %2451 = vmatpush1.bf16.msra.mxu0 0
        %2452 = vmatprep.subr.bf16.mxu0 0
        %2453 = vmatpush1.bf16.msra.mxu0 0
        %2454 = vmatprep.subr.bf16.mxu0 0
        %2455 = vmatpush1.bf16.msra.mxu0 0
        %2456 = vmatprep.subr.bf16.mxu0 0
        %2457 = vmatpush1.bf16.msra.mxu0 0
        %2458 = vmatprep.subr.bf16.mxu0 0
        %2459 = vmatpush1.bf16.msra.mxu0 0
        %2460 = vmatprep.subr.bf16.mxu0 0
        %2461 = vmatpush1.bf16.msra.mxu0 0
        %2462 = vmatprep.subr.bf16.mxu0 0
        %2463 = vmatpush1.bf16.msra.mxu0 0
        %2464 = vmatprep.subr.bf16.mxu0 0
        %2465 = vmatpush1.bf16.msra.mxu0 0
        %2466 = vmatprep.mubr.bf16.mxu0 0
        %2467 = vmatmul.mubr.bf16.gmra.mrb[0].mxu0 %v1255
        %v2468 = vpop.f32.mrb[0].mxu0
        %v2469 = vadd.f32 %v2426, %v2468
        %v2470 = vpop.f32.mrb[0].mxu0
        %v2471 = vadd.f32 %v2428, %v2470
        %v2472 = vpop.f32.mrb[0].mxu0
        %v2473 = vadd.f32 %v2430, %v2472
        %v2474 = vpop.f32.mrb[0].mxu0
        %v2475 = vadd.f32 %v2432, %v2474
        %2476 = vdwg.mxu0
        %2477 = vmatprep.subr.bf16.mxu0 %v1842
        %2478 = vmatpush1.bf16.msra.mxu0 %v1841
        %2479 = vmatprep.subr.bf16.mxu0 %v1850
        %2480 = vmatpush1.bf16.msra.mxu0 %v1849
        %2481 = vmatprep.subr.bf16.mxu0 %v1858
        %2482 = vmatpush1.bf16.msra.mxu0 %v1857
        %2483 = vmatprep.subr.bf16.mxu0 %v1866
        %2484 = vmatpush1.bf16.msra.mxu0 %v1865
        %2485 = vmatprep.subr.bf16.mxu0 %v1874
        %2486 = vmatpush1.bf16.msra.mxu0 %v1873
        %2487 = vmatprep.subr.bf16.mxu0 %v1882
        %2488 = vmatpush1.bf16.msra.mxu0 %v1881
        %2489 = vmatprep.subr.bf16.mxu0 %v1890
        %2490 = vmatpush1.bf16.msra.mxu0 %v1889
        %2491 = vmatprep.subr.bf16.mxu0 %v1898
        %2492 = vmatpush1.bf16.msra.mxu0 %v1897
        %2493 = vmatprep.subr.bf16.mxu0 %v1906
        %2494 = vmatpush1.bf16.msra.mxu0 %v1905
        %2495 = vmatprep.subr.bf16.mxu0 %v1914
        %2496 = vmatpush1.bf16.msra.mxu0 %v1913
        %2497 = vmatprep.subr.bf16.mxu0 %v1922
        %2498 = vmatpush1.bf16.msra.mxu0 %v1921
        %2499 = vmatprep.subr.bf16.mxu0 %v1930
        %2500 = vmatpush1.bf16.msra.mxu0 %v1929
        %2501 = vmatprep.subr.bf16.mxu0 %v1938
        %2502 = vmatpush1.bf16.msra.mxu0 %v1937
        %2503 = vmatprep.subr.bf16.mxu0 %v1946
        %2504 = vmatpush1.bf16.msra.mxu0 %v1945
        %2505 = vmatprep.subr.bf16.mxu0 %v1954
        %2506 = vmatpush1.bf16.msra.mxu0 %v1953
        %2507 = vmatprep.subr.bf16.mxu0 %v1962
        %2508 = vmatpush1.bf16.msra.mxu0 %v1961
        %2509 = vmatprep.mubr.bf16.mxu0 %v1254
        %2510 = vmatmul.mubr.bf16.gmra.mrb[0].mxu0 %v1253
        %v2511 = vpop.f32.mrb[0].mxu0
        %v2512 = vadd.f32 0.0, %v2511
        %v2513 = vpop.f32.mrb[0].mxu0
        %v2514 = vadd.f32 0.0, %v2513
        %v2515 = vpop.f32.mrb[0].mxu0
        %v2516 = vadd.f32 0.0, %v2515
        %v2517 = vpop.f32.mrb[0].mxu0
        %v2518 = vadd.f32 0.0, %v2517
        %2519 = vdwg.mxu0
        %2520 = vmatprep.subr.bf16.mxu0 %v1970
        %2521 = vmatpush1.bf16.msra.mxu0 %v1969
        %2522 = vmatprep.subr.bf16.mxu0 %v1978
        %2523 = vmatpush1.bf16.msra.mxu0 %v1977
        %2524 = vmatprep.subr.bf16.mxu0 %v1986
        %2525 = vmatpush1.bf16.msra.mxu0 %v1985
        %2526 = vmatprep.subr.bf16.mxu0 %v1994
        %2527 = vmatpush1.bf16.msra.mxu0 %v1993
        %2528 = vmatprep.subr.bf16.mxu0 %v2002
        %2529 = vmatpush1.bf16.msra.mxu0 %v2001
        %2530 = vmatprep.subr.bf16.mxu0 %v2010
        %2531 = vmatpush1.bf16.msra.mxu0 %v2009
        %2532 = vmatprep.subr.bf16.mxu0 %v2018
        %2533 = vmatpush1.bf16.msra.mxu0 %v2017
        %2534 = vmatprep.subr.bf16.mxu0 %v2026
        %2535 = vmatpush1.bf16.msra.mxu0 %v2025
        %2536 = vmatprep.subr.bf16.mxu0 0
        %2537 = vmatpush1.bf16.msra.mxu0 0
        %2538 = vmatprep.subr.bf16.mxu0 0
        %2539 = vmatpush1.bf16.msra.mxu0 0
        %2540 = vmatprep.subr.bf16.mxu0 0
        %2541 = vmatpush1.bf16.msra.mxu0 0
        %2542 = vmatprep.subr.bf16.mxu0 0
        %2543 = vmatpush1.bf16.msra.mxu0 0
        %2544 = vmatprep.subr.bf16.mxu0 0
        %2545 = vmatpush1.bf16.msra.mxu0 0
        %2546 = vmatprep.subr.bf16.mxu0 0
        %2547 = vmatpush1.bf16.msra.mxu0 0
        %2548 = vmatprep.subr.bf16.mxu0 0
        %2549 = vmatpush1.bf16.msra.mxu0 0
        %2550 = vmatprep.subr.bf16.mxu0 0
        %2551 = vmatpush1.bf16.msra.mxu0 0
        %2552 = vmatprep.mubr.bf16.mxu0 0
        %2553 = vmatmul.mubr.bf16.gmra.mrb[0].mxu0 %v1255
        %v2554 = vpop.f32.mrb[0].mxu0
        %v2555 = vadd.f32 %v2512, %v2554
        %v2556 = vpop.f32.mrb[0].mxu0
        %v2557 = vadd.f32 %v2514, %v2556
        %v2558 = vpop.f32.mrb[0].mxu0
        %v2559 = vadd.f32 %v2516, %v2558
        %v2560 = vpop.f32.mrb[0].mxu0
        %v2561 = vadd.f32 %v2518, %v2560
        %2562 = vdwg.mxu0
        %v2567 = vunpack.c.l.b16 %v847
        %v2568 = vunpack.c.h.b16 %v847
        %v2569 = vunpack.c.l.b16 %v848
        %v2570 = vunpack.c.l.b16 %v849
        %v2571 = vunpack.c.h.b16 %v849
        %v2572 = vunpack.c.l.b16 %v850
        %v2573 = vpack.c.b16 %v2570, %v2567
        %v2574 = vpack.c.b16 %v2571, %v2568
        %v2575 = vpack.c.b16 %v2572, %v2569
        %v2771 = vunpack.c.l.b16 %v859
        %v2772 = vunpack.c.h.b16 %v859
        %v2773 = vunpack.c.l.b16 %v860
        %v2774 = vunpack.c.h.b16 %v860
        %v2775 = vunpack.c.l.b16 %v861
        %v2776 = vunpack.c.h.b16 %v861
        %v2777 = vunpack.c.l.b16 %v862
        %v2778 = vunpack.c.h.b16 %v862
        %v2779 = vunpack.c.l.b16 %v863
        %v2780 = vunpack.c.h.b16 %v863
        %v2781 = vunpack.c.l.b16 %v864
        %v2782 = vunpack.c.h.b16 %v864
        %v2783 = vunpack.c.l.b16 %v865
        %v2784 = vunpack.c.h.b16 %v865
        %v2785 = vunpack.c.l.b16 %v866
        %v2786 = vunpack.c.h.b16 %v866
        %v2787 = vunpack.c.l.b16 %v867
        %v2788 = vunpack.c.h.b16 %v867
        %v2789 = vunpack.c.l.b16 %v868
        %v2790 = vunpack.c.h.b16 %v868
        %v2791 = vunpack.c.l.b16 %v869
        %v2792 = vunpack.c.h.b16 %v869
        %v2793 = vunpack.c.l.b16 %v870
        %v2794 = vunpack.c.h.b16 %v870
        %v2795 = vunpack.c.l.b16 %v871
        %v2796 = vunpack.c.h.b16 %v871
        %v2797 = vunpack.c.l.b16 %v872
        %v2798 = vunpack.c.h.b16 %v872
        %v2799 = vunpack.c.l.b16 %v873
        %v2800 = vunpack.c.h.b16 %v873
        %v2801 = vunpack.c.l.b16 %v874
        %v2802 = vunpack.c.h.b16 %v874
        %v2803 = vunpack.c.l.b16 %v875
        %v2804 = vunpack.c.h.b16 %v875
        %v2805 = vunpack.c.l.b16 %v876
        %v2806 = vunpack.c.h.b16 %v876
        %v2807 = vunpack.c.l.b16 %v877
        %v2808 = vunpack.c.h.b16 %v877
        %v2809 = vunpack.c.l.b16 %v878
        %v2810 = vunpack.c.h.b16 %v878
        %v2811 = vunpack.c.l.b16 %v879
        %v2812 = vunpack.c.h.b16 %v879
        %v2813 = vunpack.c.l.b16 %v880
        %v2814 = vunpack.c.h.b16 %v880
        %v2815 = vunpack.c.l.b16 %v881
        %v2816 = vunpack.c.h.b16 %v881
        %v2817 = vunpack.c.l.b16 %v882
        %v2818 = vunpack.c.h.b16 %v882
        %v2819 = vunpack.c.l.b16 %v883
        %v2820 = vunpack.c.h.b16 %v883
        %v2821 = vunpack.c.l.b16 %v884
        %v2822 = vunpack.c.h.b16 %v884
        %v2823 = vunpack.c.l.b16 %v885
        %v2824 = vunpack.c.h.b16 %v885
        %v2825 = vunpack.c.l.b16 %v886
        %v2826 = vunpack.c.h.b16 %v886
        %v2827 = vunpack.c.l.b16 %v887
        %v2828 = vunpack.c.h.b16 %v887
        %v2829 = vunpack.c.l.b16 %v888
        %v2830 = vunpack.c.h.b16 %v888
        %v2831 = vunpack.c.l.b16 %v889
        %v2832 = vunpack.c.h.b16 %v889
        %v2833 = vunpack.c.l.b16 %v890
        %v2834 = vunpack.c.h.b16 %v890
        %v2835 = vunpack.c.l.b16 %v891
        %v2836 = vunpack.c.h.b16 %v891
        %v2837 = vunpack.c.l.b16 %v892
        %v2838 = vunpack.c.h.b16 %v892
        %v2839 = vunpack.c.l.b16 %v893
        %v2840 = vunpack.c.h.b16 %v893
        %v2841 = vunpack.c.l.b16 %v894
        %v2842 = vunpack.c.h.b16 %v894
        %v2843 = vunpack.c.l.b16 %v895
        %v2844 = vunpack.c.h.b16 %v895
        %v2845 = vunpack.c.l.b16 %v896
        %v2846 = vunpack.c.h.b16 %v896
        %v2847 = vunpack.c.l.b16 %v897
        %v2848 = vunpack.c.h.b16 %v897
        %v2849 = vunpack.c.l.b16 %v898
        %v2850 = vunpack.c.h.b16 %v898
        %v2851 = vunpack.c.l.b16 %v899
        %v2852 = vunpack.c.h.b16 %v899
        %v2853 = vunpack.c.l.b16 %v900
        %v2854 = vunpack.c.h.b16 %v900
        %v2855 = vunpack.c.l.b16 %v901
        %v2856 = vunpack.c.h.b16 %v901
        %v2857 = vunpack.c.l.b16 %v902
        %v2858 = vunpack.c.h.b16 %v902
        %v2859 = vunpack.c.l.b16 %v903
        %v2860 = vunpack.c.h.b16 %v903
        %v2861 = vunpack.c.l.b16 %v904
        %v2862 = vunpack.c.h.b16 %v904
        %v2863 = vunpack.c.l.b16 %v905
        %v2864 = vunpack.c.h.b16 %v905
        %v2865 = vunpack.c.l.b16 %v906
        %v2866 = vunpack.c.h.b16 %v906
        %v2867 = vunpack.c.l.b16 %v907
        %v2868 = vunpack.c.h.b16 %v907
        %v2869 = vunpack.c.l.b16 %v908
        %v2870 = vunpack.c.h.b16 %v908
        %v2871 = vunpack.c.l.b16 %v909
        %v2872 = vunpack.c.h.b16 %v909
        %v2873 = vunpack.c.l.b16 %v910
        %v2874 = vunpack.c.h.b16 %v910
        %v2875 = vunpack.c.l.b16 %v911
        %v2876 = vunpack.c.h.b16 %v911
        %v2877 = vunpack.c.l.b16 %v912
        %v2878 = vunpack.c.h.b16 %v912
        %v2879 = vunpack.c.l.b16 %v913
        %v2880 = vunpack.c.h.b16 %v913
        %v2881 = vunpack.c.l.b16 %v914
        %v2882 = vunpack.c.h.b16 %v914
        %v2883 = vunpack.c.l.b16 %v915
        %v2884 = vunpack.c.h.b16 %v915
        %v2885 = vunpack.c.l.b16 %v916
        %v2886 = vunpack.c.h.b16 %v916
        %v2887 = vunpack.c.l.b16 %v917
        %v2888 = vunpack.c.h.b16 %v917
        %v2889 = vunpack.c.l.b16 %v918
        %v2890 = vunpack.c.h.b16 %v918
        %v2891 = vunpack.c.l.b16 %v919
        %v2892 = vunpack.c.h.b16 %v919
        %v2893 = vunpack.c.l.b16 %v920
        %v2894 = vunpack.c.h.b16 %v920
        %v2895 = vunpack.c.l.b16 %v921
        %v2896 = vunpack.c.h.b16 %v921
        %v2897 = vunpack.c.l.b16 %v922
        %v2898 = vunpack.c.h.b16 %v922
        %v2899 = vunpack.c.l.b16 %v923
        %v2900 = vunpack.c.h.b16 %v923
        %v2901 = vunpack.c.l.b16 %v924
        %v2902 = vunpack.c.h.b16 %v924
        %v2903 = vunpack.c.l.b16 %v925
        %v2904 = vunpack.c.h.b16 %v925
        %v2905 = vunpack.c.l.b16 %v926
        %v2906 = vunpack.c.h.b16 %v926
        %v2907 = vunpack.c.l.b16 %v927
        %v2908 = vunpack.c.h.b16 %v927
        %v2909 = vunpack.c.l.b16 %v928
        %v2910 = vunpack.c.h.b16 %v928
        %v2911 = vunpack.c.l.b16 %v929
        %v2912 = vunpack.c.h.b16 %v929
        %v2913 = vunpack.c.l.b16 %v930
        %v2914 = vunpack.c.h.b16 %v930
        %v2915 = vunpack.c.l.b16 %v931
        %v2916 = vunpack.c.h.b16 %v931
        %v2917 = vunpack.c.l.b16 %v932
        %v2918 = vunpack.c.h.b16 %v932
        %v2919 = vunpack.c.l.b16 %v933
        %v2920 = vunpack.c.h.b16 %v933
        %v2921 = vunpack.c.l.b16 %v934
        %v2922 = vunpack.c.h.b16 %v934
        %v2923 = vunpack.c.l.b16 %v935
        %v2924 = vunpack.c.h.b16 %v935
        %v2925 = vunpack.c.l.b16 %v936
        %v2926 = vunpack.c.h.b16 %v936
        %v2927 = vunpack.c.l.b16 %v937
        %v2928 = vunpack.c.h.b16 %v937
        %v2929 = vunpack.c.l.b16 %v938
        %v2930 = vunpack.c.h.b16 %v938
        %v2931 = vunpack.c.l.b16 %v939
        %v2932 = vunpack.c.h.b16 %v939
        %v2933 = vunpack.c.l.b16 %v940
        %v2934 = vunpack.c.h.b16 %v940
        %v2935 = vunpack.c.l.b16 %v941
        %v2936 = vunpack.c.h.b16 %v941
        %v2937 = vunpack.c.l.b16 %v942
        %v2938 = vunpack.c.h.b16 %v942
        %v2939 = vunpack.c.l.b16 %v943
        %v2940 = vunpack.c.h.b16 %v943
        %v2941 = vunpack.c.l.b16 %v944
        %v2942 = vunpack.c.h.b16 %v944
        %v2943 = vunpack.c.l.b16 %v945
        %v2944 = vunpack.c.h.b16 %v945
        %v2945 = vunpack.c.l.b16 %v946
        %v2946 = vunpack.c.h.b16 %v946
        %v2947 = vunpack.c.l.b16 %v947
        %v2948 = vunpack.c.h.b16 %v947
        %v2949 = vunpack.c.l.b16 %v948
        %v2950 = vunpack.c.h.b16 %v948
        %v2951 = vunpack.c.l.b16 %v949
        %v2952 = vunpack.c.h.b16 %v949
        %v2953 = vunpack.c.l.b16 %v950
        %v2954 = vunpack.c.h.b16 %v950
        %v2955 = vunpack.c.l.b16 %v951
        %v2956 = vunpack.c.h.b16 %v951
        %v2957 = vunpack.c.l.b16 %v952
        %v2958 = vunpack.c.h.b16 %v952
        %v2959 = vunpack.c.l.b16 %v953
        %v2960 = vunpack.c.h.b16 %v953
        %v2961 = vunpack.c.l.b16 %v954
        %v2962 = vunpack.c.h.b16 %v954
        %v2963 = vunpack.c.l.b16 %v955
        %v2964 = vunpack.c.h.b16 %v955
        %v2965 = vunpack.c.l.b16 %v956
        %v2966 = vunpack.c.h.b16 %v956
        %v2967 = vunpack.c.l.b16 %v957
        %v2968 = vunpack.c.h.b16 %v957
        %v2969 = vunpack.c.l.b16 %v958
        %v2970 = vunpack.c.h.b16 %v958
        %v2971 = vunpack.c.l.b16 %v959
        %v2972 = vunpack.c.h.b16 %v959
        %v2973 = vunpack.c.l.b16 %v960
        %v2974 = vunpack.c.h.b16 %v960
        %v2975 = vunpack.c.l.b16 %v961
        %v2976 = vunpack.c.h.b16 %v961
        %v2977 = vunpack.c.l.b16 %v962
        %v2978 = vunpack.c.h.b16 %v962
        %v2979 = vunpack.c.l.b16 %v963
        %v2980 = vunpack.c.h.b16 %v963
        %v2981 = vunpack.c.l.b16 %v964
        %v2982 = vunpack.c.h.b16 %v964
        %v2983 = vunpack.c.l.b16 %v965
        %v2984 = vunpack.c.h.b16 %v965
        %v2985 = vunpack.c.l.b16 %v966
        %v2986 = vunpack.c.h.b16 %v966
        %v2987 = vunpack.c.l.b16 %v967
        %v2988 = vunpack.c.h.b16 %v967
        %v2989 = vunpack.c.l.b16 %v968
        %v2990 = vunpack.c.h.b16 %v968
        %v2991 = vunpack.c.l.b16 %v969
        %v2992 = vunpack.c.h.b16 %v969
        %v2993 = vunpack.c.l.b16 %v970
        %v2994 = vunpack.c.h.b16 %v970
        %v2995 = vunpack.c.l.b16 %v971
        %v2996 = vunpack.c.h.b16 %v971
        %v2997 = vunpack.c.l.b16 %v972
        %v2998 = vunpack.c.h.b16 %v972
        %v2999 = vunpack.c.l.b16 %v973
        %v3000 = vunpack.c.h.b16 %v973
        %v3001 = vunpack.c.l.b16 %v974
        %v3002 = vunpack.c.h.b16 %v974
        %v3003 = vunpack.c.l.b16 %v975
        %v3004 = vunpack.c.h.b16 %v975
        %v3005 = vunpack.c.l.b16 %v976
        %v3006 = vunpack.c.h.b16 %v976
        %v3007 = vunpack.c.l.b16 %v977
        %v3008 = vunpack.c.h.b16 %v977
        %v3009 = vunpack.c.l.b16 %v978
        %v3010 = vunpack.c.h.b16 %v978
        %v3011 = vunpack.c.l.b16 %v979
        %v3012 = vunpack.c.h.b16 %v979
        %v3013 = vunpack.c.l.b16 %v980
        %v3014 = vunpack.c.h.b16 %v980
        %v3015 = vunpack.c.l.b16 %v981
        %v3016 = vunpack.c.h.b16 %v981
        %v3017 = vunpack.c.l.b16 %v982
        %v3018 = vunpack.c.h.b16 %v982
        %v3019 = vunpack.c.l.b16 %v983
        %v3020 = vunpack.c.h.b16 %v983
        %v3021 = vunpack.c.l.b16 %v984
        %v3022 = vunpack.c.h.b16 %v984
        %v3023 = vunpack.c.l.b16 %v985
        %v3024 = vunpack.c.h.b16 %v985
        %v3025 = vunpack.c.l.b16 %v986
        %v3026 = vunpack.c.h.b16 %v986
        %v3027 = vunpack.c.l.b16 %v987
        %v3028 = vunpack.c.h.b16 %v987
        %v3029 = vunpack.c.l.b16 %v988
        %v3030 = vunpack.c.h.b16 %v988
        %v3031 = vunpack.c.l.b16 %v989
        %v3032 = vunpack.c.h.b16 %v989
        %v3033 = vunpack.c.l.b16 %v990
        %v3034 = vunpack.c.h.b16 %v990
        %v3035 = vunpack.c.l.b16 %v991
        %v3036 = vunpack.c.h.b16 %v991
        %v3037 = vunpack.c.l.b16 %v992
        %v3038 = vunpack.c.h.b16 %v992
        %v3039 = vunpack.c.l.b16 %v993
        %v3040 = vunpack.c.h.b16 %v993
        %v3041 = vunpack.c.l.b16 %v994
        %v3042 = vunpack.c.h.b16 %v994
        %v3043 = vunpack.c.l.b16 %v995
        %v3044 = vunpack.c.h.b16 %v995
        %v3045 = vunpack.c.l.b16 %v996
        %v3046 = vunpack.c.h.b16 %v996
        %v3047 = vunpack.c.l.b16 %v997
        %v3048 = vunpack.c.h.b16 %v997
        %v3049 = vunpack.c.l.b16 %v998
        %v3050 = vunpack.c.h.b16 %v998
        %v3051 = vunpack.c.l.b16 %v999
        %v3052 = vunpack.c.h.b16 %v999
        %v3053 = vunpack.c.l.b16 %v1000
        %v3054 = vunpack.c.h.b16 %v1000
        %v3055 = vunpack.c.l.b16 %v1001
        %v3056 = vunpack.c.h.b16 %v1001
        %v3057 = vunpack.c.l.b16 %v1002
        %v3058 = vunpack.c.h.b16 %v1002
        %v3059 = vunpack.c.l.b16 %v1003
        %v3060 = vunpack.c.h.b16 %v1003
        %v3061 = vunpack.c.l.b16 %v1004
        %v3062 = vunpack.c.h.b16 %v1004
        %v3063 = vunpack.c.l.b16 %v1005
        %v3064 = vunpack.c.h.b16 %v1005
        %v3065 = vunpack.c.l.b16 %v1006
        %v3066 = vunpack.c.h.b16 %v1006
        %v3067 = vunpack.c.l.b16 %v1007
        %v3068 = vunpack.c.h.b16 %v1007
        %v3069 = vunpack.c.l.b16 %v1008
        %v3070 = vunpack.c.h.b16 %v1008
        %v3071 = vunpack.c.l.b16 %v1009
        %v3072 = vunpack.c.h.b16 %v1009
        %v3073 = vunpack.c.l.b16 %v1010
        %v3074 = vunpack.c.h.b16 %v1010
        %v3075 = vunpack.c.l.b16 %v1011
        %v3076 = vunpack.c.h.b16 %v1011
        %v3077 = vunpack.c.l.b16 %v1012
        %v3078 = vunpack.c.h.b16 %v1012
        %v3079 = vunpack.c.l.b16 %v1013
        %v3080 = vunpack.c.h.b16 %v1013
        %v3081 = vunpack.c.l.b16 %v1014
        %v3082 = vunpack.c.h.b16 %v1014
        %v3083 = vunpack.c.l.b16 %v1015
        %v3084 = vunpack.c.h.b16 %v1015
        %v3085 = vunpack.c.l.b16 %v1016
        %v3086 = vunpack.c.h.b16 %v1016
        %v3087 = vunpack.c.l.b16 %v1017
        %v3088 = vunpack.c.h.b16 %v1017
        %v3089 = vunpack.c.l.b16 %v1018
        %v3090 = vunpack.c.h.b16 %v1018
        %v3091 = vunpack.c.l.b16 %v1019
        %v3092 = vunpack.c.h.b16 %v1019
        %v3093 = vunpack.c.l.b16 %v1020
        %v3094 = vunpack.c.h.b16 %v1020
        %v3095 = vunpack.c.l.b16 %v1021
        %v3096 = vunpack.c.h.b16 %v1021
        %v3097 = vunpack.c.l.b16 %v1022
        %v3098 = vunpack.c.h.b16 %v1022
        %v3099 = vunpack.c.l.b16 %v1023
        %v3100 = vunpack.c.h.b16 %v1023
        %v3101 = vunpack.c.l.b16 %v1024
        %v3102 = vunpack.c.h.b16 %v1024
        %v3103 = vunpack.c.l.b16 %v1025
        %v3104 = vunpack.c.h.b16 %v1025
        %v3105 = vunpack.c.l.b16 %v1026
        %v3106 = vunpack.c.h.b16 %v1026
        %v3107 = vunpack.c.l.b16 %v1027
        %v3108 = vunpack.c.h.b16 %v1027
        %v3109 = vunpack.c.l.b16 %v1028
        %v3110 = vunpack.c.h.b16 %v1028
        %v3111 = vunpack.c.l.b16 %v1029
        %v3112 = vunpack.c.h.b16 %v1029
        %v3113 = vunpack.c.l.b16 %v1030
        %v3114 = vunpack.c.h.b16 %v1030
        %v3115 = vunpack.c.l.b16 %v1031
        %v3116 = vunpack.c.h.b16 %v1031
        %v3117 = vunpack.c.l.b16 %v1032
        %v3118 = vunpack.c.h.b16 %v1032
        %v3119 = vunpack.c.l.b16 %v1033
        %v3120 = vunpack.c.h.b16 %v1033
        %v3121 = vunpack.c.l.b16 %v1034
        %v3122 = vunpack.c.h.b16 %v1034
        %v3123 = vunpack.c.l.b16 %v1035
        %v3124 = vunpack.c.h.b16 %v1035
        %v3125 = vunpack.c.l.b16 %v1036
        %v3126 = vunpack.c.h.b16 %v1036
        %v3127 = vunpack.c.l.b16 %v1037
        %v3128 = vunpack.c.h.b16 %v1037
        %v3129 = vunpack.c.l.b16 %v1038
        %v3130 = vunpack.c.h.b16 %v1038
        %v3131 = vunpack.c.l.b16 %v1039
        %v3132 = vunpack.c.h.b16 %v1039
        %v3133 = vunpack.c.l.b16 %v1040
        %v3134 = vunpack.c.h.b16 %v1040
        %v3135 = vunpack.c.l.b16 %v1041
        %v3136 = vunpack.c.h.b16 %v1041
        %v3137 = vunpack.c.l.b16 %v1042
        %v3138 = vunpack.c.h.b16 %v1042
        %v3139 = vunpack.c.l.b16 %v1043
        %v3140 = vunpack.c.h.b16 %v1043
        %v3141 = vunpack.c.l.b16 %v1044
        %v3142 = vunpack.c.h.b16 %v1044
        %v3143 = vunpack.c.l.b16 %v1045
        %v3144 = vunpack.c.h.b16 %v1045
        %v3145 = vunpack.c.l.b16 %v1046
        %v3146 = vunpack.c.h.b16 %v1046
        %v3147 = vunpack.c.l.b16 %v1047
        %v3148 = vunpack.c.h.b16 %v1047
        %v3149 = vunpack.c.l.b16 %v1048
        %v3150 = vunpack.c.h.b16 %v1048
        %v3151 = vunpack.c.l.b16 %v1049
        %v3152 = vunpack.c.h.b16 %v1049
        %v3153 = vunpack.c.l.b16 %v1050
        %v3154 = vunpack.c.h.b16 %v1050
        %v3155 = vpack.c.b16 %v2779, %v2771
        %v3156 = vpack.c.b16 %v2780, %v2772
        %v3157 = vpack.c.b16 %v2781, %v2773
        %v3158 = vpack.c.b16 %v2782, %v2774
        %v3159 = vpack.c.b16 %v2783, %v2775
        %v3160 = vpack.c.b16 %v2784, %v2776
        %v3161 = vpack.c.b16 %v2785, %v2777
        %v3162 = vpack.c.b16 %v2786, %v2778
        %v3163 = vpack.c.b16 %v2795, %v2787
        %v3164 = vpack.c.b16 %v2796, %v2788
        %v3165 = vpack.c.b16 %v2797, %v2789
        %v3166 = vpack.c.b16 %v2798, %v2790
        %v3167 = vpack.c.b16 %v2799, %v2791
        %v3168 = vpack.c.b16 %v2800, %v2792
        %v3169 = vpack.c.b16 %v2801, %v2793
        %v3170 = vpack.c.b16 %v2802, %v2794
        %v3171 = vpack.c.b16 %v2811, %v2803
        %v3172 = vpack.c.b16 %v2812, %v2804
        %v3173 = vpack.c.b16 %v2813, %v2805
        %v3174 = vpack.c.b16 %v2814, %v2806
        %v3175 = vpack.c.b16 %v2815, %v2807
        %v3176 = vpack.c.b16 %v2816, %v2808
        %v3177 = vpack.c.b16 %v2817, %v2809
        %v3178 = vpack.c.b16 %v2818, %v2810
        %v3179 = vpack.c.b16 %v2827, %v2819
        %v3180 = vpack.c.b16 %v2828, %v2820
        %v3181 = vpack.c.b16 %v2829, %v2821
        %v3182 = vpack.c.b16 %v2830, %v2822
        %v3183 = vpack.c.b16 %v2831, %v2823
        %v3184 = vpack.c.b16 %v2832, %v2824
        %v3185 = vpack.c.b16 %v2833, %v2825
        %v3186 = vpack.c.b16 %v2834, %v2826
        %v3187 = vpack.c.b16 %v2843, %v2835
        %v3188 = vpack.c.b16 %v2844, %v2836
        %v3189 = vpack.c.b16 %v2845, %v2837
        %v3190 = vpack.c.b16 %v2846, %v2838
        %v3191 = vpack.c.b16 %v2847, %v2839
        %v3192 = vpack.c.b16 %v2848, %v2840
        %v3193 = vpack.c.b16 %v2849, %v2841
        %v3194 = vpack.c.b16 %v2850, %v2842
        %v3195 = vpack.c.b16 %v2859, %v2851
        %v3196 = vpack.c.b16 %v2860, %v2852
        %v3197 = vpack.c.b16 %v2861, %v2853
        %v3198 = vpack.c.b16 %v2862, %v2854
        %v3199 = vpack.c.b16 %v2863, %v2855
        %v3200 = vpack.c.b16 %v2864, %v2856
        %v3201 = vpack.c.b16 %v2865, %v2857
        %v3202 = vpack.c.b16 %v2866, %v2858
        %v3203 = vpack.c.b16 %v2875, %v2867
        %v3204 = vpack.c.b16 %v2876, %v2868
        %v3205 = vpack.c.b16 %v2877, %v2869
        %v3206 = vpack.c.b16 %v2878, %v2870
        %v3207 = vpack.c.b16 %v2879, %v2871
        %v3208 = vpack.c.b16 %v2880, %v2872
        %v3209 = vpack.c.b16 %v2881, %v2873
        %v3210 = vpack.c.b16 %v2882, %v2874
        %v3211 = vpack.c.b16 %v2891, %v2883
        %v3212 = vpack.c.b16 %v2892, %v2884
        %v3213 = vpack.c.b16 %v2893, %v2885
        %v3214 = vpack.c.b16 %v2894, %v2886
        %v3215 = vpack.c.b16 %v2895, %v2887
        %v3216 = vpack.c.b16 %v2896, %v2888
        %v3217 = vpack.c.b16 %v2897, %v2889
        %v3218 = vpack.c.b16 %v2898, %v2890
        %v3219 = vpack.c.b16 %v2907, %v2899
        %v3220 = vpack.c.b16 %v2908, %v2900
        %v3221 = vpack.c.b16 %v2909, %v2901
        %v3222 = vpack.c.b16 %v2910, %v2902
        %v3223 = vpack.c.b16 %v2911, %v2903
        %v3224 = vpack.c.b16 %v2912, %v2904
        %v3225 = vpack.c.b16 %v2913, %v2905
        %v3226 = vpack.c.b16 %v2914, %v2906
        %v3227 = vpack.c.b16 %v2923, %v2915
        %v3228 = vpack.c.b16 %v2924, %v2916
        %v3229 = vpack.c.b16 %v2925, %v2917
        %v3230 = vpack.c.b16 %v2926, %v2918
        %v3231 = vpack.c.b16 %v2927, %v2919
        %v3232 = vpack.c.b16 %v2928, %v2920
        %v3233 = vpack.c.b16 %v2929, %v2921
        %v3234 = vpack.c.b16 %v2930, %v2922
        %v3235 = vpack.c.b16 %v2939, %v2931
        %v3236 = vpack.c.b16 %v2940, %v2932
        %v3237 = vpack.c.b16 %v2941, %v2933
        %v3238 = vpack.c.b16 %v2942, %v2934
        %v3239 = vpack.c.b16 %v2943, %v2935
        %v3240 = vpack.c.b16 %v2944, %v2936
        %v3241 = vpack.c.b16 %v2945, %v2937
        %v3242 = vpack.c.b16 %v2946, %v2938
        %v3243 = vpack.c.b16 %v2955, %v2947
        %v3244 = vpack.c.b16 %v2956, %v2948
        %v3245 = vpack.c.b16 %v2957, %v2949
        %v3246 = vpack.c.b16 %v2958, %v2950
        %v3247 = vpack.c.b16 %v2959, %v2951
        %v3248 = vpack.c.b16 %v2960, %v2952
        %v3249 = vpack.c.b16 %v2961, %v2953
        %v3250 = vpack.c.b16 %v2962, %v2954
        %v3251 = vpack.c.b16 %v2971, %v2963
        %v3252 = vpack.c.b16 %v2972, %v2964
        %v3253 = vpack.c.b16 %v2973, %v2965
        %v3254 = vpack.c.b16 %v2974, %v2966
        %v3255 = vpack.c.b16 %v2975, %v2967
        %v3256 = vpack.c.b16 %v2976, %v2968
        %v3257 = vpack.c.b16 %v2977, %v2969
        %v3258 = vpack.c.b16 %v2978, %v2970
        %v3259 = vpack.c.b16 %v2987, %v2979
        %v3260 = vpack.c.b16 %v2988, %v2980
        %v3261 = vpack.c.b16 %v2989, %v2981
        %v3262 = vpack.c.b16 %v2990, %v2982
        %v3263 = vpack.c.b16 %v2991, %v2983
        %v3264 = vpack.c.b16 %v2992, %v2984
        %v3265 = vpack.c.b16 %v2993, %v2985
        %v3266 = vpack.c.b16 %v2994, %v2986
        %v3267 = vpack.c.b16 %v3003, %v2995
        %v3268 = vpack.c.b16 %v3004, %v2996
        %v3269 = vpack.c.b16 %v3005, %v2997
        %v3270 = vpack.c.b16 %v3006, %v2998
        %v3271 = vpack.c.b16 %v3007, %v2999
        %v3272 = vpack.c.b16 %v3008, %v3000
        %v3273 = vpack.c.b16 %v3009, %v3001
        %v3274 = vpack.c.b16 %v3010, %v3002
        %v3275 = vpack.c.b16 %v3019, %v3011
        %v3276 = vpack.c.b16 %v3020, %v3012
        %v3277 = vpack.c.b16 %v3021, %v3013
        %v3278 = vpack.c.b16 %v3022, %v3014
        %v3279 = vpack.c.b16 %v3023, %v3015
        %v3280 = vpack.c.b16 %v3024, %v3016
        %v3281 = vpack.c.b16 %v3025, %v3017
        %v3282 = vpack.c.b16 %v3026, %v3018
        %v3283 = vpack.c.b16 %v3035, %v3027
        %v3284 = vpack.c.b16 %v3036, %v3028
        %v3285 = vpack.c.b16 %v3037, %v3029
        %v3286 = vpack.c.b16 %v3038, %v3030
        %v3287 = vpack.c.b16 %v3039, %v3031
        %v3288 = vpack.c.b16 %v3040, %v3032
        %v3289 = vpack.c.b16 %v3041, %v3033
        %v3290 = vpack.c.b16 %v3042, %v3034
        %v3291 = vpack.c.b16 %v3051, %v3043
        %v3292 = vpack.c.b16 %v3052, %v3044
        %v3293 = vpack.c.b16 %v3053, %v3045
        %v3294 = vpack.c.b16 %v3054, %v3046
        %v3295 = vpack.c.b16 %v3055, %v3047
        %v3296 = vpack.c.b16 %v3056, %v3048
        %v3297 = vpack.c.b16 %v3057, %v3049
        %v3298 = vpack.c.b16 %v3058, %v3050
        %v3299 = vpack.c.b16 %v3067, %v3059
        %v3300 = vpack.c.b16 %v3068, %v3060
        %v3301 = vpack.c.b16 %v3069, %v3061
        %v3302 = vpack.c.b16 %v3070, %v3062
        %v3303 = vpack.c.b16 %v3071, %v3063
        %v3304 = vpack.c.b16 %v3072, %v3064
        %v3305 = vpack.c.b16 %v3073, %v3065
        %v3306 = vpack.c.b16 %v3074, %v3066
        %v3307 = vpack.c.b16 %v3083, %v3075
        %v3308 = vpack.c.b16 %v3084, %v3076
        %v3309 = vpack.c.b16 %v3085, %v3077
        %v3310 = vpack.c.b16 %v3086, %v3078
        %v3311 = vpack.c.b16 %v3087, %v3079
        %v3312 = vpack.c.b16 %v3088, %v3080
        %v3313 = vpack.c.b16 %v3089, %v3081
        %v3314 = vpack.c.b16 %v3090, %v3082
        %v3315 = vpack.c.b16 %v3099, %v3091
        %v3316 = vpack.c.b16 %v3100, %v3092
        %v3317 = vpack.c.b16 %v3101, %v3093
        %v3318 = vpack.c.b16 %v3102, %v3094
        %v3319 = vpack.c.b16 %v3103, %v3095
        %v3320 = vpack.c.b16 %v3104, %v3096
        %v3321 = vpack.c.b16 %v3105, %v3097
        %v3322 = vpack.c.b16 %v3106, %v3098
        %v3323 = vpack.c.b16 %v3115, %v3107
        %v3324 = vpack.c.b16 %v3116, %v3108
        %v3325 = vpack.c.b16 %v3117, %v3109
        %v3326 = vpack.c.b16 %v3118, %v3110
        %v3327 = vpack.c.b16 %v3119, %v3111
        %v3328 = vpack.c.b16 %v3120, %v3112
        %v3329 = vpack.c.b16 %v3121, %v3113
        %v3330 = vpack.c.b16 %v3122, %v3114
        %v3331 = vpack.c.b16 %v3131, %v3123
        %v3332 = vpack.c.b16 %v3132, %v3124
        %v3333 = vpack.c.b16 %v3133, %v3125
        %v3334 = vpack.c.b16 %v3134, %v3126
        %v3335 = vpack.c.b16 %v3135, %v3127
        %v3336 = vpack.c.b16 %v3136, %v3128
        %v3337 = vpack.c.b16 %v3137, %v3129
        %v3338 = vpack.c.b16 %v3138, %v3130
        %v3339 = vpack.c.b16 %v3147, %v3139
        %v3340 = vpack.c.b16 %v3148, %v3140
        %v3341 = vpack.c.b16 %v3149, %v3141
        %v3342 = vpack.c.b16 %v3150, %v3142
        %v3343 = vpack.c.b16 %v3151, %v3143
        %v3344 = vpack.c.b16 %v3152, %v3144
        %v3345 = vpack.c.b16 %v3153, %v3145
        %v3346 = vpack.c.b16 %v3154, %v3146
        %3539 = vmatprep.subr.bf16.mxu0 %v3156
        %3540 = vmatpush1.bf16.msra.mxu0 %v3155
        %3541 = vmatprep.subr.bf16.mxu0 %v3164
        %3542 = vmatpush1.bf16.msra.mxu0 %v3163
        %3543 = vmatprep.subr.bf16.mxu0 %v3172
        %3544 = vmatpush1.bf16.msra.mxu0 %v3171
        %3545 = vmatprep.subr.bf16.mxu0 %v3180
        %3546 = vmatpush1.bf16.msra.mxu0 %v3179
        %3547 = vmatprep.subr.bf16.mxu0 %v3188
        %3548 = vmatpush1.bf16.msra.mxu0 %v3187
        %3549 = vmatprep.subr.bf16.mxu0 %v3196
        %3550 = vmatpush1.bf16.msra.mxu0 %v3195
        %3551 = vmatprep.subr.bf16.mxu0 %v3204
        %3552 = vmatpush1.bf16.msra.mxu0 %v3203
        %3553 = vmatprep.subr.bf16.mxu0 %v3212
        %3554 = vmatpush1.bf16.msra.mxu0 %v3211
        %3555 = vmatprep.subr.bf16.mxu0 %v3220
        %3556 = vmatpush1.bf16.msra.mxu0 %v3219
        %3557 = vmatprep.subr.bf16.mxu0 %v3228
        %3558 = vmatpush1.bf16.msra.mxu0 %v3227
        %3559 = vmatprep.subr.bf16.mxu0 %v3236
        %3560 = vmatpush1.bf16.msra.mxu0 %v3235
        %3561 = vmatprep.subr.bf16.mxu0 %v3244
        %3562 = vmatpush1.bf16.msra.mxu0 %v3243
        %3563 = vmatprep.subr.bf16.mxu0 %v3252
        %3564 = vmatpush1.bf16.msra.mxu0 %v3251
        %3565 = vmatprep.subr.bf16.mxu0 %v3260
        %3566 = vmatpush1.bf16.msra.mxu0 %v3259
        %3567 = vmatprep.subr.bf16.mxu0 %v3268
        %3568 = vmatpush1.bf16.msra.mxu0 %v3267
        %3569 = vmatprep.subr.bf16.mxu0 %v3276
        %3570 = vmatpush1.bf16.msra.mxu0 %v3275
        %3571 = vmatprep.mubr.bf16.mxu0 %v2574
        %3572 = vmatmul.mubr.bf16.gmra.mrb[0].mxu0 %v2573
        %v3573 = vpop.f32.mrb[0].mxu0
        %v3574 = vadd.f32 %v2297, %v3573
        %v3575 = vpop.f32.mrb[0].mxu0
        %v3576 = vadd.f32 %v2299, %v3575
        %v3577 = vpop.f32.mrb[0].mxu0
        %v3578 = vadd.f32 %v2301, %v3577
        %v3579 = vpop.f32.mrb[0].mxu0
        %v3580 = vadd.f32 %v2303, %v3579
        %3581 = vdwg.mxu0
        %3582 = vmatprep.subr.bf16.mxu0 %v3284
        %3583 = vmatpush1.bf16.msra.mxu0 %v3283
        %3584 = vmatprep.subr.bf16.mxu0 %v3292
        %3585 = vmatpush1.bf16.msra.mxu0 %v3291
        %3586 = vmatprep.subr.bf16.mxu0 %v3300
        %3587 = vmatpush1.bf16.msra.mxu0 %v3299
        %3588 = vmatprep.subr.bf16.mxu0 %v3308
        %3589 = vmatpush1.bf16.msra.mxu0 %v3307
        %3590 = vmatprep.subr.bf16.mxu0 %v3316
        %3591 = vmatpush1.bf16.msra.mxu0 %v3315
        %3592 = vmatprep.subr.bf16.mxu0 %v3324
        %3593 = vmatpush1.bf16.msra.mxu0 %v3323
        %3594 = vmatprep.subr.bf16.mxu0 %v3332
        %3595 = vmatpush1.bf16.msra.mxu0 %v3331
        %3596 = vmatprep.subr.bf16.mxu0 %v3340
        %3597 = vmatpush1.bf16.msra.mxu0 %v3339
        %3598 = vmatprep.subr.bf16.mxu0 0
        %3599 = vmatpush1.bf16.msra.mxu0 0
        %3600 = vmatprep.subr.bf16.mxu0 0
        %3601 = vmatpush1.bf16.msra.mxu0 0
        %3602 = vmatprep.subr.bf16.mxu0 0
        %3603 = vmatpush1.bf16.msra.mxu0 0
        %3604 = vmatprep.subr.bf16.mxu0 0
        %3605 = vmatpush1.bf16.msra.mxu0 0
        %3606 = vmatprep.subr.bf16.mxu0 0
        %3607 = vmatpush1.bf16.msra.mxu0 0
        %3608 = vmatprep.subr.bf16.mxu0 0
        %3609 = vmatpush1.bf16.msra.mxu0 0
        %3610 = vmatprep.subr.bf16.mxu0 0
        %3611 = vmatpush1.bf16.msra.mxu0 0
        %3612 = vmatprep.subr.bf16.mxu0 0
        %3613 = vmatpush1.bf16.msra.mxu0 0
        %3614 = vmatprep.mubr.bf16.mxu0 0
        %3615 = vmatmul.mubr.bf16.gmra.mrb[0].mxu0 %v2575
        %v3616 = vpop.f32.mrb[0].mxu0
        %v3617 = vadd.f32 %v3574, %v3616
        %v3618 = vpop.f32.mrb[0].mxu0
        %v3619 = vadd.f32 %v3576, %v3618
        %v3620 = vpop.f32.mrb[0].mxu0
        %v3621 = vadd.f32 %v3578, %v3620
        %v3622 = vpop.f32.mrb[0].mxu0
        %v3623 = vadd.f32 %v3580, %v3622
        %3624 = vdwg.mxu0
        %3625 = vmatprep.subr.bf16.mxu0 %v3158
        %3626 = vmatpush1.bf16.msra.mxu0 %v3157
        %3627 = vmatprep.subr.bf16.mxu0 %v3166
        %3628 = vmatpush1.bf16.msra.mxu0 %v3165
        %3629 = vmatprep.subr.bf16.mxu0 %v3174
        %3630 = vmatpush1.bf16.msra.mxu0 %v3173
        %3631 = vmatprep.subr.bf16.mxu0 %v3182
        %3632 = vmatpush1.bf16.msra.mxu0 %v3181
        %3633 = vmatprep.subr.bf16.mxu0 %v3190
        %3634 = vmatpush1.bf16.msra.mxu0 %v3189
        %3635 = vmatprep.subr.bf16.mxu0 %v3198
        %3636 = vmatpush1.bf16.msra.mxu0 %v3197
        %3637 = vmatprep.subr.bf16.mxu0 %v3206
        %3638 = vmatpush1.bf16.msra.mxu0 %v3205
        %3639 = vmatprep.subr.bf16.mxu0 %v3214
        %3640 = vmatpush1.bf16.msra.mxu0 %v3213
        %3641 = vmatprep.subr.bf16.mxu0 %v3222
        %3642 = vmatpush1.bf16.msra.mxu0 %v3221
        %3643 = vmatprep.subr.bf16.mxu0 %v3230
        %3644 = vmatpush1.bf16.msra.mxu0 %v3229
        %3645 = vmatprep.subr.bf16.mxu0 %v3238
        %3646 = vmatpush1.bf16.msra.mxu0 %v3237
        %3647 = vmatprep.subr.bf16.mxu0 %v3246
        %3648 = vmatpush1.bf16.msra.mxu0 %v3245
        %3649 = vmatprep.subr.bf16.mxu0 %v3254
        %3650 = vmatpush1.bf16.msra.mxu0 %v3253
        %3651 = vmatprep.subr.bf16.mxu0 %v3262
        %3652 = vmatpush1.bf16.msra.mxu0 %v3261
        %3653 = vmatprep.subr.bf16.mxu0 %v3270
        %3654 = vmatpush1.bf16.msra.mxu0 %v3269
        %3655 = vmatprep.subr.bf16.mxu0 %v3278
        %3656 = vmatpush1.bf16.msra.mxu0 %v3277
        %3657 = vmatprep.mubr.bf16.mxu0 %v2574
        %3658 = vmatmul.mubr.bf16.gmra.mrb[0].mxu0 %v2573
        %v3659 = vpop.f32.mrb[0].mxu0
        %v3660 = vadd.f32 %v2383, %v3659
        %v3661 = vpop.f32.mrb[0].mxu0
        %v3662 = vadd.f32 %v2385, %v3661
        %v3663 = vpop.f32.mrb[0].mxu0
        %v3664 = vadd.f32 %v2387, %v3663
        %v3665 = vpop.f32.mrb[0].mxu0
        %v3666 = vadd.f32 %v2389, %v3665
        %3667 = vdwg.mxu0
        %3668 = vmatprep.subr.bf16.mxu0 %v3286
        %3669 = vmatpush1.bf16.msra.mxu0 %v3285
        %3670 = vmatprep.subr.bf16.mxu0 %v3294
        %3671 = vmatpush1.bf16.msra.mxu0 %v3293
        %3672 = vmatprep.subr.bf16.mxu0 %v3302
        %3673 = vmatpush1.bf16.msra.mxu0 %v3301
        %3674 = vmatprep.subr.bf16.mxu0 %v3310
        %3675 = vmatpush1.bf16.msra.mxu0 %v3309
        %3676 = vmatprep.subr.bf16.mxu0 %v3318
        %3677 = vmatpush1.bf16.msra.mxu0 %v3317
        %3678 = vmatprep.subr.bf16.mxu0 %v3326
        %3679 = vmatpush1.bf16.msra.mxu0 %v3325
        %3680 = vmatprep.subr.bf16.mxu0 %v3334
        %3681 = vmatpush1.bf16.msra.mxu0 %v3333
        %3682 = vmatprep.subr.bf16.mxu0 %v3342
        %3683 = vmatpush1.bf16.msra.mxu0 %v3341
        %3684 = vmatprep.subr.bf16.mxu0 0
        %3685 = vmatpush1.bf16.msra.mxu0 0
        %3686 = vmatprep.subr.bf16.mxu0 0
        %3687 = vmatpush1.bf16.msra.mxu0 0
        %3688 = vmatprep.subr.bf16.mxu0 0
        %3689 = vmatpush1.bf16.msra.mxu0 0
        %3690 = vmatprep.subr.bf16.mxu0 0
        %3691 = vmatpush1.bf16.msra.mxu0 0
        %3692 = vmatprep.subr.bf16.mxu0 0
        %3693 = vmatpush1.bf16.msra.mxu0 0
        %3694 = vmatprep.subr.bf16.mxu0 0
        %3695 = vmatpush1.bf16.msra.mxu0 0
        %3696 = vmatprep.subr.bf16.mxu0 0
        %3697 = vmatpush1.bf16.msra.mxu0 0
        %3698 = vmatprep.subr.bf16.mxu0 0
        %3699 = vmatpush1.bf16.msra.mxu0 0
        %3700 = vmatprep.mubr.bf16.mxu0 0
        %3701 = vmatmul.mubr.bf16.gmra.mrb[0].mxu0 %v2575
        %v3702 = vpop.f32.mrb[0].mxu0
        %v3703 = vadd.f32 %v3660, %v3702
        %v3704 = vpop.f32.mrb[0].mxu0
        %v3705 = vadd.f32 %v3662, %v3704
        %v3706 = vpop.f32.mrb[0].mxu0
        %v3707 = vadd.f32 %v3664, %v3706
        %v3708 = vpop.f32.mrb[0].mxu0
        %v3709 = vadd.f32 %v3666, %v3708
        %3710 = vdwg.mxu0
        %3711 = vmatprep.subr.bf16.mxu0 %v3160
        %3712 = vmatpush1.bf16.msra.mxu0 %v3159
        %3713 = vmatprep.subr.bf16.mxu0 %v3168
        %3714 = vmatpush1.bf16.msra.mxu0 %v3167
        %3715 = vmatprep.subr.bf16.mxu0 %v3176
        %3716 = vmatpush1.bf16.msra.mxu0 %v3175
        %3717 = vmatprep.subr.bf16.mxu0 %v3184
        %3718 = vmatpush1.bf16.msra.mxu0 %v3183
        %3719 = vmatprep.subr.bf16.mxu0 %v3192
        %3720 = vmatpush1.bf16.msra.mxu0 %v3191
        %3721 = vmatprep.subr.bf16.mxu0 %v3200
        %3722 = vmatpush1.bf16.msra.mxu0 %v3199
        %3723 = vmatprep.subr.bf16.mxu0 %v3208
        %3724 = vmatpush1.bf16.msra.mxu0 %v3207
        %3725 = vmatprep.subr.bf16.mxu0 %v3216
        %3726 = vmatpush1.bf16.msra.mxu0 %v3215
        %3727 = vmatprep.subr.bf16.mxu0 %v3224
        %3728 = vmatpush1.bf16.msra.mxu0 %v3223
        %3729 = vmatprep.subr.bf16.mxu0 %v3232
        %3730 = vmatpush1.bf16.msra.mxu0 %v3231
        %3731 = vmatprep.subr.bf16.mxu0 %v3240
        %3732 = vmatpush1.bf16.msra.mxu0 %v3239
        %3733 = vmatprep.subr.bf16.mxu0 %v3248
        %3734 = vmatpush1.bf16.msra.mxu0 %v3247
        %3735 = vmatprep.subr.bf16.mxu0 %v3256
        %3736 = vmatpush1.bf16.msra.mxu0 %v3255
        %3737 = vmatprep.subr.bf16.mxu0 %v3264
        %3738 = vmatpush1.bf16.msra.mxu0 %v3263
        %3739 = vmatprep.subr.bf16.mxu0 %v3272
        %3740 = vmatpush1.bf16.msra.mxu0 %v3271
        %3741 = vmatprep.subr.bf16.mxu0 %v3280
        %3742 = vmatpush1.bf16.msra.mxu0 %v3279
        %3743 = vmatprep.mubr.bf16.mxu0 %v2574
        %3744 = vmatmul.mubr.bf16.gmra.mrb[0].mxu0 %v2573
        %v3745 = vpop.f32.mrb[0].mxu0
        %v3746 = vadd.f32 %v2469, %v3745
        %v3747 = vpop.f32.mrb[0].mxu0
        %v3748 = vadd.f32 %v2471, %v3747
        %v3749 = vpop.f32.mrb[0].mxu0
        %v3750 = vadd.f32 %v2473, %v3749
        %v3751 = vpop.f32.mrb[0].mxu0
        %v3752 = vadd.f32 %v2475, %v3751
        %3753 = vdwg.mxu0
        %3754 = vmatprep.subr.bf16.mxu0 %v3288
        %3755 = vmatpush1.bf16.msra.mxu0 %v3287
        %3756 = vmatprep.subr.bf16.mxu0 %v3296
        %3757 = vmatpush1.bf16.msra.mxu0 %v3295
        %3758 = vmatprep.subr.bf16.mxu0 %v3304
        %3759 = vmatpush1.bf16.msra.mxu0 %v3303
        %3760 = vmatprep.subr.bf16.mxu0 %v3312
        %3761 = vmatpush1.bf16.msra.mxu0 %v3311
        %3762 = vmatprep.subr.bf16.mxu0 %v3320
        %3763 = vmatpush1.bf16.msra.mxu0 %v3319
        %3764 = vmatprep.subr.bf16.mxu0 %v3328
        %3765 = vmatpush1.bf16.msra.mxu0 %v3327
        %3766 = vmatprep.subr.bf16.mxu0 %v3336
        %3767 = vmatpush1.bf16.msra.mxu0 %v3335
        %3768 = vmatprep.subr.bf16.mxu0 %v3344
        %3769 = vmatpush1.bf16.msra.mxu0 %v3343
        %3770 = vmatprep.subr.bf16.mxu0 0
        %3771 = vmatpush1.bf16.msra.mxu0 0
        %3772 = vmatprep.subr.bf16.mxu0 0
        %3773 = vmatpush1.bf16.msra.mxu0 0
        %3774 = vmatprep.subr.bf16.mxu0 0
        %3775 = vmatpush1.bf16.msra.mxu0 0
        %3776 = vmatprep.subr.bf16.mxu0 0
        %3777 = vmatpush1.bf16.msra.mxu0 0
        %3778 = vmatprep.subr.bf16.mxu0 0
        %3779 = vmatpush1.bf16.msra.mxu0 0
        %3780 = vmatprep.subr.bf16.mxu0 0
        %3781 = vmatpush1.bf16.msra.mxu0 0
        %3782 = vmatprep.subr.bf16.mxu0 0
        %3783 = vmatpush1.bf16.msra.mxu0 0
        %3784 = vmatprep.subr.bf16.mxu0 0
        %3785 = vmatpush1.bf16.msra.mxu0 0
        %3786 = vmatprep.mubr.bf16.mxu0 0
        %3787 = vmatmul.mubr.bf16.gmra.mrb[0].mxu0 %v2575
        %v3788 = vpop.f32.mrb[0].mxu0
        %v3789 = vadd.f32 %v3746, %v3788
        %v3790 = vpop.f32.mrb[0].mxu0
        %v3791 = vadd.f32 %v3748, %v3790
        %v3792 = vpop.f32.mrb[0].mxu0
        %v3793 = vadd.f32 %v3750, %v3792
        %v3794 = vpop.f32.mrb[0].mxu0
        %v3795 = vadd.f32 %v3752, %v3794
        %3796 = vdwg.mxu0
        %3797 = vmatprep.subr.bf16.mxu0 %v3162
        %3798 = vmatpush1.bf16.msra.mxu0 %v3161
        %3799 = vmatprep.subr.bf16.mxu0 %v3170
        %3800 = vmatpush1.bf16.msra.mxu0 %v3169
        %3801 = vmatprep.subr.bf16.mxu0 %v3178
        %3802 = vmatpush1.bf16.msra.mxu0 %v3177
        %3803 = vmatprep.subr.bf16.mxu0 %v3186
        %3804 = vmatpush1.bf16.msra.mxu0 %v3185
        %3805 = vmatprep.subr.bf16.mxu0 %v3194
        %3806 = vmatpush1.bf16.msra.mxu0 %v3193
        %3807 = vmatprep.subr.bf16.mxu0 %v3202
        %3808 = vmatpush1.bf16.msra.mxu0 %v3201
        %3809 = vmatprep.subr.bf16.mxu0 %v3210
        %3810 = vmatpush1.bf16.msra.mxu0 %v3209
        %3811 = vmatprep.subr.bf16.mxu0 %v3218
        %3812 = vmatpush1.bf16.msra.mxu0 %v3217
        %3813 = vmatprep.subr.bf16.mxu0 %v3226
        %3814 = vmatpush1.bf16.msra.mxu0 %v3225
        %3815 = vmatprep.subr.bf16.mxu0 %v3234
        %3816 = vmatpush1.bf16.msra.mxu0 %v3233
        %3817 = vmatprep.subr.bf16.mxu0 %v3242
        %3818 = vmatpush1.bf16.msra.mxu0 %v3241
        %3819 = vmatprep.subr.bf16.mxu0 %v3250
        %3820 = vmatpush1.bf16.msra.mxu0 %v3249
        %3821 = vmatprep.subr.bf16.mxu0 %v3258
        %3822 = vmatpush1.bf16.msra.mxu0 %v3257
        %3823 = vmatprep.subr.bf16.mxu0 %v3266
        %3824 = vmatpush1.bf16.msra.mxu0 %v3265
        %3825 = vmatprep.subr.bf16.mxu0 %v3274
        %3826 = vmatpush1.bf16.msra.mxu0 %v3273
        %3827 = vmatprep.subr.bf16.mxu0 %v3282
        %3828 = vmatpush1.bf16.msra.mxu0 %v3281
        %3829 = vmatprep.mubr.bf16.mxu0 %v2574
        %3830 = vmatmul.mubr.bf16.gmra.mrb[0].mxu0 %v2573
        %v3831 = vpop.f32.mrb[0].mxu0
        %v3832 = vadd.f32 %v2555, %v3831
        %v3833 = vpop.f32.mrb[0].mxu0
        %v3834 = vadd.f32 %v2557, %v3833
        %v3835 = vpop.f32.mrb[0].mxu0
        %v3836 = vadd.f32 %v2559, %v3835
        %v3837 = vpop.f32.mrb[0].mxu0
        %v3838 = vadd.f32 %v2561, %v3837
        %3839 = vdwg.mxu0
        %3840 = vmatprep.subr.bf16.mxu0 %v3290
        %3841 = vmatpush1.bf16.msra.mxu0 %v3289
        %3842 = vmatprep.subr.bf16.mxu0 %v3298
        %3843 = vmatpush1.bf16.msra.mxu0 %v3297
        %3844 = vmatprep.subr.bf16.mxu0 %v3306
        %3845 = vmatpush1.bf16.msra.mxu0 %v3305
        %3846 = vmatprep.subr.bf16.mxu0 %v3314
        %3847 = vmatpush1.bf16.msra.mxu0 %v3313
        %3848 = vmatprep.subr.bf16.mxu0 %v3322
        %3849 = vmatpush1.bf16.msra.mxu0 %v3321
        %3850 = vmatprep.subr.bf16.mxu0 %v3330
        %3851 = vmatpush1.bf16.msra.mxu0 %v3329
        %3852 = vmatprep.subr.bf16.mxu0 %v3338
        %3853 = vmatpush1.bf16.msra.mxu0 %v3337
        %3854 = vmatprep.subr.bf16.mxu0 %v3346
        %3855 = vmatpush1.bf16.msra.mxu0 %v3345
        %3856 = vmatprep.subr.bf16.mxu0 0
        %3857 = vmatpush1.bf16.msra.mxu0 0
        %3858 = vmatprep.subr.bf16.mxu0 0
        %3859 = vmatpush1.bf16.msra.mxu0 0
        %3860 = vmatprep.subr.bf16.mxu0 0
        %3861 = vmatpush1.bf16.msra.mxu0 0
        %3862 = vmatprep.subr.bf16.mxu0 0
        %3863 = vmatpush1.bf16.msra.mxu0 0
        %3864 = vmatprep.subr.bf16.mxu0 0
        %3865 = vmatpush1.bf16.msra.mxu0 0
        %3866 = vmatprep.subr.bf16.mxu0 0
        %3867 = vmatpush1.bf16.msra.mxu0 0
        %3868 = vmatprep.subr.bf16.mxu0 0
        %3869 = vmatpush1.bf16.msra.mxu0 0
        %3870 = vmatprep.subr.bf16.mxu0 0
        %3871 = vmatpush1.bf16.msra.mxu0 0
        %3872 = vmatprep.mubr.bf16.mxu0 0
        %3873 = vmatmul.mubr.bf16.gmra.mrb[0].mxu0 %v2575
        %v3874 = vpop.f32.mrb[0].mxu0
        %v3875 = vadd.f32 %v3832, %v3874
        %v3876 = vpop.f32.mrb[0].mxu0
        %v3877 = vadd.f32 %v3834, %v3876
        %v3878 = vpop.f32.mrb[0].mxu0
        %v3879 = vadd.f32 %v3836, %v3878
        %v3880 = vpop.f32.mrb[0].mxu0
        %v3881 = vadd.f32 %v3838, %v3880
        %3882 = vdwg.mxu0
        %v3883 = vld [vmem:[%s6] sm:$0xff]
        %v3885 = vlaneseq
        %v3886 = vshrl.u32 %v3885, 7
        %v3887 = vsub.s32 0, %v3886
        %v3888 = vrot.slane %v3883, %v3887
        %v3889 = vlaneseq
        %v3890 = vshrl.u32 %v3889, 7
        %v3891 = vsub.s32 1, %v3890
        %v3892 = vrot.slane %v3883, %v3891
        %v3893 = vlaneseq
        %v3894 = vshrl.u32 %v3893, 7
        %v3895 = vsub.s32 2, %v3894
        %v3896 = vrot.slane %v3883, %v3895
        %v3897 = vlaneseq
        %v3898 = vshrl.u32 %v3897, 7
        %v3899 = vsub.s32 3, %v3898
        %v3900 = vrot.slane %v3883, %v3899
        %v3901 = vlaneseq
        %v3902 = vshrl.u32 %v3901, 7
        %v3903 = vsub.s32 4, %v3902
        %v3904 = vrot.slane %v3883, %v3903
        %v3905 = vlaneseq
        %v3906 = vshrl.u32 %v3905, 7
        %v3907 = vsub.s32 5, %v3906
        %v3908 = vrot.slane %v3883, %v3907
        %v3909 = vlaneseq
        %v3910 = vshrl.u32 %v3909, 7
        %v3911 = vsub.s32 6, %v3910
        %v3912 = vrot.slane %v3883, %v3911
        %v3913 = vlaneseq
        %v3914 = vshrl.u32 %v3913, 7
        %v3915 = vsub.s32 7, %v3914
        %v3916 = vrot.slane %v3883, %v3915
        %v3925 = vadd.f32 %v3617, %v3888
        %v3926 = vadd.f32 %v3619, %v3892
        %v3927 = vadd.f32 %v3703, %v3896
        %v3928 = vadd.f32 %v3705, %v3900
        %v3929 = vadd.f32 %v3789, %v3904
        %v3930 = vadd.f32 %v3791, %v3908
        %v3931 = vadd.f32 %v3875, %v3912
        %v3932 = vadd.f32 %v3877, %v3916
        %v3933 = vadd.f32 %v3621, %v3888
        %v3934 = vadd.f32 %v3623, %v3892
        %v3935 = vadd.f32 %v3707, %v3896
        %v3936 = vadd.f32 %v3709, %v3900
        %v3937 = vadd.f32 %v3793, %v3904
        %v3938 = vadd.f32 %v3795, %v3908
        %v3939 = vadd.f32 %v3879, %v3912
        %v3940 = vadd.f32 %v3881, %v3916
        %vm3941 = vcmp.ge.f32.partialorder %v3925, 0.0
        %vm3942 = vcmp.ge.f32.partialorder %v3926, 0.0
        %vm3943 = vcmp.ge.f32.partialorder %v3927, 0.0
        %vm3944 = vcmp.ge.f32.partialorder %v3928, 0.0
        %vm3945 = vcmp.ge.f32.partialorder %v3929, 0.0
        %vm3946 = vcmp.ge.f32.partialorder %v3930, 0.0
        %vm3947 = vcmp.ge.f32.partialorder %v3931, 0.0
        %vm3948 = vcmp.ge.f32.partialorder %v3932, 0.0
        %vm3949 = vcmp.ge.f32.partialorder %v3933, 0.0
        %vm3950 = vcmp.ge.f32.partialorder %v3934, 0.0
        %vm3951 = vcmp.ge.f32.partialorder %v3935, 0.0
        %vm3952 = vcmp.ge.f32.partialorder %v3936, 0.0
        %vm3953 = vcmp.ge.f32.partialorder %v3937, 0.0
        %vm3954 = vcmp.ge.f32.partialorder %v3938, 0.0
        %vm3955 = vcmp.ge.f32.partialorder %v3939, 0.0
        %vm3956 = vcmp.ge.f32.partialorder %v3940, 0.0
        %v3957 = vmul.f32 %v3925, 0.01
        %v3958 = vmul.f32 %v3926, 0.01
        %v3959 = vmul.f32 %v3927, 0.01
        %v3960 = vmul.f32 %v3928, 0.01
        %v3961 = vmul.f32 %v3929, 0.01
        %v3962 = vmul.f32 %v3930, 0.01
        %v3963 = vmul.f32 %v3931, 0.01
        %v3964 = vmul.f32 %v3932, 0.01
        %v3965 = vmul.f32 %v3933, 0.01
        %v3966 = vmul.f32 %v3934, 0.01
        %v3967 = vmul.f32 %v3935, 0.01
        %v3968 = vmul.f32 %v3936, 0.01
        %v3969 = vmul.f32 %v3937, 0.01
        %v3970 = vmul.f32 %v3938, 0.01
        %v3971 = vmul.f32 %v3939, 0.01
        %v3972 = vmul.f32 %v3940, 0.01
        %v3973 = vsel %vm3941, %v3925, %v3957
        %v3974 = vsel %vm3942, %v3926, %v3958
        %v3975 = vsel %vm3943, %v3927, %v3959
        %v3976 = vsel %vm3944, %v3928, %v3960
        %v3977 = vsel %vm3945, %v3929, %v3961
        %v3978 = vsel %vm3946, %v3930, %v3962
        %v3979 = vsel %vm3947, %v3931, %v3963
        %v3980 = vsel %vm3948, %v3932, %v3964
        %v3981 = vsel %vm3949, %v3933, %v3965
        %v3982 = vsel %vm3950, %v3934, %v3966
        %v3983 = vsel %vm3951, %v3935, %v3967
        %v3984 = vsel %vm3952, %v3936, %v3968
        %v3985 = vsel %vm3953, %v3937, %v3969
        %v3986 = vsel %vm3954, %v3938, %v3970
        %v3987 = vsel %vm3955, %v3939, %v3971
        %v3988 = vsel %vm3956, %v3940, %v3972
        %v3989 = vpack.c.bf16 %v3981, %v3973
        %v3990 = vpack.c.bf16 %v3982, %v3974
        %v3991 = vpack.c.bf16 %v3983, %v3975
        %v3992 = vpack.c.bf16 %v3984, %v3976
        %v3993 = vpack.c.bf16 %v3985, %v3977
        %v3994 = vpack.c.bf16 %v3986, %v3978
        %v3995 = vpack.c.bf16 %v3987, %v3979
        %v3996 = vpack.c.bf16 %v3988, %v3980
        %v3997 = vld [vmem:[#allocation15] sm:$0xff]
        %v3998 = vld [vmem:[#allocation15 + $0x8] sm:$0xff]
        %v3999 = vld [vmem:[#allocation15 + $0x10] sm:$0xff]
        %v4000 = vld [vmem:[#allocation15 + $0x18] sm:$0xff]
        %v4001 = vld [vmem:[#allocation15 + $0x20] sm:$0xff]
        %v4002 = vld [vmem:[#allocation15 + $0x28] sm:$0xff]
        %v4003 = vld [vmem:[#allocation15 + $0x30] sm:$0xff]
        %v4004 = vld [vmem:[#allocation15 + $0x38] sm:$0xff]
        %v4005 = vld [vmem:[#allocation15 + $0x40] sm:$0xff]
        %v4006 = vld [vmem:[#allocation15 + $0x48] sm:$0xff]
        %v4007 = vld [vmem:[#allocation15 + $0x50] sm:$0xff]
        %v4008 = vld [vmem:[#allocation15 + $0x58] sm:$0xff]
        %v4009 = vld [vmem:[#allocation15 + $0x60] sm:$0xff]
        %v4010 = vld [vmem:[#allocation15 + $0x68] sm:$0xff]
        %v4011 = vld [vmem:[#allocation15 + $0x70] sm:$0xff]
        %v4012 = vld [vmem:[#allocation15 + $0x78] sm:$0xff]
        %v4013 = vld [vmem:[#allocation15 + $0x80] sm:$0xff]
        %v4014 = vld [vmem:[#allocation15 + $0x88] sm:$0xff]
        %v4015 = vld [vmem:[#allocation15 + $0x90] sm:$0xff]
        %v4016 = vld [vmem:[#allocation15 + $0x98] sm:$0xff]
        %v4017 = vld [vmem:[#allocation15 + $0xa0] sm:$0xff]
        %v4018 = vld [vmem:[#allocation15 + $0xa8] sm:$0xff]
        %v4019 = vld [vmem:[#allocation15 + $0xb0] sm:$0xff]
        %v4020 = vld [vmem:[#allocation15 + $0xb8] sm:$0xff]
        %v4021 = vld [vmem:[#allocation15 + $0xc0] sm:$0xff]
        %v4022 = vld [vmem:[#allocation15 + $0xc8] sm:$0xff]
        %v4023 = vld [vmem:[#allocation15 + $0xd0] sm:$0xff]
        %v4024 = vld [vmem:[#allocation15 + $0xd8] sm:$0xff]
        %v4025 = vld [vmem:[#allocation15 + $0xe0] sm:$0xff]
        %v4026 = vld [vmem:[#allocation15 + $0xe8] sm:$0xff]
        %v4027 = vld [vmem:[#allocation15 + $0xf0] sm:$0xff]
        %v4028 = vld [vmem:[#allocation15 + $0xf8] sm:$0xff]
        %v4029 = vld [vmem:[#allocation15 + $0x100] sm:$0xff]
        %v4030 = vld [vmem:[#allocation15 + $0x108] sm:$0xff]
        %v4031 = vld [vmem:[#allocation15 + $0x110] sm:$0xff]
        %v4032 = vld [vmem:[#allocation15 + $0x118] sm:$0xff]
        %v4033 = vld [vmem:[#allocation15 + $0x120] sm:$0xff]
        %v4034 = vld [vmem:[#allocation15 + $0x128] sm:$0xff]
        %v4035 = vld [vmem:[#allocation15 + $0x130] sm:$0xff]
        %v4036 = vld [vmem:[#allocation15 + $0x138] sm:$0xff]
        %v4037 = vld [vmem:[#allocation15 + $0x140] sm:$0xff]
        %v4038 = vld [vmem:[#allocation15 + $0x148] sm:$0xff]
        %v4039 = vld [vmem:[#allocation15 + $0x150] sm:$0xff]
        %v4040 = vld [vmem:[#allocation15 + $0x158] sm:$0xff]
        %v4041 = vld [vmem:[#allocation15 + $0x160] sm:$0xff]
        %v4042 = vld [vmem:[#allocation15 + $0x168] sm:$0xff]
        %v4043 = vld [vmem:[#allocation15 + $0x170] sm:$0xff]
        %v4044 = vld [vmem:[#allocation15 + $0x178] sm:$0xff]
        %v4045 = vld [vmem:[#allocation15 + $0x180] sm:$0xff]
        %v4046 = vld [vmem:[#allocation15 + $0x188] sm:$0xff]
        %v4047 = vld [vmem:[#allocation15 + $0x190] sm:$0xff]
        %v4048 = vld [vmem:[#allocation15 + $0x198] sm:$0xff]
        %v4049 = vld [vmem:[#allocation15 + $0x1a0] sm:$0xff]
        %v4050 = vld [vmem:[#allocation15 + $0x1a8] sm:$0xff]
        %v4051 = vld [vmem:[#allocation15 + $0x1b0] sm:$0xff]
        %v4052 = vld [vmem:[#allocation15 + $0x1b8] sm:$0xff]
        %v4053 = vld [vmem:[#allocation15 + $0x1c0] sm:$0xff]
        %v4054 = vld [vmem:[#allocation15 + $0x1c8] sm:$0xff]
        %v4055 = vld [vmem:[#allocation15 + $0x1d0] sm:$0xff]
        %v4056 = vld [vmem:[#allocation15 + $0x1d8] sm:$0xff]
        %v4057 = vld [vmem:[#allocation15 + $0x1e0] sm:$0xff]
        %v4058 = vld [vmem:[#allocation15 + $0x1e8] sm:$0xff]
        %v4059 = vld [vmem:[#allocation15 + $0x1f0] sm:$0xff]
        %v4060 = vld [vmem:[#allocation15 + $0x1f8] sm:$0xff]
        %v4061 = vld [vmem:[#allocation15 + $0x200] sm:$0xff]
        %v4062 = vld [vmem:[#allocation15 + $0x208] sm:$0xff]
        %v4063 = vld [vmem:[#allocation15 + $0x210] sm:$0xff]
        %v4064 = vld [vmem:[#allocation15 + $0x218] sm:$0xff]
        %v4065 = vld [vmem:[#allocation15 + $0x220] sm:$0xff]
        %v4066 = vld [vmem:[#allocation15 + $0x228] sm:$0xff]
        %v4067 = vld [vmem:[#allocation15 + $0x230] sm:$0xff]
        %v4068 = vld [vmem:[#allocation15 + $0x238] sm:$0xff]
        %v4069 = vld [vmem:[#allocation15 + $0x240] sm:$0xff]
        %v4070 = vld [vmem:[#allocation15 + $0x248] sm:$0xff]
        %v4071 = vld [vmem:[#allocation15 + $0x250] sm:$0xff]
        %v4072 = vld [vmem:[#allocation15 + $0x258] sm:$0xff]
        %v4073 = vld [vmem:[#allocation15 + $0x260] sm:$0xff]
        %v4074 = vld [vmem:[#allocation15 + $0x268] sm:$0xff]
        %v4075 = vld [vmem:[#allocation15 + $0x270] sm:$0xff]
        %v4076 = vld [vmem:[#allocation15 + $0x278] sm:$0xff]
        %v4077 = vld [vmem:[#allocation15 + $0x280] sm:$0xff]
        %v4078 = vld [vmem:[#allocation15 + $0x288] sm:$0xff]
        %v4079 = vld [vmem:[#allocation15 + $0x290] sm:$0xff]
        %v4080 = vld [vmem:[#allocation15 + $0x298] sm:$0xff]
        %v4081 = vld [vmem:[#allocation15 + $0x2a0] sm:$0xff]
        %v4082 = vld [vmem:[#allocation15 + $0x2a8] sm:$0xff]
        %v4083 = vld [vmem:[#allocation15 + $0x2b0] sm:$0xff]
        %v4084 = vld [vmem:[#allocation15 + $0x2b8] sm:$0xff]
        %v4085 = vld [vmem:[#allocation15 + $0x2c0] sm:$0xff]
        %v4086 = vld [vmem:[#allocation15 + $0x2c8] sm:$0xff]
        %v4087 = vld [vmem:[#allocation15 + $0x2d0] sm:$0xff]
        %v4088 = vld [vmem:[#allocation15 + $0x2d8] sm:$0xff]
        %v4089 = vld [vmem:[#allocation15 + $0x2e0] sm:$0xff]
        %v4090 = vld [vmem:[#allocation15 + $0x2e8] sm:$0xff]
        %v4091 = vld [vmem:[#allocation15 + $0x2f0] sm:$0xff]
        %v4092 = vld [vmem:[#allocation15 + $0x2f8] sm:$0xff]
        %v4093 = vld [vmem:[#allocation15 + $0x300] sm:$0xff]
        %v4094 = vld [vmem:[#allocation15 + $0x308] sm:$0xff]
        %v4095 = vld [vmem:[#allocation15 + $0x310] sm:$0xff]
        %v4096 = vld [vmem:[#allocation15 + $0x318] sm:$0xff]
        %v4097 = vld [vmem:[#allocation15 + $0x320] sm:$0xff]
        %v4098 = vld [vmem:[#allocation15 + $0x328] sm:$0xff]
        %v4099 = vld [vmem:[#allocation15 + $0x330] sm:$0xff]
        %v4100 = vld [vmem:[#allocation15 + $0x338] sm:$0xff]
        %v4101 = vld [vmem:[#allocation15 + $0x340] sm:$0xff]
        %v4102 = vld [vmem:[#allocation15 + $0x348] sm:$0xff]
        %v4103 = vld [vmem:[#allocation15 + $0x350] sm:$0xff]
        %v4104 = vld [vmem:[#allocation15 + $0x358] sm:$0xff]
        %v4105 = vld [vmem:[#allocation15 + $0x360] sm:$0xff]
        %v4106 = vld [vmem:[#allocation15 + $0x368] sm:$0xff]
        %v4107 = vld [vmem:[#allocation15 + $0x370] sm:$0xff]
        %v4108 = vld [vmem:[#allocation15 + $0x378] sm:$0xff]
        %v4109 = vld [vmem:[#allocation15 + $0x380] sm:$0xff]
        %v4110 = vld [vmem:[#allocation15 + $0x388] sm:$0xff]
        %v4111 = vld [vmem:[#allocation15 + $0x390] sm:$0xff]
        %v4112 = vld [vmem:[#allocation15 + $0x398] sm:$0xff]
        %v4113 = vld [vmem:[#allocation15 + $0x3a0] sm:$0xff]
        %v4114 = vld [vmem:[#allocation15 + $0x3a8] sm:$0xff]
        %v4115 = vld [vmem:[#allocation15 + $0x3b0] sm:$0xff]
        %v4116 = vld [vmem:[#allocation15 + $0x3b8] sm:$0xff]
        %v4117 = vld [vmem:[#allocation15 + $0x3c0] sm:$0xff]
        %v4118 = vld [vmem:[#allocation15 + $0x3c8] sm:$0xff]
        %v4119 = vld [vmem:[#allocation15 + $0x3d0] sm:$0xff]
        %v4120 = vld [vmem:[#allocation15 + $0x3d8] sm:$0xff]
        %v4121 = vld [vmem:[#allocation15 + $0x3e0] sm:$0xff]
        %v4122 = vld [vmem:[#allocation15 + $0x3e8] sm:$0xff]
        %v4123 = vld [vmem:[#allocation15 + $0x3f0] sm:$0xff]
        %v4124 = vld [vmem:[#allocation15 + $0x3f8] sm:$0xff]
        %v4125 = vld [vmem:[#allocation15 + $0x400] sm:$0xff]
        %v4126 = vld [vmem:[#allocation15 + $0x408] sm:$0xff]
        %v4127 = vld [vmem:[#allocation15 + $0x410] sm:$0xff]
        %v4128 = vld [vmem:[#allocation15 + $0x418] sm:$0xff]
        %v4129 = vld [vmem:[#allocation15 + $0x420] sm:$0xff]
        %v4130 = vld [vmem:[#allocation15 + $0x428] sm:$0xff]
        %v4131 = vld [vmem:[#allocation15 + $0x430] sm:$0xff]
        %v4132 = vld [vmem:[#allocation15 + $0x438] sm:$0xff]
        %v4133 = vld [vmem:[#allocation15 + $0x440] sm:$0xff]
        %v4134 = vld [vmem:[#allocation15 + $0x448] sm:$0xff]
        %v4135 = vld [vmem:[#allocation15 + $0x450] sm:$0xff]
        %v4136 = vld [vmem:[#allocation15 + $0x458] sm:$0xff]
        %v4137 = vld [vmem:[#allocation15 + $0x460] sm:$0xff]
        %v4138 = vld [vmem:[#allocation15 + $0x468] sm:$0xff]
        %v4139 = vld [vmem:[#allocation15 + $0x470] sm:$0xff]
        %v4140 = vld [vmem:[#allocation15 + $0x478] sm:$0xff]
        %v4141 = vld [vmem:[#allocation15 + $0x480] sm:$0xff]
        %v4142 = vld [vmem:[#allocation15 + $0x488] sm:$0xff]
        %v4143 = vld [vmem:[#allocation15 + $0x490] sm:$0xff]
        %v4144 = vld [vmem:[#allocation15 + $0x498] sm:$0xff]
        %v4145 = vld [vmem:[#allocation15 + $0x4a0] sm:$0xff]
        %v4146 = vld [vmem:[#allocation15 + $0x4a8] sm:$0xff]
        %v4147 = vld [vmem:[#allocation15 + $0x4b0] sm:$0xff]
        %v4148 = vld [vmem:[#allocation15 + $0x4b8] sm:$0xff]
        %v4149 = vld [vmem:[#allocation15 + $0x4c0] sm:$0xff]
        %v4150 = vld [vmem:[#allocation15 + $0x4c8] sm:$0xff]
        %v4151 = vld [vmem:[#allocation15 + $0x4d0] sm:$0xff]
        %v4152 = vld [vmem:[#allocation15 + $0x4d8] sm:$0xff]
        %v4153 = vld [vmem:[#allocation15 + $0x4e0] sm:$0xff]
        %v4154 = vld [vmem:[#allocation15 + $0x4e8] sm:$0xff]
        %v4155 = vld [vmem:[#allocation15 + $0x4f0] sm:$0xff]
        %v4156 = vld [vmem:[#allocation15 + $0x4f8] sm:$0xff]
        %v4157 = vld [vmem:[#allocation15 + $0x500] sm:$0xff]
        %v4158 = vld [vmem:[#allocation15 + $0x508] sm:$0xff]
        %v4159 = vld [vmem:[#allocation15 + $0x510] sm:$0xff]
        %v4160 = vld [vmem:[#allocation15 + $0x518] sm:$0xff]
        %v4161 = vld [vmem:[#allocation15 + $0x520] sm:$0xff]
        %v4162 = vld [vmem:[#allocation15 + $0x528] sm:$0xff]
        %v4163 = vld [vmem:[#allocation15 + $0x530] sm:$0xff]
        %v4164 = vld [vmem:[#allocation15 + $0x538] sm:$0xff]
        %v4165 = vld [vmem:[#allocation15 + $0x540] sm:$0xff]
        %v4166 = vld [vmem:[#allocation15 + $0x548] sm:$0xff]
        %v4167 = vld [vmem:[#allocation15 + $0x550] sm:$0xff]
        %v4168 = vld [vmem:[#allocation15 + $0x558] sm:$0xff]
        %v4169 = vld [vmem:[#allocation15 + $0x560] sm:$0xff]
        %v4170 = vld [vmem:[#allocation15 + $0x568] sm:$0xff]
        %v4171 = vld [vmem:[#allocation15 + $0x570] sm:$0xff]
        %v4172 = vld [vmem:[#allocation15 + $0x578] sm:$0xff]
        %v4173 = vld [vmem:[#allocation15 + $0x580] sm:$0xff]
        %v4174 = vld [vmem:[#allocation15 + $0x588] sm:$0xff]
        %v4175 = vld [vmem:[#allocation15 + $0x590] sm:$0xff]
        %v4176 = vld [vmem:[#allocation15 + $0x598] sm:$0xff]
        %v4177 = vld [vmem:[#allocation15 + $0x5a0] sm:$0xff]
        %v4178 = vld [vmem:[#allocation15 + $0x5a8] sm:$0xff]
        %v4179 = vld [vmem:[#allocation15 + $0x5b0] sm:$0xff]
        %v4180 = vld [vmem:[#allocation15 + $0x5b8] sm:$0xff]
        %v4181 = vld [vmem:[#allocation15 + $0x5c0] sm:$0xff]
        %v4182 = vld [vmem:[#allocation15 + $0x5c8] sm:$0xff]
        %v4183 = vld [vmem:[#allocation15 + $0x5d0] sm:$0xff]
        %v4184 = vld [vmem:[#allocation15 + $0x5d8] sm:$0xff]
        %v4185 = vld [vmem:[#allocation15 + $0x5e0] sm:$0xff]
        %v4186 = vld [vmem:[#allocation15 + $0x5e8] sm:$0xff]
        %v4187 = vld [vmem:[#allocation15 + $0x5f0] sm:$0xff]
        %v4188 = vld [vmem:[#allocation15 + $0x5f8] sm:$0xff]
        %v4189 = vld [vmem:[#allocation15 + $0x600] sm:$0xff]
        %v4190 = vld [vmem:[#allocation15 + $0x608] sm:$0xff]
        %v4191 = vld [vmem:[#allocation15 + $0x610] sm:$0xff]
        %v4192 = vld [vmem:[#allocation15 + $0x618] sm:$0xff]
        %v4193 = vld [vmem:[#allocation15 + $0x620] sm:$0xff]
        %v4194 = vld [vmem:[#allocation15 + $0x628] sm:$0xff]
        %v4195 = vld [vmem:[#allocation15 + $0x630] sm:$0xff]
        %v4196 = vld [vmem:[#allocation15 + $0x638] sm:$0xff]
        %v4197 = vld [vmem:[#allocation15 + $0x640] sm:$0xff]
        %v4198 = vld [vmem:[#allocation15 + $0x648] sm:$0xff]
        %v4199 = vld [vmem:[#allocation15 + $0x650] sm:$0xff]
        %v4200 = vld [vmem:[#allocation15 + $0x658] sm:$0xff]
        %v4201 = vld [vmem:[#allocation15 + $0x660] sm:$0xff]
        %v4202 = vld [vmem:[#allocation15 + $0x668] sm:$0xff]
        %v4203 = vld [vmem:[#allocation15 + $0x670] sm:$0xff]
        %v4204 = vld [vmem:[#allocation15 + $0x678] sm:$0xff]
        %v4205 = vld [vmem:[#allocation15 + $0x680] sm:$0xff]
        %v4206 = vld [vmem:[#allocation15 + $0x688] sm:$0xff]
        %v4207 = vld [vmem:[#allocation15 + $0x690] sm:$0xff]
        %v4208 = vld [vmem:[#allocation15 + $0x698] sm:$0xff]
        %v4209 = vld [vmem:[#allocation15 + $0x6a0] sm:$0xff]
        %v4210 = vld [vmem:[#allocation15 + $0x6a8] sm:$0xff]
        %v4211 = vld [vmem:[#allocation15 + $0x6b0] sm:$0xff]
        %v4212 = vld [vmem:[#allocation15 + $0x6b8] sm:$0xff]
        %v4213 = vld [vmem:[#allocation15 + $0x6c0] sm:$0xff]
        %v4214 = vld [vmem:[#allocation15 + $0x6c8] sm:$0xff]
        %v4215 = vld [vmem:[#allocation15 + $0x6d0] sm:$0xff]
        %v4216 = vld [vmem:[#allocation15 + $0x6d8] sm:$0xff]
        %v4217 = vld [vmem:[#allocation15 + $0x6e0] sm:$0xff]
        %v4218 = vld [vmem:[#allocation15 + $0x6e8] sm:$0xff]
        %v4219 = vld [vmem:[#allocation15 + $0x6f0] sm:$0xff]
        %v4220 = vld [vmem:[#allocation15 + $0x6f8] sm:$0xff]
        %v4221 = vld [vmem:[#allocation15 + $0x700] sm:$0xff]
        %v4222 = vld [vmem:[#allocation15 + $0x708] sm:$0xff]
        %v4223 = vld [vmem:[#allocation15 + $0x710] sm:$0xff]
        %v4224 = vld [vmem:[#allocation15 + $0x718] sm:$0xff]
        %v4225 = vld [vmem:[#allocation15 + $0x720] sm:$0xff]
        %v4226 = vld [vmem:[#allocation15 + $0x728] sm:$0xff]
        %v4227 = vld [vmem:[#allocation15 + $0x730] sm:$0xff]
        %v4228 = vld [vmem:[#allocation15 + $0x738] sm:$0xff]
        %v4229 = vld [vmem:[#allocation15 + $0x740] sm:$0xff]
        %v4230 = vld [vmem:[#allocation15 + $0x748] sm:$0xff]
        %v4231 = vld [vmem:[#allocation15 + $0x750] sm:$0xff]
        %v4232 = vld [vmem:[#allocation15 + $0x758] sm:$0xff]
        %v4233 = vld [vmem:[#allocation15 + $0x760] sm:$0xff]
        %v4234 = vld [vmem:[#allocation15 + $0x768] sm:$0xff]
        %v4235 = vld [vmem:[#allocation15 + $0x770] sm:$0xff]
        %v4236 = vld [vmem:[#allocation15 + $0x778] sm:$0xff]
        %v4237 = vld [vmem:[#allocation15 + $0x780] sm:$0xff]
        %v4238 = vld [vmem:[#allocation15 + $0x788] sm:$0xff]
        %v4239 = vld [vmem:[#allocation15 + $0x790] sm:$0xff]
        %v4240 = vld [vmem:[#allocation15 + $0x798] sm:$0xff]
        %v4241 = vld [vmem:[#allocation15 + $0x7a0] sm:$0xff]
        %v4242 = vld [vmem:[#allocation15 + $0x7a8] sm:$0xff]
        %v4243 = vld [vmem:[#allocation15 + $0x7b0] sm:$0xff]
        %v4244 = vld [vmem:[#allocation15 + $0x7b8] sm:$0xff]
        %v4245 = vld [vmem:[#allocation15 + $0x7c0] sm:$0xff]
        %v4246 = vld [vmem:[#allocation15 + $0x7c8] sm:$0xff]
        %v4247 = vld [vmem:[#allocation15 + $0x7d0] sm:$0xff]
        %v4248 = vld [vmem:[#allocation15 + $0x7d8] sm:$0xff]
        %v4249 = vld [vmem:[#allocation15 + $0x7e0] sm:$0xff]
        %v4250 = vld [vmem:[#allocation15 + $0x7e8] sm:$0xff]
        %v4251 = vld [vmem:[#allocation15 + $0x7f0] sm:$0xff]
        %v4252 = vld [vmem:[#allocation15 + $0x7f8] sm:$0xff]
        %v4253 = vld [vmem:[%s8] sm:$0xf]
        %v4255 = vlaneseq
        %v4256 = vshrl.u32 %v4255, 7
        %v4257 = vsub.s32 0, %v4256
        %v4258 = vrot.slane %v4253, %v4257
        %v4259 = vlaneseq
        %v4260 = vshrl.u32 %v4259, 7
        %v4261 = vsub.s32 1, %v4260
        %v4262 = vrot.slane %v4253, %v4261
        %v4263 = vlaneseq
        %v4264 = vshrl.u32 %v4263, 7
        %v4265 = vsub.s32 2, %v4264
        %v4266 = vrot.slane %v4253, %v4265
        %v4267 = vlaneseq
        %v4268 = vshrl.u32 %v4267, 7
        %v4269 = vsub.s32 3, %v4268
        %v4270 = vrot.slane %v4253, %v4269
        %v4531 = vunpack.c.l.b16 %v3997
        %v4532 = vunpack.c.h.b16 %v3997
        %v4533 = vunpack.c.l.b16 %v3998
        %v4534 = vunpack.c.h.b16 %v3998
        %v4535 = vunpack.c.l.b16 %v3999
        %v4536 = vunpack.c.h.b16 %v3999
        %v4537 = vunpack.c.l.b16 %v4000
        %v4538 = vunpack.c.h.b16 %v4000
        %v4539 = vunpack.c.l.b16 %v4001
        %v4540 = vunpack.c.h.b16 %v4001
        %v4541 = vunpack.c.l.b16 %v4002
        %v4542 = vunpack.c.h.b16 %v4002
        %v4543 = vunpack.c.l.b16 %v4003
        %v4544 = vunpack.c.h.b16 %v4003
        %v4545 = vunpack.c.l.b16 %v4004
        %v4546 = vunpack.c.h.b16 %v4004
        %v4547 = vunpack.c.l.b16 %v4005
        %v4548 = vunpack.c.h.b16 %v4005
        %v4549 = vunpack.c.l.b16 %v4006
        %v4550 = vunpack.c.h.b16 %v4006
        %v4551 = vunpack.c.l.b16 %v4007
        %v4552 = vunpack.c.h.b16 %v4007
        %v4553 = vunpack.c.l.b16 %v4008
        %v4554 = vunpack.c.h.b16 %v4008
        %v4555 = vunpack.c.l.b16 %v4009
        %v4556 = vunpack.c.h.b16 %v4009
        %v4557 = vunpack.c.l.b16 %v4010
        %v4558 = vunpack.c.h.b16 %v4010
        %v4559 = vunpack.c.l.b16 %v4011
        %v4560 = vunpack.c.h.b16 %v4011
        %v4561 = vunpack.c.l.b16 %v4012
        %v4562 = vunpack.c.h.b16 %v4012
        %v4563 = vunpack.c.l.b16 %v4013
        %v4564 = vunpack.c.h.b16 %v4013
        %v4565 = vunpack.c.l.b16 %v4014
        %v4566 = vunpack.c.h.b16 %v4014
        %v4567 = vunpack.c.l.b16 %v4015
        %v4568 = vunpack.c.h.b16 %v4015
        %v4569 = vunpack.c.l.b16 %v4016
        %v4570 = vunpack.c.h.b16 %v4016
        %v4571 = vunpack.c.l.b16 %v4017
        %v4572 = vunpack.c.h.b16 %v4017
        %v4573 = vunpack.c.l.b16 %v4018
        %v4574 = vunpack.c.h.b16 %v4018
        %v4575 = vunpack.c.l.b16 %v4019
        %v4576 = vunpack.c.h.b16 %v4019
        %v4577 = vunpack.c.l.b16 %v4020
        %v4578 = vunpack.c.h.b16 %v4020
        %v4579 = vunpack.c.l.b16 %v4021
        %v4580 = vunpack.c.h.b16 %v4021
        %v4581 = vunpack.c.l.b16 %v4022
        %v4582 = vunpack.c.h.b16 %v4022
        %v4583 = vunpack.c.l.b16 %v4023
        %v4584 = vunpack.c.h.b16 %v4023
        %v4585 = vunpack.c.l.b16 %v4024
        %v4586 = vunpack.c.h.b16 %v4024
        %v4587 = vunpack.c.l.b16 %v4025
        %v4588 = vunpack.c.h.b16 %v4025
        %v4589 = vunpack.c.l.b16 %v4026
        %v4590 = vunpack.c.h.b16 %v4026
        %v4591 = vunpack.c.l.b16 %v4027
        %v4592 = vunpack.c.h.b16 %v4027
        %v4593 = vunpack.c.l.b16 %v4028
        %v4594 = vunpack.c.h.b16 %v4028
        %v4595 = vunpack.c.l.b16 %v4029
        %v4596 = vunpack.c.h.b16 %v4029
        %v4597 = vunpack.c.l.b16 %v4030
        %v4598 = vunpack.c.h.b16 %v4030
        %v4599 = vunpack.c.l.b16 %v4031
        %v4600 = vunpack.c.h.b16 %v4031
        %v4601 = vunpack.c.l.b16 %v4032
        %v4602 = vunpack.c.h.b16 %v4032
        %v4603 = vunpack.c.l.b16 %v4033
        %v4604 = vunpack.c.h.b16 %v4033
        %v4605 = vunpack.c.l.b16 %v4034
        %v4606 = vunpack.c.h.b16 %v4034
        %v4607 = vunpack.c.l.b16 %v4035
        %v4608 = vunpack.c.h.b16 %v4035
        %v4609 = vunpack.c.l.b16 %v4036
        %v4610 = vunpack.c.h.b16 %v4036
        %v4611 = vunpack.c.l.b16 %v4037
        %v4612 = vunpack.c.h.b16 %v4037
        %v4613 = vunpack.c.l.b16 %v4038
        %v4614 = vunpack.c.h.b16 %v4038
        %v4615 = vunpack.c.l.b16 %v4039
        %v4616 = vunpack.c.h.b16 %v4039
        %v4617 = vunpack.c.l.b16 %v4040
        %v4618 = vunpack.c.h.b16 %v4040
        %v4619 = vunpack.c.l.b16 %v4041
        %v4620 = vunpack.c.h.b16 %v4041
        %v4621 = vunpack.c.l.b16 %v4042
        %v4622 = vunpack.c.h.b16 %v4042
        %v4623 = vunpack.c.l.b16 %v4043
        %v4624 = vunpack.c.h.b16 %v4043
        %v4625 = vunpack.c.l.b16 %v4044
        %v4626 = vunpack.c.h.b16 %v4044
        %v4627 = vunpack.c.l.b16 %v4045
        %v4628 = vunpack.c.h.b16 %v4045
        %v4629 = vunpack.c.l.b16 %v4046
        %v4630 = vunpack.c.h.b16 %v4046
        %v4631 = vunpack.c.l.b16 %v4047
        %v4632 = vunpack.c.h.b16 %v4047
        %v4633 = vunpack.c.l.b16 %v4048
        %v4634 = vunpack.c.h.b16 %v4048
        %v4635 = vunpack.c.l.b16 %v4049
        %v4636 = vunpack.c.h.b16 %v4049
        %v4637 = vunpack.c.l.b16 %v4050
        %v4638 = vunpack.c.h.b16 %v4050
        %v4639 = vunpack.c.l.b16 %v4051
        %v4640 = vunpack.c.h.b16 %v4051
        %v4641 = vunpack.c.l.b16 %v4052
        %v4642 = vunpack.c.h.b16 %v4052
        %v4643 = vunpack.c.l.b16 %v4053
        %v4644 = vunpack.c.h.b16 %v4053
        %v4645 = vunpack.c.l.b16 %v4054
        %v4646 = vunpack.c.h.b16 %v4054
        %v4647 = vunpack.c.l.b16 %v4055
        %v4648 = vunpack.c.h.b16 %v4055
        %v4649 = vunpack.c.l.b16 %v4056
        %v4650 = vunpack.c.h.b16 %v4056
        %v4651 = vunpack.c.l.b16 %v4057
        %v4652 = vunpack.c.h.b16 %v4057
        %v4653 = vunpack.c.l.b16 %v4058
        %v4654 = vunpack.c.h.b16 %v4058
        %v4655 = vunpack.c.l.b16 %v4059
        %v4656 = vunpack.c.h.b16 %v4059
        %v4657 = vunpack.c.l.b16 %v4060
        %v4658 = vunpack.c.h.b16 %v4060
        %v4659 = vunpack.c.l.b16 %v4061
        %v4660 = vunpack.c.h.b16 %v4061
        %v4661 = vunpack.c.l.b16 %v4062
        %v4662 = vunpack.c.h.b16 %v4062
        %v4663 = vunpack.c.l.b16 %v4063
        %v4664 = vunpack.c.h.b16 %v4063
        %v4665 = vunpack.c.l.b16 %v4064
        %v4666 = vunpack.c.h.b16 %v4064
        %v4667 = vunpack.c.l.b16 %v4065
        %v4668 = vunpack.c.h.b16 %v4065
        %v4669 = vunpack.c.l.b16 %v4066
        %v4670 = vunpack.c.h.b16 %v4066
        %v4671 = vunpack.c.l.b16 %v4067
        %v4672 = vunpack.c.h.b16 %v4067
        %v4673 = vunpack.c.l.b16 %v4068
        %v4674 = vunpack.c.h.b16 %v4068
        %v4675 = vunpack.c.l.b16 %v4069
        %v4676 = vunpack.c.h.b16 %v4069
        %v4677 = vunpack.c.l.b16 %v4070
        %v4678 = vunpack.c.h.b16 %v4070
        %v4679 = vunpack.c.l.b16 %v4071
        %v4680 = vunpack.c.h.b16 %v4071
        %v4681 = vunpack.c.l.b16 %v4072
        %v4682 = vunpack.c.h.b16 %v4072
        %v4683 = vunpack.c.l.b16 %v4073
        %v4684 = vunpack.c.h.b16 %v4073
        %v4685 = vunpack.c.l.b16 %v4074
        %v4686 = vunpack.c.h.b16 %v4074
        %v4687 = vunpack.c.l.b16 %v4075
        %v4688 = vunpack.c.h.b16 %v4075
        %v4689 = vunpack.c.l.b16 %v4076
        %v4690 = vunpack.c.h.b16 %v4076
        %v4691 = vunpack.c.l.b16 %v4077
        %v4692 = vunpack.c.h.b16 %v4077
        %v4693 = vunpack.c.l.b16 %v4078
        %v4694 = vunpack.c.h.b16 %v4078
        %v4695 = vunpack.c.l.b16 %v4079
        %v4696 = vunpack.c.h.b16 %v4079
        %v4697 = vunpack.c.l.b16 %v4080
        %v4698 = vunpack.c.h.b16 %v4080
        %v4699 = vunpack.c.l.b16 %v4081
        %v4700 = vunpack.c.h.b16 %v4081
        %v4701 = vunpack.c.l.b16 %v4082
        %v4702 = vunpack.c.h.b16 %v4082
        %v4703 = vunpack.c.l.b16 %v4083
        %v4704 = vunpack.c.h.b16 %v4083
        %v4705 = vunpack.c.l.b16 %v4084
        %v4706 = vunpack.c.h.b16 %v4084
        %v4707 = vunpack.c.l.b16 %v4085
        %v4708 = vunpack.c.h.b16 %v4085
        %v4709 = vunpack.c.l.b16 %v4086
        %v4710 = vunpack.c.h.b16 %v4086
        %v4711 = vunpack.c.l.b16 %v4087
        %v4712 = vunpack.c.h.b16 %v4087
        %v4713 = vunpack.c.l.b16 %v4088
        %v4714 = vunpack.c.h.b16 %v4088
        %v4715 = vunpack.c.l.b16 %v4089
        %v4716 = vunpack.c.h.b16 %v4089
        %v4717 = vunpack.c.l.b16 %v4090
        %v4718 = vunpack.c.h.b16 %v4090
        %v4719 = vunpack.c.l.b16 %v4091
        %v4720 = vunpack.c.h.b16 %v4091
        %v4721 = vunpack.c.l.b16 %v4092
        %v4722 = vunpack.c.h.b16 %v4092
        %v4723 = vunpack.c.l.b16 %v4093
        %v4724 = vunpack.c.h.b16 %v4093
        %v4725 = vunpack.c.l.b16 %v4094
        %v4726 = vunpack.c.h.b16 %v4094
        %v4727 = vunpack.c.l.b16 %v4095
        %v4728 = vunpack.c.h.b16 %v4095
        %v4729 = vunpack.c.l.b16 %v4096
        %v4730 = vunpack.c.h.b16 %v4096
        %v4731 = vunpack.c.l.b16 %v4097
        %v4732 = vunpack.c.h.b16 %v4097
        %v4733 = vunpack.c.l.b16 %v4098
        %v4734 = vunpack.c.h.b16 %v4098
        %v4735 = vunpack.c.l.b16 %v4099
        %v4736 = vunpack.c.h.b16 %v4099
        %v4737 = vunpack.c.l.b16 %v4100
        %v4738 = vunpack.c.h.b16 %v4100
        %v4739 = vunpack.c.l.b16 %v4101
        %v4740 = vunpack.c.h.b16 %v4101
        %v4741 = vunpack.c.l.b16 %v4102
        %v4742 = vunpack.c.h.b16 %v4102
        %v4743 = vunpack.c.l.b16 %v4103
        %v4744 = vunpack.c.h.b16 %v4103
        %v4745 = vunpack.c.l.b16 %v4104
        %v4746 = vunpack.c.h.b16 %v4104
        %v4747 = vunpack.c.l.b16 %v4105
        %v4748 = vunpack.c.h.b16 %v4105
        %v4749 = vunpack.c.l.b16 %v4106
        %v4750 = vunpack.c.h.b16 %v4106
        %v4751 = vunpack.c.l.b16 %v4107
        %v4752 = vunpack.c.h.b16 %v4107
        %v4753 = vunpack.c.l.b16 %v4108
        %v4754 = vunpack.c.h.b16 %v4108
        %v4755 = vunpack.c.l.b16 %v4109
        %v4756 = vunpack.c.h.b16 %v4109
        %v4757 = vunpack.c.l.b16 %v4110
        %v4758 = vunpack.c.h.b16 %v4110
        %v4759 = vunpack.c.l.b16 %v4111
        %v4760 = vunpack.c.h.b16 %v4111
        %v4761 = vunpack.c.l.b16 %v4112
        %v4762 = vunpack.c.h.b16 %v4112
        %v4763 = vunpack.c.l.b16 %v4113
        %v4764 = vunpack.c.h.b16 %v4113
        %v4765 = vunpack.c.l.b16 %v4114
        %v4766 = vunpack.c.h.b16 %v4114
        %v4767 = vunpack.c.l.b16 %v4115
        %v4768 = vunpack.c.h.b16 %v4115
        %v4769 = vunpack.c.l.b16 %v4116
        %v4770 = vunpack.c.h.b16 %v4116
        %v4771 = vunpack.c.l.b16 %v4117
        %v4772 = vunpack.c.h.b16 %v4117
        %v4773 = vunpack.c.l.b16 %v4118
        %v4774 = vunpack.c.h.b16 %v4118
        %v4775 = vunpack.c.l.b16 %v4119
        %v4776 = vunpack.c.h.b16 %v4119
        %v4777 = vunpack.c.l.b16 %v4120
        %v4778 = vunpack.c.h.b16 %v4120
        %v4779 = vunpack.c.l.b16 %v4121
        %v4780 = vunpack.c.h.b16 %v4121
        %v4781 = vunpack.c.l.b16 %v4122
        %v4782 = vunpack.c.h.b16 %v4122
        %v4783 = vunpack.c.l.b16 %v4123
        %v4784 = vunpack.c.h.b16 %v4123
        %v4785 = vunpack.c.l.b16 %v4124
        %v4786 = vunpack.c.h.b16 %v4124
        %v4787 = vunpack.c.l.b16 %v4125
        %v4788 = vunpack.c.h.b16 %v4125
        %v4789 = vunpack.c.l.b16 %v4126
        %v4790 = vunpack.c.h.b16 %v4126
        %v4791 = vunpack.c.l.b16 %v4127
        %v4792 = vunpack.c.h.b16 %v4127
        %v4793 = vunpack.c.l.b16 %v4128
        %v4794 = vunpack.c.h.b16 %v4128
        %v4795 = vunpack.c.l.b16 %v4129
        %v4796 = vunpack.c.h.b16 %v4129
        %v4797 = vunpack.c.l.b16 %v4130
        %v4798 = vunpack.c.h.b16 %v4130
        %v4799 = vunpack.c.l.b16 %v4131
        %v4800 = vunpack.c.h.b16 %v4131
        %v4801 = vunpack.c.l.b16 %v4132
        %v4802 = vunpack.c.h.b16 %v4132
        %v4803 = vunpack.c.l.b16 %v4133
        %v4804 = vunpack.c.h.b16 %v4133
        %v4805 = vunpack.c.l.b16 %v4134
        %v4806 = vunpack.c.h.b16 %v4134
        %v4807 = vunpack.c.l.b16 %v4135
        %v4808 = vunpack.c.h.b16 %v4135
        %v4809 = vunpack.c.l.b16 %v4136
        %v4810 = vunpack.c.h.b16 %v4136
        %v4811 = vunpack.c.l.b16 %v4137
        %v4812 = vunpack.c.h.b16 %v4137
        %v4813 = vunpack.c.l.b16 %v4138
        %v4814 = vunpack.c.h.b16 %v4138
        %v4815 = vunpack.c.l.b16 %v4139
        %v4816 = vunpack.c.h.b16 %v4139
        %v4817 = vunpack.c.l.b16 %v4140
        %v4818 = vunpack.c.h.b16 %v4140
        %v4819 = vunpack.c.l.b16 %v4141
        %v4820 = vunpack.c.h.b16 %v4141
        %v4821 = vunpack.c.l.b16 %v4142
        %v4822 = vunpack.c.h.b16 %v4142
        %v4823 = vunpack.c.l.b16 %v4143
        %v4824 = vunpack.c.h.b16 %v4143
        %v4825 = vunpack.c.l.b16 %v4144
        %v4826 = vunpack.c.h.b16 %v4144
        %v4827 = vunpack.c.l.b16 %v4145
        %v4828 = vunpack.c.h.b16 %v4145
        %v4829 = vunpack.c.l.b16 %v4146
        %v4830 = vunpack.c.h.b16 %v4146
        %v4831 = vunpack.c.l.b16 %v4147
        %v4832 = vunpack.c.h.b16 %v4147
        %v4833 = vunpack.c.l.b16 %v4148
        %v4834 = vunpack.c.h.b16 %v4148
        %v4835 = vunpack.c.l.b16 %v4149
        %v4836 = vunpack.c.h.b16 %v4149
        %v4837 = vunpack.c.l.b16 %v4150
        %v4838 = vunpack.c.h.b16 %v4150
        %v4839 = vunpack.c.l.b16 %v4151
        %v4840 = vunpack.c.h.b16 %v4151
        %v4841 = vunpack.c.l.b16 %v4152
        %v4842 = vunpack.c.h.b16 %v4152
        %v4843 = vunpack.c.l.b16 %v4153
        %v4844 = vunpack.c.h.b16 %v4153
        %v4845 = vunpack.c.l.b16 %v4154
        %v4846 = vunpack.c.h.b16 %v4154
        %v4847 = vunpack.c.l.b16 %v4155
        %v4848 = vunpack.c.h.b16 %v4155
        %v4849 = vunpack.c.l.b16 %v4156
        %v4850 = vunpack.c.h.b16 %v4156
        %v4851 = vunpack.c.l.b16 %v4157
        %v4852 = vunpack.c.h.b16 %v4157
        %v4853 = vunpack.c.l.b16 %v4158
        %v4854 = vunpack.c.h.b16 %v4158
        %v4855 = vunpack.c.l.b16 %v4159
        %v4856 = vunpack.c.h.b16 %v4159
        %v4857 = vunpack.c.l.b16 %v4160
        %v4858 = vunpack.c.h.b16 %v4160
        %v4859 = vunpack.c.l.b16 %v4161
        %v4860 = vunpack.c.h.b16 %v4161
        %v4861 = vunpack.c.l.b16 %v4162
        %v4862 = vunpack.c.h.b16 %v4162
        %v4863 = vunpack.c.l.b16 %v4163
        %v4864 = vunpack.c.h.b16 %v4163
        %v4865 = vunpack.c.l.b16 %v4164
        %v4866 = vunpack.c.h.b16 %v4164
        %v4867 = vunpack.c.l.b16 %v4165
        %v4868 = vunpack.c.h.b16 %v4165
        %v4869 = vunpack.c.l.b16 %v4166
        %v4870 = vunpack.c.h.b16 %v4166
        %v4871 = vunpack.c.l.b16 %v4167
        %v4872 = vunpack.c.h.b16 %v4167
        %v4873 = vunpack.c.l.b16 %v4168
        %v4874 = vunpack.c.h.b16 %v4168
        %v4875 = vunpack.c.l.b16 %v4169
        %v4876 = vunpack.c.h.b16 %v4169
        %v4877 = vunpack.c.l.b16 %v4170
        %v4878 = vunpack.c.h.b16 %v4170
        %v4879 = vunpack.c.l.b16 %v4171
        %v4880 = vunpack.c.h.b16 %v4171
        %v4881 = vunpack.c.l.b16 %v4172
        %v4882 = vunpack.c.h.b16 %v4172
        %v4883 = vunpack.c.l.b16 %v4173
        %v4884 = vunpack.c.h.b16 %v4173
        %v4885 = vunpack.c.l.b16 %v4174
        %v4886 = vunpack.c.h.b16 %v4174
        %v4887 = vunpack.c.l.b16 %v4175
        %v4888 = vunpack.c.h.b16 %v4175
        %v4889 = vunpack.c.l.b16 %v4176
        %v4890 = vunpack.c.h.b16 %v4176
        %v4891 = vunpack.c.l.b16 %v4177
        %v4892 = vunpack.c.h.b16 %v4177
        %v4893 = vunpack.c.l.b16 %v4178
        %v4894 = vunpack.c.h.b16 %v4178
        %v4895 = vunpack.c.l.b16 %v4179
        %v4896 = vunpack.c.h.b16 %v4179
        %v4897 = vunpack.c.l.b16 %v4180
        %v4898 = vunpack.c.h.b16 %v4180
        %v4899 = vunpack.c.l.b16 %v4181
        %v4900 = vunpack.c.h.b16 %v4181
        %v4901 = vunpack.c.l.b16 %v4182
        %v4902 = vunpack.c.h.b16 %v4182
        %v4903 = vunpack.c.l.b16 %v4183
        %v4904 = vunpack.c.h.b16 %v4183
        %v4905 = vunpack.c.l.b16 %v4184
        %v4906 = vunpack.c.h.b16 %v4184
        %v4907 = vunpack.c.l.b16 %v4185
        %v4908 = vunpack.c.h.b16 %v4185
        %v4909 = vunpack.c.l.b16 %v4186
        %v4910 = vunpack.c.h.b16 %v4186
        %v4911 = vunpack.c.l.b16 %v4187
        %v4912 = vunpack.c.h.b16 %v4187
        %v4913 = vunpack.c.l.b16 %v4188
        %v4914 = vunpack.c.h.b16 %v4188
        %v4915 = vunpack.c.l.b16 %v4189
        %v4916 = vunpack.c.h.b16 %v4189
        %v4917 = vunpack.c.l.b16 %v4190
        %v4918 = vunpack.c.h.b16 %v4190
        %v4919 = vunpack.c.l.b16 %v4191
        %v4920 = vunpack.c.h.b16 %v4191
        %v4921 = vunpack.c.l.b16 %v4192
        %v4922 = vunpack.c.h.b16 %v4192
        %v4923 = vunpack.c.l.b16 %v4193
        %v4924 = vunpack.c.h.b16 %v4193
        %v4925 = vunpack.c.l.b16 %v4194
        %v4926 = vunpack.c.h.b16 %v4194
        %v4927 = vunpack.c.l.b16 %v4195
        %v4928 = vunpack.c.h.b16 %v4195
        %v4929 = vunpack.c.l.b16 %v4196
        %v4930 = vunpack.c.h.b16 %v4196
        %v4931 = vunpack.c.l.b16 %v4197
        %v4932 = vunpack.c.h.b16 %v4197
        %v4933 = vunpack.c.l.b16 %v4198
        %v4934 = vunpack.c.h.b16 %v4198
        %v4935 = vunpack.c.l.b16 %v4199
        %v4936 = vunpack.c.h.b16 %v4199
        %v4937 = vunpack.c.l.b16 %v4200
        %v4938 = vunpack.c.h.b16 %v4200
        %v4939 = vunpack.c.l.b16 %v4201
        %v4940 = vunpack.c.h.b16 %v4201
        %v4941 = vunpack.c.l.b16 %v4202
        %v4942 = vunpack.c.h.b16 %v4202
        %v4943 = vunpack.c.l.b16 %v4203
        %v4944 = vunpack.c.h.b16 %v4203
        %v4945 = vunpack.c.l.b16 %v4204
        %v4946 = vunpack.c.h.b16 %v4204
        %v4947 = vunpack.c.l.b16 %v4205
        %v4948 = vunpack.c.h.b16 %v4205
        %v4949 = vunpack.c.l.b16 %v4206
        %v4950 = vunpack.c.h.b16 %v4206
        %v4951 = vunpack.c.l.b16 %v4207
        %v4952 = vunpack.c.h.b16 %v4207
        %v4953 = vunpack.c.l.b16 %v4208
        %v4954 = vunpack.c.h.b16 %v4208
        %v4955 = vunpack.c.l.b16 %v4209
        %v4956 = vunpack.c.h.b16 %v4209
        %v4957 = vunpack.c.l.b16 %v4210
        %v4958 = vunpack.c.h.b16 %v4210
        %v4959 = vunpack.c.l.b16 %v4211
        %v4960 = vunpack.c.h.b16 %v4211
        %v4961 = vunpack.c.l.b16 %v4212
        %v4962 = vunpack.c.h.b16 %v4212
        %v4963 = vunpack.c.l.b16 %v4213
        %v4964 = vunpack.c.h.b16 %v4213
        %v4965 = vunpack.c.l.b16 %v4214
        %v4966 = vunpack.c.h.b16 %v4214
        %v4967 = vunpack.c.l.b16 %v4215
        %v4968 = vunpack.c.h.b16 %v4215
        %v4969 = vunpack.c.l.b16 %v4216
        %v4970 = vunpack.c.h.b16 %v4216
        %v4971 = vunpack.c.l.b16 %v4217
        %v4972 = vunpack.c.h.b16 %v4217
        %v4973 = vunpack.c.l.b16 %v4218
        %v4974 = vunpack.c.h.b16 %v4218
        %v4975 = vunpack.c.l.b16 %v4219
        %v4976 = vunpack.c.h.b16 %v4219
        %v4977 = vunpack.c.l.b16 %v4220
        %v4978 = vunpack.c.h.b16 %v4220
        %v4979 = vunpack.c.l.b16 %v4221
        %v4980 = vunpack.c.h.b16 %v4221
        %v4981 = vunpack.c.l.b16 %v4222
        %v4982 = vunpack.c.h.b16 %v4222
        %v4983 = vunpack.c.l.b16 %v4223
        %v4984 = vunpack.c.h.b16 %v4223
        %v4985 = vunpack.c.l.b16 %v4224
        %v4986 = vunpack.c.h.b16 %v4224
        %v4987 = vunpack.c.l.b16 %v4225
        %v4988 = vunpack.c.h.b16 %v4225
        %v4989 = vunpack.c.l.b16 %v4226
        %v4990 = vunpack.c.h.b16 %v4226
        %v4991 = vunpack.c.l.b16 %v4227
        %v4992 = vunpack.c.h.b16 %v4227
        %v4993 = vunpack.c.l.b16 %v4228
        %v4994 = vunpack.c.h.b16 %v4228
        %v4995 = vunpack.c.l.b16 %v4229
        %v4996 = vunpack.c.h.b16 %v4229
        %v4997 = vunpack.c.l.b16 %v4230
        %v4998 = vunpack.c.h.b16 %v4230
        %v4999 = vunpack.c.l.b16 %v4231
        %v5000 = vunpack.c.h.b16 %v4231
        %v5001 = vunpack.c.l.b16 %v4232
        %v5002 = vunpack.c.h.b16 %v4232
        %v5003 = vunpack.c.l.b16 %v4233
        %v5004 = vunpack.c.h.b16 %v4233
        %v5005 = vunpack.c.l.b16 %v4234
        %v5006 = vunpack.c.h.b16 %v4234
        %v5007 = vunpack.c.l.b16 %v4235
        %v5008 = vunpack.c.h.b16 %v4235
        %v5009 = vunpack.c.l.b16 %v4236
        %v5010 = vunpack.c.h.b16 %v4236
        %v5011 = vunpack.c.l.b16 %v4237
        %v5012 = vunpack.c.h.b16 %v4237
        %v5013 = vunpack.c.l.b16 %v4238
        %v5014 = vunpack.c.h.b16 %v4238
        %v5015 = vunpack.c.l.b16 %v4239
        %v5016 = vunpack.c.h.b16 %v4239
        %v5017 = vunpack.c.l.b16 %v4240
        %v5018 = vunpack.c.h.b16 %v4240
        %v5019 = vunpack.c.l.b16 %v4241
        %v5020 = vunpack.c.h.b16 %v4241
        %v5021 = vunpack.c.l.b16 %v4242
        %v5022 = vunpack.c.h.b16 %v4242
        %v5023 = vunpack.c.l.b16 %v4243
        %v5024 = vunpack.c.h.b16 %v4243
        %v5025 = vunpack.c.l.b16 %v4244
        %v5026 = vunpack.c.h.b16 %v4244
        %v5027 = vunpack.c.l.b16 %v4245
        %v5028 = vunpack.c.h.b16 %v4245
        %v5029 = vunpack.c.l.b16 %v4246
        %v5030 = vunpack.c.h.b16 %v4246
        %v5031 = vunpack.c.l.b16 %v4247
        %v5032 = vunpack.c.h.b16 %v4247
        %v5033 = vunpack.c.l.b16 %v4248
        %v5034 = vunpack.c.h.b16 %v4248
        %v5035 = vunpack.c.l.b16 %v4249
        %v5036 = vunpack.c.h.b16 %v4249
        %v5037 = vunpack.c.l.b16 %v4250
        %v5038 = vunpack.c.h.b16 %v4250
        %v5039 = vunpack.c.l.b16 %v4251
        %v5040 = vunpack.c.h.b16 %v4251
        %v5041 = vunpack.c.l.b16 %v4252
        %v5042 = vunpack.c.h.b16 %v4252
        %v5043 = vpack.c.b16 %v4535, %v4531
        %v5044 = vpack.c.b16 %v4536, %v4532
        %v5045 = vpack.c.b16 %v4537, %v4533
        %v5046 = vpack.c.b16 %v4538, %v4534
        %v5047 = vpack.c.b16 %v4543, %v4539
        %v5048 = vpack.c.b16 %v4544, %v4540
        %v5049 = vpack.c.b16 %v4545, %v4541
        %v5050 = vpack.c.b16 %v4546, %v4542
        %v5051 = vpack.c.b16 %v4551, %v4547
        %v5052 = vpack.c.b16 %v4552, %v4548
        %v5053 = vpack.c.b16 %v4553, %v4549
        %v5054 = vpack.c.b16 %v4554, %v4550
        %v5055 = vpack.c.b16 %v4559, %v4555
        %v5056 = vpack.c.b16 %v4560, %v4556
        %v5057 = vpack.c.b16 %v4561, %v4557
        %v5058 = vpack.c.b16 %v4562, %v4558
        %v5059 = vpack.c.b16 %v4567, %v4563
        %v5060 = vpack.c.b16 %v4568, %v4564
        %v5061 = vpack.c.b16 %v4569, %v4565
        %v5062 = vpack.c.b16 %v4570, %v4566
        %v5063 = vpack.c.b16 %v4575, %v4571
        %v5064 = vpack.c.b16 %v4576, %v4572
        %v5065 = vpack.c.b16 %v4577, %v4573
        %v5066 = vpack.c.b16 %v4578, %v4574
        %v5067 = vpack.c.b16 %v4583, %v4579
        %v5068 = vpack.c.b16 %v4584, %v4580
        %v5069 = vpack.c.b16 %v4585, %v4581
        %v5070 = vpack.c.b16 %v4586, %v4582
        %v5071 = vpack.c.b16 %v4591, %v4587
        %v5072 = vpack.c.b16 %v4592, %v4588
        %v5073 = vpack.c.b16 %v4593, %v4589
        %v5074 = vpack.c.b16 %v4594, %v4590
        %v5075 = vpack.c.b16 %v4599, %v4595
        %v5076 = vpack.c.b16 %v4600, %v4596
        %v5077 = vpack.c.b16 %v4601, %v4597
        %v5078 = vpack.c.b16 %v4602, %v4598
        %v5079 = vpack.c.b16 %v4607, %v4603
        %v5080 = vpack.c.b16 %v4608, %v4604
        %v5081 = vpack.c.b16 %v4609, %v4605
        %v5082 = vpack.c.b16 %v4610, %v4606
        %v5083 = vpack.c.b16 %v4615, %v4611
        %v5084 = vpack.c.b16 %v4616, %v4612
        %v5085 = vpack.c.b16 %v4617, %v4613
        %v5086 = vpack.c.b16 %v4618, %v4614
        %v5087 = vpack.c.b16 %v4623, %v4619
        %v5088 = vpack.c.b16 %v4624, %v4620
        %v5089 = vpack.c.b16 %v4625, %v4621
        %v5090 = vpack.c.b16 %v4626, %v4622
        %v5091 = vpack.c.b16 %v4631, %v4627
        %v5092 = vpack.c.b16 %v4632, %v4628
        %v5093 = vpack.c.b16 %v4633, %v4629
        %v5094 = vpack.c.b16 %v4634, %v4630
        %v5095 = vpack.c.b16 %v4639, %v4635
        %v5096 = vpack.c.b16 %v4640, %v4636
        %v5097 = vpack.c.b16 %v4641, %v4637
        %v5098 = vpack.c.b16 %v4642, %v4638
        %v5099 = vpack.c.b16 %v4647, %v4643
        %v5100 = vpack.c.b16 %v4648, %v4644
        %v5101 = vpack.c.b16 %v4649, %v4645
        %v5102 = vpack.c.b16 %v4650, %v4646
        %v5103 = vpack.c.b16 %v4655, %v4651
        %v5104 = vpack.c.b16 %v4656, %v4652
        %v5105 = vpack.c.b16 %v4657, %v4653
        %v5106 = vpack.c.b16 %v4658, %v4654
        %v5107 = vpack.c.b16 %v4663, %v4659
        %v5108 = vpack.c.b16 %v4664, %v4660
        %v5109 = vpack.c.b16 %v4665, %v4661
        %v5110 = vpack.c.b16 %v4666, %v4662
        %v5111 = vpack.c.b16 %v4671, %v4667
        %v5112 = vpack.c.b16 %v4672, %v4668
        %v5113 = vpack.c.b16 %v4673, %v4669
        %v5114 = vpack.c.b16 %v4674, %v4670
        %v5115 = vpack.c.b16 %v4679, %v4675
        %v5116 = vpack.c.b16 %v4680, %v4676
        %v5117 = vpack.c.b16 %v4681, %v4677
        %v5118 = vpack.c.b16 %v4682, %v4678
        %v5119 = vpack.c.b16 %v4687, %v4683
        %v5120 = vpack.c.b16 %v4688, %v4684
        %v5121 = vpack.c.b16 %v4689, %v4685
        %v5122 = vpack.c.b16 %v4690, %v4686
        %v5123 = vpack.c.b16 %v4695, %v4691
        %v5124 = vpack.c.b16 %v4696, %v4692
        %v5125 = vpack.c.b16 %v4697, %v4693
        %v5126 = vpack.c.b16 %v4698, %v4694
        %v5127 = vpack.c.b16 %v4703, %v4699
        %v5128 = vpack.c.b16 %v4704, %v4700
        %v5129 = vpack.c.b16 %v4705, %v4701
        %v5130 = vpack.c.b16 %v4706, %v4702
        %v5131 = vpack.c.b16 %v4711, %v4707
        %v5132 = vpack.c.b16 %v4712, %v4708
        %v5133 = vpack.c.b16 %v4713, %v4709
        %v5134 = vpack.c.b16 %v4714, %v4710
        %v5135 = vpack.c.b16 %v4719, %v4715
        %v5136 = vpack.c.b16 %v4720, %v4716
        %v5137 = vpack.c.b16 %v4721, %v4717
        %v5138 = vpack.c.b16 %v4722, %v4718
        %v5139 = vpack.c.b16 %v4727, %v4723
        %v5140 = vpack.c.b16 %v4728, %v4724
        %v5141 = vpack.c.b16 %v4729, %v4725
        %v5142 = vpack.c.b16 %v4730, %v4726
        %v5143 = vpack.c.b16 %v4735, %v4731
        %v5144 = vpack.c.b16 %v4736, %v4732
        %v5145 = vpack.c.b16 %v4737, %v4733
        %v5146 = vpack.c.b16 %v4738, %v4734
        %v5147 = vpack.c.b16 %v4743, %v4739
        %v5148 = vpack.c.b16 %v4744, %v4740
        %v5149 = vpack.c.b16 %v4745, %v4741
        %v5150 = vpack.c.b16 %v4746, %v4742
        %v5151 = vpack.c.b16 %v4751, %v4747
        %v5152 = vpack.c.b16 %v4752, %v4748
        %v5153 = vpack.c.b16 %v4753, %v4749
        %v5154 = vpack.c.b16 %v4754, %v4750
        %v5155 = vpack.c.b16 %v4759, %v4755
        %v5156 = vpack.c.b16 %v4760, %v4756
        %v5157 = vpack.c.b16 %v4761, %v4757
        %v5158 = vpack.c.b16 %v4762, %v4758
        %v5159 = vpack.c.b16 %v4767, %v4763
        %v5160 = vpack.c.b16 %v4768, %v4764
        %v5161 = vpack.c.b16 %v4769, %v4765
        %v5162 = vpack.c.b16 %v4770, %v4766
        %v5163 = vpack.c.b16 %v4775, %v4771
        %v5164 = vpack.c.b16 %v4776, %v4772
        %v5165 = vpack.c.b16 %v4777, %v4773
        %v5166 = vpack.c.b16 %v4778, %v4774
        %v5167 = vpack.c.b16 %v4783, %v4779
        %v5168 = vpack.c.b16 %v4784, %v4780
        %v5169 = vpack.c.b16 %v4785, %v4781
        %v5170 = vpack.c.b16 %v4786, %v4782
        %v5171 = vpack.c.b16 %v4791, %v4787
        %v5172 = vpack.c.b16 %v4792, %v4788
        %v5173 = vpack.c.b16 %v4793, %v4789
        %v5174 = vpack.c.b16 %v4794, %v4790
        %v5175 = vpack.c.b16 %v4799, %v4795
        %v5176 = vpack.c.b16 %v4800, %v4796
        %v5177 = vpack.c.b16 %v4801, %v4797
        %v5178 = vpack.c.b16 %v4802, %v4798
        %v5179 = vpack.c.b16 %v4807, %v4803
        %v5180 = vpack.c.b16 %v4808, %v4804
        %v5181 = vpack.c.b16 %v4809, %v4805
        %v5182 = vpack.c.b16 %v4810, %v4806
        %v5183 = vpack.c.b16 %v4815, %v4811
        %v5184 = vpack.c.b16 %v4816, %v4812
        %v5185 = vpack.c.b16 %v4817, %v4813
        %v5186 = vpack.c.b16 %v4818, %v4814
        %v5187 = vpack.c.b16 %v4823, %v4819
        %v5188 = vpack.c.b16 %v4824, %v4820
        %v5189 = vpack.c.b16 %v4825, %v4821
        %v5190 = vpack.c.b16 %v4826, %v4822
        %v5191 = vpack.c.b16 %v4831, %v4827
        %v5192 = vpack.c.b16 %v4832, %v4828
        %v5193 = vpack.c.b16 %v4833, %v4829
        %v5194 = vpack.c.b16 %v4834, %v4830
        %v5195 = vpack.c.b16 %v4839, %v4835
        %v5196 = vpack.c.b16 %v4840, %v4836
        %v5197 = vpack.c.b16 %v4841, %v4837
        %v5198 = vpack.c.b16 %v4842, %v4838
        %v5199 = vpack.c.b16 %v4847, %v4843
        %v5200 = vpack.c.b16 %v4848, %v4844
        %v5201 = vpack.c.b16 %v4849, %v4845
        %v5202 = vpack.c.b16 %v4850, %v4846
        %v5203 = vpack.c.b16 %v4855, %v4851
        %v5204 = vpack.c.b16 %v4856, %v4852
        %v5205 = vpack.c.b16 %v4857, %v4853
        %v5206 = vpack.c.b16 %v4858, %v4854
        %v5207 = vpack.c.b16 %v4863, %v4859
        %v5208 = vpack.c.b16 %v4864, %v4860
        %v5209 = vpack.c.b16 %v4865, %v4861
        %v5210 = vpack.c.b16 %v4866, %v4862
        %v5211 = vpack.c.b16 %v4871, %v4867
        %v5212 = vpack.c.b16 %v4872, %v4868
        %v5213 = vpack.c.b16 %v4873, %v4869
        %v5214 = vpack.c.b16 %v4874, %v4870
        %v5215 = vpack.c.b16 %v4879, %v4875
        %v5216 = vpack.c.b16 %v4880, %v4876
        %v5217 = vpack.c.b16 %v4881, %v4877
        %v5218 = vpack.c.b16 %v4882, %v4878
        %v5219 = vpack.c.b16 %v4887, %v4883
        %v5220 = vpack.c.b16 %v4888, %v4884
        %v5221 = vpack.c.b16 %v4889, %v4885
        %v5222 = vpack.c.b16 %v4890, %v4886
        %v5223 = vpack.c.b16 %v4895, %v4891
        %v5224 = vpack.c.b16 %v4896, %v4892
        %v5225 = vpack.c.b16 %v4897, %v4893
        %v5226 = vpack.c.b16 %v4898, %v4894
        %v5227 = vpack.c.b16 %v4903, %v4899
        %v5228 = vpack.c.b16 %v4904, %v4900
        %v5229 = vpack.c.b16 %v4905, %v4901
        %v5230 = vpack.c.b16 %v4906, %v4902
        %v5231 = vpack.c.b16 %v4911, %v4907
        %v5232 = vpack.c.b16 %v4912, %v4908
        %v5233 = vpack.c.b16 %v4913, %v4909
        %v5234 = vpack.c.b16 %v4914, %v4910
        %v5235 = vpack.c.b16 %v4919, %v4915
        %v5236 = vpack.c.b16 %v4920, %v4916
        %v5237 = vpack.c.b16 %v4921, %v4917
        %v5238 = vpack.c.b16 %v4922, %v4918
        %v5239 = vpack.c.b16 %v4927, %v4923
        %v5240 = vpack.c.b16 %v4928, %v4924
        %v5241 = vpack.c.b16 %v4929, %v4925
        %v5242 = vpack.c.b16 %v4930, %v4926
        %v5243 = vpack.c.b16 %v4935, %v4931
        %v5244 = vpack.c.b16 %v4936, %v4932
        %v5245 = vpack.c.b16 %v4937, %v4933
        %v5246 = vpack.c.b16 %v4938, %v4934
        %v5247 = vpack.c.b16 %v4943, %v4939
        %v5248 = vpack.c.b16 %v4944, %v4940
        %v5249 = vpack.c.b16 %v4945, %v4941
        %v5250 = vpack.c.b16 %v4946, %v4942
        %v5251 = vpack.c.b16 %v4951, %v4947
        %v5252 = vpack.c.b16 %v4952, %v4948
        %v5253 = vpack.c.b16 %v4953, %v4949
        %v5254 = vpack.c.b16 %v4954, %v4950
        %v5255 = vpack.c.b16 %v4959, %v4955
        %v5256 = vpack.c.b16 %v4960, %v4956
        %v5257 = vpack.c.b16 %v4961, %v4957
        %v5258 = vpack.c.b16 %v4962, %v4958
        %v5259 = vpack.c.b16 %v4967, %v4963
        %v5260 = vpack.c.b16 %v4968, %v4964
        %v5261 = vpack.c.b16 %v4969, %v4965
        %v5262 = vpack.c.b16 %v4970, %v4966
        %v5263 = vpack.c.b16 %v4975, %v4971
        %v5264 = vpack.c.b16 %v4976, %v4972
        %v5265 = vpack.c.b16 %v4977, %v4973
        %v5266 = vpack.c.b16 %v4978, %v4974
        %v5267 = vpack.c.b16 %v4983, %v4979
        %v5268 = vpack.c.b16 %v4984, %v4980
        %v5269 = vpack.c.b16 %v4985, %v4981
        %v5270 = vpack.c.b16 %v4986, %v4982
        %v5271 = vpack.c.b16 %v4991, %v4987
        %v5272 = vpack.c.b16 %v4992, %v4988
        %v5273 = vpack.c.b16 %v4993, %v4989
        %v5274 = vpack.c.b16 %v4994, %v4990
        %v5275 = vpack.c.b16 %v4999, %v4995
        %v5276 = vpack.c.b16 %v5000, %v4996
        %v5277 = vpack.c.b16 %v5001, %v4997
        %v5278 = vpack.c.b16 %v5002, %v4998
        %v5279 = vpack.c.b16 %v5007, %v5003
        %v5280 = vpack.c.b16 %v5008, %v5004
        %v5281 = vpack.c.b16 %v5009, %v5005
        %v5282 = vpack.c.b16 %v5010, %v5006
        %v5283 = vpack.c.b16 %v5015, %v5011
        %v5284 = vpack.c.b16 %v5016, %v5012
        %v5285 = vpack.c.b16 %v5017, %v5013
        %v5286 = vpack.c.b16 %v5018, %v5014
        %v5287 = vpack.c.b16 %v5023, %v5019
        %v5288 = vpack.c.b16 %v5024, %v5020
        %v5289 = vpack.c.b16 %v5025, %v5021
        %v5290 = vpack.c.b16 %v5026, %v5022
        %v5291 = vpack.c.b16 %v5031, %v5027
        %v5292 = vpack.c.b16 %v5032, %v5028
        %v5293 = vpack.c.b16 %v5033, %v5029
        %v5294 = vpack.c.b16 %v5034, %v5030
        %v5295 = vpack.c.b16 %v5039, %v5035
        %v5296 = vpack.c.b16 %v5040, %v5036
        %v5297 = vpack.c.b16 %v5041, %v5037
        %v5298 = vpack.c.b16 %v5042, %v5038
        %5555 = vmatprep.subr.bf16.mxu0 %v5044
        %5556 = vmatpush1.bf16.msra.mxu0 %v5043
        %5557 = vmatprep.subr.bf16.mxu0 %v5048
        %5558 = vmatpush1.bf16.msra.mxu0 %v5047
        %5559 = vmatprep.subr.bf16.mxu0 %v5052
        %5560 = vmatpush1.bf16.msra.mxu0 %v5051
        %5561 = vmatprep.subr.bf16.mxu0 %v5056
        %5562 = vmatpush1.bf16.msra.mxu0 %v5055
        %5563 = vmatprep.subr.bf16.mxu0 %v5060
        %5564 = vmatpush1.bf16.msra.mxu0 %v5059
        %5565 = vmatprep.subr.bf16.mxu0 %v5064
        %5566 = vmatpush1.bf16.msra.mxu0 %v5063
        %5567 = vmatprep.subr.bf16.mxu0 %v5068
        %5568 = vmatpush1.bf16.msra.mxu0 %v5067
        %5569 = vmatprep.subr.bf16.mxu0 %v5072
        %5570 = vmatpush1.bf16.msra.mxu0 %v5071
        %5571 = vmatprep.subr.bf16.mxu0 %v5076
        %5572 = vmatpush1.bf16.msra.mxu0 %v5075
        %5573 = vmatprep.subr.bf16.mxu0 %v5080
        %5574 = vmatpush1.bf16.msra.mxu0 %v5079
        %5575 = vmatprep.subr.bf16.mxu0 %v5084
        %5576 = vmatpush1.bf16.msra.mxu0 %v5083
        %5577 = vmatprep.subr.bf16.mxu0 %v5088
        %5578 = vmatpush1.bf16.msra.mxu0 %v5087
        %5579 = vmatprep.subr.bf16.mxu0 %v5092
        %5580 = vmatpush1.bf16.msra.mxu0 %v5091
        %5581 = vmatprep.subr.bf16.mxu0 %v5096
        %5582 = vmatpush1.bf16.msra.mxu0 %v5095
        %5583 = vmatprep.subr.bf16.mxu0 %v5100
        %5584 = vmatpush1.bf16.msra.mxu0 %v5099
        %5585 = vmatprep.subr.bf16.mxu0 %v5104
        %5586 = vmatpush1.bf16.msra.mxu0 %v5103
        %5587 = vmatprep.mubr.bf16.mxu0 %v3990
        %5588 = vmatmul.mubr.bf16.gmra.mrb[0].mxu0 %v3989
        %v5589 = vpop.f32.mrb[0].mxu0
        %v5590 = vadd.f32 %v4258, %v5589
        %v5591 = vpop.f32.mrb[0].mxu0
        %v5592 = vadd.f32 %v4262, %v5591
        %v5593 = vpop.f32.mrb[0].mxu0
        %v5594 = vadd.f32 %v4258, %v5593
        %v5595 = vpop.f32.mrb[0].mxu0
        %v5596 = vadd.f32 %v4262, %v5595
        %5597 = vdwg.mxu0
        %5598 = vmatprep.subr.bf16.mxu0 %v5108
        %5599 = vmatpush1.bf16.msra.mxu0 %v5107
        %5600 = vmatprep.subr.bf16.mxu0 %v5112
        %5601 = vmatpush1.bf16.msra.mxu0 %v5111
        %5602 = vmatprep.subr.bf16.mxu0 %v5116
        %5603 = vmatpush1.bf16.msra.mxu0 %v5115
        %5604 = vmatprep.subr.bf16.mxu0 %v5120
        %5605 = vmatpush1.bf16.msra.mxu0 %v5119
        %5606 = vmatprep.subr.bf16.mxu0 %v5124
        %5607 = vmatpush1.bf16.msra.mxu0 %v5123
        %5608 = vmatprep.subr.bf16.mxu0 %v5128
        %5609 = vmatpush1.bf16.msra.mxu0 %v5127
        %5610 = vmatprep.subr.bf16.mxu0 %v5132
        %5611 = vmatpush1.bf16.msra.mxu0 %v5131
        %5612 = vmatprep.subr.bf16.mxu0 %v5136
        %5613 = vmatpush1.bf16.msra.mxu0 %v5135
        %5614 = vmatprep.subr.bf16.mxu0 %v5140
        %5615 = vmatpush1.bf16.msra.mxu0 %v5139
        %5616 = vmatprep.subr.bf16.mxu0 %v5144
        %5617 = vmatpush1.bf16.msra.mxu0 %v5143
        %5618 = vmatprep.subr.bf16.mxu0 %v5148
        %5619 = vmatpush1.bf16.msra.mxu0 %v5147
        %5620 = vmatprep.subr.bf16.mxu0 %v5152
        %5621 = vmatpush1.bf16.msra.mxu0 %v5151
        %5622 = vmatprep.subr.bf16.mxu0 %v5156
        %5623 = vmatpush1.bf16.msra.mxu0 %v5155
        %5624 = vmatprep.subr.bf16.mxu0 %v5160
        %5625 = vmatpush1.bf16.msra.mxu0 %v5159
        %5626 = vmatprep.subr.bf16.mxu0 %v5164
        %5627 = vmatpush1.bf16.msra.mxu0 %v5163
        %5628 = vmatprep.subr.bf16.mxu0 %v5168
        %5629 = vmatpush1.bf16.msra.mxu0 %v5167
        %5630 = vmatprep.mubr.bf16.mxu0 %v3992
        %5631 = vmatmul.mubr.bf16.gmra.mrb[0].mxu0 %v3991
        %v5632 = vpop.f32.mrb[0].mxu0
        %v5633 = vadd.f32 %v5590, %v5632
        %v5634 = vpop.f32.mrb[0].mxu0
        %v5635 = vadd.f32 %v5592, %v5634
        %v5636 = vpop.f32.mrb[0].mxu0
        %v5637 = vadd.f32 %v5594, %v5636
        %v5638 = vpop.f32.mrb[0].mxu0
        %v5639 = vadd.f32 %v5596, %v5638
        %5640 = vdwg.mxu0
        %5641 = vmatprep.subr.bf16.mxu0 %v5172
        %5642 = vmatpush1.bf16.msra.mxu0 %v5171
        %5643 = vmatprep.subr.bf16.mxu0 %v5176
        %5644 = vmatpush1.bf16.msra.mxu0 %v5175
        %5645 = vmatprep.subr.bf16.mxu0 %v5180
        %5646 = vmatpush1.bf16.msra.mxu0 %v5179
        %5647 = vmatprep.subr.bf16.mxu0 %v5184
        %5648 = vmatpush1.bf16.msra.mxu0 %v5183
        %5649 = vmatprep.subr.bf16.mxu0 %v5188
        %5650 = vmatpush1.bf16.msra.mxu0 %v5187
        %5651 = vmatprep.subr.bf16.mxu0 %v5192
        %5652 = vmatpush1.bf16.msra.mxu0 %v5191
        %5653 = vmatprep.subr.bf16.mxu0 %v5196
        %5654 = vmatpush1.bf16.msra.mxu0 %v5195
        %5655 = vmatprep.subr.bf16.mxu0 %v5200
        %5656 = vmatpush1.bf16.msra.mxu0 %v5199
        %5657 = vmatprep.subr.bf16.mxu0 %v5204
        %5658 = vmatpush1.bf16.msra.mxu0 %v5203
        %5659 = vmatprep.subr.bf16.mxu0 %v5208
        %5660 = vmatpush1.bf16.msra.mxu0 %v5207
        %5661 = vmatprep.subr.bf16.mxu0 %v5212
        %5662 = vmatpush1.bf16.msra.mxu0 %v5211
        %5663 = vmatprep.subr.bf16.mxu0 %v5216
        %5664 = vmatpush1.bf16.msra.mxu0 %v5215
        %5665 = vmatprep.subr.bf16.mxu0 %v5220
        %5666 = vmatpush1.bf16.msra.mxu0 %v5219
        %5667 = vmatprep.subr.bf16.mxu0 %v5224
        %5668 = vmatpush1.bf16.msra.mxu0 %v5223
        %5669 = vmatprep.subr.bf16.mxu0 %v5228
        %5670 = vmatpush1.bf16.msra.mxu0 %v5227
        %5671 = vmatprep.subr.bf16.mxu0 %v5232
        %5672 = vmatpush1.bf16.msra.mxu0 %v5231
        %5673 = vmatprep.mubr.bf16.mxu0 %v3994
        %5674 = vmatmul.mubr.bf16.gmra.mrb[0].mxu0 %v3993
        %v5675 = vpop.f32.mrb[0].mxu0
        %v5676 = vadd.f32 %v5633, %v5675
        %v5677 = vpop.f32.mrb[0].mxu0
        %v5678 = vadd.f32 %v5635, %v5677
        %v5679 = vpop.f32.mrb[0].mxu0
        %v5680 = vadd.f32 %v5637, %v5679
        %v5681 = vpop.f32.mrb[0].mxu0
        %v5682 = vadd.f32 %v5639, %v5681
        %5683 = vdwg.mxu0
        %5684 = vmatprep.subr.bf16.mxu0 %v5236
        %5685 = vmatpush1.bf16.msra.mxu0 %v5235
        %5686 = vmatprep.subr.bf16.mxu0 %v5240
        %5687 = vmatpush1.bf16.msra.mxu0 %v5239
        %5688 = vmatprep.subr.bf16.mxu0 %v5244
        %5689 = vmatpush1.bf16.msra.mxu0 %v5243
        %5690 = vmatprep.subr.bf16.mxu0 %v5248
        %5691 = vmatpush1.bf16.msra.mxu0 %v5247
        %5692 = vmatprep.subr.bf16.mxu0 %v5252
        %5693 = vmatpush1.bf16.msra.mxu0 %v5251
        %5694 = vmatprep.subr.bf16.mxu0 %v5256
        %5695 = vmatpush1.bf16.msra.mxu0 %v5255
        %5696 = vmatprep.subr.bf16.mxu0 %v5260
        %5697 = vmatpush1.bf16.msra.mxu0 %v5259
        %5698 = vmatprep.subr.bf16.mxu0 %v5264
        %5699 = vmatpush1.bf16.msra.mxu0 %v5263
        %5700 = vmatprep.subr.bf16.mxu0 %v5268
        %5701 = vmatpush1.bf16.msra.mxu0 %v5267
        %5702 = vmatprep.subr.bf16.mxu0 %v5272
        %5703 = vmatpush1.bf16.msra.mxu0 %v5271
        %5704 = vmatprep.subr.bf16.mxu0 %v5276
        %5705 = vmatpush1.bf16.msra.mxu0 %v5275
        %5706 = vmatprep.subr.bf16.mxu0 %v5280
        %5707 = vmatpush1.bf16.msra.mxu0 %v5279
        %5708 = vmatprep.subr.bf16.mxu0 %v5284
        %5709 = vmatpush1.bf16.msra.mxu0 %v5283
        %5710 = vmatprep.subr.bf16.mxu0 %v5288
        %5711 = vmatpush1.bf16.msra.mxu0 %v5287
        %5712 = vmatprep.subr.bf16.mxu0 %v5292
        %5713 = vmatpush1.bf16.msra.mxu0 %v5291
        %5714 = vmatprep.subr.bf16.mxu0 %v5296
        %5715 = vmatpush1.bf16.msra.mxu0 %v5295
        %5716 = vmatprep.mubr.bf16.mxu0 %v3996
        %5717 = vmatmul.mubr.bf16.gmra.mrb[0].mxu0 %v3995
        %v5718 = vpop.f32.mrb[0].mxu0
        %v5719 = vadd.f32 %v5676, %v5718
        %v5720 = vpop.f32.mrb[0].mxu0
        %v5721 = vadd.f32 %v5678, %v5720
        %v5722 = vpop.f32.mrb[0].mxu0
        %v5723 = vadd.f32 %v5680, %v5722
        %v5724 = vpop.f32.mrb[0].mxu0
        %v5725 = vadd.f32 %v5682, %v5724
        %5726 = vdwg.mxu0
        %5727 = vmatprep.subr.bf16.mxu0 %v5046
        %5728 = vmatpush1.bf16.msra.mxu0 %v5045
        %5729 = vmatprep.subr.bf16.mxu0 %v5050
        %5730 = vmatpush1.bf16.msra.mxu0 %v5049
        %5731 = vmatprep.subr.bf16.mxu0 %v5054
        %5732 = vmatpush1.bf16.msra.mxu0 %v5053
        %5733 = vmatprep.subr.bf16.mxu0 %v5058
        %5734 = vmatpush1.bf16.msra.mxu0 %v5057
        %5735 = vmatprep.subr.bf16.mxu0 %v5062
        %5736 = vmatpush1.bf16.msra.mxu0 %v5061
        %5737 = vmatprep.subr.bf16.mxu0 %v5066
        %5738 = vmatpush1.bf16.msra.mxu0 %v5065
        %5739 = vmatprep.subr.bf16.mxu0 %v5070
        %5740 = vmatpush1.bf16.msra.mxu0 %v5069
        %5741 = vmatprep.subr.bf16.mxu0 %v5074
        %5742 = vmatpush1.bf16.msra.mxu0 %v5073
        %5743 = vmatprep.subr.bf16.mxu0 %v5078
        %5744 = vmatpush1.bf16.msra.mxu0 %v5077
        %5745 = vmatprep.subr.bf16.mxu0 %v5082
        %5746 = vmatpush1.bf16.msra.mxu0 %v5081
        %5747 = vmatprep.subr.bf16.mxu0 %v5086
        %5748 = vmatpush1.bf16.msra.mxu0 %v5085
        %5749 = vmatprep.subr.bf16.mxu0 %v5090
        %5750 = vmatpush1.bf16.msra.mxu0 %v5089
        %5751 = vmatprep.subr.bf16.mxu0 %v5094
        %5752 = vmatpush1.bf16.msra.mxu0 %v5093
        %5753 = vmatprep.subr.bf16.mxu0 %v5098
        %5754 = vmatpush1.bf16.msra.mxu0 %v5097
        %5755 = vmatprep.subr.bf16.mxu0 %v5102
        %5756 = vmatpush1.bf16.msra.mxu0 %v5101
        %5757 = vmatprep.subr.bf16.mxu0 %v5106
        %5758 = vmatpush1.bf16.msra.mxu0 %v5105
        %5759 = vmatprep.mubr.bf16.mxu0 %v3990
        %5760 = vmatmul.mubr.bf16.gmra.mrb[0].mxu0 %v3989
        %v5761 = vpop.f32.mrb[0].mxu0
        %v5762 = vadd.f32 %v4266, %v5761
        %v5763 = vpop.f32.mrb[0].mxu0
        %v5764 = vadd.f32 %v4270, %v5763
        %v5765 = vpop.f32.mrb[0].mxu0
        %v5766 = vadd.f32 %v4266, %v5765
        %v5767 = vpop.f32.mrb[0].mxu0
        %v5768 = vadd.f32 %v4270, %v5767
        %5769 = vdwg.mxu0
        %5770 = vmatprep.subr.bf16.mxu0 %v5110
        %5771 = vmatpush1.bf16.msra.mxu0 %v5109
        %5772 = vmatprep.subr.bf16.mxu0 %v5114
        %5773 = vmatpush1.bf16.msra.mxu0 %v5113
        %5774 = vmatprep.subr.bf16.mxu0 %v5118
        %5775 = vmatpush1.bf16.msra.mxu0 %v5117
        %5776 = vmatprep.subr.bf16.mxu0 %v5122
        %5777 = vmatpush1.bf16.msra.mxu0 %v5121
        %5778 = vmatprep.subr.bf16.mxu0 %v5126
        %5779 = vmatpush1.bf16.msra.mxu0 %v5125
        %5780 = vmatprep.subr.bf16.mxu0 %v5130
        %5781 = vmatpush1.bf16.msra.mxu0 %v5129
        %5782 = vmatprep.subr.bf16.mxu0 %v5134
        %5783 = vmatpush1.bf16.msra.mxu0 %v5133
        %5784 = vmatprep.subr.bf16.mxu0 %v5138
        %5785 = vmatpush1.bf16.msra.mxu0 %v5137
        %5786 = vmatprep.subr.bf16.mxu0 %v5142
        %5787 = vmatpush1.bf16.msra.mxu0 %v5141
        %5788 = vmatprep.subr.bf16.mxu0 %v5146
        %5789 = vmatpush1.bf16.msra.mxu0 %v5145
        %5790 = vmatprep.subr.bf16.mxu0 %v5150
        %5791 = vmatpush1.bf16.msra.mxu0 %v5149
        %5792 = vmatprep.subr.bf16.mxu0 %v5154
        %5793 = vmatpush1.bf16.msra.mxu0 %v5153
        %5794 = vmatprep.subr.bf16.mxu0 %v5158
        %5795 = vmatpush1.bf16.msra.mxu0 %v5157
        %5796 = vmatprep.subr.bf16.mxu0 %v5162
        %5797 = vmatpush1.bf16.msra.mxu0 %v5161
        %5798 = vmatprep.subr.bf16.mxu0 %v5166
        %5799 = vmatpush1.bf16.msra.mxu0 %v5165
        %5800 = vmatprep.subr.bf16.mxu0 %v5170
        %5801 = vmatpush1.bf16.msra.mxu0 %v5169
        %5802 = vmatprep.mubr.bf16.mxu0 %v3992
        %5803 = vmatmul.mubr.bf16.gmra.mrb[0].mxu0 %v3991
        %v5804 = vpop.f32.mrb[0].mxu0
        %v5805 = vadd.f32 %v5762, %v5804
        %v5806 = vpop.f32.mrb[0].mxu0
        %v5807 = vadd.f32 %v5764, %v5806
        %v5808 = vpop.f32.mrb[0].mxu0
        %v5809 = vadd.f32 %v5766, %v5808
        %v5810 = vpop.f32.mrb[0].mxu0
        %v5811 = vadd.f32 %v5768, %v5810
        %5812 = vdwg.mxu0
        %5813 = vmatprep.subr.bf16.mxu0 %v5174
        %5814 = vmatpush1.bf16.msra.mxu0 %v5173
        %5815 = vmatprep.subr.bf16.mxu0 %v5178
        %5816 = vmatpush1.bf16.msra.mxu0 %v5177
        %5817 = vmatprep.subr.bf16.mxu0 %v5182
        %5818 = vmatpush1.bf16.msra.mxu0 %v5181
        %5819 = vmatprep.subr.bf16.mxu0 %v5186
        %5820 = vmatpush1.bf16.msra.mxu0 %v5185
        %5821 = vmatprep.subr.bf16.mxu0 %v5190
        %5822 = vmatpush1.bf16.msra.mxu0 %v5189
        %5823 = vmatprep.subr.bf16.mxu0 %v5194
        %5824 = vmatpush1.bf16.msra.mxu0 %v5193
        %5825 = vmatprep.subr.bf16.mxu0 %v5198
        %5826 = vmatpush1.bf16.msra.mxu0 %v5197
        %5827 = vmatprep.subr.bf16.mxu0 %v5202
        %5828 = vmatpush1.bf16.msra.mxu0 %v5201
        %5829 = vmatprep.subr.bf16.mxu0 %v5206
        %5830 = vmatpush1.bf16.msra.mxu0 %v5205
        %5831 = vmatprep.subr.bf16.mxu0 %v5210
        %5832 = vmatpush1.bf16.msra.mxu0 %v5209
        %5833 = vmatprep.subr.bf16.mxu0 %v5214
        %5834 = vmatpush1.bf16.msra.mxu0 %v5213
        %5835 = vmatprep.subr.bf16.mxu0 %v5218
        %5836 = vmatpush1.bf16.msra.mxu0 %v5217
        %5837 = vmatprep.subr.bf16.mxu0 %v5222
        %5838 = vmatpush1.bf16.msra.mxu0 %v5221
        %5839 = vmatprep.subr.bf16.mxu0 %v5226
        %5840 = vmatpush1.bf16.msra.mxu0 %v5225
        %5841 = vmatprep.subr.bf16.mxu0 %v5230
        %5842 = vmatpush1.bf16.msra.mxu0 %v5229
        %5843 = vmatprep.subr.bf16.mxu0 %v5234
        %5844 = vmatpush1.bf16.msra.mxu0 %v5233
        %5845 = vmatprep.mubr.bf16.mxu0 %v3994
        %5846 = vmatmul.mubr.bf16.gmra.mrb[0].mxu0 %v3993
        %v5847 = vpop.f32.mrb[0].mxu0
        %v5848 = vadd.f32 %v5805, %v5847
        %v5849 = vpop.f32.mrb[0].mxu0
        %v5850 = vadd.f32 %v5807, %v5849
        %v5851 = vpop.f32.mrb[0].mxu0
        %v5852 = vadd.f32 %v5809, %v5851
        %v5853 = vpop.f32.mrb[0].mxu0
        %v5854 = vadd.f32 %v5811, %v5853
        %5855 = vdwg.mxu0
        %5856 = vmatprep.subr.bf16.mxu0 %v5238
        %5857 = vmatpush1.bf16.msra.mxu0 %v5237
        %5858 = vmatprep.subr.bf16.mxu0 %v5242
        %5859 = vmatpush1.bf16.msra.mxu0 %v5241
        %5860 = vmatprep.subr.bf16.mxu0 %v5246
        %5861 = vmatpush1.bf16.msra.mxu0 %v5245
        %5862 = vmatprep.subr.bf16.mxu0 %v5250
        %5863 = vmatpush1.bf16.msra.mxu0 %v5249
        %5864 = vmatprep.subr.bf16.mxu0 %v5254
        %5865 = vmatpush1.bf16.msra.mxu0 %v5253
        %5866 = vmatprep.subr.bf16.mxu0 %v5258
        %5867 = vmatpush1.bf16.msra.mxu0 %v5257
        %5868 = vmatprep.subr.bf16.mxu0 %v5262
        %5869 = vmatpush1.bf16.msra.mxu0 %v5261
        %5870 = vmatprep.subr.bf16.mxu0 %v5266
        %5871 = vmatpush1.bf16.msra.mxu0 %v5265
        %5872 = vmatprep.subr.bf16.mxu0 %v5270
        %5873 = vmatpush1.bf16.msra.mxu0 %v5269
        %5874 = vmatprep.subr.bf16.mxu0 %v5274
        %5875 = vmatpush1.bf16.msra.mxu0 %v5273
        %5876 = vmatprep.subr.bf16.mxu0 %v5278
        %5877 = vmatpush1.bf16.msra.mxu0 %v5277
        %5878 = vmatprep.subr.bf16.mxu0 %v5282
        %5879 = vmatpush1.bf16.msra.mxu0 %v5281
        %5880 = vmatprep.subr.bf16.mxu0 %v5286
        %5881 = vmatpush1.bf16.msra.mxu0 %v5285
        %5882 = vmatprep.subr.bf16.mxu0 %v5290
        %5883 = vmatpush1.bf16.msra.mxu0 %v5289
        %5884 = vmatprep.subr.bf16.mxu0 %v5294
        %5885 = vmatpush1.bf16.msra.mxu0 %v5293
        %5886 = vmatprep.subr.bf16.mxu0 %v5298
        %5887 = vmatpush1.bf16.msra.mxu0 %v5297
        %5888 = vmatprep.mubr.bf16.mxu0 %v3996
        %5889 = vmatmul.mubr.bf16.gmra.mrb[0].mxu0 %v3995
        %v5890 = vpop.f32.mrb[0].mxu0
        %v5891 = vadd.f32 %v5848, %v5890
        %v5892 = vpop.f32.mrb[0].mxu0
        %v5893 = vadd.f32 %v5850, %v5892
        %v5894 = vpop.f32.mrb[0].mxu0
        %v5895 = vadd.f32 %v5852, %v5894
        %v5896 = vpop.f32.mrb[0].mxu0
        %v5897 = vadd.f32 %v5854, %v5896
        %5898 = vdwg.mxu0
        %vm5899 = vcmp.ge.f32.partialorder %v5719, 0.0
        %vm5900 = vcmp.ge.f32.partialorder %v5721, 0.0
        %vm5901 = vcmp.ge.f32.partialorder %v5891, 0.0
        %vm5902 = vcmp.ge.f32.partialorder %v5893, 0.0
        %vm5903 = vcmp.ge.f32.partialorder %v5723, 0.0
        %vm5904 = vcmp.ge.f32.partialorder %v5725, 0.0
        %vm5905 = vcmp.ge.f32.partialorder %v5895, 0.0
        %vm5906 = vcmp.ge.f32.partialorder %v5897, 0.0
        %v5907 = vmul.f32 %v5719, 0.01
        %v5908 = vmul.f32 %v5721, 0.01
        %v5909 = vmul.f32 %v5891, 0.01
        %v5910 = vmul.f32 %v5893, 0.01
        %v5911 = vmul.f32 %v5723, 0.01
        %v5912 = vmul.f32 %v5725, 0.01
        %v5913 = vmul.f32 %v5895, 0.01
        %v5914 = vmul.f32 %v5897, 0.01
        %v5915 = vsel %vm5899, %v5719, %v5907
        %v5916 = vsel %vm5900, %v5721, %v5908
        %v5917 = vsel %vm5901, %v5891, %v5909
        %v5918 = vsel %vm5902, %v5893, %v5910
        %v5919 = vsel %vm5903, %v5723, %v5911
        %v5920 = vsel %vm5904, %v5725, %v5912
        %v5921 = vsel %vm5905, %v5895, %v5913
        %v5922 = vsel %vm5906, %v5897, %v5914
        %v5923 = vld [vmem:[%s9] sm:$0xf]
        %v5925 = vlaneseq
        %v5926 = vshrl.u32 %v5925, 7
        %v5927 = vsub.s32 0, %v5926
        %v5928 = vrot.slane %v5923, %v5927
        %v5929 = vlaneseq
        %v5930 = vshrl.u32 %v5929, 7
        %v5931 = vsub.s32 1, %v5930
        %v5932 = vrot.slane %v5923, %v5931
        %v5933 = vlaneseq
        %v5934 = vshrl.u32 %v5933, 7
        %v5935 = vsub.s32 2, %v5934
        %v5936 = vrot.slane %v5923, %v5935
        %v5937 = vlaneseq
        %v5938 = vshrl.u32 %v5937, 7
        %v5939 = vsub.s32 3, %v5938
        %v5940 = vrot.slane %v5923, %v5939
        %v5945 = vmul.f32 %v5915, %v5928
        %v5946 = vmul.f32 %v5916, %v5932
        %v5947 = vmul.f32 %v5917, %v5936
        %v5948 = vmul.f32 %v5918, %v5940
        %v5949 = vmul.f32 %v5919, %v5928
        %v5950 = vmul.f32 %v5920, %v5932
        %v5951 = vmul.f32 %v5921, %v5936
        %v5952 = vmul.f32 %v5922, %v5940
        %v5953 = vadd.f32 %v5945, %v5946
        %v5954 = vadd.f32 %v5953, %v5947
        %v5955 = vadd.f32 %v5954, %v5948
        %5956 = vadd.xlane.f32.xlu0 %v5955
        %v5957 = vpop.xlane.xlu0 %5956
        %v5958 = vadd.f32 %v5949, %v5950
        %v5959 = vadd.f32 %v5958, %v5951
        %v5960 = vadd.f32 %v5959, %v5952
        %5961 = vadd.xlane.f32.xlu0 %v5960
        %v5962 = vpop.xlane.xlu0 %5961
        %v5963 = vld [vmem:[#allocation2] sm:$0x1]
        %5965 = vset.pattern.permute.xlu0 0
        %5966 = vperm.xlu0 %5965, %v5963
        %v5967 = vpop.permute.xlu0 %5966
        %v5969 = vlaneseq
        %v5970 = vshrl.u32 %v5969, 7
        %v5971 = vsub.s32 0, %v5970
        %v5972 = vrot.slane %v5967, %v5971
        %v5973 = vadd.f32 %v5957, %v5972
        %v5974 = vadd.f32 %v5962, %v5972
        %v5977 = vlaneseq
        %v5978 = vand.u32 %v5977, 127
        %v5979 = vlaneseq
        %v5980 = vshrl.u32 %v5979, 7
        %v5981 = vsub.s32 %v5978, %v5980
        %v5982 = vrot.slane %v5973, %v5981
        %v5983 = vadd.s32 %v5978, 4294967288
        %v5984 = vlaneseq
        %v5985 = vshrl.u32 %v5984, 7
        %v5986 = vsub.s32 %v5983, %v5985
        %v5987 = vrot.slane %v5974, %v5986
        %vm5988 = vcmask 130112
        %v5989 = vsel %vm5988, %v5987, %v5982
        %vm5991 = vcmask 122880
        %5992 = vst.msk [vmem:[%s835] sm:$0x1] %vm5991, %v5989
        %v5993 = vld [vmem:[#allocation16] sm:$0xff]
        %v5994 = vld [vmem:[#allocation16 + $0x8] sm:$0xff]
        %v5995 = vld [vmem:[#allocation16 + $0x10] sm:$0xff]
        %v5996 = vld [vmem:[#allocation16 + $0x18] sm:$0xff]
        %v5997 = vld [vmem:[#allocation16 + $0x20] sm:$0xff]
        %v5998 = vld [vmem:[#allocation16 + $0x28] sm:$0xff]
        %v5999 = vld [vmem:[#allocation16 + $0x30] sm:$0xff]
        %v6000 = vld [vmem:[#allocation16 + $0x38] sm:$0xff]
        %v6001 = vld [vmem:[#allocation16 + $0x40] sm:$0xff]
        %v6002 = vld [vmem:[#allocation16 + $0x48] sm:$0xff]
        %v6003 = vld [vmem:[#allocation16 + $0x50] sm:$0xff]
        %v6004 = vld [vmem:[#allocation16 + $0x58] sm:$0xff]
        %v6005 = vld [vmem:[#allocation16 + $0x60] sm:$0xff]
        %v6006 = vld [vmem:[#allocation16 + $0x68] sm:$0xff]
        %v6007 = vld [vmem:[#allocation16 + $0x70] sm:$0xff]
        %v6008 = vld [vmem:[#allocation16 + $0x78] sm:$0xff]
        %v6009 = vld [vmem:[#allocation16 + $0x80] sm:$0xff]
        %v6010 = vld [vmem:[#allocation16 + $0x88] sm:$0xff]
        %v6011 = vld [vmem:[#allocation16 + $0x90] sm:$0xff]
        %v6012 = vld [vmem:[#allocation16 + $0x98] sm:$0xff]
        %v6013 = vld [vmem:[#allocation16 + $0xa0] sm:$0xff]
        %v6014 = vld [vmem:[#allocation16 + $0xa8] sm:$0xff]
        %v6015 = vld [vmem:[#allocation16 + $0xb0] sm:$0xff]
        %v6016 = vld [vmem:[#allocation16 + $0xb8] sm:$0xff]
        %v6017 = vld [vmem:[#allocation16 + $0xc0] sm:$0xff]
        %v6018 = vld [vmem:[#allocation16 + $0xc8] sm:$0xff]
        %v6019 = vld [vmem:[#allocation16 + $0xd0] sm:$0xff]
        %v6020 = vld [vmem:[#allocation16 + $0xd8] sm:$0xff]
        %v6021 = vld [vmem:[#allocation16 + $0xe0] sm:$0xff]
        %v6022 = vld [vmem:[#allocation16 + $0xe8] sm:$0xff]
        %v6023 = vld [vmem:[#allocation16 + $0xf0] sm:$0xff]
        %v6024 = vld [vmem:[#allocation16 + $0xf8] sm:$0xff]
        %v6025 = vld [vmem:[#allocation16 + $0x100] sm:$0xff]
        %v6026 = vld [vmem:[#allocation16 + $0x108] sm:$0xff]
        %v6027 = vld [vmem:[#allocation16 + $0x110] sm:$0xff]
        %v6028 = vld [vmem:[#allocation16 + $0x118] sm:$0xff]
        %v6029 = vld [vmem:[#allocation16 + $0x120] sm:$0xff]
        %v6030 = vld [vmem:[#allocation16 + $0x128] sm:$0xff]
        %v6031 = vld [vmem:[#allocation16 + $0x130] sm:$0xff]
        %v6032 = vld [vmem:[#allocation16 + $0x138] sm:$0xff]
        %v6033 = vld [vmem:[#allocation16 + $0x140] sm:$0xff]
        %v6034 = vld [vmem:[#allocation16 + $0x148] sm:$0xff]
        %v6035 = vld [vmem:[#allocation16 + $0x150] sm:$0xff]
        %v6036 = vld [vmem:[#allocation16 + $0x158] sm:$0xff]
        %v6037 = vld [vmem:[#allocation16 + $0x160] sm:$0xff]
        %v6038 = vld [vmem:[#allocation16 + $0x168] sm:$0xff]
        %v6039 = vld [vmem:[#allocation16 + $0x170] sm:$0xff]
        %v6040 = vld [vmem:[#allocation16 + $0x178] sm:$0xff]
        %v6041 = vld [vmem:[#allocation16 + $0x180] sm:$0xff]
        %v6042 = vld [vmem:[#allocation16 + $0x188] sm:$0xff]
        %v6043 = vld [vmem:[#allocation16 + $0x190] sm:$0xff]
        %v6044 = vld [vmem:[#allocation16 + $0x198] sm:$0xff]
        %v6045 = vld [vmem:[#allocation16 + $0x1a0] sm:$0xff]
        %v6046 = vld [vmem:[#allocation16 + $0x1a8] sm:$0xff]
        %v6047 = vld [vmem:[#allocation16 + $0x1b0] sm:$0xff]
        %v6048 = vld [vmem:[#allocation16 + $0x1b8] sm:$0xff]
        %v6049 = vld [vmem:[#allocation16 + $0x1c0] sm:$0xff]
        %v6050 = vld [vmem:[#allocation16 + $0x1c8] sm:$0xff]
        %v6051 = vld [vmem:[#allocation16 + $0x1d0] sm:$0xff]
        %v6052 = vld [vmem:[#allocation16 + $0x1d8] sm:$0xff]
        %v6053 = vld [vmem:[#allocation16 + $0x1e0] sm:$0xff]
        %v6054 = vld [vmem:[#allocation16 + $0x1e8] sm:$0xff]
        %v6055 = vld [vmem:[#allocation16 + $0x1f0] sm:$0xff]
        %v6056 = vld [vmem:[#allocation16 + $0x1f8] sm:$0xff]
        %v6057 = vld [vmem:[#allocation16 + $0x200] sm:$0xff]
        %v6058 = vld [vmem:[#allocation16 + $0x208] sm:$0xff]
        %v6059 = vld [vmem:[#allocation16 + $0x210] sm:$0xff]
        %v6060 = vld [vmem:[#allocation16 + $0x218] sm:$0xff]
        %v6061 = vld [vmem:[#allocation16 + $0x220] sm:$0xff]
        %v6062 = vld [vmem:[#allocation16 + $0x228] sm:$0xff]
        %v6063 = vld [vmem:[#allocation16 + $0x230] sm:$0xff]
        %v6064 = vld [vmem:[#allocation16 + $0x238] sm:$0xff]
        %v6065 = vld [vmem:[#allocation16 + $0x240] sm:$0xff]
        %v6066 = vld [vmem:[#allocation16 + $0x248] sm:$0xff]
        %v6067 = vld [vmem:[#allocation16 + $0x250] sm:$0xff]
        %v6068 = vld [vmem:[#allocation16 + $0x258] sm:$0xff]
        %v6069 = vld [vmem:[#allocation16 + $0x260] sm:$0xff]
        %v6070 = vld [vmem:[#allocation16 + $0x268] sm:$0xff]
        %v6071 = vld [vmem:[#allocation16 + $0x270] sm:$0xff]
        %v6072 = vld [vmem:[#allocation16 + $0x278] sm:$0xff]
        %v6073 = vld [vmem:[#allocation16 + $0x280] sm:$0xff]
        %v6074 = vld [vmem:[#allocation16 + $0x288] sm:$0xff]
        %v6075 = vld [vmem:[#allocation16 + $0x290] sm:$0xff]
        %v6076 = vld [vmem:[#allocation16 + $0x298] sm:$0xff]
        %v6077 = vld [vmem:[#allocation16 + $0x2a0] sm:$0xff]
        %v6078 = vld [vmem:[#allocation16 + $0x2a8] sm:$0xff]
        %v6079 = vld [vmem:[#allocation16 + $0x2b0] sm:$0xff]
        %v6080 = vld [vmem:[#allocation16 + $0x2b8] sm:$0xff]
        %v6081 = vld [vmem:[#allocation16 + $0x2c0] sm:$0xff]
        %v6082 = vld [vmem:[#allocation16 + $0x2c8] sm:$0xff]
        %v6083 = vld [vmem:[#allocation16 + $0x2d0] sm:$0xff]
        %v6084 = vld [vmem:[#allocation16 + $0x2d8] sm:$0xff]
        %v6085 = vld [vmem:[#allocation16 + $0x2e0] sm:$0xff]
        %v6086 = vld [vmem:[#allocation16 + $0x2e8] sm:$0xff]
        %v6087 = vld [vmem:[#allocation16 + $0x2f0] sm:$0xff]
        %v6088 = vld [vmem:[#allocation16 + $0x2f8] sm:$0xff]
        %v6089 = vld [vmem:[#allocation16 + $0x300] sm:$0xff]
        %v6090 = vld [vmem:[#allocation16 + $0x308] sm:$0xff]
        %v6091 = vld [vmem:[#allocation16 + $0x310] sm:$0xff]
        %v6092 = vld [vmem:[#allocation16 + $0x318] sm:$0xff]
        %v6093 = vld [vmem:[#allocation16 + $0x320] sm:$0xff]
        %v6094 = vld [vmem:[#allocation16 + $0x328] sm:$0xff]
        %v6095 = vld [vmem:[#allocation16 + $0x330] sm:$0xff]
        %v6096 = vld [vmem:[#allocation16 + $0x338] sm:$0xff]
        %v6097 = vld [vmem:[#allocation16 + $0x340] sm:$0xff]
        %v6098 = vld [vmem:[#allocation16 + $0x348] sm:$0xff]
        %v6099 = vld [vmem:[#allocation16 + $0x350] sm:$0xff]
        %v6100 = vld [vmem:[#allocation16 + $0x358] sm:$0xff]
        %v6101 = vld [vmem:[#allocation16 + $0x360] sm:$0xff]
        %v6102 = vld [vmem:[#allocation16 + $0x368] sm:$0xff]
        %v6103 = vld [vmem:[#allocation16 + $0x370] sm:$0xff]
        %v6104 = vld [vmem:[#allocation16 + $0x378] sm:$0xff]
        %v6105 = vld [vmem:[#allocation16 + $0x380] sm:$0xff]
        %v6106 = vld [vmem:[#allocation16 + $0x388] sm:$0xff]
        %v6107 = vld [vmem:[#allocation16 + $0x390] sm:$0xff]
        %v6108 = vld [vmem:[#allocation16 + $0x398] sm:$0xff]
        %v6109 = vld [vmem:[#allocation16 + $0x3a0] sm:$0xff]
        %v6110 = vld [vmem:[#allocation16 + $0x3a8] sm:$0xff]
        %v6111 = vld [vmem:[#allocation16 + $0x3b0] sm:$0xff]
        %v6112 = vld [vmem:[#allocation16 + $0x3b8] sm:$0xff]
        %v6113 = vld [vmem:[#allocation16 + $0x3c0] sm:$0xff]
        %v6114 = vld [vmem:[#allocation16 + $0x3c8] sm:$0xff]
        %v6115 = vld [vmem:[#allocation16 + $0x3d0] sm:$0xff]
        %v6116 = vld [vmem:[#allocation16 + $0x3d8] sm:$0xff]
        %v6117 = vld [vmem:[#allocation16 + $0x3e0] sm:$0xff]
        %v6118 = vld [vmem:[#allocation16 + $0x3e8] sm:$0xff]
        %v6119 = vld [vmem:[#allocation16 + $0x3f0] sm:$0xff]
        %v6120 = vld [vmem:[#allocation16 + $0x3f8] sm:$0xff]
        %v6121 = vld [vmem:[#allocation18] sm:$0xff]
        %v6122 = vld [vmem:[#allocation18 + $0x8] sm:$0xff]
        %v6123 = vld [vmem:[#allocation18 + $0x10] sm:$0xff]
        %v6124 = vld [vmem:[#allocation18 + $0x18] sm:$0xff]
        %v6125 = vld [vmem:[#allocation18 + $0x20] sm:$0xff]
        %v6126 = vld [vmem:[#allocation18 + $0x28] sm:$0xff]
        %v6127 = vld [vmem:[#allocation18 + $0x30] sm:$0xff]
        %v6128 = vld [vmem:[#allocation18 + $0x38] sm:$0xff]
        %v6129 = vld [vmem:[#allocation18 + $0x40] sm:$0xff]
        %v6130 = vld [vmem:[#allocation18 + $0x48] sm:$0xff]
        %v6131 = vld [vmem:[#allocation18 + $0x50] sm:$0xff]
        %v6132 = vld [vmem:[#allocation18 + $0x58] sm:$0xff]
        %v6133 = vld [vmem:[#allocation18 + $0x60] sm:$0xff]
        %v6134 = vld [vmem:[#allocation18 + $0x68] sm:$0xff]
        %v6135 = vld [vmem:[#allocation18 + $0x70] sm:$0xff]
        %v6136 = vld [vmem:[#allocation18 + $0x78] sm:$0xff]
        %v6137 = vld [vmem:[#allocation18 + $0x80] sm:$0xff]
        %v6138 = vld [vmem:[#allocation18 + $0x88] sm:$0xff]
        %v6139 = vld [vmem:[#allocation18 + $0x90] sm:$0xff]
        %v6140 = vld [vmem:[#allocation18 + $0x98] sm:$0xff]
        %v6141 = vld [vmem:[#allocation18 + $0xa0] sm:$0xff]
        %v6142 = vld [vmem:[#allocation18 + $0xa8] sm:$0xff]
        %v6143 = vld [vmem:[#allocation18 + $0xb0] sm:$0xff]
        %v6144 = vld [vmem:[#allocation18 + $0xb8] sm:$0xff]
        %v6145 = vld [vmem:[#allocation18 + $0xc0] sm:$0xff]
        %v6146 = vld [vmem:[#allocation18 + $0xc8] sm:$0xff]
        %v6147 = vld [vmem:[#allocation18 + $0xd0] sm:$0xff]
        %v6148 = vld [vmem:[#allocation18 + $0xd8] sm:$0xff]
        %v6149 = vld [vmem:[#allocation18 + $0xe0] sm:$0xff]
        %v6150 = vld [vmem:[#allocation18 + $0xe8] sm:$0xff]
        %v6151 = vld [vmem:[#allocation18 + $0xf0] sm:$0xff]
        %v6152 = vld [vmem:[#allocation18 + $0xf8] sm:$0xff]
        %v6153 = vld [vmem:[#allocation18 + $0x100] sm:$0xff]
        %v6154 = vld [vmem:[#allocation18 + $0x108] sm:$0xff]
        %v6155 = vld [vmem:[#allocation18 + $0x110] sm:$0xff]
        %v6156 = vld [vmem:[#allocation18 + $0x118] sm:$0xff]
        %v6157 = vld [vmem:[#allocation18 + $0x120] sm:$0xff]
        %v6158 = vld [vmem:[#allocation18 + $0x128] sm:$0xff]
        %v6159 = vld [vmem:[#allocation18 + $0x130] sm:$0xff]
        %v6160 = vld [vmem:[#allocation18 + $0x138] sm:$0xff]
        %v6161 = vld [vmem:[#allocation18 + $0x140] sm:$0xff]
        %v6162 = vld [vmem:[#allocation18 + $0x148] sm:$0xff]
        %v6163 = vld [vmem:[#allocation18 + $0x150] sm:$0xff]
        %v6164 = vld [vmem:[#allocation18 + $0x158] sm:$0xff]
        %v6165 = vld [vmem:[#allocation18 + $0x160] sm:$0xff]
        %v6166 = vld [vmem:[#allocation18 + $0x168] sm:$0xff]
        %v6167 = vld [vmem:[#allocation18 + $0x170] sm:$0xff]
        %v6168 = vld [vmem:[#allocation18 + $0x178] sm:$0xff]
        %v6169 = vld [vmem:[#allocation18 + $0x180] sm:$0xff]
        %v6170 = vld [vmem:[#allocation18 + $0x188] sm:$0xff]
        %v6171 = vld [vmem:[#allocation18 + $0x190] sm:$0xff]
        %v6172 = vld [vmem:[#allocation18 + $0x198] sm:$0xff]
        %v6173 = vld [vmem:[#allocation18 + $0x1a0] sm:$0xff]
        %v6174 = vld [vmem:[#allocation18 + $0x1a8] sm:$0xff]
        %v6175 = vld [vmem:[#allocation18 + $0x1b0] sm:$0xff]
        %v6176 = vld [vmem:[#allocation18 + $0x1b8] sm:$0xff]
        %v6177 = vld [vmem:[#allocation18 + $0x1c0] sm:$0xff]
        %v6178 = vld [vmem:[#allocation18 + $0x1c8] sm:$0xff]
        %v6179 = vld [vmem:[#allocation18 + $0x1d0] sm:$0xff]
        %v6180 = vld [vmem:[#allocation18 + $0x1d8] sm:$0xff]
        %v6181 = vld [vmem:[#allocation18 + $0x1e0] sm:$0xff]
        %v6182 = vld [vmem:[#allocation18 + $0x1e8] sm:$0xff]
        %v6183 = vld [vmem:[#allocation18 + $0x1f0] sm:$0xff]
        %v6184 = vld [vmem:[#allocation18 + $0x1f8] sm:$0xff]
        %v6185 = vld [vmem:[#allocation18 + $0x200] sm:$0xff]
        %v6186 = vld [vmem:[#allocation18 + $0x208] sm:$0xff]
        %v6187 = vld [vmem:[#allocation18 + $0x210] sm:$0xff]
        %v6188 = vld [vmem:[#allocation18 + $0x218] sm:$0xff]
        %v6189 = vld [vmem:[#allocation18 + $0x220] sm:$0xff]
        %v6190 = vld [vmem:[#allocation18 + $0x228] sm:$0xff]
        %v6191 = vld [vmem:[#allocation18 + $0x230] sm:$0xff]
        %v6192 = vld [vmem:[#allocation18 + $0x238] sm:$0xff]
        %v6193 = vld [vmem:[#allocation18 + $0x240] sm:$0xff]
        %v6194 = vld [vmem:[#allocation18 + $0x248] sm:$0xff]
        %v6195 = vld [vmem:[#allocation18 + $0x250] sm:$0xff]
        %v6196 = vld [vmem:[#allocation18 + $0x258] sm:$0xff]
        %v6197 = vld [vmem:[#allocation18 + $0x260] sm:$0xff]
        %v6198 = vld [vmem:[#allocation18 + $0x268] sm:$0xff]
        %v6199 = vld [vmem:[#allocation18 + $0x270] sm:$0xff]
        %v6200 = vld [vmem:[#allocation18 + $0x278] sm:$0xff]
        %v6201 = vld [vmem:[#allocation18 + $0x280] sm:$0xff]
        %v6202 = vld [vmem:[#allocation18 + $0x288] sm:$0xff]
        %v6203 = vld [vmem:[#allocation18 + $0x290] sm:$0xff]
        %v6204 = vld [vmem:[#allocation18 + $0x298] sm:$0xff]
        %v6205 = vld [vmem:[#allocation18 + $0x2a0] sm:$0xff]
        %v6206 = vld [vmem:[#allocation18 + $0x2a8] sm:$0xff]
        %v6207 = vld [vmem:[#allocation18 + $0x2b0] sm:$0xff]
        %v6208 = vld [vmem:[#allocation18 + $0x2b8] sm:$0xff]
        %v6209 = vld [vmem:[#allocation18 + $0x2c0] sm:$0xff]
        %v6210 = vld [vmem:[#allocation18 + $0x2c8] sm:$0xff]
        %v6211 = vld [vmem:[#allocation18 + $0x2d0] sm:$0xff]
        %v6212 = vld [vmem:[#allocation18 + $0x2d8] sm:$0xff]
        %v6213 = vld [vmem:[#allocation18 + $0x2e0] sm:$0xff]
        %v6214 = vld [vmem:[#allocation18 + $0x2e8] sm:$0xff]
        %v6215 = vld [vmem:[#allocation18 + $0x2f0] sm:$0xff]
        %v6216 = vld [vmem:[#allocation18 + $0x2f8] sm:$0xff]
        %v6217 = vld [vmem:[#allocation18 + $0x300] sm:$0xff]
        %v6218 = vld [vmem:[#allocation18 + $0x308] sm:$0xff]
        %v6219 = vld [vmem:[#allocation18 + $0x310] sm:$0xff]
        %v6220 = vld [vmem:[#allocation18 + $0x318] sm:$0xff]
        %v6221 = vld [vmem:[#allocation18 + $0x320] sm:$0xff]
        %v6222 = vld [vmem:[#allocation18 + $0x328] sm:$0xff]
        %v6223 = vld [vmem:[#allocation18 + $0x330] sm:$0xff]
        %v6224 = vld [vmem:[#allocation18 + $0x338] sm:$0xff]
        %v6225 = vld [vmem:[#allocation18 + $0x340] sm:$0xff]
        %v6226 = vld [vmem:[#allocation18 + $0x348] sm:$0xff]
        %v6227 = vld [vmem:[#allocation18 + $0x350] sm:$0xff]
        %v6228 = vld [vmem:[#allocation18 + $0x358] sm:$0xff]
        %v6229 = vld [vmem:[#allocation18 + $0x360] sm:$0xff]
        %v6230 = vld [vmem:[#allocation18 + $0x368] sm:$0xff]
        %v6231 = vld [vmem:[#allocation18 + $0x370] sm:$0xff]
        %v6232 = vld [vmem:[#allocation18 + $0x378] sm:$0xff]
        %v6233 = vld [vmem:[#allocation18 + $0x380] sm:$0xff]
        %v6234 = vld [vmem:[#allocation18 + $0x388] sm:$0xff]
        %v6235 = vld [vmem:[#allocation18 + $0x390] sm:$0xff]
        %v6236 = vld [vmem:[#allocation18 + $0x398] sm:$0xff]
        %v6237 = vld [vmem:[#allocation18 + $0x3a0] sm:$0xff]
        %v6238 = vld [vmem:[#allocation18 + $0x3a8] sm:$0xff]
        %v6239 = vld [vmem:[#allocation18 + $0x3b0] sm:$0xff]
        %v6240 = vld [vmem:[#allocation18 + $0x3b8] sm:$0xff]
        %v6241 = vld [vmem:[#allocation18 + $0x3c0] sm:$0xff]
        %v6242 = vld [vmem:[#allocation18 + $0x3c8] sm:$0xff]
        %v6243 = vld [vmem:[#allocation18 + $0x3d0] sm:$0xff]
        %v6244 = vld [vmem:[#allocation18 + $0x3d8] sm:$0xff]
        %v6245 = vld [vmem:[#allocation18 + $0x3e0] sm:$0xff]
        %v6246 = vld [vmem:[#allocation18 + $0x3e8] sm:$0xff]
        %v6247 = vld [vmem:[#allocation18 + $0x3f0] sm:$0xff]
        %v6248 = vld [vmem:[#allocation18 + $0x3f8] sm:$0xff]
        %v6251 = vunpack.c.l.b16 %v857
        %v6252 = vunpack.c.h.b16 %v857
        %v6253 = vunpack.c.l.b16 %v858
        %v6254 = vunpack.c.h.b16 %v858
        %v6255 = vpack.c.b16 %v6253, %v6251
        %v6256 = vpack.c.b16 %v6254, %v6252
        %v6387 = vunpack.c.l.b16 %v6121
        %v6388 = vunpack.c.h.b16 %v6121
        %v6389 = vunpack.c.l.b16 %v6122
        %v6390 = vunpack.c.h.b16 %v6122
        %v6391 = vunpack.c.l.b16 %v6123
        %v6392 = vunpack.c.h.b16 %v6123
        %v6393 = vunpack.c.l.b16 %v6124
        %v6394 = vunpack.c.h.b16 %v6124
        %v6395 = vunpack.c.l.b16 %v6125
        %v6396 = vunpack.c.h.b16 %v6125
        %v6397 = vunpack.c.l.b16 %v6126
        %v6398 = vunpack.c.h.b16 %v6126
        %v6399 = vunpack.c.l.b16 %v6127
        %v6400 = vunpack.c.h.b16 %v6127
        %v6401 = vunpack.c.l.b16 %v6128
        %v6402 = vunpack.c.h.b16 %v6128
        %v6403 = vunpack.c.l.b16 %v6129
        %v6404 = vunpack.c.h.b16 %v6129
        %v6405 = vunpack.c.l.b16 %v6130
        %v6406 = vunpack.c.h.b16 %v6130
        %v6407 = vunpack.c.l.b16 %v6131
        %v6408 = vunpack.c.h.b16 %v6131
        %v6409 = vunpack.c.l.b16 %v6132
        %v6410 = vunpack.c.h.b16 %v6132
        %v6411 = vunpack.c.l.b16 %v6133
        %v6412 = vunpack.c.h.b16 %v6133
        %v6413 = vunpack.c.l.b16 %v6134
        %v6414 = vunpack.c.h.b16 %v6134
        %v6415 = vunpack.c.l.b16 %v6135
        %v6416 = vunpack.c.h.b16 %v6135
        %v6417 = vunpack.c.l.b16 %v6136
        %v6418 = vunpack.c.h.b16 %v6136
        %v6419 = vunpack.c.l.b16 %v6137
        %v6420 = vunpack.c.h.b16 %v6137
        %v6421 = vunpack.c.l.b16 %v6138
        %v6422 = vunpack.c.h.b16 %v6138
        %v6423 = vunpack.c.l.b16 %v6139
        %v6424 = vunpack.c.h.b16 %v6139
        %v6425 = vunpack.c.l.b16 %v6140
        %v6426 = vunpack.c.h.b16 %v6140
        %v6427 = vunpack.c.l.b16 %v6141
        %v6428 = vunpack.c.h.b16 %v6141
        %v6429 = vunpack.c.l.b16 %v6142
        %v6430 = vunpack.c.h.b16 %v6142
        %v6431 = vunpack.c.l.b16 %v6143
        %v6432 = vunpack.c.h.b16 %v6143
        %v6433 = vunpack.c.l.b16 %v6144
        %v6434 = vunpack.c.h.b16 %v6144
        %v6435 = vunpack.c.l.b16 %v6145
        %v6436 = vunpack.c.h.b16 %v6145
        %v6437 = vunpack.c.l.b16 %v6146
        %v6438 = vunpack.c.h.b16 %v6146
        %v6439 = vunpack.c.l.b16 %v6147
        %v6440 = vunpack.c.h.b16 %v6147
        %v6441 = vunpack.c.l.b16 %v6148
        %v6442 = vunpack.c.h.b16 %v6148
        %v6443 = vunpack.c.l.b16 %v6149
        %v6444 = vunpack.c.h.b16 %v6149
        %v6445 = vunpack.c.l.b16 %v6150
        %v6446 = vunpack.c.h.b16 %v6150
        %v6447 = vunpack.c.l.b16 %v6151
        %v6448 = vunpack.c.h.b16 %v6151
        %v6449 = vunpack.c.l.b16 %v6152
        %v6450 = vunpack.c.h.b16 %v6152
        %v6451 = vunpack.c.l.b16 %v6153
        %v6452 = vunpack.c.h.b16 %v6153
        %v6453 = vunpack.c.l.b16 %v6154
        %v6454 = vunpack.c.h.b16 %v6154
        %v6455 = vunpack.c.l.b16 %v6155
        %v6456 = vunpack.c.h.b16 %v6155
        %v6457 = vunpack.c.l.b16 %v6156
        %v6458 = vunpack.c.h.b16 %v6156
        %v6459 = vunpack.c.l.b16 %v6157
        %v6460 = vunpack.c.h.b16 %v6157
        %v6461 = vunpack.c.l.b16 %v6158
        %v6462 = vunpack.c.h.b16 %v6158
        %v6463 = vunpack.c.l.b16 %v6159
        %v6464 = vunpack.c.h.b16 %v6159
        %v6465 = vunpack.c.l.b16 %v6160
        %v6466 = vunpack.c.h.b16 %v6160
        %v6467 = vunpack.c.l.b16 %v6161
        %v6468 = vunpack.c.h.b16 %v6161
        %v6469 = vunpack.c.l.b16 %v6162
        %v6470 = vunpack.c.h.b16 %v6162
        %v6471 = vunpack.c.l.b16 %v6163
        %v6472 = vunpack.c.h.b16 %v6163
        %v6473 = vunpack.c.l.b16 %v6164
        %v6474 = vunpack.c.h.b16 %v6164
        %v6475 = vunpack.c.l.b16 %v6165
        %v6476 = vunpack.c.h.b16 %v6165
        %v6477 = vunpack.c.l.b16 %v6166
        %v6478 = vunpack.c.h.b16 %v6166
        %v6479 = vunpack.c.l.b16 %v6167
        %v6480 = vunpack.c.h.b16 %v6167
        %v6481 = vunpack.c.l.b16 %v6168
        %v6482 = vunpack.c.h.b16 %v6168
        %v6483 = vunpack.c.l.b16 %v6169
        %v6484 = vunpack.c.h.b16 %v6169
        %v6485 = vunpack.c.l.b16 %v6170
        %v6486 = vunpack.c.h.b16 %v6170
        %v6487 = vunpack.c.l.b16 %v6171
        %v6488 = vunpack.c.h.b16 %v6171
        %v6489 = vunpack.c.l.b16 %v6172
        %v6490 = vunpack.c.h.b16 %v6172
        %v6491 = vunpack.c.l.b16 %v6173
        %v6492 = vunpack.c.h.b16 %v6173
        %v6493 = vunpack.c.l.b16 %v6174
        %v6494 = vunpack.c.h.b16 %v6174
        %v6495 = vunpack.c.l.b16 %v6175
        %v6496 = vunpack.c.h.b16 %v6175
        %v6497 = vunpack.c.l.b16 %v6176
        %v6498 = vunpack.c.h.b16 %v6176
        %v6499 = vunpack.c.l.b16 %v6177
        %v6500 = vunpack.c.h.b16 %v6177
        %v6501 = vunpack.c.l.b16 %v6178
        %v6502 = vunpack.c.h.b16 %v6178
        %v6503 = vunpack.c.l.b16 %v6179
        %v6504 = vunpack.c.h.b16 %v6179
        %v6505 = vunpack.c.l.b16 %v6180
        %v6506 = vunpack.c.h.b16 %v6180
        %v6507 = vunpack.c.l.b16 %v6181
        %v6508 = vunpack.c.h.b16 %v6181
        %v6509 = vunpack.c.l.b16 %v6182
        %v6510 = vunpack.c.h.b16 %v6182
        %v6511 = vunpack.c.l.b16 %v6183
        %v6512 = vunpack.c.h.b16 %v6183
        %v6513 = vunpack.c.l.b16 %v6184
        %v6514 = vunpack.c.h.b16 %v6184
        %v6515 = vunpack.c.l.b16 %v6185
        %v6516 = vunpack.c.h.b16 %v6185
        %v6517 = vunpack.c.l.b16 %v6186
        %v6518 = vunpack.c.h.b16 %v6186
        %v6519 = vunpack.c.l.b16 %v6187
        %v6520 = vunpack.c.h.b16 %v6187
        %v6521 = vunpack.c.l.b16 %v6188
        %v6522 = vunpack.c.h.b16 %v6188
        %v6523 = vunpack.c.l.b16 %v6189
        %v6524 = vunpack.c.h.b16 %v6189
        %v6525 = vunpack.c.l.b16 %v6190
        %v6526 = vunpack.c.h.b16 %v6190
        %v6527 = vunpack.c.l.b16 %v6191
        %v6528 = vunpack.c.h.b16 %v6191
        %v6529 = vunpack.c.l.b16 %v6192
        %v6530 = vunpack.c.h.b16 %v6192
        %v6531 = vunpack.c.l.b16 %v6193
        %v6532 = vunpack.c.h.b16 %v6193
        %v6533 = vunpack.c.l.b16 %v6194
        %v6534 = vunpack.c.h.b16 %v6194
        %v6535 = vunpack.c.l.b16 %v6195
        %v6536 = vunpack.c.h.b16 %v6195
        %v6537 = vunpack.c.l.b16 %v6196
        %v6538 = vunpack.c.h.b16 %v6196
        %v6539 = vunpack.c.l.b16 %v6197
        %v6540 = vunpack.c.h.b16 %v6197
        %v6541 = vunpack.c.l.b16 %v6198
        %v6542 = vunpack.c.h.b16 %v6198
        %v6543 = vunpack.c.l.b16 %v6199
        %v6544 = vunpack.c.h.b16 %v6199
        %v6545 = vunpack.c.l.b16 %v6200
        %v6546 = vunpack.c.h.b16 %v6200
        %v6547 = vunpack.c.l.b16 %v6201
        %v6548 = vunpack.c.h.b16 %v6201
        %v6549 = vunpack.c.l.b16 %v6202
        %v6550 = vunpack.c.h.b16 %v6202
        %v6551 = vunpack.c.l.b16 %v6203
        %v6552 = vunpack.c.h.b16 %v6203
        %v6553 = vunpack.c.l.b16 %v6204
        %v6554 = vunpack.c.h.b16 %v6204
        %v6555 = vunpack.c.l.b16 %v6205
        %v6556 = vunpack.c.h.b16 %v6205
        %v6557 = vunpack.c.l.b16 %v6206
        %v6558 = vunpack.c.h.b16 %v6206
        %v6559 = vunpack.c.l.b16 %v6207
        %v6560 = vunpack.c.h.b16 %v6207
        %v6561 = vunpack.c.l.b16 %v6208
        %v6562 = vunpack.c.h.b16 %v6208
        %v6563 = vunpack.c.l.b16 %v6209
        %v6564 = vunpack.c.h.b16 %v6209
        %v6565 = vunpack.c.l.b16 %v6210
        %v6566 = vunpack.c.h.b16 %v6210
        %v6567 = vunpack.c.l.b16 %v6211
        %v6568 = vunpack.c.h.b16 %v6211
        %v6569 = vunpack.c.l.b16 %v6212
        %v6570 = vunpack.c.h.b16 %v6212
        %v6571 = vunpack.c.l.b16 %v6213
        %v6572 = vunpack.c.h.b16 %v6213
        %v6573 = vunpack.c.l.b16 %v6214
        %v6574 = vunpack.c.h.b16 %v6214
        %v6575 = vunpack.c.l.b16 %v6215
        %v6576 = vunpack.c.h.b16 %v6215
        %v6577 = vunpack.c.l.b16 %v6216
        %v6578 = vunpack.c.h.b16 %v6216
        %v6579 = vunpack.c.l.b16 %v6217
        %v6580 = vunpack.c.h.b16 %v6217
        %v6581 = vunpack.c.l.b16 %v6218
        %v6582 = vunpack.c.h.b16 %v6218
        %v6583 = vunpack.c.l.b16 %v6219
        %v6584 = vunpack.c.h.b16 %v6219
        %v6585 = vunpack.c.l.b16 %v6220
        %v6586 = vunpack.c.h.b16 %v6220
        %v6587 = vunpack.c.l.b16 %v6221
        %v6588 = vunpack.c.h.b16 %v6221
        %v6589 = vunpack.c.l.b16 %v6222
        %v6590 = vunpack.c.h.b16 %v6222
        %v6591 = vunpack.c.l.b16 %v6223
        %v6592 = vunpack.c.h.b16 %v6223
        %v6593 = vunpack.c.l.b16 %v6224
        %v6594 = vunpack.c.h.b16 %v6224
        %v6595 = vunpack.c.l.b16 %v6225
        %v6596 = vunpack.c.h.b16 %v6225
        %v6597 = vunpack.c.l.b16 %v6226
        %v6598 = vunpack.c.h.b16 %v6226
        %v6599 = vunpack.c.l.b16 %v6227
        %v6600 = vunpack.c.h.b16 %v6227
        %v6601 = vunpack.c.l.b16 %v6228
        %v6602 = vunpack.c.h.b16 %v6228
        %v6603 = vunpack.c.l.b16 %v6229
        %v6604 = vunpack.c.h.b16 %v6229
        %v6605 = vunpack.c.l.b16 %v6230
        %v6606 = vunpack.c.h.b16 %v6230
        %v6607 = vunpack.c.l.b16 %v6231
        %v6608 = vunpack.c.h.b16 %v6231
        %v6609 = vunpack.c.l.b16 %v6232
        %v6610 = vunpack.c.h.b16 %v6232
        %v6611 = vunpack.c.l.b16 %v6233
        %v6612 = vunpack.c.h.b16 %v6233
        %v6613 = vunpack.c.l.b16 %v6234
        %v6614 = vunpack.c.h.b16 %v6234
        %v6615 = vunpack.c.l.b16 %v6235
        %v6616 = vunpack.c.h.b16 %v6235
        %v6617 = vunpack.c.l.b16 %v6236
        %v6618 = vunpack.c.h.b16 %v6236
        %v6619 = vunpack.c.l.b16 %v6237
        %v6620 = vunpack.c.h.b16 %v6237
        %v6621 = vunpack.c.l.b16 %v6238
        %v6622 = vunpack.c.h.b16 %v6238
        %v6623 = vunpack.c.l.b16 %v6239
        %v6624 = vunpack.c.h.b16 %v6239
        %v6625 = vunpack.c.l.b16 %v6240
        %v6626 = vunpack.c.h.b16 %v6240
        %v6627 = vunpack.c.l.b16 %v6241
        %v6628 = vunpack.c.h.b16 %v6241
        %v6629 = vunpack.c.l.b16 %v6242
        %v6630 = vunpack.c.h.b16 %v6242
        %v6631 = vunpack.c.l.b16 %v6243
        %v6632 = vunpack.c.h.b16 %v6243
        %v6633 = vunpack.c.l.b16 %v6244
        %v6634 = vunpack.c.h.b16 %v6244
        %v6635 = vunpack.c.l.b16 %v6245
        %v6636 = vunpack.c.h.b16 %v6245
        %v6637 = vunpack.c.l.b16 %v6246
        %v6638 = vunpack.c.h.b16 %v6246
        %v6639 = vunpack.c.l.b16 %v6247
        %v6640 = vunpack.c.h.b16 %v6247
        %v6641 = vunpack.c.l.b16 %v6248
        %v6642 = vunpack.c.h.b16 %v6248
        %v6643 = vpack.c.b16 %v6395, %v6387
        %v6644 = vpack.c.b16 %v6396, %v6388
        %v6645 = vpack.c.b16 %v6397, %v6389
        %v6646 = vpack.c.b16 %v6398, %v6390
        %v6647 = vpack.c.b16 %v6399, %v6391
        %v6648 = vpack.c.b16 %v6400, %v6392
        %v6649 = vpack.c.b16 %v6401, %v6393
        %v6650 = vpack.c.b16 %v6402, %v6394
        %v6651 = vpack.c.b16 %v6411, %v6403
        %v6652 = vpack.c.b16 %v6412, %v6404
        %v6653 = vpack.c.b16 %v6413, %v6405
        %v6654 = vpack.c.b16 %v6414, %v6406
        %v6655 = vpack.c.b16 %v6415, %v6407
        %v6656 = vpack.c.b16 %v6416, %v6408
        %v6657 = vpack.c.b16 %v6417, %v6409
        %v6658 = vpack.c.b16 %v6418, %v6410
        %v6659 = vpack.c.b16 %v6427, %v6419
        %v6660 = vpack.c.b16 %v6428, %v6420
        %v6661 = vpack.c.b16 %v6429, %v6421
        %v6662 = vpack.c.b16 %v6430, %v6422
        %v6663 = vpack.c.b16 %v6431, %v6423
        %v6664 = vpack.c.b16 %v6432, %v6424
        %v6665 = vpack.c.b16 %v6433, %v6425
        %v6666 = vpack.c.b16 %v6434, %v6426
        %v6667 = vpack.c.b16 %v6443, %v6435
        %v6668 = vpack.c.b16 %v6444, %v6436
        %v6669 = vpack.c.b16 %v6445, %v6437
        %v6670 = vpack.c.b16 %v6446, %v6438
        %v6671 = vpack.c.b16 %v6447, %v6439
        %v6672 = vpack.c.b16 %v6448, %v6440
        %v6673 = vpack.c.b16 %v6449, %v6441
        %v6674 = vpack.c.b16 %v6450, %v6442
        %v6675 = vpack.c.b16 %v6459, %v6451
        %v6676 = vpack.c.b16 %v6460, %v6452
        %v6677 = vpack.c.b16 %v6461, %v6453
        %v6678 = vpack.c.b16 %v6462, %v6454
        %v6679 = vpack.c.b16 %v6463, %v6455
        %v6680 = vpack.c.b16 %v6464, %v6456
        %v6681 = vpack.c.b16 %v6465, %v6457
        %v6682 = vpack.c.b16 %v6466, %v6458
        %v6683 = vpack.c.b16 %v6475, %v6467
        %v6684 = vpack.c.b16 %v6476, %v6468
        %v6685 = vpack.c.b16 %v6477, %v6469
        %v6686 = vpack.c.b16 %v6478, %v6470
        %v6687 = vpack.c.b16 %v6479, %v6471
        %v6688 = vpack.c.b16 %v6480, %v6472
        %v6689 = vpack.c.b16 %v6481, %v6473
        %v6690 = vpack.c.b16 %v6482, %v6474
        %v6691 = vpack.c.b16 %v6491, %v6483
        %v6692 = vpack.c.b16 %v6492, %v6484
        %v6693 = vpack.c.b16 %v6493, %v6485
        %v6694 = vpack.c.b16 %v6494, %v6486
        %v6695 = vpack.c.b16 %v6495, %v6487
        %v6696 = vpack.c.b16 %v6496, %v6488
        %v6697 = vpack.c.b16 %v6497, %v6489
        %v6698 = vpack.c.b16 %v6498, %v6490
        %v6699 = vpack.c.b16 %v6507, %v6499
        %v6700 = vpack.c.b16 %v6508, %v6500
        %v6701 = vpack.c.b16 %v6509, %v6501
        %v6702 = vpack.c.b16 %v6510, %v6502
        %v6703 = vpack.c.b16 %v6511, %v6503
        %v6704 = vpack.c.b16 %v6512, %v6504
        %v6705 = vpack.c.b16 %v6513, %v6505
        %v6706 = vpack.c.b16 %v6514, %v6506
        %v6707 = vpack.c.b16 %v6523, %v6515
        %v6708 = vpack.c.b16 %v6524, %v6516
        %v6709 = vpack.c.b16 %v6525, %v6517
        %v6710 = vpack.c.b16 %v6526, %v6518
        %v6711 = vpack.c.b16 %v6527, %v6519
        %v6712 = vpack.c.b16 %v6528, %v6520
        %v6713 = vpack.c.b16 %v6529, %v6521
        %v6714 = vpack.c.b16 %v6530, %v6522
        %v6715 = vpack.c.b16 %v6539, %v6531
        %v6716 = vpack.c.b16 %v6540, %v6532
        %v6717 = vpack.c.b16 %v6541, %v6533
        %v6718 = vpack.c.b16 %v6542, %v6534
        %v6719 = vpack.c.b16 %v6543, %v6535
        %v6720 = vpack.c.b16 %v6544, %v6536
        %v6721 = vpack.c.b16 %v6545, %v6537
        %v6722 = vpack.c.b16 %v6546, %v6538
        %v6723 = vpack.c.b16 %v6555, %v6547
        %v6724 = vpack.c.b16 %v6556, %v6548
        %v6725 = vpack.c.b16 %v6557, %v6549
        %v6726 = vpack.c.b16 %v6558, %v6550
        %v6727 = vpack.c.b16 %v6559, %v6551
        %v6728 = vpack.c.b16 %v6560, %v6552
        %v6729 = vpack.c.b16 %v6561, %v6553
        %v6730 = vpack.c.b16 %v6562, %v6554
        %v6731 = vpack.c.b16 %v6571, %v6563
        %v6732 = vpack.c.b16 %v6572, %v6564
        %v6733 = vpack.c.b16 %v6573, %v6565
        %v6734 = vpack.c.b16 %v6574, %v6566
        %v6735 = vpack.c.b16 %v6575, %v6567
        %v6736 = vpack.c.b16 %v6576, %v6568
        %v6737 = vpack.c.b16 %v6577, %v6569
        %v6738 = vpack.c.b16 %v6578, %v6570
        %v6739 = vpack.c.b16 %v6587, %v6579
        %v6740 = vpack.c.b16 %v6588, %v6580
        %v6741 = vpack.c.b16 %v6589, %v6581
        %v6742 = vpack.c.b16 %v6590, %v6582
        %v6743 = vpack.c.b16 %v6591, %v6583
        %v6744 = vpack.c.b16 %v6592, %v6584
        %v6745 = vpack.c.b16 %v6593, %v6585
        %v6746 = vpack.c.b16 %v6594, %v6586
        %v6747 = vpack.c.b16 %v6603, %v6595
        %v6748 = vpack.c.b16 %v6604, %v6596
        %v6749 = vpack.c.b16 %v6605, %v6597
        %v6750 = vpack.c.b16 %v6606, %v6598
        %v6751 = vpack.c.b16 %v6607, %v6599
        %v6752 = vpack.c.b16 %v6608, %v6600
        %v6753 = vpack.c.b16 %v6609, %v6601
        %v6754 = vpack.c.b16 %v6610, %v6602
        %v6755 = vpack.c.b16 %v6619, %v6611
        %v6756 = vpack.c.b16 %v6620, %v6612
        %v6757 = vpack.c.b16 %v6621, %v6613
        %v6758 = vpack.c.b16 %v6622, %v6614
        %v6759 = vpack.c.b16 %v6623, %v6615
        %v6760 = vpack.c.b16 %v6624, %v6616
        %v6761 = vpack.c.b16 %v6625, %v6617
        %v6762 = vpack.c.b16 %v6626, %v6618
        %v6763 = vpack.c.b16 %v6635, %v6627
        %v6764 = vpack.c.b16 %v6636, %v6628
        %v6765 = vpack.c.b16 %v6637, %v6629
        %v6766 = vpack.c.b16 %v6638, %v6630
        %v6767 = vpack.c.b16 %v6639, %v6631
        %v6768 = vpack.c.b16 %v6640, %v6632
        %v6769 = vpack.c.b16 %v6641, %v6633
        %v6770 = vpack.c.b16 %v6642, %v6634
        %6899 = vmatprep.subr.bf16.mxu0 %v6644
        %6900 = vmatpush1.bf16.msra.mxu0 %v6643
        %6901 = vmatprep.subr.bf16.mxu0 %v6652
        %6902 = vmatpush1.bf16.msra.mxu0 %v6651
        %6903 = vmatprep.subr.bf16.mxu0 %v6660
        %6904 = vmatpush1.bf16.msra.mxu0 %v6659
        %6905 = vmatprep.subr.bf16.mxu0 %v6668
        %6906 = vmatpush1.bf16.msra.mxu0 %v6667
        %6907 = vmatprep.subr.bf16.mxu0 %v6676
        %6908 = vmatpush1.bf16.msra.mxu0 %v6675
        %6909 = vmatprep.subr.bf16.mxu0 %v6684
        %6910 = vmatpush1.bf16.msra.mxu0 %v6683
        %6911 = vmatprep.subr.bf16.mxu0 %v6692
        %6912 = vmatpush1.bf16.msra.mxu0 %v6691
        %6913 = vmatprep.subr.bf16.mxu0 %v6700
        %6914 = vmatpush1.bf16.msra.mxu0 %v6699
        %6915 = vmatprep.subr.bf16.mxu0 %v6708
        %6916 = vmatpush1.bf16.msra.mxu0 %v6707
        %6917 = vmatprep.subr.bf16.mxu0 %v6716
        %6918 = vmatpush1.bf16.msra.mxu0 %v6715
        %6919 = vmatprep.subr.bf16.mxu0 %v6724
        %6920 = vmatpush1.bf16.msra.mxu0 %v6723
        %6921 = vmatprep.subr.bf16.mxu0 %v6732
        %6922 = vmatpush1.bf16.msra.mxu0 %v6731
        %6923 = vmatprep.subr.bf16.mxu0 %v6740
        %6924 = vmatpush1.bf16.msra.mxu0 %v6739
        %6925 = vmatprep.subr.bf16.mxu0 %v6748
        %6926 = vmatpush1.bf16.msra.mxu0 %v6747
        %6927 = vmatprep.subr.bf16.mxu0 %v6756
        %6928 = vmatpush1.bf16.msra.mxu0 %v6755
        %6929 = vmatprep.subr.bf16.mxu0 %v6764
        %6930 = vmatpush1.bf16.msra.mxu0 %v6763
        %6931 = vmatprep.mubr.bf16.mxu0 %v6256
        %6932 = vmatmul.mubr.bf16.gmra.mrb[0].mxu0 %v6255
        %v6933 = vpop.f32.mrb[0].mxu0
        %v6934 = vadd.f32 0.0, %v6933
        %v6935 = vpop.f32.mrb[0].mxu0
        %v6936 = vadd.f32 0.0, %v6935
        %v6937 = vpop.f32.mrb[0].mxu0
        %v6938 = vadd.f32 0.0, %v6937
        %v6939 = vpop.f32.mrb[0].mxu0
        %v6940 = vadd.f32 0.0, %v6939
        %6941 = vdwg.mxu0
        %6942 = vmatprep.subr.bf16.mxu0 %v6646
        %6943 = vmatpush1.bf16.msra.mxu0 %v6645
        %6944 = vmatprep.subr.bf16.mxu0 %v6654
        %6945 = vmatpush1.bf16.msra.mxu0 %v6653
        %6946 = vmatprep.subr.bf16.mxu0 %v6662
        %6947 = vmatpush1.bf16.msra.mxu0 %v6661
        %6948 = vmatprep.subr.bf16.mxu0 %v6670
        %6949 = vmatpush1.bf16.msra.mxu0 %v6669
        %6950 = vmatprep.subr.bf16.mxu0 %v6678
        %6951 = vmatpush1.bf16.msra.mxu0 %v6677
        %6952 = vmatprep.subr.bf16.mxu0 %v6686
        %6953 = vmatpush1.bf16.msra.mxu0 %v6685
        %6954 = vmatprep.subr.bf16.mxu0 %v6694
        %6955 = vmatpush1.bf16.msra.mxu0 %v6693
        %6956 = vmatprep.subr.bf16.mxu0 %v6702
        %6957 = vmatpush1.bf16.msra.mxu0 %v6701
        %6958 = vmatprep.subr.bf16.mxu0 %v6710
        %6959 = vmatpush1.bf16.msra.mxu0 %v6709
        %6960 = vmatprep.subr.bf16.mxu0 %v6718
        %6961 = vmatpush1.bf16.msra.mxu0 %v6717
        %6962 = vmatprep.subr.bf16.mxu0 %v6726
        %6963 = vmatpush1.bf16.msra.mxu0 %v6725
        %6964 = vmatprep.subr.bf16.mxu0 %v6734
        %6965 = vmatpush1.bf16.msra.mxu0 %v6733
        %6966 = vmatprep.subr.bf16.mxu0 %v6742
        %6967 = vmatpush1.bf16.msra.mxu0 %v6741
        %6968 = vmatprep.subr.bf16.mxu0 %v6750
        %6969 = vmatpush1.bf16.msra.mxu0 %v6749
        %6970 = vmatprep.subr.bf16.mxu0 %v6758
        %6971 = vmatpush1.bf16.msra.mxu0 %v6757
        %6972 = vmatprep.subr.bf16.mxu0 %v6766
        %6973 = vmatpush1.bf16.msra.mxu0 %v6765
        %6974 = vmatprep.mubr.bf16.mxu0 %v6256
        %6975 = vmatmul.mubr.bf16.gmra.mrb[0].mxu0 %v6255
        %v6976 = vpop.f32.mrb[0].mxu0
        %v6977 = vadd.f32 0.0, %v6976
        %v6978 = vpop.f32.mrb[0].mxu0
        %v6979 = vadd.f32 0.0, %v6978
        %v6980 = vpop.f32.mrb[0].mxu0
        %v6981 = vadd.f32 0.0, %v6980
        %v6982 = vpop.f32.mrb[0].mxu0
        %v6983 = vadd.f32 0.0, %v6982
        %6984 = vdwg.mxu0
        %6985 = vmatprep.subr.bf16.mxu0 %v6648
        %6986 = vmatpush1.bf16.msra.mxu0 %v6647
        %6987 = vmatprep.subr.bf16.mxu0 %v6656
        %6988 = vmatpush1.bf16.msra.mxu0 %v6655
        %6989 = vmatprep.subr.bf16.mxu0 %v6664
        %6990 = vmatpush1.bf16.msra.mxu0 %v6663
        %6991 = vmatprep.subr.bf16.mxu0 %v6672
        %6992 = vmatpush1.bf16.msra.mxu0 %v6671
        %6993 = vmatprep.subr.bf16.mxu0 %v6680
        %6994 = vmatpush1.bf16.msra.mxu0 %v6679
        %6995 = vmatprep.subr.bf16.mxu0 %v6688
        %6996 = vmatpush1.bf16.msra.mxu0 %v6687
        %6997 = vmatprep.subr.bf16.mxu0 %v6696
        %6998 = vmatpush1.bf16.msra.mxu0 %v6695
        %6999 = vmatprep.subr.bf16.mxu0 %v6704
        %7000 = vmatpush1.bf16.msra.mxu0 %v6703
        %7001 = vmatprep.subr.bf16.mxu0 %v6712
        %7002 = vmatpush1.bf16.msra.mxu0 %v6711
        %7003 = vmatprep.subr.bf16.mxu0 %v6720
        %7004 = vmatpush1.bf16.msra.mxu0 %v6719
        %7005 = vmatprep.subr.bf16.mxu0 %v6728
        %7006 = vmatpush1.bf16.msra.mxu0 %v6727
        %7007 = vmatprep.subr.bf16.mxu0 %v6736
        %7008 = vmatpush1.bf16.msra.mxu0 %v6735
        %7009 = vmatprep.subr.bf16.mxu0 %v6744
        %7010 = vmatpush1.bf16.msra.mxu0 %v6743
        %7011 = vmatprep.subr.bf16.mxu0 %v6752
        %7012 = vmatpush1.bf16.msra.mxu0 %v6751
        %7013 = vmatprep.subr.bf16.mxu0 %v6760
        %7014 = vmatpush1.bf16.msra.mxu0 %v6759
        %7015 = vmatprep.subr.bf16.mxu0 %v6768
        %7016 = vmatpush1.bf16.msra.mxu0 %v6767
        %7017 = vmatprep.mubr.bf16.mxu0 %v6256
        %7018 = vmatmul.mubr.bf16.gmra.mrb[0].mxu0 %v6255
        %v7019 = vpop.f32.mrb[0].mxu0
        %v7020 = vadd.f32 0.0, %v7019
        %v7021 = vpop.f32.mrb[0].mxu0
        %v7022 = vadd.f32 0.0, %v7021
        %v7023 = vpop.f32.mrb[0].mxu0
        %v7024 = vadd.f32 0.0, %v7023
        %v7025 = vpop.f32.mrb[0].mxu0
        %v7026 = vadd.f32 0.0, %v7025
        %7027 = vdwg.mxu0
        %7028 = vmatprep.subr.bf16.mxu0 %v6650
        %7029 = vmatpush1.bf16.msra.mxu0 %v6649
        %7030 = vmatprep.subr.bf16.mxu0 %v6658
        %7031 = vmatpush1.bf16.msra.mxu0 %v6657
        %7032 = vmatprep.subr.bf16.mxu0 %v6666
        %7033 = vmatpush1.bf16.msra.mxu0 %v6665
        %7034 = vmatprep.subr.bf16.mxu0 %v6674
        %7035 = vmatpush1.bf16.msra.mxu0 %v6673
        %7036 = vmatprep.subr.bf16.mxu0 %v6682
        %7037 = vmatpush1.bf16.msra.mxu0 %v6681
        %7038 = vmatprep.subr.bf16.mxu0 %v6690
        %7039 = vmatpush1.bf16.msra.mxu0 %v6689
        %7040 = vmatprep.subr.bf16.mxu0 %v6698
        %7041 = vmatpush1.bf16.msra.mxu0 %v6697
        %7042 = vmatprep.subr.bf16.mxu0 %v6706
        %7043 = vmatpush1.bf16.msra.mxu0 %v6705
        %7044 = vmatprep.subr.bf16.mxu0 %v6714
        %7045 = vmatpush1.bf16.msra.mxu0 %v6713
        %7046 = vmatprep.subr.bf16.mxu0 %v6722
        %7047 = vmatpush1.bf16.msra.mxu0 %v6721
        %7048 = vmatprep.subr.bf16.mxu0 %v6730
        %7049 = vmatpush1.bf16.msra.mxu0 %v6729
        %7050 = vmatprep.subr.bf16.mxu0 %v6738
        %7051 = vmatpush1.bf16.msra.mxu0 %v6737
        %7052 = vmatprep.subr.bf16.mxu0 %v6746
        %7053 = vmatpush1.bf16.msra.mxu0 %v6745
        %7054 = vmatprep.subr.bf16.mxu0 %v6754
        %7055 = vmatpush1.bf16.msra.mxu0 %v6753
        %7056 = vmatprep.subr.bf16.mxu0 %v6762
        %7057 = vmatpush1.bf16.msra.mxu0 %v6761
        %7058 = vmatprep.subr.bf16.mxu0 %v6770
        %7059 = vmatpush1.bf16.msra.mxu0 %v6769
        %7060 = vmatprep.mubr.bf16.mxu0 %v6256
        %7061 = vmatmul.mubr.bf16.gmra.mrb[0].mxu0 %v6255
        %v7062 = vpop.f32.mrb[0].mxu0
        %v7063 = vadd.f32 0.0, %v7062
        %v7064 = vpop.f32.mrb[0].mxu0
        %v7065 = vadd.f32 0.0, %v7064
        %v7066 = vpop.f32.mrb[0].mxu0
        %v7067 = vadd.f32 0.0, %v7066
        %v7068 = vpop.f32.mrb[0].mxu0
        %v7069 = vadd.f32 0.0, %v7068
        %7070 = vdwg.mxu0
        %v7073 = vunpack.c.l.b16 %v855
        %v7074 = vunpack.c.h.b16 %v855
        %v7075 = vunpack.c.l.b16 %v856
        %v7076 = vunpack.c.h.b16 %v856
        %v7077 = vpack.c.b16 %v7075, %v7073
        %v7078 = vpack.c.b16 %v7076, %v7074
        %v7209 = vunpack.c.l.b16 %v5993
        %v7210 = vunpack.c.h.b16 %v5993
        %v7211 = vunpack.c.l.b16 %v5994
        %v7212 = vunpack.c.h.b16 %v5994
        %v7213 = vunpack.c.l.b16 %v5995
        %v7214 = vunpack.c.h.b16 %v5995
        %v7215 = vunpack.c.l.b16 %v5996
        %v7216 = vunpack.c.h.b16 %v5996
        %v7217 = vunpack.c.l.b16 %v5997
        %v7218 = vunpack.c.h.b16 %v5997
        %v7219 = vunpack.c.l.b16 %v5998
        %v7220 = vunpack.c.h.b16 %v5998
        %v7221 = vunpack.c.l.b16 %v5999
        %v7222 = vunpack.c.h.b16 %v5999
        %v7223 = vunpack.c.l.b16 %v6000
        %v7224 = vunpack.c.h.b16 %v6000
        %v7225 = vunpack.c.l.b16 %v6001
        %v7226 = vunpack.c.h.b16 %v6001
        %v7227 = vunpack.c.l.b16 %v6002
        %v7228 = vunpack.c.h.b16 %v6002
        %v7229 = vunpack.c.l.b16 %v6003
        %v7230 = vunpack.c.h.b16 %v6003
        %v7231 = vunpack.c.l.b16 %v6004
        %v7232 = vunpack.c.h.b16 %v6004
        %v7233 = vunpack.c.l.b16 %v6005
        %v7234 = vunpack.c.h.b16 %v6005
        %v7235 = vunpack.c.l.b16 %v6006
        %v7236 = vunpack.c.h.b16 %v6006
        %v7237 = vunpack.c.l.b16 %v6007
        %v7238 = vunpack.c.h.b16 %v6007
        %v7239 = vunpack.c.l.b16 %v6008
        %v7240 = vunpack.c.h.b16 %v6008
        %v7241 = vunpack.c.l.b16 %v6009
        %v7242 = vunpack.c.h.b16 %v6009
        %v7243 = vunpack.c.l.b16 %v6010
        %v7244 = vunpack.c.h.b16 %v6010
        %v7245 = vunpack.c.l.b16 %v6011
        %v7246 = vunpack.c.h.b16 %v6011
        %v7247 = vunpack.c.l.b16 %v6012
        %v7248 = vunpack.c.h.b16 %v6012
        %v7249 = vunpack.c.l.b16 %v6013
        %v7250 = vunpack.c.h.b16 %v6013
        %v7251 = vunpack.c.l.b16 %v6014
        %v7252 = vunpack.c.h.b16 %v6014
        %v7253 = vunpack.c.l.b16 %v6015
        %v7254 = vunpack.c.h.b16 %v6015
        %v7255 = vunpack.c.l.b16 %v6016
        %v7256 = vunpack.c.h.b16 %v6016
        %v7257 = vunpack.c.l.b16 %v6017
        %v7258 = vunpack.c.h.b16 %v6017
        %v7259 = vunpack.c.l.b16 %v6018
        %v7260 = vunpack.c.h.b16 %v6018
        %v7261 = vunpack.c.l.b16 %v6019
        %v7262 = vunpack.c.h.b16 %v6019
        %v7263 = vunpack.c.l.b16 %v6020
        %v7264 = vunpack.c.h.b16 %v6020
        %v7265 = vunpack.c.l.b16 %v6021
        %v7266 = vunpack.c.h.b16 %v6021
        %v7267 = vunpack.c.l.b16 %v6022
        %v7268 = vunpack.c.h.b16 %v6022
        %v7269 = vunpack.c.l.b16 %v6023
        %v7270 = vunpack.c.h.b16 %v6023
        %v7271 = vunpack.c.l.b16 %v6024
        %v7272 = vunpack.c.h.b16 %v6024
        %v7273 = vunpack.c.l.b16 %v6025
        %v7274 = vunpack.c.h.b16 %v6025
        %v7275 = vunpack.c.l.b16 %v6026
        %v7276 = vunpack.c.h.b16 %v6026
        %v7277 = vunpack.c.l.b16 %v6027
        %v7278 = vunpack.c.h.b16 %v6027
        %v7279 = vunpack.c.l.b16 %v6028
        %v7280 = vunpack.c.h.b16 %v6028
        %v7281 = vunpack.c.l.b16 %v6029
        %v7282 = vunpack.c.h.b16 %v6029
        %v7283 = vunpack.c.l.b16 %v6030
        %v7284 = vunpack.c.h.b16 %v6030
        %v7285 = vunpack.c.l.b16 %v6031
        %v7286 = vunpack.c.h.b16 %v6031
        %v7287 = vunpack.c.l.b16 %v6032
        %v7288 = vunpack.c.h.b16 %v6032
        %v7289 = vunpack.c.l.b16 %v6033
        %v7290 = vunpack.c.h.b16 %v6033
        %v7291 = vunpack.c.l.b16 %v6034
        %v7292 = vunpack.c.h.b16 %v6034
        %v7293 = vunpack.c.l.b16 %v6035
        %v7294 = vunpack.c.h.b16 %v6035
        %v7295 = vunpack.c.l.b16 %v6036
        %v7296 = vunpack.c.h.b16 %v6036
        %v7297 = vunpack.c.l.b16 %v6037
        %v7298 = vunpack.c.h.b16 %v6037
        %v7299 = vunpack.c.l.b16 %v6038
        %v7300 = vunpack.c.h.b16 %v6038
        %v7301 = vunpack.c.l.b16 %v6039
        %v7302 = vunpack.c.h.b16 %v6039
        %v7303 = vunpack.c.l.b16 %v6040
        %v7304 = vunpack.c.h.b16 %v6040
        %v7305 = vunpack.c.l.b16 %v6041
        %v7306 = vunpack.c.h.b16 %v6041
        %v7307 = vunpack.c.l.b16 %v6042
        %v7308 = vunpack.c.h.b16 %v6042
        %v7309 = vunpack.c.l.b16 %v6043
        %v7310 = vunpack.c.h.b16 %v6043
        %v7311 = vunpack.c.l.b16 %v6044
        %v7312 = vunpack.c.h.b16 %v6044
        %v7313 = vunpack.c.l.b16 %v6045
        %v7314 = vunpack.c.h.b16 %v6045
        %v7315 = vunpack.c.l.b16 %v6046
        %v7316 = vunpack.c.h.b16 %v6046
        %v7317 = vunpack.c.l.b16 %v6047
        %v7318 = vunpack.c.h.b16 %v6047
        %v7319 = vunpack.c.l.b16 %v6048
        %v7320 = vunpack.c.h.b16 %v6048
        %v7321 = vunpack.c.l.b16 %v6049
        %v7322 = vunpack.c.h.b16 %v6049
        %v7323 = vunpack.c.l.b16 %v6050
        %v7324 = vunpack.c.h.b16 %v6050
        %v7325 = vunpack.c.l.b16 %v6051
        %v7326 = vunpack.c.h.b16 %v6051
        %v7327 = vunpack.c.l.b16 %v6052
        %v7328 = vunpack.c.h.b16 %v6052
        %v7329 = vunpack.c.l.b16 %v6053
        %v7330 = vunpack.c.h.b16 %v6053
        %v7331 = vunpack.c.l.b16 %v6054
        %v7332 = vunpack.c.h.b16 %v6054
        %v7333 = vunpack.c.l.b16 %v6055
        %v7334 = vunpack.c.h.b16 %v6055
        %v7335 = vunpack.c.l.b16 %v6056
        %v7336 = vunpack.c.h.b16 %v6056
        %v7337 = vunpack.c.l.b16 %v6057
        %v7338 = vunpack.c.h.b16 %v6057
        %v7339 = vunpack.c.l.b16 %v6058
        %v7340 = vunpack.c.h.b16 %v6058
        %v7341 = vunpack.c.l.b16 %v6059
        %v7342 = vunpack.c.h.b16 %v6059
        %v7343 = vunpack.c.l.b16 %v6060
        %v7344 = vunpack.c.h.b16 %v6060
        %v7345 = vunpack.c.l.b16 %v6061
        %v7346 = vunpack.c.h.b16 %v6061
        %v7347 = vunpack.c.l.b16 %v6062
        %v7348 = vunpack.c.h.b16 %v6062
        %v7349 = vunpack.c.l.b16 %v6063
        %v7350 = vunpack.c.h.b16 %v6063
        %v7351 = vunpack.c.l.b16 %v6064
        %v7352 = vunpack.c.h.b16 %v6064
        %v7353 = vunpack.c.l.b16 %v6065
        %v7354 = vunpack.c.h.b16 %v6065
        %v7355 = vunpack.c.l.b16 %v6066
        %v7356 = vunpack.c.h.b16 %v6066
        %v7357 = vunpack.c.l.b16 %v6067
        %v7358 = vunpack.c.h.b16 %v6067
        %v7359 = vunpack.c.l.b16 %v6068
        %v7360 = vunpack.c.h.b16 %v6068
        %v7361 = vunpack.c.l.b16 %v6069
        %v7362 = vunpack.c.h.b16 %v6069
        %v7363 = vunpack.c.l.b16 %v6070
        %v7364 = vunpack.c.h.b16 %v6070
        %v7365 = vunpack.c.l.b16 %v6071
        %v7366 = vunpack.c.h.b16 %v6071
        %v7367 = vunpack.c.l.b16 %v6072
        %v7368 = vunpack.c.h.b16 %v6072
        %v7369 = vunpack.c.l.b16 %v6073
        %v7370 = vunpack.c.h.b16 %v6073
        %v7371 = vunpack.c.l.b16 %v6074
        %v7372 = vunpack.c.h.b16 %v6074
        %v7373 = vunpack.c.l.b16 %v6075
        %v7374 = vunpack.c.h.b16 %v6075
        %v7375 = vunpack.c.l.b16 %v6076
        %v7376 = vunpack.c.h.b16 %v6076
        %v7377 = vunpack.c.l.b16 %v6077
        %v7378 = vunpack.c.h.b16 %v6077
        %v7379 = vunpack.c.l.b16 %v6078
        %v7380 = vunpack.c.h.b16 %v6078
        %v7381 = vunpack.c.l.b16 %v6079
        %v7382 = vunpack.c.h.b16 %v6079
        %v7383 = vunpack.c.l.b16 %v6080
        %v7384 = vunpack.c.h.b16 %v6080
        %v7385 = vunpack.c.l.b16 %v6081
        %v7386 = vunpack.c.h.b16 %v6081
        %v7387 = vunpack.c.l.b16 %v6082
        %v7388 = vunpack.c.h.b16 %v6082
        %v7389 = vunpack.c.l.b16 %v6083
        %v7390 = vunpack.c.h.b16 %v6083
        %v7391 = vunpack.c.l.b16 %v6084
        %v7392 = vunpack.c.h.b16 %v6084
        %v7393 = vunpack.c.l.b16 %v6085
        %v7394 = vunpack.c.h.b16 %v6085
        %v7395 = vunpack.c.l.b16 %v6086
        %v7396 = vunpack.c.h.b16 %v6086
        %v7397 = vunpack.c.l.b16 %v6087
        %v7398 = vunpack.c.h.b16 %v6087
        %v7399 = vunpack.c.l.b16 %v6088
        %v7400 = vunpack.c.h.b16 %v6088
        %v7401 = vunpack.c.l.b16 %v6089
        %v7402 = vunpack.c.h.b16 %v6089
        %v7403 = vunpack.c.l.b16 %v6090
        %v7404 = vunpack.c.h.b16 %v6090
        %v7405 = vunpack.c.l.b16 %v6091
        %v7406 = vunpack.c.h.b16 %v6091
        %v7407 = vunpack.c.l.b16 %v6092
        %v7408 = vunpack.c.h.b16 %v6092
        %v7409 = vunpack.c.l.b16 %v6093
        %v7410 = vunpack.c.h.b16 %v6093
        %v7411 = vunpack.c.l.b16 %v6094
        %v7412 = vunpack.c.h.b16 %v6094
        %v7413 = vunpack.c.l.b16 %v6095
        %v7414 = vunpack.c.h.b16 %v6095
        %v7415 = vunpack.c.l.b16 %v6096
        %v7416 = vunpack.c.h.b16 %v6096
        %v7417 = vunpack.c.l.b16 %v6097
        %v7418 = vunpack.c.h.b16 %v6097
        %v7419 = vunpack.c.l.b16 %v6098
        %v7420 = vunpack.c.h.b16 %v6098
        %v7421 = vunpack.c.l.b16 %v6099
        %v7422 = vunpack.c.h.b16 %v6099
        %v7423 = vunpack.c.l.b16 %v6100
        %v7424 = vunpack.c.h.b16 %v6100
        %v7425 = vunpack.c.l.b16 %v6101
        %v7426 = vunpack.c.h.b16 %v6101
        %v7427 = vunpack.c.l.b16 %v6102
        %v7428 = vunpack.c.h.b16 %v6102
        %v7429 = vunpack.c.l.b16 %v6103
        %v7430 = vunpack.c.h.b16 %v6103
        %v7431 = vunpack.c.l.b16 %v6104
        %v7432 = vunpack.c.h.b16 %v6104
        %v7433 = vunpack.c.l.b16 %v6105
        %v7434 = vunpack.c.h.b16 %v6105
        %v7435 = vunpack.c.l.b16 %v6106
        %v7436 = vunpack.c.h.b16 %v6106
        %v7437 = vunpack.c.l.b16 %v6107
        %v7438 = vunpack.c.h.b16 %v6107
        %v7439 = vunpack.c.l.b16 %v6108
        %v7440 = vunpack.c.h.b16 %v6108
        %v7441 = vunpack.c.l.b16 %v6109
        %v7442 = vunpack.c.h.b16 %v6109
        %v7443 = vunpack.c.l.b16 %v6110
        %v7444 = vunpack.c.h.b16 %v6110
        %v7445 = vunpack.c.l.b16 %v6111
        %v7446 = vunpack.c.h.b16 %v6111
        %v7447 = vunpack.c.l.b16 %v6112
        %v7448 = vunpack.c.h.b16 %v6112
        %v7449 = vunpack.c.l.b16 %v6113
        %v7450 = vunpack.c.h.b16 %v6113
        %v7451 = vunpack.c.l.b16 %v6114
        %v7452 = vunpack.c.h.b16 %v6114
        %v7453 = vunpack.c.l.b16 %v6115
        %v7454 = vunpack.c.h.b16 %v6115
        %v7455 = vunpack.c.l.b16 %v6116
        %v7456 = vunpack.c.h.b16 %v6116
        %v7457 = vunpack.c.l.b16 %v6117
        %v7458 = vunpack.c.h.b16 %v6117
        %v7459 = vunpack.c.l.b16 %v6118
        %v7460 = vunpack.c.h.b16 %v6118
        %v7461 = vunpack.c.l.b16 %v6119
        %v7462 = vunpack.c.h.b16 %v6119
        %v7463 = vunpack.c.l.b16 %v6120
        %v7464 = vunpack.c.h.b16 %v6120
        %v7465 = vpack.c.b16 %v7217, %v7209
        %v7466 = vpack.c.b16 %v7218, %v7210
        %v7467 = vpack.c.b16 %v7219, %v7211
        %v7468 = vpack.c.b16 %v7220, %v7212
        %v7469 = vpack.c.b16 %v7221, %v7213
        %v7470 = vpack.c.b16 %v7222, %v7214
        %v7471 = vpack.c.b16 %v7223, %v7215
        %v7472 = vpack.c.b16 %v7224, %v7216
        %v7473 = vpack.c.b16 %v7233, %v7225
        %v7474 = vpack.c.b16 %v7234, %v7226
        %v7475 = vpack.c.b16 %v7235, %v7227
        %v7476 = vpack.c.b16 %v7236, %v7228
        %v7477 = vpack.c.b16 %v7237, %v7229
        %v7478 = vpack.c.b16 %v7238, %v7230
        %v7479 = vpack.c.b16 %v7239, %v7231
        %v7480 = vpack.c.b16 %v7240, %v7232
        %v7481 = vpack.c.b16 %v7249, %v7241
        %v7482 = vpack.c.b16 %v7250, %v7242
        %v7483 = vpack.c.b16 %v7251, %v7243
        %v7484 = vpack.c.b16 %v7252, %v7244
        %v7485 = vpack.c.b16 %v7253, %v7245
        %v7486 = vpack.c.b16 %v7254, %v7246
        %v7487 = vpack.c.b16 %v7255, %v7247
        %v7488 = vpack.c.b16 %v7256, %v7248
        %v7489 = vpack.c.b16 %v7265, %v7257
        %v7490 = vpack.c.b16 %v7266, %v7258
        %v7491 = vpack.c.b16 %v7267, %v7259
        %v7492 = vpack.c.b16 %v7268, %v7260
        %v7493 = vpack.c.b16 %v7269, %v7261
        %v7494 = vpack.c.b16 %v7270, %v7262
        %v7495 = vpack.c.b16 %v7271, %v7263
        %v7496 = vpack.c.b16 %v7272, %v7264
        %v7497 = vpack.c.b16 %v7281, %v7273
        %v7498 = vpack.c.b16 %v7282, %v7274
        %v7499 = vpack.c.b16 %v7283, %v7275
        %v7500 = vpack.c.b16 %v7284, %v7276
        %v7501 = vpack.c.b16 %v7285, %v7277
        %v7502 = vpack.c.b16 %v7286, %v7278
        %v7503 = vpack.c.b16 %v7287, %v7279
        %v7504 = vpack.c.b16 %v7288, %v7280
        %v7505 = vpack.c.b16 %v7297, %v7289
        %v7506 = vpack.c.b16 %v7298, %v7290
        %v7507 = vpack.c.b16 %v7299, %v7291
        %v7508 = vpack.c.b16 %v7300, %v7292
        %v7509 = vpack.c.b16 %v7301, %v7293
        %v7510 = vpack.c.b16 %v7302, %v7294
        %v7511 = vpack.c.b16 %v7303, %v7295
        %v7512 = vpack.c.b16 %v7304, %v7296
        %v7513 = vpack.c.b16 %v7313, %v7305
        %v7514 = vpack.c.b16 %v7314, %v7306
        %v7515 = vpack.c.b16 %v7315, %v7307
        %v7516 = vpack.c.b16 %v7316, %v7308
        %v7517 = vpack.c.b16 %v7317, %v7309
        %v7518 = vpack.c.b16 %v7318, %v7310
        %v7519 = vpack.c.b16 %v7319, %v7311
        %v7520 = vpack.c.b16 %v7320, %v7312
        %v7521 = vpack.c.b16 %v7329, %v7321
        %v7522 = vpack.c.b16 %v7330, %v7322
        %v7523 = vpack.c.b16 %v7331, %v7323
        %v7524 = vpack.c.b16 %v7332, %v7324
        %v7525 = vpack.c.b16 %v7333, %v7325
        %v7526 = vpack.c.b16 %v7334, %v7326
        %v7527 = vpack.c.b16 %v7335, %v7327
        %v7528 = vpack.c.b16 %v7336, %v7328
        %v7529 = vpack.c.b16 %v7345, %v7337
        %v7530 = vpack.c.b16 %v7346, %v7338
        %v7531 = vpack.c.b16 %v7347, %v7339
        %v7532 = vpack.c.b16 %v7348, %v7340
        %v7533 = vpack.c.b16 %v7349, %v7341
        %v7534 = vpack.c.b16 %v7350, %v7342
        %v7535 = vpack.c.b16 %v7351, %v7343
        %v7536 = vpack.c.b16 %v7352, %v7344
        %v7537 = vpack.c.b16 %v7361, %v7353
        %v7538 = vpack.c.b16 %v7362, %v7354
        %v7539 = vpack.c.b16 %v7363, %v7355
        %v7540 = vpack.c.b16 %v7364, %v7356
        %v7541 = vpack.c.b16 %v7365, %v7357
        %v7542 = vpack.c.b16 %v7366, %v7358
        %v7543 = vpack.c.b16 %v7367, %v7359
        %v7544 = vpack.c.b16 %v7368, %v7360
        %v7545 = vpack.c.b16 %v7377, %v7369
        %v7546 = vpack.c.b16 %v7378, %v7370
        %v7547 = vpack.c.b16 %v7379, %v7371
        %v7548 = vpack.c.b16 %v7380, %v7372
        %v7549 = vpack.c.b16 %v7381, %v7373
        %v7550 = vpack.c.b16 %v7382, %v7374
        %v7551 = vpack.c.b16 %v7383, %v7375
        %v7552 = vpack.c.b16 %v7384, %v7376
        %v7553 = vpack.c.b16 %v7393, %v7385
        %v7554 = vpack.c.b16 %v7394, %v7386
        %v7555 = vpack.c.b16 %v7395, %v7387
        %v7556 = vpack.c.b16 %v7396, %v7388
        %v7557 = vpack.c.b16 %v7397, %v7389
        %v7558 = vpack.c.b16 %v7398, %v7390
        %v7559 = vpack.c.b16 %v7399, %v7391
        %v7560 = vpack.c.b16 %v7400, %v7392
        %v7561 = vpack.c.b16 %v7409, %v7401
        %v7562 = vpack.c.b16 %v7410, %v7402
        %v7563 = vpack.c.b16 %v7411, %v7403
        %v7564 = vpack.c.b16 %v7412, %v7404
        %v7565 = vpack.c.b16 %v7413, %v7405
        %v7566 = vpack.c.b16 %v7414, %v7406
        %v7567 = vpack.c.b16 %v7415, %v7407
        %v7568 = vpack.c.b16 %v7416, %v7408
        %v7569 = vpack.c.b16 %v7425, %v7417
        %v7570 = vpack.c.b16 %v7426, %v7418
        %v7571 = vpack.c.b16 %v7427, %v7419
        %v7572 = vpack.c.b16 %v7428, %v7420
        %v7573 = vpack.c.b16 %v7429, %v7421
        %v7574 = vpack.c.b16 %v7430, %v7422
        %v7575 = vpack.c.b16 %v7431, %v7423
        %v7576 = vpack.c.b16 %v7432, %v7424
        %v7577 = vpack.c.b16 %v7441, %v7433
        %v7578 = vpack.c.b16 %v7442, %v7434
        %v7579 = vpack.c.b16 %v7443, %v7435
        %v7580 = vpack.c.b16 %v7444, %v7436
        %v7581 = vpack.c.b16 %v7445, %v7437
        %v7582 = vpack.c.b16 %v7446, %v7438
        %v7583 = vpack.c.b16 %v7447, %v7439
        %v7584 = vpack.c.b16 %v7448, %v7440
        %v7585 = vpack.c.b16 %v7457, %v7449
        %v7586 = vpack.c.b16 %v7458, %v7450
        %v7587 = vpack.c.b16 %v7459, %v7451
        %v7588 = vpack.c.b16 %v7460, %v7452
        %v7589 = vpack.c.b16 %v7461, %v7453
        %v7590 = vpack.c.b16 %v7462, %v7454
        %v7591 = vpack.c.b16 %v7463, %v7455
        %v7592 = vpack.c.b16 %v7464, %v7456
        %7721 = vmatprep.subr.bf16.mxu0 %v7466
        %7722 = vmatpush1.bf16.msra.mxu0 %v7465
        %7723 = vmatprep.subr.bf16.mxu0 %v7474
        %7724 = vmatpush1.bf16.msra.mxu0 %v7473
        %7725 = vmatprep.subr.bf16.mxu0 %v7482
        %7726 = vmatpush1.bf16.msra.mxu0 %v7481
        %7727 = vmatprep.subr.bf16.mxu0 %v7490
        %7728 = vmatpush1.bf16.msra.mxu0 %v7489
        %7729 = vmatprep.subr.bf16.mxu0 %v7498
        %7730 = vmatpush1.bf16.msra.mxu0 %v7497
        %7731 = vmatprep.subr.bf16.mxu0 %v7506
        %7732 = vmatpush1.bf16.msra.mxu0 %v7505
        %7733 = vmatprep.subr.bf16.mxu0 %v7514
        %7734 = vmatpush1.bf16.msra.mxu0 %v7513
        %7735 = vmatprep.subr.bf16.mxu0 %v7522
        %7736 = vmatpush1.bf16.msra.mxu0 %v7521
        %7737 = vmatprep.subr.bf16.mxu0 %v7530
        %7738 = vmatpush1.bf16.msra.mxu0 %v7529
        %7739 = vmatprep.subr.bf16.mxu0 %v7538
        %7740 = vmatpush1.bf16.msra.mxu0 %v7537
        %7741 = vmatprep.subr.bf16.mxu0 %v7546
        %7742 = vmatpush1.bf16.msra.mxu0 %v7545
        %7743 = vmatprep.subr.bf16.mxu0 %v7554
        %7744 = vmatpush1.bf16.msra.mxu0 %v7553
        %7745 = vmatprep.subr.bf16.mxu0 %v7562
        %7746 = vmatpush1.bf16.msra.mxu0 %v7561
        %7747 = vmatprep.subr.bf16.mxu0 %v7570
        %7748 = vmatpush1.bf16.msra.mxu0 %v7569
        %7749 = vmatprep.subr.bf16.mxu0 %v7578
        %7750 = vmatpush1.bf16.msra.mxu0 %v7577
        %7751 = vmatprep.subr.bf16.mxu0 %v7586
        %7752 = vmatpush1.bf16.msra.mxu0 %v7585
        %7753 = vmatprep.mubr.bf16.mxu0 %v7078
        %7754 = vmatmul.mubr.bf16.gmra.mrb[0].mxu0 %v7077
        %v7755 = vpop.f32.mrb[0].mxu0
        %v7756 = vadd.f32 %v6934, %v7755
        %v7757 = vpop.f32.mrb[0].mxu0
        %v7758 = vadd.f32 %v6936, %v7757
        %v7759 = vpop.f32.mrb[0].mxu0
        %v7760 = vadd.f32 %v6938, %v7759
        %v7761 = vpop.f32.mrb[0].mxu0
        %v7762 = vadd.f32 %v6940, %v7761
        %7763 = vdwg.mxu0
        %7764 = vmatprep.subr.bf16.mxu0 %v7468
        %7765 = vmatpush1.bf16.msra.mxu0 %v7467
        %7766 = vmatprep.subr.bf16.mxu0 %v7476
        %7767 = vmatpush1.bf16.msra.mxu0 %v7475
        %7768 = vmatprep.subr.bf16.mxu0 %v7484
        %7769 = vmatpush1.bf16.msra.mxu0 %v7483
        %7770 = vmatprep.subr.bf16.mxu0 %v7492
        %7771 = vmatpush1.bf16.msra.mxu0 %v7491
        %7772 = vmatprep.subr.bf16.mxu0 %v7500
        %7773 = vmatpush1.bf16.msra.mxu0 %v7499
        %7774 = vmatprep.subr.bf16.mxu0 %v7508
        %7775 = vmatpush1.bf16.msra.mxu0 %v7507
        %7776 = vmatprep.subr.bf16.mxu0 %v7516
        %7777 = vmatpush1.bf16.msra.mxu0 %v7515
        %7778 = vmatprep.subr.bf16.mxu0 %v7524
        %7779 = vmatpush1.bf16.msra.mxu0 %v7523
        %7780 = vmatprep.subr.bf16.mxu0 %v7532
        %7781 = vmatpush1.bf16.msra.mxu0 %v7531
        %7782 = vmatprep.subr.bf16.mxu0 %v7540
        %7783 = vmatpush1.bf16.msra.mxu0 %v7539
        %7784 = vmatprep.subr.bf16.mxu0 %v7548
        %7785 = vmatpush1.bf16.msra.mxu0 %v7547
        %7786 = vmatprep.subr.bf16.mxu0 %v7556
        %7787 = vmatpush1.bf16.msra.mxu0 %v7555
        %7788 = vmatprep.subr.bf16.mxu0 %v7564
        %7789 = vmatpush1.bf16.msra.mxu0 %v7563
        %7790 = vmatprep.subr.bf16.mxu0 %v7572
        %7791 = vmatpush1.bf16.msra.mxu0 %v7571
        %7792 = vmatprep.subr.bf16.mxu0 %v7580
        %7793 = vmatpush1.bf16.msra.mxu0 %v7579
        %7794 = vmatprep.subr.bf16.mxu0 %v7588
        %7795 = vmatpush1.bf16.msra.mxu0 %v7587
        %7796 = vmatprep.mubr.bf16.mxu0 %v7078
        %7797 = vmatmul.mubr.bf16.gmra.mrb[0].mxu0 %v7077
        %v7798 = vpop.f32.mrb[0].mxu0
        %v7799 = vadd.f32 %v6977, %v7798
        %v7800 = vpop.f32.mrb[0].mxu0
        %v7801 = vadd.f32 %v6979, %v7800
        %v7802 = vpop.f32.mrb[0].mxu0
        %v7803 = vadd.f32 %v6981, %v7802
        %v7804 = vpop.f32.mrb[0].mxu0
        %v7805 = vadd.f32 %v6983, %v7804
        %7806 = vdwg.mxu0
        %7807 = vmatprep.subr.bf16.mxu0 %v7470
        %7808 = vmatpush1.bf16.msra.mxu0 %v7469
        %7809 = vmatprep.subr.bf16.mxu0 %v7478
        %7810 = vmatpush1.bf16.msra.mxu0 %v7477
        %7811 = vmatprep.subr.bf16.mxu0 %v7486
        %7812 = vmatpush1.bf16.msra.mxu0 %v7485
        %7813 = vmatprep.subr.bf16.mxu0 %v7494
        %7814 = vmatpush1.bf16.msra.mxu0 %v7493
        %7815 = vmatprep.subr.bf16.mxu0 %v7502
        %7816 = vmatpush1.bf16.msra.mxu0 %v7501
        %7817 = vmatprep.subr.bf16.mxu0 %v7510
        %7818 = vmatpush1.bf16.msra.mxu0 %v7509
        %7819 = vmatprep.subr.bf16.mxu0 %v7518
        %7820 = vmatpush1.bf16.msra.mxu0 %v7517
        %7821 = vmatprep.subr.bf16.mxu0 %v7526
        %7822 = vmatpush1.bf16.msra.mxu0 %v7525
        %7823 = vmatprep.subr.bf16.mxu0 %v7534
        %7824 = vmatpush1.bf16.msra.mxu0 %v7533
        %7825 = vmatprep.subr.bf16.mxu0 %v7542
        %7826 = vmatpush1.bf16.msra.mxu0 %v7541
        %7827 = vmatprep.subr.bf16.mxu0 %v7550
        %7828 = vmatpush1.bf16.msra.mxu0 %v7549
        %7829 = vmatprep.subr.bf16.mxu0 %v7558
        %7830 = vmatpush1.bf16.msra.mxu0 %v7557
        %7831 = vmatprep.subr.bf16.mxu0 %v7566
        %7832 = vmatpush1.bf16.msra.mxu0 %v7565
        %7833 = vmatprep.subr.bf16.mxu0 %v7574
        %7834 = vmatpush1.bf16.msra.mxu0 %v7573
        %7835 = vmatprep.subr.bf16.mxu0 %v7582
        %7836 = vmatpush1.bf16.msra.mxu0 %v7581
        %7837 = vmatprep.subr.bf16.mxu0 %v7590
        %7838 = vmatpush1.bf16.msra.mxu0 %v7589
        %7839 = vmatprep.mubr.bf16.mxu0 %v7078
        %7840 = vmatmul.mubr.bf16.gmra.mrb[0].mxu0 %v7077
        %v7841 = vpop.f32.mrb[0].mxu0
        %v7842 = vadd.f32 %v7020, %v7841
        %v7843 = vpop.f32.mrb[0].mxu0
        %v7844 = vadd.f32 %v7022, %v7843
        %v7845 = vpop.f32.mrb[0].mxu0
        %v7846 = vadd.f32 %v7024, %v7845
        %v7847 = vpop.f32.mrb[0].mxu0
        %v7848 = vadd.f32 %v7026, %v7847
        %7849 = vdwg.mxu0
        %7850 = vmatprep.subr.bf16.mxu0 %v7472
        %7851 = vmatpush1.bf16.msra.mxu0 %v7471
        %7852 = vmatprep.subr.bf16.mxu0 %v7480
        %7853 = vmatpush1.bf16.msra.mxu0 %v7479
        %7854 = vmatprep.subr.bf16.mxu0 %v7488
        %7855 = vmatpush1.bf16.msra.mxu0 %v7487
        %7856 = vmatprep.subr.bf16.mxu0 %v7496
        %7857 = vmatpush1.bf16.msra.mxu0 %v7495
        %7858 = vmatprep.subr.bf16.mxu0 %v7504
        %7859 = vmatpush1.bf16.msra.mxu0 %v7503
        %7860 = vmatprep.subr.bf16.mxu0 %v7512
        %7861 = vmatpush1.bf16.msra.mxu0 %v7511
        %7862 = vmatprep.subr.bf16.mxu0 %v7520
        %7863 = vmatpush1.bf16.msra.mxu0 %v7519
        %7864 = vmatprep.subr.bf16.mxu0 %v7528
        %7865 = vmatpush1.bf16.msra.mxu0 %v7527
        %7866 = vmatprep.subr.bf16.mxu0 %v7536
        %7867 = vmatpush1.bf16.msra.mxu0 %v7535
        %7868 = vmatprep.subr.bf16.mxu0 %v7544
        %7869 = vmatpush1.bf16.msra.mxu0 %v7543
        %7870 = vmatprep.subr.bf16.mxu0 %v7552
        %7871 = vmatpush1.bf16.msra.mxu0 %v7551
        %7872 = vmatprep.subr.bf16.mxu0 %v7560
        %7873 = vmatpush1.bf16.msra.mxu0 %v7559
        %7874 = vmatprep.subr.bf16.mxu0 %v7568
        %7875 = vmatpush1.bf16.msra.mxu0 %v7567
        %7876 = vmatprep.subr.bf16.mxu0 %v7576
        %7877 = vmatpush1.bf16.msra.mxu0 %v7575
        %7878 = vmatprep.subr.bf16.mxu0 %v7584
        %7879 = vmatpush1.bf16.msra.mxu0 %v7583
        %7880 = vmatprep.subr.bf16.mxu0 %v7592
        %7881 = vmatpush1.bf16.msra.mxu0 %v7591
        %7882 = vmatprep.mubr.bf16.mxu0 %v7078
        %7883 = vmatmul.mubr.bf16.gmra.mrb[0].mxu0 %v7077
        %v7884 = vpop.f32.mrb[0].mxu0
        %v7885 = vadd.f32 %v7063, %v7884
        %v7886 = vpop.f32.mrb[0].mxu0
        %v7887 = vadd.f32 %v7065, %v7886
        %v7888 = vpop.f32.mrb[0].mxu0
        %v7889 = vadd.f32 %v7067, %v7888
        %v7890 = vpop.f32.mrb[0].mxu0
        %v7891 = vadd.f32 %v7069, %v7890
        %7892 = vdwg.mxu0
        %v7893 = vld [vmem:[%s13] sm:$0xff]
        %v7895 = vlaneseq
        %v7896 = vshrl.u32 %v7895, 7
        %v7897 = vsub.s32 0, %v7896
        %v7898 = vrot.slane %v7893, %v7897
        %v7899 = vlaneseq
        %v7900 = vshrl.u32 %v7899, 7
        %v7901 = vsub.s32 1, %v7900
        %v7902 = vrot.slane %v7893, %v7901
        %v7903 = vlaneseq
        %v7904 = vshrl.u32 %v7903, 7
        %v7905 = vsub.s32 2, %v7904
        %v7906 = vrot.slane %v7893, %v7905
        %v7907 = vlaneseq
        %v7908 = vshrl.u32 %v7907, 7
        %v7909 = vsub.s32 3, %v7908
        %v7910 = vrot.slane %v7893, %v7909
        %v7911 = vlaneseq
        %v7912 = vshrl.u32 %v7911, 7
        %v7913 = vsub.s32 4, %v7912
        %v7914 = vrot.slane %v7893, %v7913
        %v7915 = vlaneseq
        %v7916 = vshrl.u32 %v7915, 7
        %v7917 = vsub.s32 5, %v7916
        %v7918 = vrot.slane %v7893, %v7917
        %v7919 = vlaneseq
        %v7920 = vshrl.u32 %v7919, 7
        %v7921 = vsub.s32 6, %v7920
        %v7922 = vrot.slane %v7893, %v7921
        %v7923 = vlaneseq
        %v7924 = vshrl.u32 %v7923, 7
        %v7925 = vsub.s32 7, %v7924
        %v7926 = vrot.slane %v7893, %v7925
        %v7935 = vadd.f32 %v7756, %v7898
        %v7936 = vadd.f32 %v7758, %v7902
        %v7937 = vadd.f32 %v7799, %v7906
        %v7938 = vadd.f32 %v7801, %v7910
        %v7939 = vadd.f32 %v7842, %v7914
        %v7940 = vadd.f32 %v7844, %v7918
        %v7941 = vadd.f32 %v7885, %v7922
        %v7942 = vadd.f32 %v7887, %v7926
        %v7943 = vadd.f32 %v7760, %v7898
        %v7944 = vadd.f32 %v7762, %v7902
        %v7945 = vadd.f32 %v7803, %v7906
        %v7946 = vadd.f32 %v7805, %v7910
        %v7947 = vadd.f32 %v7846, %v7914
        %v7948 = vadd.f32 %v7848, %v7918
        %v7949 = vadd.f32 %v7889, %v7922
        %v7950 = vadd.f32 %v7891, %v7926
        %vm7951 = vcmp.ge.f32.partialorder %v7935, 0.0
        %vm7952 = vcmp.ge.f32.partialorder %v7936, 0.0
        %vm7953 = vcmp.ge.f32.partialorder %v7937, 0.0
        %vm7954 = vcmp.ge.f32.partialorder %v7938, 0.0
        %vm7955 = vcmp.ge.f32.partialorder %v7939, 0.0
        %vm7956 = vcmp.ge.f32.partialorder %v7940, 0.0
        %vm7957 = vcmp.ge.f32.partialorder %v7941, 0.0
        %vm7958 = vcmp.ge.f32.partialorder %v7942, 0.0
        %vm7959 = vcmp.ge.f32.partialorder %v7943, 0.0
        %vm7960 = vcmp.ge.f32.partialorder %v7944, 0.0
        %vm7961 = vcmp.ge.f32.partialorder %v7945, 0.0
        %vm7962 = vcmp.ge.f32.partialorder %v7946, 0.0
        %vm7963 = vcmp.ge.f32.partialorder %v7947, 0.0
        %vm7964 = vcmp.ge.f32.partialorder %v7948, 0.0
        %vm7965 = vcmp.ge.f32.partialorder %v7949, 0.0
        %vm7966 = vcmp.ge.f32.partialorder %v7950, 0.0
        %v7967 = vmul.f32 %v7935, 0.01
        %v7968 = vmul.f32 %v7936, 0.01
        %v7969 = vmul.f32 %v7937, 0.01
        %v7970 = vmul.f32 %v7938, 0.01
        %v7971 = vmul.f32 %v7939, 0.01
        %v7972 = vmul.f32 %v7940, 0.01
        %v7973 = vmul.f32 %v7941, 0.01
        %v7974 = vmul.f32 %v7942, 0.01
        %v7975 = vmul.f32 %v7943, 0.01
        %v7976 = vmul.f32 %v7944, 0.01
        %v7977 = vmul.f32 %v7945, 0.01
        %v7978 = vmul.f32 %v7946, 0.01
        %v7979 = vmul.f32 %v7947, 0.01
        %v7980 = vmul.f32 %v7948, 0.01
        %v7981 = vmul.f32 %v7949, 0.01
        %v7982 = vmul.f32 %v7950, 0.01
        %v7983 = vsel %vm7951, %v7935, %v7967
        %v7984 = vsel %vm7952, %v7936, %v7968
        %v7985 = vsel %vm7953, %v7937, %v7969
        %v7986 = vsel %vm7954, %v7938, %v7970
        %v7987 = vsel %vm7955, %v7939, %v7971
        %v7988 = vsel %vm7956, %v7940, %v7972
        %v7989 = vsel %vm7957, %v7941, %v7973
        %v7990 = vsel %vm7958, %v7942, %v7974
        %v7991 = vsel %vm7959, %v7943, %v7975
        %v7992 = vsel %vm7960, %v7944, %v7976
        %v7993 = vsel %vm7961, %v7945, %v7977
        %v7994 = vsel %vm7962, %v7946, %v7978
        %v7995 = vsel %vm7963, %v7947, %v7979
        %v7996 = vsel %vm7964, %v7948, %v7980
        %v7997 = vsel %vm7965, %v7949, %v7981
        %v7998 = vsel %vm7966, %v7950, %v7982
        %v7999 = vpack.c.bf16 %v7991, %v7983
        %v8000 = vpack.c.bf16 %v7992, %v7984
        %v8001 = vpack.c.bf16 %v7993, %v7985
        %v8002 = vpack.c.bf16 %v7994, %v7986
        %v8003 = vpack.c.bf16 %v7995, %v7987
        %v8004 = vpack.c.bf16 %v7996, %v7988
        %v8005 = vpack.c.bf16 %v7997, %v7989
        %v8006 = vpack.c.bf16 %v7998, %v7990
        %v8007 = vld [vmem:[#allocation19] sm:$0xff]
        %v8008 = vld [vmem:[#allocation19 + $0x8] sm:$0xff]
        %v8009 = vld [vmem:[#allocation19 + $0x10] sm:$0xff]
        %v8010 = vld [vmem:[#allocation19 + $0x18] sm:$0xff]
        %v8011 = vld [vmem:[#allocation19 + $0x20] sm:$0xff]
        %v8012 = vld [vmem:[#allocation19 + $0x28] sm:$0xff]
        %v8013 = vld [vmem:[#allocation19 + $0x30] sm:$0xff]
        %v8014 = vld [vmem:[#allocation19 + $0x38] sm:$0xff]
        %v8015 = vld [vmem:[#allocation19 + $0x40] sm:$0xff]
        %v8016 = vld [vmem:[#allocation19 + $0x48] sm:$0xff]
        %v8017 = vld [vmem:[#allocation19 + $0x50] sm:$0xff]
        %v8018 = vld [vmem:[#allocation19 + $0x58] sm:$0xff]
        %v8019 = vld [vmem:[#allocation19 + $0x60] sm:$0xff]
        %v8020 = vld [vmem:[#allocation19 + $0x68] sm:$0xff]
        %v8021 = vld [vmem:[#allocation19 + $0x70] sm:$0xff]
        %v8022 = vld [vmem:[#allocation19 + $0x78] sm:$0xff]
        %v8023 = vld [vmem:[#allocation19 + $0x80] sm:$0xff]
        %v8024 = vld [vmem:[#allocation19 + $0x88] sm:$0xff]
        %v8025 = vld [vmem:[#allocation19 + $0x90] sm:$0xff]
        %v8026 = vld [vmem:[#allocation19 + $0x98] sm:$0xff]
        %v8027 = vld [vmem:[#allocation19 + $0xa0] sm:$0xff]
        %v8028 = vld [vmem:[#allocation19 + $0xa8] sm:$0xff]
        %v8029 = vld [vmem:[#allocation19 + $0xb0] sm:$0xff]
        %v8030 = vld [vmem:[#allocation19 + $0xb8] sm:$0xff]
        %v8031 = vld [vmem:[#allocation19 + $0xc0] sm:$0xff]
        %v8032 = vld [vmem:[#allocation19 + $0xc8] sm:$0xff]
        %v8033 = vld [vmem:[#allocation19 + $0xd0] sm:$0xff]
        %v8034 = vld [vmem:[#allocation19 + $0xd8] sm:$0xff]
        %v8035 = vld [vmem:[#allocation19 + $0xe0] sm:$0xff]
        %v8036 = vld [vmem:[#allocation19 + $0xe8] sm:$0xff]
        %v8037 = vld [vmem:[#allocation19 + $0xf0] sm:$0xff]
        %v8038 = vld [vmem:[#allocation19 + $0xf8] sm:$0xff]
        %v8039 = vld [vmem:[#allocation19 + $0x100] sm:$0xff]
        %v8040 = vld [vmem:[#allocation19 + $0x108] sm:$0xff]
        %v8041 = vld [vmem:[#allocation19 + $0x110] sm:$0xff]
        %v8042 = vld [vmem:[#allocation19 + $0x118] sm:$0xff]
        %v8043 = vld [vmem:[#allocation19 + $0x120] sm:$0xff]
        %v8044 = vld [vmem:[#allocation19 + $0x128] sm:$0xff]
        %v8045 = vld [vmem:[#allocation19 + $0x130] sm:$0xff]
        %v8046 = vld [vmem:[#allocation19 + $0x138] sm:$0xff]
        %v8047 = vld [vmem:[#allocation19 + $0x140] sm:$0xff]
        %v8048 = vld [vmem:[#allocation19 + $0x148] sm:$0xff]
        %v8049 = vld [vmem:[#allocation19 + $0x150] sm:$0xff]
        %v8050 = vld [vmem:[#allocation19 + $0x158] sm:$0xff]
        %v8051 = vld [vmem:[#allocation19 + $0x160] sm:$0xff]
        %v8052 = vld [vmem:[#allocation19 + $0x168] sm:$0xff]
        %v8053 = vld [vmem:[#allocation19 + $0x170] sm:$0xff]
        %v8054 = vld [vmem:[#allocation19 + $0x178] sm:$0xff]
        %v8055 = vld [vmem:[#allocation19 + $0x180] sm:$0xff]
        %v8056 = vld [vmem:[#allocation19 + $0x188] sm:$0xff]
        %v8057 = vld [vmem:[#allocation19 + $0x190] sm:$0xff]
        %v8058 = vld [vmem:[#allocation19 + $0x198] sm:$0xff]
        %v8059 = vld [vmem:[#allocation19 + $0x1a0] sm:$0xff]
        %v8060 = vld [vmem:[#allocation19 + $0x1a8] sm:$0xff]
        %v8061 = vld [vmem:[#allocation19 + $0x1b0] sm:$0xff]
        %v8062 = vld [vmem:[#allocation19 + $0x1b8] sm:$0xff]
        %v8063 = vld [vmem:[#allocation19 + $0x1c0] sm:$0xff]
        %v8064 = vld [vmem:[#allocation19 + $0x1c8] sm:$0xff]
        %v8065 = vld [vmem:[#allocation19 + $0x1d0] sm:$0xff]
        %v8066 = vld [vmem:[#allocation19 + $0x1d8] sm:$0xff]
        %v8067 = vld [vmem:[#allocation19 + $0x1e0] sm:$0xff]
        %v8068 = vld [vmem:[#allocation19 + $0x1e8] sm:$0xff]
        %v8069 = vld [vmem:[#allocation19 + $0x1f0] sm:$0xff]
        %v8070 = vld [vmem:[#allocation19 + $0x1f8] sm:$0xff]
        %v8071 = vld [vmem:[#allocation19 + $0x200] sm:$0xff]
        %v8072 = vld [vmem:[#allocation19 + $0x208] sm:$0xff]
        %v8073 = vld [vmem:[#allocation19 + $0x210] sm:$0xff]
        %v8074 = vld [vmem:[#allocation19 + $0x218] sm:$0xff]
        %v8075 = vld [vmem:[#allocation19 + $0x220] sm:$0xff]
        %v8076 = vld [vmem:[#allocation19 + $0x228] sm:$0xff]
        %v8077 = vld [vmem:[#allocation19 + $0x230] sm:$0xff]
        %v8078 = vld [vmem:[#allocation19 + $0x238] sm:$0xff]
        %v8079 = vld [vmem:[#allocation19 + $0x240] sm:$0xff]
        %v8080 = vld [vmem:[#allocation19 + $0x248] sm:$0xff]
        %v8081 = vld [vmem:[#allocation19 + $0x250] sm:$0xff]
        %v8082 = vld [vmem:[#allocation19 + $0x258] sm:$0xff]
        %v8083 = vld [vmem:[#allocation19 + $0x260] sm:$0xff]
        %v8084 = vld [vmem:[#allocation19 + $0x268] sm:$0xff]
        %v8085 = vld [vmem:[#allocation19 + $0x270] sm:$0xff]
        %v8086 = vld [vmem:[#allocation19 + $0x278] sm:$0xff]
        %v8087 = vld [vmem:[#allocation19 + $0x280] sm:$0xff]
        %v8088 = vld [vmem:[#allocation19 + $0x288] sm:$0xff]
        %v8089 = vld [vmem:[#allocation19 + $0x290] sm:$0xff]
        %v8090 = vld [vmem:[#allocation19 + $0x298] sm:$0xff]
        %v8091 = vld [vmem:[#allocation19 + $0x2a0] sm:$0xff]
        %v8092 = vld [vmem:[#allocation19 + $0x2a8] sm:$0xff]
        %v8093 = vld [vmem:[#allocation19 + $0x2b0] sm:$0xff]
        %v8094 = vld [vmem:[#allocation19 + $0x2b8] sm:$0xff]
        %v8095 = vld [vmem:[#allocation19 + $0x2c0] sm:$0xff]
        %v8096 = vld [vmem:[#allocation19 + $0x2c8] sm:$0xff]
        %v8097 = vld [vmem:[#allocation19 + $0x2d0] sm:$0xff]
        %v8098 = vld [vmem:[#allocation19 + $0x2d8] sm:$0xff]
        %v8099 = vld [vmem:[#allocation19 + $0x2e0] sm:$0xff]
        %v8100 = vld [vmem:[#allocation19 + $0x2e8] sm:$0xff]
        %v8101 = vld [vmem:[#allocation19 + $0x2f0] sm:$0xff]
        %v8102 = vld [vmem:[#allocation19 + $0x2f8] sm:$0xff]
        %v8103 = vld [vmem:[#allocation19 + $0x300] sm:$0xff]
        %v8104 = vld [vmem:[#allocation19 + $0x308] sm:$0xff]
        %v8105 = vld [vmem:[#allocation19 + $0x310] sm:$0xff]
        %v8106 = vld [vmem:[#allocation19 + $0x318] sm:$0xff]
        %v8107 = vld [vmem:[#allocation19 + $0x320] sm:$0xff]
        %v8108 = vld [vmem:[#allocation19 + $0x328] sm:$0xff]
        %v8109 = vld [vmem:[#allocation19 + $0x330] sm:$0xff]
        %v8110 = vld [vmem:[#allocation19 + $0x338] sm:$0xff]
        %v8111 = vld [vmem:[#allocation19 + $0x340] sm:$0xff]
        %v8112 = vld [vmem:[#allocation19 + $0x348] sm:$0xff]
        %v8113 = vld [vmem:[#allocation19 + $0x350] sm:$0xff]
        %v8114 = vld [vmem:[#allocation19 + $0x358] sm:$0xff]
        %v8115 = vld [vmem:[#allocation19 + $0x360] sm:$0xff]
        %v8116 = vld [vmem:[#allocation19 + $0x368] sm:$0xff]
        %v8117 = vld [vmem:[#allocation19 + $0x370] sm:$0xff]
        %v8118 = vld [vmem:[#allocation19 + $0x378] sm:$0xff]
        %v8119 = vld [vmem:[#allocation19 + $0x380] sm:$0xff]
        %v8120 = vld [vmem:[#allocation19 + $0x388] sm:$0xff]
        %v8121 = vld [vmem:[#allocation19 + $0x390] sm:$0xff]
        %v8122 = vld [vmem:[#allocation19 + $0x398] sm:$0xff]
        %v8123 = vld [vmem:[#allocation19 + $0x3a0] sm:$0xff]
        %v8124 = vld [vmem:[#allocation19 + $0x3a8] sm:$0xff]
        %v8125 = vld [vmem:[#allocation19 + $0x3b0] sm:$0xff]
        %v8126 = vld [vmem:[#allocation19 + $0x3b8] sm:$0xff]
        %v8127 = vld [vmem:[#allocation19 + $0x3c0] sm:$0xff]
        %v8128 = vld [vmem:[#allocation19 + $0x3c8] sm:$0xff]
        %v8129 = vld [vmem:[#allocation19 + $0x3d0] sm:$0xff]
        %v8130 = vld [vmem:[#allocation19 + $0x3d8] sm:$0xff]
        %v8131 = vld [vmem:[#allocation19 + $0x3e0] sm:$0xff]
        %v8132 = vld [vmem:[#allocation19 + $0x3e8] sm:$0xff]
        %v8133 = vld [vmem:[#allocation19 + $0x3f0] sm:$0xff]
        %v8134 = vld [vmem:[#allocation19 + $0x3f8] sm:$0xff]
        %v8135 = vld [vmem:[#allocation19 + $0x400] sm:$0xff]
        %v8136 = vld [vmem:[#allocation19 + $0x408] sm:$0xff]
        %v8137 = vld [vmem:[#allocation19 + $0x410] sm:$0xff]
        %v8138 = vld [vmem:[#allocation19 + $0x418] sm:$0xff]
        %v8139 = vld [vmem:[#allocation19 + $0x420] sm:$0xff]
        %v8140 = vld [vmem:[#allocation19 + $0x428] sm:$0xff]
        %v8141 = vld [vmem:[#allocation19 + $0x430] sm:$0xff]
        %v8142 = vld [vmem:[#allocation19 + $0x438] sm:$0xff]
        %v8143 = vld [vmem:[#allocation19 + $0x440] sm:$0xff]
        %v8144 = vld [vmem:[#allocation19 + $0x448] sm:$0xff]
        %v8145 = vld [vmem:[#allocation19 + $0x450] sm:$0xff]
        %v8146 = vld [vmem:[#allocation19 + $0x458] sm:$0xff]
        %v8147 = vld [vmem:[#allocation19 + $0x460] sm:$0xff]
        %v8148 = vld [vmem:[#allocation19 + $0x468] sm:$0xff]
        %v8149 = vld [vmem:[#allocation19 + $0x470] sm:$0xff]
        %v8150 = vld [vmem:[#allocation19 + $0x478] sm:$0xff]
        %v8151 = vld [vmem:[#allocation19 + $0x480] sm:$0xff]
        %v8152 = vld [vmem:[#allocation19 + $0x488] sm:$0xff]
        %v8153 = vld [vmem:[#allocation19 + $0x490] sm:$0xff]
        %v8154 = vld [vmem:[#allocation19 + $0x498] sm:$0xff]
        %v8155 = vld [vmem:[#allocation19 + $0x4a0] sm:$0xff]
        %v8156 = vld [vmem:[#allocation19 + $0x4a8] sm:$0xff]
        %v8157 = vld [vmem:[#allocation19 + $0x4b0] sm:$0xff]
        %v8158 = vld [vmem:[#allocation19 + $0x4b8] sm:$0xff]
        %v8159 = vld [vmem:[#allocation19 + $0x4c0] sm:$0xff]
        %v8160 = vld [vmem:[#allocation19 + $0x4c8] sm:$0xff]
        %v8161 = vld [vmem:[#allocation19 + $0x4d0] sm:$0xff]
        %v8162 = vld [vmem:[#allocation19 + $0x4d8] sm:$0xff]
        %v8163 = vld [vmem:[#allocation19 + $0x4e0] sm:$0xff]
        %v8164 = vld [vmem:[#allocation19 + $0x4e8] sm:$0xff]
        %v8165 = vld [vmem:[#allocation19 + $0x4f0] sm:$0xff]
        %v8166 = vld [vmem:[#allocation19 + $0x4f8] sm:$0xff]
        %v8167 = vld [vmem:[#allocation19 + $0x500] sm:$0xff]
        %v8168 = vld [vmem:[#allocation19 + $0x508] sm:$0xff]
        %v8169 = vld [vmem:[#allocation19 + $0x510] sm:$0xff]
        %v8170 = vld [vmem:[#allocation19 + $0x518] sm:$0xff]
        %v8171 = vld [vmem:[#allocation19 + $0x520] sm:$0xff]
        %v8172 = vld [vmem:[#allocation19 + $0x528] sm:$0xff]
        %v8173 = vld [vmem:[#allocation19 + $0x530] sm:$0xff]
        %v8174 = vld [vmem:[#allocation19 + $0x538] sm:$0xff]
        %v8175 = vld [vmem:[#allocation19 + $0x540] sm:$0xff]
        %v8176 = vld [vmem:[#allocation19 + $0x548] sm:$0xff]
        %v8177 = vld [vmem:[#allocation19 + $0x550] sm:$0xff]
        %v8178 = vld [vmem:[#allocation19 + $0x558] sm:$0xff]
        %v8179 = vld [vmem:[#allocation19 + $0x560] sm:$0xff]
        %v8180 = vld [vmem:[#allocation19 + $0x568] sm:$0xff]
        %v8181 = vld [vmem:[#allocation19 + $0x570] sm:$0xff]
        %v8182 = vld [vmem:[#allocation19 + $0x578] sm:$0xff]
        %v8183 = vld [vmem:[#allocation19 + $0x580] sm:$0xff]
        %v8184 = vld [vmem:[#allocation19 + $0x588] sm:$0xff]
        %v8185 = vld [vmem:[#allocation19 + $0x590] sm:$0xff]
        %v8186 = vld [vmem:[#allocation19 + $0x598] sm:$0xff]
        %v8187 = vld [vmem:[#allocation19 + $0x5a0] sm:$0xff]
        %v8188 = vld [vmem:[#allocation19 + $0x5a8] sm:$0xff]
        %v8189 = vld [vmem:[#allocation19 + $0x5b0] sm:$0xff]
        %v8190 = vld [vmem:[#allocation19 + $0x5b8] sm:$0xff]
        %v8191 = vld [vmem:[#allocation19 + $0x5c0] sm:$0xff]
        %v8192 = vld [vmem:[#allocation19 + $0x5c8] sm:$0xff]
        %v8193 = vld [vmem:[#allocation19 + $0x5d0] sm:$0xff]
        %v8194 = vld [vmem:[#allocation19 + $0x5d8] sm:$0xff]
        %v8195 = vld [vmem:[#allocation19 + $0x5e0] sm:$0xff]
        %v8196 = vld [vmem:[#allocation19 + $0x5e8] sm:$0xff]
        %v8197 = vld [vmem:[#allocation19 + $0x5f0] sm:$0xff]
        %v8198 = vld [vmem:[#allocation19 + $0x5f8] sm:$0xff]
        %v8199 = vld [vmem:[#allocation19 + $0x600] sm:$0xff]
        %v8200 = vld [vmem:[#allocation19 + $0x608] sm:$0xff]
        %v8201 = vld [vmem:[#allocation19 + $0x610] sm:$0xff]
        %v8202 = vld [vmem:[#allocation19 + $0x618] sm:$0xff]
        %v8203 = vld [vmem:[#allocation19 + $0x620] sm:$0xff]
        %v8204 = vld [vmem:[#allocation19 + $0x628] sm:$0xff]
        %v8205 = vld [vmem:[#allocation19 + $0x630] sm:$0xff]
        %v8206 = vld [vmem:[#allocation19 + $0x638] sm:$0xff]
        %v8207 = vld [vmem:[#allocation19 + $0x640] sm:$0xff]
        %v8208 = vld [vmem:[#allocation19 + $0x648] sm:$0xff]
        %v8209 = vld [vmem:[#allocation19 + $0x650] sm:$0xff]
        %v8210 = vld [vmem:[#allocation19 + $0x658] sm:$0xff]
        %v8211 = vld [vmem:[#allocation19 + $0x660] sm:$0xff]
        %v8212 = vld [vmem:[#allocation19 + $0x668] sm:$0xff]
        %v8213 = vld [vmem:[#allocation19 + $0x670] sm:$0xff]
        %v8214 = vld [vmem:[#allocation19 + $0x678] sm:$0xff]
        %v8215 = vld [vmem:[#allocation19 + $0x680] sm:$0xff]
        %v8216 = vld [vmem:[#allocation19 + $0x688] sm:$0xff]
        %v8217 = vld [vmem:[#allocation19 + $0x690] sm:$0xff]
        %v8218 = vld [vmem:[#allocation19 + $0x698] sm:$0xff]
        %v8219 = vld [vmem:[#allocation19 + $0x6a0] sm:$0xff]
        %v8220 = vld [vmem:[#allocation19 + $0x6a8] sm:$0xff]
        %v8221 = vld [vmem:[#allocation19 + $0x6b0] sm:$0xff]
        %v8222 = vld [vmem:[#allocation19 + $0x6b8] sm:$0xff]
        %v8223 = vld [vmem:[#allocation19 + $0x6c0] sm:$0xff]
        %v8224 = vld [vmem:[#allocation19 + $0x6c8] sm:$0xff]
        %v8225 = vld [vmem:[#allocation19 + $0x6d0] sm:$0xff]
        %v8226 = vld [vmem:[#allocation19 + $0x6d8] sm:$0xff]
        %v8227 = vld [vmem:[#allocation19 + $0x6e0] sm:$0xff]
        %v8228 = vld [vmem:[#allocation19 + $0x6e8] sm:$0xff]
        %v8229 = vld [vmem:[#allocation19 + $0x6f0] sm:$0xff]
        %v8230 = vld [vmem:[#allocation19 + $0x6f8] sm:$0xff]
        %v8231 = vld [vmem:[#allocation19 + $0x700] sm:$0xff]
        %v8232 = vld [vmem:[#allocation19 + $0x708] sm:$0xff]
        %v8233 = vld [vmem:[#allocation19 + $0x710] sm:$0xff]
        %v8234 = vld [vmem:[#allocation19 + $0x718] sm:$0xff]
        %v8235 = vld [vmem:[#allocation19 + $0x720] sm:$0xff]
        %v8236 = vld [vmem:[#allocation19 + $0x728] sm:$0xff]
        %v8237 = vld [vmem:[#allocation19 + $0x730] sm:$0xff]
        %v8238 = vld [vmem:[#allocation19 + $0x738] sm:$0xff]
        %v8239 = vld [vmem:[#allocation19 + $0x740] sm:$0xff]
        %v8240 = vld [vmem:[#allocation19 + $0x748] sm:$0xff]
        %v8241 = vld [vmem:[#allocation19 + $0x750] sm:$0xff]
        %v8242 = vld [vmem:[#allocation19 + $0x758] sm:$0xff]
        %v8243 = vld [vmem:[#allocation19 + $0x760] sm:$0xff]
        %v8244 = vld [vmem:[#allocation19 + $0x768] sm:$0xff]
        %v8245 = vld [vmem:[#allocation19 + $0x770] sm:$0xff]
        %v8246 = vld [vmem:[#allocation19 + $0x778] sm:$0xff]
        %v8247 = vld [vmem:[#allocation19 + $0x780] sm:$0xff]
        %v8248 = vld [vmem:[#allocation19 + $0x788] sm:$0xff]
        %v8249 = vld [vmem:[#allocation19 + $0x790] sm:$0xff]
        %v8250 = vld [vmem:[#allocation19 + $0x798] sm:$0xff]
        %v8251 = vld [vmem:[#allocation19 + $0x7a0] sm:$0xff]
        %v8252 = vld [vmem:[#allocation19 + $0x7a8] sm:$0xff]
        %v8253 = vld [vmem:[#allocation19 + $0x7b0] sm:$0xff]
        %v8254 = vld [vmem:[#allocation19 + $0x7b8] sm:$0xff]
        %v8255 = vld [vmem:[#allocation19 + $0x7c0] sm:$0xff]
        %v8256 = vld [vmem:[#allocation19 + $0x7c8] sm:$0xff]
        %v8257 = vld [vmem:[#allocation19 + $0x7d0] sm:$0xff]
        %v8258 = vld [vmem:[#allocation19 + $0x7d8] sm:$0xff]
        %v8259 = vld [vmem:[#allocation19 + $0x7e0] sm:$0xff]
        %v8260 = vld [vmem:[#allocation19 + $0x7e8] sm:$0xff]
        %v8261 = vld [vmem:[#allocation19 + $0x7f0] sm:$0xff]
        %v8262 = vld [vmem:[#allocation19 + $0x7f8] sm:$0xff]
        %v8263 = vld [vmem:[%s15] sm:$0xf]
        %v8265 = vlaneseq
        %v8266 = vshrl.u32 %v8265, 7
        %v8267 = vsub.s32 0, %v8266
        %v8268 = vrot.slane %v8263, %v8267
        %v8269 = vlaneseq
        %v8270 = vshrl.u32 %v8269, 7
        %v8271 = vsub.s32 1, %v8270
        %v8272 = vrot.slane %v8263, %v8271
        %v8273 = vlaneseq
        %v8274 = vshrl.u32 %v8273, 7
        %v8275 = vsub.s32 2, %v8274
        %v8276 = vrot.slane %v8263, %v8275
        %v8277 = vlaneseq
        %v8278 = vshrl.u32 %v8277, 7
        %v8279 = vsub.s32 3, %v8278
        %v8280 = vrot.slane %v8263, %v8279
        %v8541 = vunpack.c.l.b16 %v8007
        %v8542 = vunpack.c.h.b16 %v8007
        %v8543 = vunpack.c.l.b16 %v8008
        %v8544 = vunpack.c.h.b16 %v8008
        %v8545 = vunpack.c.l.b16 %v8009
        %v8546 = vunpack.c.h.b16 %v8009
        %v8547 = vunpack.c.l.b16 %v8010
        %v8548 = vunpack.c.h.b16 %v8010
        %v8549 = vunpack.c.l.b16 %v8011
        %v8550 = vunpack.c.h.b16 %v8011
        %v8551 = vunpack.c.l.b16 %v8012
        %v8552 = vunpack.c.h.b16 %v8012
        %v8553 = vunpack.c.l.b16 %v8013
        %v8554 = vunpack.c.h.b16 %v8013
        %v8555 = vunpack.c.l.b16 %v8014
        %v8556 = vunpack.c.h.b16 %v8014
        %v8557 = vunpack.c.l.b16 %v8015
        %v8558 = vunpack.c.h.b16 %v8015
        %v8559 = vunpack.c.l.b16 %v8016
        %v8560 = vunpack.c.h.b16 %v8016
        %v8561 = vunpack.c.l.b16 %v8017
        %v8562 = vunpack.c.h.b16 %v8017
        %v8563 = vunpack.c.l.b16 %v8018
        %v8564 = vunpack.c.h.b16 %v8018
        %v8565 = vunpack.c.l.b16 %v8019
        %v8566 = vunpack.c.h.b16 %v8019
        %v8567 = vunpack.c.l.b16 %v8020
        %v8568 = vunpack.c.h.b16 %v8020
        %v8569 = vunpack.c.l.b16 %v8021
        %v8570 = vunpack.c.h.b16 %v8021
        %v8571 = vunpack.c.l.b16 %v8022
        %v8572 = vunpack.c.h.b16 %v8022
        %v8573 = vunpack.c.l.b16 %v8023
        %v8574 = vunpack.c.h.b16 %v8023
        %v8575 = vunpack.c.l.b16 %v8024
        %v8576 = vunpack.c.h.b16 %v8024
        %v8577 = vunpack.c.l.b16 %v8025
        %v8578 = vunpack.c.h.b16 %v8025
        %v8579 = vunpack.c.l.b16 %v8026
        %v8580 = vunpack.c.h.b16 %v8026
        %v8581 = vunpack.c.l.b16 %v8027
        %v8582 = vunpack.c.h.b16 %v8027
        %v8583 = vunpack.c.l.b16 %v8028
        %v8584 = vunpack.c.h.b16 %v8028
        %v8585 = vunpack.c.l.b16 %v8029
        %v8586 = vunpack.c.h.b16 %v8029
        %v8587 = vunpack.c.l.b16 %v8030
        %v8588 = vunpack.c.h.b16 %v8030
        %v8589 = vunpack.c.l.b16 %v8031
        %v8590 = vunpack.c.h.b16 %v8031
        %v8591 = vunpack.c.l.b16 %v8032
        %v8592 = vunpack.c.h.b16 %v8032
        %v8593 = vunpack.c.l.b16 %v8033
        %v8594 = vunpack.c.h.b16 %v8033
        %v8595 = vunpack.c.l.b16 %v8034
        %v8596 = vunpack.c.h.b16 %v8034
        %v8597 = vunpack.c.l.b16 %v8035
        %v8598 = vunpack.c.h.b16 %v8035
        %v8599 = vunpack.c.l.b16 %v8036
        %v8600 = vunpack.c.h.b16 %v8036
        %v8601 = vunpack.c.l.b16 %v8037
        %v8602 = vunpack.c.h.b16 %v8037
        %v8603 = vunpack.c.l.b16 %v8038
        %v8604 = vunpack.c.h.b16 %v8038
        %v8605 = vunpack.c.l.b16 %v8039
        %v8606 = vunpack.c.h.b16 %v8039
        %v8607 = vunpack.c.l.b16 %v8040
        %v8608 = vunpack.c.h.b16 %v8040
        %v8609 = vunpack.c.l.b16 %v8041
        %v8610 = vunpack.c.h.b16 %v8041
        %v8611 = vunpack.c.l.b16 %v8042
        %v8612 = vunpack.c.h.b16 %v8042
        %v8613 = vunpack.c.l.b16 %v8043
        %v8614 = vunpack.c.h.b16 %v8043
        %v8615 = vunpack.c.l.b16 %v8044
        %v8616 = vunpack.c.h.b16 %v8044
        %v8617 = vunpack.c.l.b16 %v8045
        %v8618 = vunpack.c.h.b16 %v8045
        %v8619 = vunpack.c.l.b16 %v8046
        %v8620 = vunpack.c.h.b16 %v8046
        %v8621 = vunpack.c.l.b16 %v8047
        %v8622 = vunpack.c.h.b16 %v8047
        %v8623 = vunpack.c.l.b16 %v8048
        %v8624 = vunpack.c.h.b16 %v8048
        %v8625 = vunpack.c.l.b16 %v8049
        %v8626 = vunpack.c.h.b16 %v8049
        %v8627 = vunpack.c.l.b16 %v8050
        %v8628 = vunpack.c.h.b16 %v8050
        %v8629 = vunpack.c.l.b16 %v8051
        %v8630 = vunpack.c.h.b16 %v8051
        %v8631 = vunpack.c.l.b16 %v8052
        %v8632 = vunpack.c.h.b16 %v8052
        %v8633 = vunpack.c.l.b16 %v8053
        %v8634 = vunpack.c.h.b16 %v8053
        %v8635 = vunpack.c.l.b16 %v8054
        %v8636 = vunpack.c.h.b16 %v8054
        %v8637 = vunpack.c.l.b16 %v8055
        %v8638 = vunpack.c.h.b16 %v8055
        %v8639 = vunpack.c.l.b16 %v8056
        %v8640 = vunpack.c.h.b16 %v8056
        %v8641 = vunpack.c.l.b16 %v8057
        %v8642 = vunpack.c.h.b16 %v8057
        %v8643 = vunpack.c.l.b16 %v8058
        %v8644 = vunpack.c.h.b16 %v8058
        %v8645 = vunpack.c.l.b16 %v8059
        %v8646 = vunpack.c.h.b16 %v8059
        %v8647 = vunpack.c.l.b16 %v8060
        %v8648 = vunpack.c.h.b16 %v8060
        %v8649 = vunpack.c.l.b16 %v8061
        %v8650 = vunpack.c.h.b16 %v8061
        %v8651 = vunpack.c.l.b16 %v8062
        %v8652 = vunpack.c.h.b16 %v8062
        %v8653 = vunpack.c.l.b16 %v8063
        %v8654 = vunpack.c.h.b16 %v8063
        %v8655 = vunpack.c.l.b16 %v8064
        %v8656 = vunpack.c.h.b16 %v8064
        %v8657 = vunpack.c.l.b16 %v8065
        %v8658 = vunpack.c.h.b16 %v8065
        %v8659 = vunpack.c.l.b16 %v8066
        %v8660 = vunpack.c.h.b16 %v8066
        %v8661 = vunpack.c.l.b16 %v8067
        %v8662 = vunpack.c.h.b16 %v8067
        %v8663 = vunpack.c.l.b16 %v8068
        %v8664 = vunpack.c.h.b16 %v8068
        %v8665 = vunpack.c.l.b16 %v8069
        %v8666 = vunpack.c.h.b16 %v8069
        %v8667 = vunpack.c.l.b16 %v8070
        %v8668 = vunpack.c.h.b16 %v8070
        %v8669 = vunpack.c.l.b16 %v8071
        %v8670 = vunpack.c.h.b16 %v8071
        %v8671 = vunpack.c.l.b16 %v8072
        %v8672 = vunpack.c.h.b16 %v8072
        %v8673 = vunpack.c.l.b16 %v8073
        %v8674 = vunpack.c.h.b16 %v8073
        %v8675 = vunpack.c.l.b16 %v8074
        %v8676 = vunpack.c.h.b16 %v8074
        %v8677 = vunpack.c.l.b16 %v8075
        %v8678 = vunpack.c.h.b16 %v8075
        %v8679 = vunpack.c.l.b16 %v8076
        %v8680 = vunpack.c.h.b16 %v8076
        %v8681 = vunpack.c.l.b16 %v8077
        %v8682 = vunpack.c.h.b16 %v8077
        %v8683 = vunpack.c.l.b16 %v8078
        %v8684 = vunpack.c.h.b16 %v8078
        %v8685 = vunpack.c.l.b16 %v8079
        %v8686 = vunpack.c.h.b16 %v8079
        %v8687 = vunpack.c.l.b16 %v8080
        %v8688 = vunpack.c.h.b16 %v8080
        %v8689 = vunpack.c.l.b16 %v8081
        %v8690 = vunpack.c.h.b16 %v8081
        %v8691 = vunpack.c.l.b16 %v8082
        %v8692 = vunpack.c.h.b16 %v8082
        %v8693 = vunpack.c.l.b16 %v8083
        %v8694 = vunpack.c.h.b16 %v8083
        %v8695 = vunpack.c.l.b16 %v8084
        %v8696 = vunpack.c.h.b16 %v8084
        %v8697 = vunpack.c.l.b16 %v8085
        %v8698 = vunpack.c.h.b16 %v8085
        %v8699 = vunpack.c.l.b16 %v8086
        %v8700 = vunpack.c.h.b16 %v8086
        %v8701 = vunpack.c.l.b16 %v8087
        %v8702 = vunpack.c.h.b16 %v8087
        %v8703 = vunpack.c.l.b16 %v8088
        %v8704 = vunpack.c.h.b16 %v8088
        %v8705 = vunpack.c.l.b16 %v8089
        %v8706 = vunpack.c.h.b16 %v8089
        %v8707 = vunpack.c.l.b16 %v8090
        %v8708 = vunpack.c.h.b16 %v8090
        %v8709 = vunpack.c.l.b16 %v8091
        %v8710 = vunpack.c.h.b16 %v8091
        %v8711 = vunpack.c.l.b16 %v8092
        %v8712 = vunpack.c.h.b16 %v8092
        %v8713 = vunpack.c.l.b16 %v8093
        %v8714 = vunpack.c.h.b16 %v8093
        %v8715 = vunpack.c.l.b16 %v8094
        %v8716 = vunpack.c.h.b16 %v8094
        %v8717 = vunpack.c.l.b16 %v8095
        %v8718 = vunpack.c.h.b16 %v8095
        %v8719 = vunpack.c.l.b16 %v8096
        %v8720 = vunpack.c.h.b16 %v8096
        %v8721 = vunpack.c.l.b16 %v8097
        %v8722 = vunpack.c.h.b16 %v8097
        %v8723 = vunpack.c.l.b16 %v8098
        %v8724 = vunpack.c.h.b16 %v8098
        %v8725 = vunpack.c.l.b16 %v8099
        %v8726 = vunpack.c.h.b16 %v8099
        %v8727 = vunpack.c.l.b16 %v8100
        %v8728 = vunpack.c.h.b16 %v8100
        %v8729 = vunpack.c.l.b16 %v8101
        %v8730 = vunpack.c.h.b16 %v8101
        %v8731 = vunpack.c.l.b16 %v8102
        %v8732 = vunpack.c.h.b16 %v8102
        %v8733 = vunpack.c.l.b16 %v8103
        %v8734 = vunpack.c.h.b16 %v8103
        %v8735 = vunpack.c.l.b16 %v8104
        %v8736 = vunpack.c.h.b16 %v8104
        %v8737 = vunpack.c.l.b16 %v8105
        %v8738 = vunpack.c.h.b16 %v8105
        %v8739 = vunpack.c.l.b16 %v8106
        %v8740 = vunpack.c.h.b16 %v8106
        %v8741 = vunpack.c.l.b16 %v8107
        %v8742 = vunpack.c.h.b16 %v8107
        %v8743 = vunpack.c.l.b16 %v8108
        %v8744 = vunpack.c.h.b16 %v8108
        %v8745 = vunpack.c.l.b16 %v8109
        %v8746 = vunpack.c.h.b16 %v8109
        %v8747 = vunpack.c.l.b16 %v8110
        %v8748 = vunpack.c.h.b16 %v8110
        %v8749 = vunpack.c.l.b16 %v8111
        %v8750 = vunpack.c.h.b16 %v8111
        %v8751 = vunpack.c.l.b16 %v8112
        %v8752 = vunpack.c.h.b16 %v8112
        %v8753 = vunpack.c.l.b16 %v8113
        %v8754 = vunpack.c.h.b16 %v8113
        %v8755 = vunpack.c.l.b16 %v8114
        %v8756 = vunpack.c.h.b16 %v8114
        %v8757 = vunpack.c.l.b16 %v8115
        %v8758 = vunpack.c.h.b16 %v8115
        %v8759 = vunpack.c.l.b16 %v8116
        %v8760 = vunpack.c.h.b16 %v8116
        %v8761 = vunpack.c.l.b16 %v8117
        %v8762 = vunpack.c.h.b16 %v8117
        %v8763 = vunpack.c.l.b16 %v8118
        %v8764 = vunpack.c.h.b16 %v8118
        %v8765 = vunpack.c.l.b16 %v8119
        %v8766 = vunpack.c.h.b16 %v8119
        %v8767 = vunpack.c.l.b16 %v8120
        %v8768 = vunpack.c.h.b16 %v8120
        %v8769 = vunpack.c.l.b16 %v8121
        %v8770 = vunpack.c.h.b16 %v8121
        %v8771 = vunpack.c.l.b16 %v8122
        %v8772 = vunpack.c.h.b16 %v8122
        %v8773 = vunpack.c.l.b16 %v8123
        %v8774 = vunpack.c.h.b16 %v8123
        %v8775 = vunpack.c.l.b16 %v8124
        %v8776 = vunpack.c.h.b16 %v8124
        %v8777 = vunpack.c.l.b16 %v8125
        %v8778 = vunpack.c.h.b16 %v8125
        %v8779 = vunpack.c.l.b16 %v8126
        %v8780 = vunpack.c.h.b16 %v8126
        %v8781 = vunpack.c.l.b16 %v8127
        %v8782 = vunpack.c.h.b16 %v8127
        %v8783 = vunpack.c.l.b16 %v8128
        %v8784 = vunpack.c.h.b16 %v8128
        %v8785 = vunpack.c.l.b16 %v8129
        %v8786 = vunpack.c.h.b16 %v8129
        %v8787 = vunpack.c.l.b16 %v8130
        %v8788 = vunpack.c.h.b16 %v8130
        %v8789 = vunpack.c.l.b16 %v8131
        %v8790 = vunpack.c.h.b16 %v8131
        %v8791 = vunpack.c.l.b16 %v8132
        %v8792 = vunpack.c.h.b16 %v8132
        %v8793 = vunpack.c.l.b16 %v8133
        %v8794 = vunpack.c.h.b16 %v8133
        %v8795 = vunpack.c.l.b16 %v8134
        %v8796 = vunpack.c.h.b16 %v8134
        %v8797 = vunpack.c.l.b16 %v8135
        %v8798 = vunpack.c.h.b16 %v8135
        %v8799 = vunpack.c.l.b16 %v8136
        %v8800 = vunpack.c.h.b16 %v8136
        %v8801 = vunpack.c.l.b16 %v8137
        %v8802 = vunpack.c.h.b16 %v8137
        %v8803 = vunpack.c.l.b16 %v8138
        %v8804 = vunpack.c.h.b16 %v8138
        %v8805 = vunpack.c.l.b16 %v8139
        %v8806 = vunpack.c.h.b16 %v8139
        %v8807 = vunpack.c.l.b16 %v8140
        %v8808 = vunpack.c.h.b16 %v8140
        %v8809 = vunpack.c.l.b16 %v8141
        %v8810 = vunpack.c.h.b16 %v8141
        %v8811 = vunpack.c.l.b16 %v8142
        %v8812 = vunpack.c.h.b16 %v8142
        %v8813 = vunpack.c.l.b16 %v8143
        %v8814 = vunpack.c.h.b16 %v8143
        %v8815 = vunpack.c.l.b16 %v8144
        %v8816 = vunpack.c.h.b16 %v8144
        %v8817 = vunpack.c.l.b16 %v8145
        %v8818 = vunpack.c.h.b16 %v8145
        %v8819 = vunpack.c.l.b16 %v8146
        %v8820 = vunpack.c.h.b16 %v8146
        %v8821 = vunpack.c.l.b16 %v8147
        %v8822 = vunpack.c.h.b16 %v8147
        %v8823 = vunpack.c.l.b16 %v8148
        %v8824 = vunpack.c.h.b16 %v8148
        %v8825 = vunpack.c.l.b16 %v8149
        %v8826 = vunpack.c.h.b16 %v8149
        %v8827 = vunpack.c.l.b16 %v8150
        %v8828 = vunpack.c.h.b16 %v8150
        %v8829 = vunpack.c.l.b16 %v8151
        %v8830 = vunpack.c.h.b16 %v8151
        %v8831 = vunpack.c.l.b16 %v8152
        %v8832 = vunpack.c.h.b16 %v8152
        %v8833 = vunpack.c.l.b16 %v8153
        %v8834 = vunpack.c.h.b16 %v8153
        %v8835 = vunpack.c.l.b16 %v8154
        %v8836 = vunpack.c.h.b16 %v8154
        %v8837 = vunpack.c.l.b16 %v8155
        %v8838 = vunpack.c.h.b16 %v8155
        %v8839 = vunpack.c.l.b16 %v8156
        %v8840 = vunpack.c.h.b16 %v8156
        %v8841 = vunpack.c.l.b16 %v8157
        %v8842 = vunpack.c.h.b16 %v8157
        %v8843 = vunpack.c.l.b16 %v8158
        %v8844 = vunpack.c.h.b16 %v8158
        %v8845 = vunpack.c.l.b16 %v8159
        %v8846 = vunpack.c.h.b16 %v8159
        %v8847 = vunpack.c.l.b16 %v8160
        %v8848 = vunpack.c.h.b16 %v8160
        %v8849 = vunpack.c.l.b16 %v8161
        %v8850 = vunpack.c.h.b16 %v8161
        %v8851 = vunpack.c.l.b16 %v8162
        %v8852 = vunpack.c.h.b16 %v8162
        %v8853 = vunpack.c.l.b16 %v8163
        %v8854 = vunpack.c.h.b16 %v8163
        %v8855 = vunpack.c.l.b16 %v8164
        %v8856 = vunpack.c.h.b16 %v8164
        %v8857 = vunpack.c.l.b16 %v8165
        %v8858 = vunpack.c.h.b16 %v8165
        %v8859 = vunpack.c.l.b16 %v8166
        %v8860 = vunpack.c.h.b16 %v8166
        %v8861 = vunpack.c.l.b16 %v8167
        %v8862 = vunpack.c.h.b16 %v8167
        %v8863 = vunpack.c.l.b16 %v8168
        %v8864 = vunpack.c.h.b16 %v8168
        %v8865 = vunpack.c.l.b16 %v8169
        %v8866 = vunpack.c.h.b16 %v8169
        %v8867 = vunpack.c.l.b16 %v8170
        %v8868 = vunpack.c.h.b16 %v8170
        %v8869 = vunpack.c.l.b16 %v8171
        %v8870 = vunpack.c.h.b16 %v8171
        %v8871 = vunpack.c.l.b16 %v8172
        %v8872 = vunpack.c.h.b16 %v8172
        %v8873 = vunpack.c.l.b16 %v8173
        %v8874 = vunpack.c.h.b16 %v8173
        %v8875 = vunpack.c.l.b16 %v8174
        %v8876 = vunpack.c.h.b16 %v8174
        %v8877 = vunpack.c.l.b16 %v8175
        %v8878 = vunpack.c.h.b16 %v8175
        %v8879 = vunpack.c.l.b16 %v8176
        %v8880 = vunpack.c.h.b16 %v8176
        %v8881 = vunpack.c.l.b16 %v8177
        %v8882 = vunpack.c.h.b16 %v8177
        %v8883 = vunpack.c.l.b16 %v8178
        %v8884 = vunpack.c.h.b16 %v8178
        %v8885 = vunpack.c.l.b16 %v8179
        %v8886 = vunpack.c.h.b16 %v8179
        %v8887 = vunpack.c.l.b16 %v8180
        %v8888 = vunpack.c.h.b16 %v8180
        %v8889 = vunpack.c.l.b16 %v8181
        %v8890 = vunpack.c.h.b16 %v8181
        %v8891 = vunpack.c.l.b16 %v8182
        %v8892 = vunpack.c.h.b16 %v8182
        %v8893 = vunpack.c.l.b16 %v8183
        %v8894 = vunpack.c.h.b16 %v8183
        %v8895 = vunpack.c.l.b16 %v8184
        %v8896 = vunpack.c.h.b16 %v8184
        %v8897 = vunpack.c.l.b16 %v8185
        %v8898 = vunpack.c.h.b16 %v8185
        %v8899 = vunpack.c.l.b16 %v8186
        %v8900 = vunpack.c.h.b16 %v8186
        %v8901 = vunpack.c.l.b16 %v8187
        %v8902 = vunpack.c.h.b16 %v8187
        %v8903 = vunpack.c.l.b16 %v8188
        %v8904 = vunpack.c.h.b16 %v8188
        %v8905 = vunpack.c.l.b16 %v8189
        %v8906 = vunpack.c.h.b16 %v8189
        %v8907 = vunpack.c.l.b16 %v8190
        %v8908 = vunpack.c.h.b16 %v8190
        %v8909 = vunpack.c.l.b16 %v8191
        %v8910 = vunpack.c.h.b16 %v8191
        %v8911 = vunpack.c.l.b16 %v8192
        %v8912 = vunpack.c.h.b16 %v8192
        %v8913 = vunpack.c.l.b16 %v8193
        %v8914 = vunpack.c.h.b16 %v8193
        %v8915 = vunpack.c.l.b16 %v8194
        %v8916 = vunpack.c.h.b16 %v8194
        %v8917 = vunpack.c.l.b16 %v8195
        %v8918 = vunpack.c.h.b16 %v8195
        %v8919 = vunpack.c.l.b16 %v8196
        %v8920 = vunpack.c.h.b16 %v8196
        %v8921 = vunpack.c.l.b16 %v8197
        %v8922 = vunpack.c.h.b16 %v8197
        %v8923 = vunpack.c.l.b16 %v8198
        %v8924 = vunpack.c.h.b16 %v8198
        %v8925 = vunpack.c.l.b16 %v8199
        %v8926 = vunpack.c.h.b16 %v8199
        %v8927 = vunpack.c.l.b16 %v8200
        %v8928 = vunpack.c.h.b16 %v8200
        %v8929 = vunpack.c.l.b16 %v8201
        %v8930 = vunpack.c.h.b16 %v8201
        %v8931 = vunpack.c.l.b16 %v8202
        %v8932 = vunpack.c.h.b16 %v8202
        %v8933 = vunpack.c.l.b16 %v8203
        %v8934 = vunpack.c.h.b16 %v8203
        %v8935 = vunpack.c.l.b16 %v8204
        %v8936 = vunpack.c.h.b16 %v8204
        %v8937 = vunpack.c.l.b16 %v8205
        %v8938 = vunpack.c.h.b16 %v8205
        %v8939 = vunpack.c.l.b16 %v8206
        %v8940 = vunpack.c.h.b16 %v8206
        %v8941 = vunpack.c.l.b16 %v8207
        %v8942 = vunpack.c.h.b16 %v8207
        %v8943 = vunpack.c.l.b16 %v8208
        %v8944 = vunpack.c.h.b16 %v8208
        %v8945 = vunpack.c.l.b16 %v8209
        %v8946 = vunpack.c.h.b16 %v8209
        %v8947 = vunpack.c.l.b16 %v8210
        %v8948 = vunpack.c.h.b16 %v8210
        %v8949 = vunpack.c.l.b16 %v8211
        %v8950 = vunpack.c.h.b16 %v8211
        %v8951 = vunpack.c.l.b16 %v8212
        %v8952 = vunpack.c.h.b16 %v8212
        %v8953 = vunpack.c.l.b16 %v8213
        %v8954 = vunpack.c.h.b16 %v8213
        %v8955 = vunpack.c.l.b16 %v8214
        %v8956 = vunpack.c.h.b16 %v8214
        %v8957 = vunpack.c.l.b16 %v8215
        %v8958 = vunpack.c.h.b16 %v8215
        %v8959 = vunpack.c.l.b16 %v8216
        %v8960 = vunpack.c.h.b16 %v8216
        %v8961 = vunpack.c.l.b16 %v8217
        %v8962 = vunpack.c.h.b16 %v8217
        %v8963 = vunpack.c.l.b16 %v8218
        %v8964 = vunpack.c.h.b16 %v8218
        %v8965 = vunpack.c.l.b16 %v8219
        %v8966 = vunpack.c.h.b16 %v8219
        %v8967 = vunpack.c.l.b16 %v8220
        %v8968 = vunpack.c.h.b16 %v8220
        %v8969 = vunpack.c.l.b16 %v8221
        %v8970 = vunpack.c.h.b16 %v8221
        %v8971 = vunpack.c.l.b16 %v8222
        %v8972 = vunpack.c.h.b16 %v8222
        %v8973 = vunpack.c.l.b16 %v8223
        %v8974 = vunpack.c.h.b16 %v8223
        %v8975 = vunpack.c.l.b16 %v8224
        %v8976 = vunpack.c.h.b16 %v8224
        %v8977 = vunpack.c.l.b16 %v8225
        %v8978 = vunpack.c.h.b16 %v8225
        %v8979 = vunpack.c.l.b16 %v8226
        %v8980 = vunpack.c.h.b16 %v8226
        %v8981 = vunpack.c.l.b16 %v8227
        %v8982 = vunpack.c.h.b16 %v8227
        %v8983 = vunpack.c.l.b16 %v8228
        %v8984 = vunpack.c.h.b16 %v8228
        %v8985 = vunpack.c.l.b16 %v8229
        %v8986 = vunpack.c.h.b16 %v8229
        %v8987 = vunpack.c.l.b16 %v8230
        %v8988 = vunpack.c.h.b16 %v8230
        %v8989 = vunpack.c.l.b16 %v8231
        %v8990 = vunpack.c.h.b16 %v8231
        %v8991 = vunpack.c.l.b16 %v8232
        %v8992 = vunpack.c.h.b16 %v8232
        %v8993 = vunpack.c.l.b16 %v8233
        %v8994 = vunpack.c.h.b16 %v8233
        %v8995 = vunpack.c.l.b16 %v8234
        %v8996 = vunpack.c.h.b16 %v8234
        %v8997 = vunpack.c.l.b16 %v8235
        %v8998 = vunpack.c.h.b16 %v8235
        %v8999 = vunpack.c.l.b16 %v8236
        %v9000 = vunpack.c.h.b16 %v8236
        %v9001 = vunpack.c.l.b16 %v8237
        %v9002 = vunpack.c.h.b16 %v8237
        %v9003 = vunpack.c.l.b16 %v8238
        %v9004 = vunpack.c.h.b16 %v8238
        %v9005 = vunpack.c.l.b16 %v8239
        %v9006 = vunpack.c.h.b16 %v8239
        %v9007 = vunpack.c.l.b16 %v8240
        %v9008 = vunpack.c.h.b16 %v8240
        %v9009 = vunpack.c.l.b16 %v8241
        %v9010 = vunpack.c.h.b16 %v8241
        %v9011 = vunpack.c.l.b16 %v8242
        %v9012 = vunpack.c.h.b16 %v8242
        %v9013 = vunpack.c.l.b16 %v8243
        %v9014 = vunpack.c.h.b16 %v8243
        %v9015 = vunpack.c.l.b16 %v8244
        %v9016 = vunpack.c.h.b16 %v8244
        %v9017 = vunpack.c.l.b16 %v8245
        %v9018 = vunpack.c.h.b16 %v8245
        %v9019 = vunpack.c.l.b16 %v8246
        %v9020 = vunpack.c.h.b16 %v8246
        %v9021 = vunpack.c.l.b16 %v8247
        %v9022 = vunpack.c.h.b16 %v8247
        %v9023 = vunpack.c.l.b16 %v8248
        %v9024 = vunpack.c.h.b16 %v8248
        %v9025 = vunpack.c.l.b16 %v8249
        %v9026 = vunpack.c.h.b16 %v8249
        %v9027 = vunpack.c.l.b16 %v8250
        %v9028 = vunpack.c.h.b16 %v8250
        %v9029 = vunpack.c.l.b16 %v8251
        %v9030 = vunpack.c.h.b16 %v8251
        %v9031 = vunpack.c.l.b16 %v8252
        %v9032 = vunpack.c.h.b16 %v8252
        %v9033 = vunpack.c.l.b16 %v8253
        %v9034 = vunpack.c.h.b16 %v8253
        %v9035 = vunpack.c.l.b16 %v8254
        %v9036 = vunpack.c.h.b16 %v8254
        %v9037 = vunpack.c.l.b16 %v8255
        %v9038 = vunpack.c.h.b16 %v8255
        %v9039 = vunpack.c.l.b16 %v8256
        %v9040 = vunpack.c.h.b16 %v8256
        %v9041 = vunpack.c.l.b16 %v8257
        %v9042 = vunpack.c.h.b16 %v8257
        %v9043 = vunpack.c.l.b16 %v8258
        %v9044 = vunpack.c.h.b16 %v8258
        %v9045 = vunpack.c.l.b16 %v8259
        %v9046 = vunpack.c.h.b16 %v8259
        %v9047 = vunpack.c.l.b16 %v8260
        %v9048 = vunpack.c.h.b16 %v8260
        %v9049 = vunpack.c.l.b16 %v8261
        %v9050 = vunpack.c.h.b16 %v8261
        %v9051 = vunpack.c.l.b16 %v8262
        %v9052 = vunpack.c.h.b16 %v8262
        %v9053 = vpack.c.b16 %v8545, %v8541
        %v9054 = vpack.c.b16 %v8546, %v8542
        %v9055 = vpack.c.b16 %v8547, %v8543
        %v9056 = vpack.c.b16 %v8548, %v8544
        %v9057 = vpack.c.b16 %v8553, %v8549
        %v9058 = vpack.c.b16 %v8554, %v8550
        %v9059 = vpack.c.b16 %v8555, %v8551
        %v9060 = vpack.c.b16 %v8556, %v8552
        %v9061 = vpack.c.b16 %v8561, %v8557
        %v9062 = vpack.c.b16 %v8562, %v8558
        %v9063 = vpack.c.b16 %v8563, %v8559
        %v9064 = vpack.c.b16 %v8564, %v8560
        %v9065 = vpack.c.b16 %v8569, %v8565
        %v9066 = vpack.c.b16 %v8570, %v8566
        %v9067 = vpack.c.b16 %v8571, %v8567
        %v9068 = vpack.c.b16 %v8572, %v8568
        %v9069 = vpack.c.b16 %v8577, %v8573
        %v9070 = vpack.c.b16 %v8578, %v8574
        %v9071 = vpack.c.b16 %v8579, %v8575
        %v9072 = vpack.c.b16 %v8580, %v8576
        %v9073 = vpack.c.b16 %v8585, %v8581
        %v9074 = vpack.c.b16 %v8586, %v8582
        %v9075 = vpack.c.b16 %v8587, %v8583
        %v9076 = vpack.c.b16 %v8588, %v8584
        %v9077 = vpack.c.b16 %v8593, %v8589
        %v9078 = vpack.c.b16 %v8594, %v8590
        %v9079 = vpack.c.b16 %v8595, %v8591
        %v9080 = vpack.c.b16 %v8596, %v8592
        %v9081 = vpack.c.b16 %v8601, %v8597
        %v9082 = vpack.c.b16 %v8602, %v8598
        %v9083 = vpack.c.b16 %v8603, %v8599
        %v9084 = vpack.c.b16 %v8604, %v8600
        %v9085 = vpack.c.b16 %v8609, %v8605
        %v9086 = vpack.c.b16 %v8610, %v8606
        %v9087 = vpack.c.b16 %v8611, %v8607
        %v9088 = vpack.c.b16 %v8612, %v8608
        %v9089 = vpack.c.b16 %v8617, %v8613
        %v9090 = vpack.c.b16 %v8618, %v8614
        %v9091 = vpack.c.b16 %v8619, %v8615
        %v9092 = vpack.c.b16 %v8620, %v8616
        %v9093 = vpack.c.b16 %v8625, %v8621
        %v9094 = vpack.c.b16 %v8626, %v8622
        %v9095 = vpack.c.b16 %v8627, %v8623
        %v9096 = vpack.c.b16 %v8628, %v8624
        %v9097 = vpack.c.b16 %v8633, %v8629
        %v9098 = vpack.c.b16 %v8634, %v8630
        %v9099 = vpack.c.b16 %v8635, %v8631
        %v9100 = vpack.c.b16 %v8636, %v8632
        %v9101 = vpack.c.b16 %v8641, %v8637
        %v9102 = vpack.c.b16 %v8642, %v8638
        %v9103 = vpack.c.b16 %v8643, %v8639
        %v9104 = vpack.c.b16 %v8644, %v8640
        %v9105 = vpack.c.b16 %v8649, %v8645
        %v9106 = vpack.c.b16 %v8650, %v8646
        %v9107 = vpack.c.b16 %v8651, %v8647
        %v9108 = vpack.c.b16 %v8652, %v8648
        %v9109 = vpack.c.b16 %v8657, %v8653
        %v9110 = vpack.c.b16 %v8658, %v8654
        %v9111 = vpack.c.b16 %v8659, %v8655
        %v9112 = vpack.c.b16 %v8660, %v8656
        %v9113 = vpack.c.b16 %v8665, %v8661
        %v9114 = vpack.c.b16 %v8666, %v8662
        %v9115 = vpack.c.b16 %v8667, %v8663
        %v9116 = vpack.c.b16 %v8668, %v8664
        %v9117 = vpack.c.b16 %v8673, %v8669
        %v9118 = vpack.c.b16 %v8674, %v8670
        %v9119 = vpack.c.b16 %v8675, %v8671
        %v9120 = vpack.c.b16 %v8676, %v8672
        %v9121 = vpack.c.b16 %v8681, %v8677
        %v9122 = vpack.c.b16 %v8682, %v8678
        %v9123 = vpack.c.b16 %v8683, %v8679
        %v9124 = vpack.c.b16 %v8684, %v8680
        %v9125 = vpack.c.b16 %v8689, %v8685
        %v9126 = vpack.c.b16 %v8690, %v8686
        %v9127 = vpack.c.b16 %v8691, %v8687
        %v9128 = vpack.c.b16 %v8692, %v8688
        %v9129 = vpack.c.b16 %v8697, %v8693
        %v9130 = vpack.c.b16 %v8698, %v8694
        %v9131 = vpack.c.b16 %v8699, %v8695
        %v9132 = vpack.c.b16 %v8700, %v8696
        %v9133 = vpack.c.b16 %v8705, %v8701
        %v9134 = vpack.c.b16 %v8706, %v8702
        %v9135 = vpack.c.b16 %v8707, %v8703
        %v9136 = vpack.c.b16 %v8708, %v8704
        %v9137 = vpack.c.b16 %v8713, %v8709
        %v9138 = vpack.c.b16 %v8714, %v8710
        %v9139 = vpack.c.b16 %v8715, %v8711
        %v9140 = vpack.c.b16 %v8716, %v8712
        %v9141 = vpack.c.b16 %v8721, %v8717
        %v9142 = vpack.c.b16 %v8722, %v8718
        %v9143 = vpack.c.b16 %v8723, %v8719
        %v9144 = vpack.c.b16 %v8724, %v8720
        %v9145 = vpack.c.b16 %v8729, %v8725
        %v9146 = vpack.c.b16 %v8730, %v8726
        %v9147 = vpack.c.b16 %v8731, %v8727
        %v9148 = vpack.c.b16 %v8732, %v8728
        %v9149 = vpack.c.b16 %v8737, %v8733
        %v9150 = vpack.c.b16 %v8738, %v8734
        %v9151 = vpack.c.b16 %v8739, %v8735
        %v9152 = vpack.c.b16 %v8740, %v8736
        %v9153 = vpack.c.b16 %v8745, %v8741
        %v9154 = vpack.c.b16 %v8746, %v8742
        %v9155 = vpack.c.b16 %v8747, %v8743
        %v9156 = vpack.c.b16 %v8748, %v8744
        %v9157 = vpack.c.b16 %v8753, %v8749
        %v9158 = vpack.c.b16 %v8754, %v8750
        %v9159 = vpack.c.b16 %v8755, %v8751
        %v9160 = vpack.c.b16 %v8756, %v8752
        %v9161 = vpack.c.b16 %v8761, %v8757
        %v9162 = vpack.c.b16 %v8762, %v8758
        %v9163 = vpack.c.b16 %v8763, %v8759
        %v9164 = vpack.c.b16 %v8764, %v8760
        %v9165 = vpack.c.b16 %v8769, %v8765
        %v9166 = vpack.c.b16 %v8770, %v8766
        %v9167 = vpack.c.b16 %v8771, %v8767
        %v9168 = vpack.c.b16 %v8772, %v8768
        %v9169 = vpack.c.b16 %v8777, %v8773
        %v9170 = vpack.c.b16 %v8778, %v8774
        %v9171 = vpack.c.b16 %v8779, %v8775
        %v9172 = vpack.c.b16 %v8780, %v8776
        %v9173 = vpack.c.b16 %v8785, %v8781
        %v9174 = vpack.c.b16 %v8786, %v8782
        %v9175 = vpack.c.b16 %v8787, %v8783
        %v9176 = vpack.c.b16 %v8788, %v8784
        %v9177 = vpack.c.b16 %v8793, %v8789
        %v9178 = vpack.c.b16 %v8794, %v8790
        %v9179 = vpack.c.b16 %v8795, %v8791
        %v9180 = vpack.c.b16 %v8796, %v8792
        %v9181 = vpack.c.b16 %v8801, %v8797
        %v9182 = vpack.c.b16 %v8802, %v8798
        %v9183 = vpack.c.b16 %v8803, %v8799
        %v9184 = vpack.c.b16 %v8804, %v8800
        %v9185 = vpack.c.b16 %v8809, %v8805
        %v9186 = vpack.c.b16 %v8810, %v8806
        %v9187 = vpack.c.b16 %v8811, %v8807
        %v9188 = vpack.c.b16 %v8812, %v8808
        %v9189 = vpack.c.b16 %v8817, %v8813
        %v9190 = vpack.c.b16 %v8818, %v8814
        %v9191 = vpack.c.b16 %v8819, %v8815
        %v9192 = vpack.c.b16 %v8820, %v8816
        %v9193 = vpack.c.b16 %v8825, %v8821
        %v9194 = vpack.c.b16 %v8826, %v8822
        %v9195 = vpack.c.b16 %v8827, %v8823
        %v9196 = vpack.c.b16 %v8828, %v8824
        %v9197 = vpack.c.b16 %v8833, %v8829
        %v9198 = vpack.c.b16 %v8834, %v8830
        %v9199 = vpack.c.b16 %v8835, %v8831
        %v9200 = vpack.c.b16 %v8836, %v8832
        %v9201 = vpack.c.b16 %v8841, %v8837
        %v9202 = vpack.c.b16 %v8842, %v8838
        %v9203 = vpack.c.b16 %v8843, %v8839
        %v9204 = vpack.c.b16 %v8844, %v8840
        %v9205 = vpack.c.b16 %v8849, %v8845
        %v9206 = vpack.c.b16 %v8850, %v8846
        %v9207 = vpack.c.b16 %v8851, %v8847
        %v9208 = vpack.c.b16 %v8852, %v8848
        %v9209 = vpack.c.b16 %v8857, %v8853
        %v9210 = vpack.c.b16 %v8858, %v8854
        %v9211 = vpack.c.b16 %v8859, %v8855
        %v9212 = vpack.c.b16 %v8860, %v8856
        %v9213 = vpack.c.b16 %v8865, %v8861
        %v9214 = vpack.c.b16 %v8866, %v8862
        %v9215 = vpack.c.b16 %v8867, %v8863
        %v9216 = vpack.c.b16 %v8868, %v8864
        %v9217 = vpack.c.b16 %v8873, %v8869
        %v9218 = vpack.c.b16 %v8874, %v8870
        %v9219 = vpack.c.b16 %v8875, %v8871
        %v9220 = vpack.c.b16 %v8876, %v8872
        %v9221 = vpack.c.b16 %v8881, %v8877
        %v9222 = vpack.c.b16 %v8882, %v8878
        %v9223 = vpack.c.b16 %v8883, %v8879
        %v9224 = vpack.c.b16 %v8884, %v8880
        %v9225 = vpack.c.b16 %v8889, %v8885
        %v9226 = vpack.c.b16 %v8890, %v8886
        %v9227 = vpack.c.b16 %v8891, %v8887
        %v9228 = vpack.c.b16 %v8892, %v8888
        %v9229 = vpack.c.b16 %v8897, %v8893
        %v9230 = vpack.c.b16 %v8898, %v8894
        %v9231 = vpack.c.b16 %v8899, %v8895
        %v9232 = vpack.c.b16 %v8900, %v8896
        %v9233 = vpack.c.b16 %v8905, %v8901
        %v9234 = vpack.c.b16 %v8906, %v8902
        %v9235 = vpack.c.b16 %v8907, %v8903
        %v9236 = vpack.c.b16 %v8908, %v8904
        %v9237 = vpack.c.b16 %v8913, %v8909
        %v9238 = vpack.c.b16 %v8914, %v8910
        %v9239 = vpack.c.b16 %v8915, %v8911
        %v9240 = vpack.c.b16 %v8916, %v8912
        %v9241 = vpack.c.b16 %v8921, %v8917
        %v9242 = vpack.c.b16 %v8922, %v8918
        %v9243 = vpack.c.b16 %v8923, %v8919
        %v9244 = vpack.c.b16 %v8924, %v8920
        %v9245 = vpack.c.b16 %v8929, %v8925
        %v9246 = vpack.c.b16 %v8930, %v8926
        %v9247 = vpack.c.b16 %v8931, %v8927
        %v9248 = vpack.c.b16 %v8932, %v8928
        %v9249 = vpack.c.b16 %v8937, %v8933
        %v9250 = vpack.c.b16 %v8938, %v8934
        %v9251 = vpack.c.b16 %v8939, %v8935
        %v9252 = vpack.c.b16 %v8940, %v8936
        %v9253 = vpack.c.b16 %v8945, %v8941
        %v9254 = vpack.c.b16 %v8946, %v8942
        %v9255 = vpack.c.b16 %v8947, %v8943
        %v9256 = vpack.c.b16 %v8948, %v8944
        %v9257 = vpack.c.b16 %v8953, %v8949
        %v9258 = vpack.c.b16 %v8954, %v8950
        %v9259 = vpack.c.b16 %v8955, %v8951
        %v9260 = vpack.c.b16 %v8956, %v8952
        %v9261 = vpack.c.b16 %v8961, %v8957
        %v9262 = vpack.c.b16 %v8962, %v8958
        %v9263 = vpack.c.b16 %v8963, %v8959
        %v9264 = vpack.c.b16 %v8964, %v8960
        %v9265 = vpack.c.b16 %v8969, %v8965
        %v9266 = vpack.c.b16 %v8970, %v8966
        %v9267 = vpack.c.b16 %v8971, %v8967
        %v9268 = vpack.c.b16 %v8972, %v8968
        %v9269 = vpack.c.b16 %v8977, %v8973
        %v9270 = vpack.c.b16 %v8978, %v8974
        %v9271 = vpack.c.b16 %v8979, %v8975
        %v9272 = vpack.c.b16 %v8980, %v8976
        %v9273 = vpack.c.b16 %v8985, %v8981
        %v9274 = vpack.c.b16 %v8986, %v8982
        %v9275 = vpack.c.b16 %v8987, %v8983
        %v9276 = vpack.c.b16 %v8988, %v8984
        %v9277 = vpack.c.b16 %v8993, %v8989
        %v9278 = vpack.c.b16 %v8994, %v8990
        %v9279 = vpack.c.b16 %v8995, %v8991
        %v9280 = vpack.c.b16 %v8996, %v8992
        %v9281 = vpack.c.b16 %v9001, %v8997
        %v9282 = vpack.c.b16 %v9002, %v8998
        %v9283 = vpack.c.b16 %v9003, %v8999
        %v9284 = vpack.c.b16 %v9004, %v9000
        %v9285 = vpack.c.b16 %v9009, %v9005
        %v9286 = vpack.c.b16 %v9010, %v9006
        %v9287 = vpack.c.b16 %v9011, %v9007
        %v9288 = vpack.c.b16 %v9012, %v9008
        %v9289 = vpack.c.b16 %v9017, %v9013
        %v9290 = vpack.c.b16 %v9018, %v9014
        %v9291 = vpack.c.b16 %v9019, %v9015
        %v9292 = vpack.c.b16 %v9020, %v9016
        %v9293 = vpack.c.b16 %v9025, %v9021
        %v9294 = vpack.c.b16 %v9026, %v9022
        %v9295 = vpack.c.b16 %v9027, %v9023
        %v9296 = vpack.c.b16 %v9028, %v9024
        %v9297 = vpack.c.b16 %v9033, %v9029
        %v9298 = vpack.c.b16 %v9034, %v9030
        %v9299 = vpack.c.b16 %v9035, %v9031
        %v9300 = vpack.c.b16 %v9036, %v9032
        %v9301 = vpack.c.b16 %v9041, %v9037
        %v9302 = vpack.c.b16 %v9042, %v9038
        %v9303 = vpack.c.b16 %v9043, %v9039
        %v9304 = vpack.c.b16 %v9044, %v9040
        %v9305 = vpack.c.b16 %v9049, %v9045
        %v9306 = vpack.c.b16 %v9050, %v9046
        %v9307 = vpack.c.b16 %v9051, %v9047
        %v9308 = vpack.c.b16 %v9052, %v9048
        %9565 = vmatprep.subr.bf16.mxu0 %v9054
        %9566 = vmatpush1.bf16.msra.mxu0 %v9053
        %9567 = vmatprep.subr.bf16.mxu0 %v9058
        %9568 = vmatpush1.bf16.msra.mxu0 %v9057
        %9569 = vmatprep.subr.bf16.mxu0 %v9062
        %9570 = vmatpush1.bf16.msra.mxu0 %v9061
        %9571 = vmatprep.subr.bf16.mxu0 %v9066
        %9572 = vmatpush1.bf16.msra.mxu0 %v9065
        %9573 = vmatprep.subr.bf16.mxu0 %v9070
        %9574 = vmatpush1.bf16.msra.mxu0 %v9069
        %9575 = vmatprep.subr.bf16.mxu0 %v9074
        %9576 = vmatpush1.bf16.msra.mxu0 %v9073
        %9577 = vmatprep.subr.bf16.mxu0 %v9078
        %9578 = vmatpush1.bf16.msra.mxu0 %v9077
        %9579 = vmatprep.subr.bf16.mxu0 %v9082
        %9580 = vmatpush1.bf16.msra.mxu0 %v9081
        %9581 = vmatprep.subr.bf16.mxu0 %v9086
        %9582 = vmatpush1.bf16.msra.mxu0 %v9085
        %9583 = vmatprep.subr.bf16.mxu0 %v9090
        %9584 = vmatpush1.bf16.msra.mxu0 %v9089
        %9585 = vmatprep.subr.bf16.mxu0 %v9094
        %9586 = vmatpush1.bf16.msra.mxu0 %v9093
        %9587 = vmatprep.subr.bf16.mxu0 %v9098
        %9588 = vmatpush1.bf16.msra.mxu0 %v9097
        %9589 = vmatprep.subr.bf16.mxu0 %v9102
        %9590 = vmatpush1.bf16.msra.mxu0 %v9101
        %9591 = vmatprep.subr.bf16.mxu0 %v9106
        %9592 = vmatpush1.bf16.msra.mxu0 %v9105
        %9593 = vmatprep.subr.bf16.mxu0 %v9110
        %9594 = vmatpush1.bf16.msra.mxu0 %v9109
        %9595 = vmatprep.subr.bf16.mxu0 %v9114
        %9596 = vmatpush1.bf16.msra.mxu0 %v9113
        %9597 = vmatprep.mubr.bf16.mxu0 %v8000
        %9598 = vmatmul.mubr.bf16.gmra.mrb[0].mxu0 %v7999
        %v9599 = vpop.f32.mrb[0].mxu0
        %v9600 = vadd.f32 %v8268, %v9599
        %v9601 = vpop.f32.mrb[0].mxu0
        %v9602 = vadd.f32 %v8272, %v9601
        %v9603 = vpop.f32.mrb[0].mxu0
        %v9604 = vadd.f32 %v8268, %v9603
        %v9605 = vpop.f32.mrb[0].mxu0
        %v9606 = vadd.f32 %v8272, %v9605
        %9607 = vdwg.mxu0
        %9608 = vmatprep.subr.bf16.mxu0 %v9118
        %9609 = vmatpush1.bf16.msra.mxu0 %v9117
        %9610 = vmatprep.subr.bf16.mxu0 %v9122
        %9611 = vmatpush1.bf16.msra.mxu0 %v9121
        %9612 = vmatprep.subr.bf16.mxu0 %v9126
        %9613 = vmatpush1.bf16.msra.mxu0 %v9125
        %9614 = vmatprep.subr.bf16.mxu0 %v9130
        %9615 = vmatpush1.bf16.msra.mxu0 %v9129
        %9616 = vmatprep.subr.bf16.mxu0 %v9134
        %9617 = vmatpush1.bf16.msra.mxu0 %v9133
        %9618 = vmatprep.subr.bf16.mxu0 %v9138
        %9619 = vmatpush1.bf16.msra.mxu0 %v9137
        %9620 = vmatprep.subr.bf16.mxu0 %v9142
        %9621 = vmatpush1.bf16.msra.mxu0 %v9141
        %9622 = vmatprep.subr.bf16.mxu0 %v9146
        %9623 = vmatpush1.bf16.msra.mxu0 %v9145
        %9624 = vmatprep.subr.bf16.mxu0 %v9150
        %9625 = vmatpush1.bf16.msra.mxu0 %v9149
        %9626 = vmatprep.subr.bf16.mxu0 %v9154
        %9627 = vmatpush1.bf16.msra.mxu0 %v9153
        %9628 = vmatprep.subr.bf16.mxu0 %v9158
        %9629 = vmatpush1.bf16.msra.mxu0 %v9157
        %9630 = vmatprep.subr.bf16.mxu0 %v9162
        %9631 = vmatpush1.bf16.msra.mxu0 %v9161
        %9632 = vmatprep.subr.bf16.mxu0 %v9166
        %9633 = vmatpush1.bf16.msra.mxu0 %v9165
        %9634 = vmatprep.subr.bf16.mxu0 %v9170
        %9635 = vmatpush1.bf16.msra.mxu0 %v9169
        %9636 = vmatprep.subr.bf16.mxu0 %v9174
        %9637 = vmatpush1.bf16.msra.mxu0 %v9173
        %9638 = vmatprep.subr.bf16.mxu0 %v9178
        %9639 = vmatpush1.bf16.msra.mxu0 %v9177
        %9640 = vmatprep.mubr.bf16.mxu0 %v8002
        %9641 = vmatmul.mubr.bf16.gmra.mrb[0].mxu0 %v8001
        %v9642 = vpop.f32.mrb[0].mxu0
        %v9643 = vadd.f32 %v9600, %v9642
        %v9644 = vpop.f32.mrb[0].mxu0
        %v9645 = vadd.f32 %v9602, %v9644
        %v9646 = vpop.f32.mrb[0].mxu0
        %v9647 = vadd.f32 %v9604, %v9646
        %v9648 = vpop.f32.mrb[0].mxu0
        %v9649 = vadd.f32 %v9606, %v9648
        %9650 = vdwg.mxu0
        %9651 = vmatprep.subr.bf16.mxu0 %v9182
        %9652 = vmatpush1.bf16.msra.mxu0 %v9181
        %9653 = vmatprep.subr.bf16.mxu0 %v9186
        %9654 = vmatpush1.bf16.msra.mxu0 %v9185
        %9655 = vmatprep.subr.bf16.mxu0 %v9190
        %9656 = vmatpush1.bf16.msra.mxu0 %v9189
        %9657 = vmatprep.subr.bf16.mxu0 %v9194
        %9658 = vmatpush1.bf16.msra.mxu0 %v9193
        %9659 = vmatprep.subr.bf16.mxu0 %v9198
        %9660 = vmatpush1.bf16.msra.mxu0 %v9197
        %9661 = vmatprep.subr.bf16.mxu0 %v9202
        %9662 = vmatpush1.bf16.msra.mxu0 %v9201
        %9663 = vmatprep.subr.bf16.mxu0 %v9206
        %9664 = vmatpush1.bf16.msra.mxu0 %v9205
        %9665 = vmatprep.subr.bf16.mxu0 %v9210
        %9666 = vmatpush1.bf16.msra.mxu0 %v9209
        %9667 = vmatprep.subr.bf16.mxu0 %v9214
        %9668 = vmatpush1.bf16.msra.mxu0 %v9213
        %9669 = vmatprep.subr.bf16.mxu0 %v9218
        %9670 = vmatpush1.bf16.msra.mxu0 %v9217
        %9671 = vmatprep.subr.bf16.mxu0 %v9222
        %9672 = vmatpush1.bf16.msra.mxu0 %v9221
        %9673 = vmatprep.subr.bf16.mxu0 %v9226
        %9674 = vmatpush1.bf16.msra.mxu0 %v9225
        %9675 = vmatprep.subr.bf16.mxu0 %v9230
        %9676 = vmatpush1.bf16.msra.mxu0 %v9229
        %9677 = vmatprep.subr.bf16.mxu0 %v9234
        %9678 = vmatpush1.bf16.msra.mxu0 %v9233
        %9679 = vmatprep.subr.bf16.mxu0 %v9238
        %9680 = vmatpush1.bf16.msra.mxu0 %v9237
        %9681 = vmatprep.subr.bf16.mxu0 %v9242
        %9682 = vmatpush1.bf16.msra.mxu0 %v9241
        %9683 = vmatprep.mubr.bf16.mxu0 %v8004
        %9684 = vmatmul.mubr.bf16.gmra.mrb[0].mxu0 %v8003
        %v9685 = vpop.f32.mrb[0].mxu0
        %v9686 = vadd.f32 %v9643, %v9685
        %v9687 = vpop.f32.mrb[0].mxu0
        %v9688 = vadd.f32 %v9645, %v9687
        %v9689 = vpop.f32.mrb[0].mxu0
        %v9690 = vadd.f32 %v9647, %v9689
        %v9691 = vpop.f32.mrb[0].mxu0
        %v9692 = vadd.f32 %v9649, %v9691
        %9693 = vdwg.mxu0
        %9694 = vmatprep.subr.bf16.mxu0 %v9246
        %9695 = vmatpush1.bf16.msra.mxu0 %v9245
        %9696 = vmatprep.subr.bf16.mxu0 %v9250
        %9697 = vmatpush1.bf16.msra.mxu0 %v9249
        %9698 = vmatprep.subr.bf16.mxu0 %v9254
        %9699 = vmatpush1.bf16.msra.mxu0 %v9253
        %9700 = vmatprep.subr.bf16.mxu0 %v9258
        %9701 = vmatpush1.bf16.msra.mxu0 %v9257
        %9702 = vmatprep.subr.bf16.mxu0 %v9262
        %9703 = vmatpush1.bf16.msra.mxu0 %v9261
        %9704 = vmatprep.subr.bf16.mxu0 %v9266
        %9705 = vmatpush1.bf16.msra.mxu0 %v9265
        %9706 = vmatprep.subr.bf16.mxu0 %v9270
        %9707 = vmatpush1.bf16.msra.mxu0 %v9269
        %9708 = vmatprep.subr.bf16.mxu0 %v9274
        %9709 = vmatpush1.bf16.msra.mxu0 %v9273
        %9710 = vmatprep.subr.bf16.mxu0 %v9278
        %9711 = vmatpush1.bf16.msra.mxu0 %v9277
        %9712 = vmatprep.subr.bf16.mxu0 %v9282
        %9713 = vmatpush1.bf16.msra.mxu0 %v9281
        %9714 = vmatprep.subr.bf16.mxu0 %v9286
        %9715 = vmatpush1.bf16.msra.mxu0 %v9285
        %9716 = vmatprep.subr.bf16.mxu0 %v9290
        %9717 = vmatpush1.bf16.msra.mxu0 %v9289
        %9718 = vmatprep.subr.bf16.mxu0 %v9294
        %9719 = vmatpush1.bf16.msra.mxu0 %v9293
        %9720 = vmatprep.subr.bf16.mxu0 %v9298
        %9721 = vmatpush1.bf16.msra.mxu0 %v9297
        %9722 = vmatprep.subr.bf16.mxu0 %v9302
        %9723 = vmatpush1.bf16.msra.mxu0 %v9301
        %9724 = vmatprep.subr.bf16.mxu0 %v9306
        %9725 = vmatpush1.bf16.msra.mxu0 %v9305
        %9726 = vmatprep.mubr.bf16.mxu0 %v8006
        %9727 = vmatmul.mubr.bf16.gmra.mrb[0].mxu0 %v8005
        %v9728 = vpop.f32.mrb[0].mxu0
        %v9729 = vadd.f32 %v9686, %v9728
        %v9730 = vpop.f32.mrb[0].mxu0
        %v9731 = vadd.f32 %v9688, %v9730
        %v9732 = vpop.f32.mrb[0].mxu0
        %v9733 = vadd.f32 %v9690, %v9732
        %v9734 = vpop.f32.mrb[0].mxu0
        %v9735 = vadd.f32 %v9692, %v9734
        %9736 = vdwg.mxu0
        %9737 = vmatprep.subr.bf16.mxu0 %v9056
        %9738 = vmatpush1.bf16.msra.mxu0 %v9055
        %9739 = vmatprep.subr.bf16.mxu0 %v9060
        %9740 = vmatpush1.bf16.msra.mxu0 %v9059
        %9741 = vmatprep.subr.bf16.mxu0 %v9064
        %9742 = vmatpush1.bf16.msra.mxu0 %v9063
        %9743 = vmatprep.subr.bf16.mxu0 %v9068
        %9744 = vmatpush1.bf16.msra.mxu0 %v9067
        %9745 = vmatprep.subr.bf16.mxu0 %v9072
        %9746 = vmatpush1.bf16.msra.mxu0 %v9071
        %9747 = vmatprep.subr.bf16.mxu0 %v9076
        %9748 = vmatpush1.bf16.msra.mxu0 %v9075
        %9749 = vmatprep.subr.bf16.mxu0 %v9080
        %9750 = vmatpush1.bf16.msra.mxu0 %v9079
        %9751 = vmatprep.subr.bf16.mxu0 %v9084
        %9752 = vmatpush1.bf16.msra.mxu0 %v9083
        %9753 = vmatprep.subr.bf16.mxu0 %v9088
        %9754 = vmatpush1.bf16.msra.mxu0 %v9087
        %9755 = vmatprep.subr.bf16.mxu0 %v9092
        %9756 = vmatpush1.bf16.msra.mxu0 %v9091
        %9757 = vmatprep.subr.bf16.mxu0 %v9096
        %9758 = vmatpush1.bf16.msra.mxu0 %v9095
        %9759 = vmatprep.subr.bf16.mxu0 %v9100
        %9760 = vmatpush1.bf16.msra.mxu0 %v9099
        %9761 = vmatprep.subr.bf16.mxu0 %v9104
        %9762 = vmatpush1.bf16.msra.mxu0 %v9103
        %9763 = vmatprep.subr.bf16.mxu0 %v9108
        %9764 = vmatpush1.bf16.msra.mxu0 %v9107
        %9765 = vmatprep.subr.bf16.mxu0 %v9112
        %9766 = vmatpush1.bf16.msra.mxu0 %v9111
        %9767 = vmatprep.subr.bf16.mxu0 %v9116
        %9768 = vmatpush1.bf16.msra.mxu0 %v9115
        %9769 = vmatprep.mubr.bf16.mxu0 %v8000
        %9770 = vmatmul.mubr.bf16.gmra.mrb[0].mxu0 %v7999
        %v9771 = vpop.f32.mrb[0].mxu0
        %v9772 = vadd.f32 %v8276, %v9771
        %v9773 = vpop.f32.mrb[0].mxu0
        %v9774 = vadd.f32 %v8280, %v9773
        %v9775 = vpop.f32.mrb[0].mxu0
        %v9776 = vadd.f32 %v8276, %v9775
        %v9777 = vpop.f32.mrb[0].mxu0
        %v9778 = vadd.f32 %v8280, %v9777
        %9779 = vdwg.mxu0
        %9780 = vmatprep.subr.bf16.mxu0 %v9120
        %9781 = vmatpush1.bf16.msra.mxu0 %v9119
        %9782 = vmatprep.subr.bf16.mxu0 %v9124
        %9783 = vmatpush1.bf16.msra.mxu0 %v9123
        %9784 = vmatprep.subr.bf16.mxu0 %v9128
        %9785 = vmatpush1.bf16.msra.mxu0 %v9127
        %9786 = vmatprep.subr.bf16.mxu0 %v9132
        %9787 = vmatpush1.bf16.msra.mxu0 %v9131
        %9788 = vmatprep.subr.bf16.mxu0 %v9136
        %9789 = vmatpush1.bf16.msra.mxu0 %v9135
        %9790 = vmatprep.subr.bf16.mxu0 %v9140
        %9791 = vmatpush1.bf16.msra.mxu0 %v9139
        %9792 = vmatprep.subr.bf16.mxu0 %v9144
        %9793 = vmatpush1.bf16.msra.mxu0 %v9143
        %9794 = vmatprep.subr.bf16.mxu0 %v9148
        %9795 = vmatpush1.bf16.msra.mxu0 %v9147
        %9796 = vmatprep.subr.bf16.mxu0 %v9152
        %9797 = vmatpush1.bf16.msra.mxu0 %v9151
        %9798 = vmatprep.subr.bf16.mxu0 %v9156
        %9799 = vmatpush1.bf16.msra.mxu0 %v9155
        %9800 = vmatprep.subr.bf16.mxu0 %v9160
        %9801 = vmatpush1.bf16.msra.mxu0 %v9159
        %9802 = vmatprep.subr.bf16.mxu0 %v9164
        %9803 = vmatpush1.bf16.msra.mxu0 %v9163
        %9804 = vmatprep.subr.bf16.mxu0 %v9168
        %9805 = vmatpush1.bf16.msra.mxu0 %v9167
        %9806 = vmatprep.subr.bf16.mxu0 %v9172
        %9807 = vmatpush1.bf16.msra.mxu0 %v9171
        %9808 = vmatprep.subr.bf16.mxu0 %v9176
        %9809 = vmatpush1.bf16.msra.mxu0 %v9175
        %9810 = vmatprep.subr.bf16.mxu0 %v9180
        %9811 = vmatpush1.bf16.msra.mxu0 %v9179
        %9812 = vmatprep.mubr.bf16.mxu0 %v8002
        %9813 = vmatmul.mubr.bf16.gmra.mrb[0].mxu0 %v8001
        %v9814 = vpop.f32.mrb[0].mxu0
        %v9815 = vadd.f32 %v9772, %v9814
        %v9816 = vpop.f32.mrb[0].mxu0
        %v9817 = vadd.f32 %v9774, %v9816
        %v9818 = vpop.f32.mrb[0].mxu0
        %v9819 = vadd.f32 %v9776, %v9818
        %v9820 = vpop.f32.mrb[0].mxu0
        %v9821 = vadd.f32 %v9778, %v9820
        %9822 = vdwg.mxu0
        %9823 = vmatprep.subr.bf16.mxu0 %v9184
        %9824 = vmatpush1.bf16.msra.mxu0 %v9183
        %9825 = vmatprep.subr.bf16.mxu0 %v9188
        %9826 = vmatpush1.bf16.msra.mxu0 %v9187
        %9827 = vmatprep.subr.bf16.mxu0 %v9192
        %9828 = vmatpush1.bf16.msra.mxu0 %v9191
        %9829 = vmatprep.subr.bf16.mxu0 %v9196
        %9830 = vmatpush1.bf16.msra.mxu0 %v9195
        %9831 = vmatprep.subr.bf16.mxu0 %v9200
        %9832 = vmatpush1.bf16.msra.mxu0 %v9199
        %9833 = vmatprep.subr.bf16.mxu0 %v9204
        %9834 = vmatpush1.bf16.msra.mxu0 %v9203
        %9835 = vmatprep.subr.bf16.mxu0 %v9208
        %9836 = vmatpush1.bf16.msra.mxu0 %v9207
        %9837 = vmatprep.subr.bf16.mxu0 %v9212
        %9838 = vmatpush1.bf16.msra.mxu0 %v9211
        %9839 = vmatprep.subr.bf16.mxu0 %v9216
        %9840 = vmatpush1.bf16.msra.mxu0 %v9215
        %9841 = vmatprep.subr.bf16.mxu0 %v9220
        %9842 = vmatpush1.bf16.msra.mxu0 %v9219
        %9843 = vmatprep.subr.bf16.mxu0 %v9224
        %9844 = vmatpush1.bf16.msra.mxu0 %v9223
        %9845 = vmatprep.subr.bf16.mxu0 %v9228
        %9846 = vmatpush1.bf16.msra.mxu0 %v9227
        %9847 = vmatprep.subr.bf16.mxu0 %v9232
        %9848 = vmatpush1.bf16.msra.mxu0 %v9231
        %9849 = vmatprep.subr.bf16.mxu0 %v9236
        %9850 = vmatpush1.bf16.msra.mxu0 %v9235
        %9851 = vmatprep.subr.bf16.mxu0 %v9240
        %9852 = vmatpush1.bf16.msra.mxu0 %v9239
        %9853 = vmatprep.subr.bf16.mxu0 %v9244
        %9854 = vmatpush1.bf16.msra.mxu0 %v9243
        %9855 = vmatprep.mubr.bf16.mxu0 %v8004
        %9856 = vmatmul.mubr.bf16.gmra.mrb[0].mxu0 %v8003
        %v9857 = vpop.f32.mrb[0].mxu0
        %v9858 = vadd.f32 %v9815, %v9857
        %v9859 = vpop.f32.mrb[0].mxu0
        %v9860 = vadd.f32 %v9817, %v9859
        %v9861 = vpop.f32.mrb[0].mxu0
        %v9862 = vadd.f32 %v9819, %v9861
        %v9863 = vpop.f32.mrb[0].mxu0
        %v9864 = vadd.f32 %v9821, %v9863
        %9865 = vdwg.mxu0
        %9866 = vmatprep.subr.bf16.mxu0 %v9248
        %9867 = vmatpush1.bf16.msra.mxu0 %v9247
        %9868 = vmatprep.subr.bf16.mxu0 %v9252
        %9869 = vmatpush1.bf16.msra.mxu0 %v9251
        %9870 = vmatprep.subr.bf16.mxu0 %v9256
        %9871 = vmatpush1.bf16.msra.mxu0 %v9255
        %9872 = vmatprep.subr.bf16.mxu0 %v9260
        %9873 = vmatpush1.bf16.msra.mxu0 %v9259
        %9874 = vmatprep.subr.bf16.mxu0 %v9264
        %9875 = vmatpush1.bf16.msra.mxu0 %v9263
        %9876 = vmatprep.subr.bf16.mxu0 %v9268
        %9877 = vmatpush1.bf16.msra.mxu0 %v9267
        %9878 = vmatprep.subr.bf16.mxu0 %v9272
        %9879 = vmatpush1.bf16.msra.mxu0 %v9271
        %9880 = vmatprep.subr.bf16.mxu0 %v9276
        %9881 = vmatpush1.bf16.msra.mxu0 %v9275
        %9882 = vmatprep.subr.bf16.mxu0 %v9280
        %9883 = vmatpush1.bf16.msra.mxu0 %v9279
        %9884 = vmatprep.subr.bf16.mxu0 %v9284
        %9885 = vmatpush1.bf16.msra.mxu0 %v9283
        %9886 = vmatprep.subr.bf16.mxu0 %v9288
        %9887 = vmatpush1.bf16.msra.mxu0 %v9287
        %9888 = vmatprep.subr.bf16.mxu0 %v9292
        %9889 = vmatpush1.bf16.msra.mxu0 %v9291
        %9890 = vmatprep.subr.bf16.mxu0 %v9296
        %9891 = vmatpush1.bf16.msra.mxu0 %v9295
        %9892 = vmatprep.subr.bf16.mxu0 %v9300
        %9893 = vmatpush1.bf16.msra.mxu0 %v9299
        %9894 = vmatprep.subr.bf16.mxu0 %v9304
        %9895 = vmatpush1.bf16.msra.mxu0 %v9303
        %9896 = vmatprep.subr.bf16.mxu0 %v9308
        %9897 = vmatpush1.bf16.msra.mxu0 %v9307
        %9898 = vmatprep.mubr.bf16.mxu0 %v8006
        %9899 = vmatmul.mubr.bf16.gmra.mrb[0].mxu0 %v8005
        %v9900 = vpop.f32.mrb[0].mxu0
        %v9901 = vadd.f32 %v9858, %v9900
        %v9902 = vpop.f32.mrb[0].mxu0
        %v9903 = vadd.f32 %v9860, %v9902
        %v9904 = vpop.f32.mrb[0].mxu0
        %v9905 = vadd.f32 %v9862, %v9904
        %v9906 = vpop.f32.mrb[0].mxu0
        %v9907 = vadd.f32 %v9864, %v9906
        %9908 = vdwg.mxu0
        %vm9909 = vcmp.ge.f32.partialorder %v9729, 0.0
        %vm9910 = vcmp.ge.f32.partialorder %v9731, 0.0
        %vm9911 = vcmp.ge.f32.partialorder %v9901, 0.0
        %vm9912 = vcmp.ge.f32.partialorder %v9903, 0.0
        %vm9913 = vcmp.ge.f32.partialorder %v9733, 0.0
        %vm9914 = vcmp.ge.f32.partialorder %v9735, 0.0
        %vm9915 = vcmp.ge.f32.partialorder %v9905, 0.0
        %vm9916 = vcmp.ge.f32.partialorder %v9907, 0.0
        %v9917 = vmul.f32 %v9729, 0.01
        %v9918 = vmul.f32 %v9731, 0.01
        %v9919 = vmul.f32 %v9901, 0.01
        %v9920 = vmul.f32 %v9903, 0.01
        %v9921 = vmul.f32 %v9733, 0.01
        %v9922 = vmul.f32 %v9735, 0.01
        %v9923 = vmul.f32 %v9905, 0.01
        %v9924 = vmul.f32 %v9907, 0.01
        %v9925 = vsel %vm9909, %v9729, %v9917
        %v9926 = vsel %vm9910, %v9731, %v9918
        %v9927 = vsel %vm9911, %v9901, %v9919
        %v9928 = vsel %vm9912, %v9903, %v9920
        %v9929 = vsel %vm9913, %v9733, %v9921
        %v9930 = vsel %vm9914, %v9735, %v9922
        %v9931 = vsel %vm9915, %v9905, %v9923
        %v9932 = vsel %vm9916, %v9907, %v9924
        %v9933 = vld [vmem:[%s16] sm:$0xf]
        %v9935 = vlaneseq
        %v9936 = vshrl.u32 %v9935, 7
        %v9937 = vsub.s32 0, %v9936
        %v9938 = vrot.slane %v9933, %v9937
        %v9939 = vlaneseq
        %v9940 = vshrl.u32 %v9939, 7
        %v9941 = vsub.s32 1, %v9940
        %v9942 = vrot.slane %v9933, %v9941
        %v9943 = vlaneseq
        %v9944 = vshrl.u32 %v9943, 7
        %v9945 = vsub.s32 2, %v9944
        %v9946 = vrot.slane %v9933, %v9945
        %v9947 = vlaneseq
        %v9948 = vshrl.u32 %v9947, 7
        %v9949 = vsub.s32 3, %v9948
        %v9950 = vrot.slane %v9933, %v9949
        %v9955 = vmul.f32 %v9925, %v9938
        %v9956 = vmul.f32 %v9926, %v9942
        %v9957 = vmul.f32 %v9927, %v9946
        %v9958 = vmul.f32 %v9928, %v9950
        %v9959 = vmul.f32 %v9929, %v9938
        %v9960 = vmul.f32 %v9930, %v9942
        %v9961 = vmul.f32 %v9931, %v9946
        %v9962 = vmul.f32 %v9932, %v9950
        %v9963 = vadd.f32 %v9955, %v9956
        %v9964 = vadd.f32 %v9963, %v9957
        %v9965 = vadd.f32 %v9964, %v9958
        %9966 = vadd.xlane.f32.xlu0 %v9965
        %v9967 = vpop.xlane.xlu0 %9966
        %v9968 = vadd.f32 %v9959, %v9960
        %v9969 = vadd.f32 %v9968, %v9961
        %v9970 = vadd.f32 %v9969, %v9962
        %9971 = vadd.xlane.f32.xlu0 %v9970
        %v9972 = vpop.xlane.xlu0 %9971
        %v9973 = vld [vmem:[#allocation3] sm:$0x1]
        %9975 = vset.pattern.permute.xlu0 0
        %9976 = vperm.xlu0 %9975, %v9973
        %v9977 = vpop.permute.xlu0 %9976
        %v9979 = vlaneseq
        %v9980 = vshrl.u32 %v9979, 7
        %v9981 = vsub.s32 0, %v9980
        %v9982 = vrot.slane %v9977, %v9981
        %v9983 = vadd.f32 %v9967, %v9982
        %v9984 = vadd.f32 %v9972, %v9982
        %v9987 = vlaneseq
        %v9988 = vshrl.u32 %v9987, 7
        %v9989 = vsub.s32 %v5978, %v9988
        %v9990 = vrot.slane %v9983, %v9989
        %v9991 = vlaneseq
        %v9992 = vshrl.u32 %v9991, 7
        %v9993 = vsub.s32 %v5983, %v9992
        %v9994 = vrot.slane %v9984, %v9993
        %v9995 = vsel %vm5988, %v9994, %v9990
        %9997 = vst.msk [vmem:[%s841] sm:$0x1] %vm5991, %v9995
        %s9998 = sand.u32 %s459, 1
        %s9999 = scalar_lea.sflag [#allocation6], %s9998
        %s10000 = sand.u32 %s459, 1
        %s10001 = scalar_lea.vmem [#allocation21], %s10000
        %s10002 = sand.u32 %s485, 1
        %s10003 = scalar_lea.sflag [#allocation23], %s10002
        %s10004 = sand.u32 %s485, 1
        %s10005 = scalar_lea.vmem [#allocation22], %s10004
        // Predicated region
        $region133: #{tpu_custom_call.1} parent=91 // pred_check
          %p10006 = pneg %p469
        $region134: #{tpu_custom_call.1} parent=91 // pred_check_branch
          %10008 = sbr.rel (%p10006) target = $region136
        $region135: #{tpu_custom_call.1} parent=91 // pred_region
          %s10010 = ssub.s32 16, 16
          %10011 = vsyncadd %s9999, %s10010
          %s10012 = smul.addr %s53, 16
          %s10013 = scalar_lea.hbm %s18, %s10012
          %s10015 = sshll.u32 %s10001, 4
          %s10016 = int_to_ptr.vmem [resolvable:$true] %s10015
          %10018 = dma.vmem_to_hbm [thread:$0]  %s10016, 16, %s10013, %s9999
        $region136: #{tpu_custom_call.1} parent=91 // pred_fallthru
          _
        // Predicated region
        $region137: #{tpu_custom_call.1} parent=91 // pred_check
          %p10019 = pneg %p495
        $region138: #{tpu_custom_call.1} parent=91 // pred_check_branch
          %10021 = sbr.rel (%p10019) target = $region140
        $region139: #{tpu_custom_call.1} parent=91 // pred_region
          %s10023 = ssub.s32 16, 16
          %10024 = vsyncadd %s10003, %s10023
          %s10025 = smul.addr %s53, 16
          %s10026 = scalar_lea.hbm %s19, %s10025
          %s10028 = sshll.u32 %s10005, 4
          %s10029 = int_to_ptr.vmem [resolvable:$true] %s10028
          %10031 = dma.vmem_to_hbm [thread:$0]  %s10029, 16, %s10026, %s10003
        $region140: #{tpu_custom_call.1} parent=91 // pred_fallthru
          _
      $region92: #{tpu_custom_call.1} parent=5 // pred_fallthru
        _
      %p10032 = scmp.le.s32.totalorder 2, %s48
      // Predicated region
      $region141: #{tpu_custom_call.1} parent=5 // pred_check
        %p10033 = pneg %p10032
      $region142: #{tpu_custom_call.1} parent=5 // pred_check_branch
        %10035 = sbr.rel (%p10033) target = $region144
      $region143: #{tpu_custom_call.1} parent=5 // pred_region
        %s10036 = ssub.s32 %s48, 2
        // Predicated region
        $region145: #{tpu_custom_call.1} parent=143 // pred_check
          %p10037 = pneg %p475
        $region146: #{tpu_custom_call.1} parent=143 // pred_check_branch
          %10039 = sbr.rel (%p10037) target = $region148
        $region147: #{tpu_custom_call.1} parent=143 // pred_region
          %s10040 = sand.u32 %s460, 1
          %s10041 = scalar_lea.sflag [#allocation6], %s10040
          %s10042 = sand.u32 %s460, 1
          %s10043 = scalar_lea.vmem [#allocation21], %s10042
          %10044 = dma.done %s10041, 16
        $region148: #{tpu_custom_call.1} parent=143 // pred_fallthru
          _
        // Predicated region
        $region149: #{tpu_custom_call.1} parent=143 // pred_check
          %p10045 = pneg %p501
        $region150: #{tpu_custom_call.1} parent=143 // pred_check_branch
          %10047 = sbr.rel (%p10045) target = $region152
        $region151: #{tpu_custom_call.1} parent=143 // pred_region
          %s10048 = sand.u32 %s486, 1
          %s10049 = scalar_lea.sflag [#allocation23], %s10048
          %s10050 = sand.u32 %s486, 1
          %s10051 = scalar_lea.vmem [#allocation22], %s10050
          %10052 = dma.done %s10049, 16
        $region152: #{tpu_custom_call.1} parent=143 // pred_fallthru
          _
      $region144: #{tpu_custom_call.1} parent=5 // pred_fallthru
        _
    $region6: #{tpu_custom_call.1} parent=1 // loop_footer
      %s52 = sadd.s32 1, %s48
    $region7: #{tpu_custom_call.1} parent=1 // loop_footer_branch
      %47 = sbr.rel target = $region3
    $region8: #{tpu_custom_call.1} parent=1 // loop_exit
      _
    %10053 = vsyncpa [#allocation5], 1
    %s10054 = scalar_lea.sflag [#allocation5], 1
    %10055 = vsyncpa %s10054, 1
    %10056 = vsyncpa [#allocation8], 1
    %s10057 = scalar_lea.sflag [#allocation8], 1
    %10058 = vsyncpa %s10057, 1
    %10059 = vsyncpa [#allocation11], 1
    %s10060 = scalar_lea.sflag [#allocation11], 1
    %10061 = vsyncpa %s10060, 1
    %10062 = vsyncpa [#allocation14], 1
    %10063 = vsyncpa [#allocation17], 1
    %10064 = vsyncpa [#allocation20], 1
    %10065 = vsyncpa [#allocation6], 1
    %s10066 = scalar_lea.sflag [#allocation6], 1
    %10067 = vsyncpa %s10066, 1
    %10068 = vsyncpa [#allocation23], 1
    %s10069 = scalar_lea.sflag [#allocation23], 1
    %10070 = vsyncpa %s10069, 1

</llo_original>
